<compile_context>
chip_gen: v6e
topology: v6e:2x2x1
jax: 0.10.0
libtpu: 0.0.40
codegen_flags: <defaults>
</compile_context>

<pallas_src>
import numpy as np
import jax
import jax.numpy as jnp
from jax.experimental import pallas as pl
from jax.experimental.pallas import tpu as pltpu

N_EVENTS = 16  # module-level `n_events` in the experiment file

VMEM = pl.BlockSpec(memory_space=pltpu.MemorySpace.VMEM)


# --------------------------------------------------------------------------- #
# Kernel A: fused conv stack
#   env            = (x @ Wenv + b)**2                         -> (BE, n_frames)
#   to_frames      = Linear -> [ConvT+BN+LReLU]* -> Conv(k=3)
#   noise upsample = [ConvT+BN+LReLU]* -> Conv(k=3) -> sigmoid^2 * frame-mask
# Activations use a 2-D (BE, L*C) position-major / channel-minor lane layout so
# each conv layer is ONE dense matmul and every store is lane-dense.
# --------------------------------------------------------------------------- #
def _conv_stack_kernel_factory(n_tf_layers, n_nz_layers, C, CC, mask_after):
    def kernel(*refs):
        it = iter(refs)
        x_ref = next(it)
        wenv_ref, benv_ref = next(it), next(it)
        wbeg_ref, bbeg_ref = next(it), next(it)
        tf_layers = [(next(it), next(it), next(it)) for _ in range(n_tf_layers)]
        ktf_ref, kbtf_ref = next(it), next(it)
        nz_layers = [(next(it), next(it), next(it)) for _ in range(n_nz_layers)]
        kn_ref, kbn_ref = next(it), next(it)
        gmat_ref, gt_ref = next(it), next(it)
        env_ref, filt_ref = next(it), next(it)

        x = x_ref[...]

        # envelope branch: Linear -> square (interpolation happens in kernel B2)
        e = jnp.dot(x, wenv_ref[...], preferred_element_type=jnp.float32) + benv_ref[...]
        env_ref[...] = e * e

        # ConvTranspose1d(C,C,4,stride=2,pad=1) + BatchNorm1d(batch stats) + LeakyReLU(0.2)
        def convt_bn_lrelu(h, t_ref, gamma_ref, beta_ref):
            y = jnp.dot(h, t_ref[...], preferred_element_type=jnp.float32)  # (BE, L*C)
            lc = y.shape[1]
            g = gmat_ref[:lc, :]          # (L*C, C) per-channel grouping
            gt = gt_ref[:, :lc]           # (C, L*C) per-channel broadcast
            cnt = float(y.shape[0] * (lc // C))
            s = jnp.sum(jnp.dot(y, g, preferred_element_type=jnp.float32),
                        axis=0, keepdims=True)
            ss = jnp.sum(jnp.dot(y * y, g, preferred_element_type=jnp.float32),
                         axis=0, keepdims=True)
            mean = s / cnt
            var = ss / cnt - mean * mean          # biased variance (one-pass, f32)
            inv = jax.lax.rsqrt(var + 1e-5)
            scale = inv * gamma_ref[...]          # (1, C)
            shift = beta_ref[...] - mean * scale  # (1, C)
            y = (y * jnp.dot(scale, gt, preferred_element_type=jnp.float32)
                 + jnp.dot(shift, gt, preferred_element_type=jnp.float32))
            return jnp.where(y > 0, y, 0.2 * y)

        # to_frames (from_latent=True): begin Linear (torch .view folded into W)
        h = jnp.dot(x, wbeg_ref[...], preferred_element_type=jnp.float32) + bbeg_ref[...]
        for t_ref, g_ref, b_ref in tf_layers:
            h = convt_bn_lrelu(h, t_ref, g_ref, b_ref)
        h = jnp.dot(h, ktf_ref[...], preferred_element_type=jnp.float32) + kbtf_ref[...]

        # noise upsample (from_latent=False) -> filter logits (BE, F*CC)
        for t_ref, g_ref, b_ref in nz_layers:
            h = convt_bn_lrelu(h, t_ref, g_ref, b_ref)
        logits = jnp.dot(h, kn_ref[...], preferred_element_type=jnp.float32) + kbn_ref[...]

        f = jax.nn.sigmoid(logits)
        f = f * f
        # zero every noise frame with index >= mask_after (lane = frame*CC + bin)
        lane = jax.lax.broadcasted_iota(jnp.int32, f.shape, 1)
        filt_ref[...] = jnp.where(lane < mask_after * CC, f, 0.0)

    return kernel


# --------------------------------------------------------------------------- #
# Kernel B1: rDFT -> filter -> Hann-windowed irDFT, all as lane-dense matmuls.
# --------------------------------------------------------------------------- #
def _spectral_kernel(frames_ref, filt_ref, dft_ref, idft_ref, time_ref):
    spec = jnp.dot(frames_ref[...], dft_ref[...], preferred_element_type=jnp.float32)
    spec = spec * filt_ref[...]
    time_ref[...] = jnp.dot(spec, idft_ref[...], preferred_element_type=jnp.float32)


# --------------------------------------------------------------------------- #
# Kernel B2: 50%-overlap-add (odd frames shifted by one hop, in-kernel) +
# env linear interpolation (matmul) + env multiply.
# --------------------------------------------------------------------------- #
def _mix_kernel_factory(hop):
    def kernel(ev_ref, od_ref, envf_ref, m_ref, o_ref):
        od = od_ref[...]
        rows, n = od.shape
        od = jnp.concatenate(
            [jnp.zeros((rows, hop), jnp.float32), od[:, : n - hop]], axis=1)
        env = jnp.dot(envf_ref[...], m_ref[...], preferred_element_type=jnp.float32)
        o_ref[...] = (ev_ref[...] + od) * env
    return kernel


# ------------------------------- init helpers ------------------------------ #
def _linear_interp_matrix(in_size, out_size):
    # F.interpolate(mode='linear', align_corners=False) as a matrix.
    scale = in_size / out_size
    src = (np.arange(out_size) + 0.5) * scale - 0.5
    src = np.clip(src, 0.0, in_size - 1)
    i0 = np.floor(src).astype(np.int64)
    i1 = np.minimum(i0 + 1, in_size - 1)
    w1 = (src - i0).astype(np.float32)
    w0 = (1.0 - w1).astype(np.float32)
    m = np.zeros((in_size, out_size), np.float32)
    cols = np.arange(out_size)
    np.add.at(m, (i0, cols), w0)
    np.add.at(m, (i1, cols), w1)
    return m


def _convt_dense(w, l_in):
    # ConvTranspose1d(Cin,Cout,4,stride=2,pad=1) as a dense (Lin*Cin, 2Lin*Cout)
    # matrix on position-major / channel-minor feature vectors (shifts and the
    # even/odd output interleave are folded in).
    cin, cout, K = w.shape
    T = np.zeros((l_in * cin, 2 * l_in * cout), np.float32)
    for l in range(l_in):
        for k in range(K):
            m = 2 * l - 1 + k
            if 0 <= m < 2 * l_in:
                T[l * cin:(l + 1) * cin, m * cout:(m + 1) * cout] += w[:, :, k]
    return T


def _conv3_dense(w, length):
    # Conv1d(Cin,Cout,3,pad=1) as a dense (L*Cin, L*Cout) matrix.
    cout, cin, K = w.shape
    A = np.zeros((length * cin, length * cout), np.float32)
    for m in range(length):
        for k in range(K):
            l = m - 1 + k
            if 0 <= l < length:
                A[l * cin:(l + 1) * cin, m * cout:(m + 1) * cout] += w[:, :, k].T
    return A


def _dft_matrices(window, n_bins, n_pad):
    # Real DFT / inverse real DFT as matmuls, bins zero-padded to n_pad lanes;
    # Hann synthesis window and 1/W normalization folded into the inverse.
    n = np.arange(window)
    k = np.arange(n_pad)
    valid = (k < n_bins).astype(np.float64)
    ang_f = 2.0 * np.pi * np.outer(n, k) / window
    dft = np.concatenate([np.cos(ang_f) * valid[None, :],
                          -np.sin(ang_f) * valid[None, :]], axis=1)
    wk = np.where((k == 0) | (k == window // 2), 1.0, 2.0) * valid / window
    ang_i = 2.0 * np.pi * np.outer(k, n) / window
    win = np.hanning(window)  # TODO(synk): window choice is an assumption (see header)
    idft = np.concatenate([wk[:, None] * np.cos(ang_i) * win[None, :],
                           -wk[:, None] * np.sin(ang_i) * win[None, :]], axis=0)
    return dft.astype(np.float32), idft.astype(np.float32)


# ------------------------------ model builder ------------------------------ #
def build_generate_impulse(key, latent_dim, channels, n_samples):
    C = channels
    start = 4
    n_frames = n_samples // 256
    F = n_frames * 4                   # noise frames
    hop = n_samples // F
    window = 2 * hop                   # = 128 for any n_samples (n_frames = n_samples/256)
    CC = window // 2 + 1               # 65 rFFT bins
    NPAD = 128                         # bins padded to a full 128-lane vreg
    n_tf_layers = int(round(np.log2(n_frames) - np.log2(start)))
    n_nz_layers = int(round(np.log2(F) - np.log2(n_frames)))
    mask_after = 1

    keys = list(jax.random.split(key, 4 + n_tf_layers + n_nz_layers + 2))

    def normal(k, shape, scale):
        return np.asarray(scale * jax.random.normal(k, shape, jnp.float32))

    # env Linear
    wenv = normal(keys[0], (latent_dim, n_frames), 0.05)
    benv = np.zeros((1, n_frames), np.float32)
    # to_frames begin Linear; PyTorch view(N, C, start) folded into the weight so
    # the kernel-side layout is position-major / channel-minor.
    wbeg = normal(keys[1], (latent_dim, C * start), 0.05)
    wbeg = wbeg.reshape(latent_dim, C, start).transpose(0, 2, 1).reshape(latent_dim, start * C)
    bbeg = np.zeros((1, start * C), np.float32)

    kcur = 2
    stack_inputs = [jnp.asarray(wenv), jnp.asarray(benv),
                    jnp.asarray(wbeg), jnp.asarray(bbeg)]

    L = start
    for _ in range(n_tf_layers):
        w = normal(keys[kcur], (C, C, 4), 0.1); kcur += 1
        stack_inputs += [jnp.asarray(_convt_dense(w, L)),
                         jnp.ones((1, C), jnp.float32),    # BN gamma
                         jnp.zeros((1, C), jnp.float32)]   # BN beta
        L *= 2
    w = normal(keys[kcur], (C, C, 3), 0.1); kcur += 1       # to_frames final Conv1d(k=3)
    stack_inputs += [jnp.asarray(_conv3_dense(w, L)),
                     jnp.zeros((1, L * C), jnp.float32)]
    for _ in range(n_nz_layers):
        w = normal(keys[kcur], (C, C, 4), 0.1); kcur += 1
        stack_inputs += [jnp.asarray(_convt_dense(w, L)),
                         jnp.ones((1, C), jnp.float32),
                         jnp.zeros((1, C), jnp.float32)]
        L *= 2
    w = normal(keys[kcur], (CC, C, 3), 0.1); kcur += 1      # noise final Conv1d(k=3): C -> 65
    stack_inputs += [jnp.asarray(_conv3_dense(w, L)),
                     jnp.zeros((1, L * CC), jnp.float32)]
    assert L == F
    gmat = np.tile(np.eye(C, dtype=np.float32), (F, 1))     # (F*C, C)
    stack_inputs += [jnp.asarray(gmat), jnp.asarray(np.ascontiguousarray(gmat.T))]

    stack_kernel = _conv_stack_kernel_factory(n_tf_layers, n_nz_layers, C, CC, mask_after)
    mix_kernel = _mix_kernel_factory(hop)

    dft, idft = _dft_matrices(window, CC, NPAD)
    arrays = {
        'stack': stack_inputs,
        'dft': jnp.asarray(dft),       # (W, 2*NPAD)   [re | im]
        'idft': jnp.asarray(idft),     # (2*NPAD, W)   windowed inverse
        'interp': jnp.asarray(_linear_interp_matrix(n_frames, n_samples)),
    }

    def apply_fn(arrays, x, noise_key):
        B, E, D = x.shape
        BE = B * E
        be_block = 8 if BE % 8 == 0 else BE
        row_block = be_block * F
        xf = x.reshape(BE, D)

        # ---- kernel A: fused conv stack (single block: BN needs the full batch)
        a_in = [xf] + list(arrays['stack'])
        env_f, filt = pl.pallas_call(
            stack_kernel,
            out_shape=(jax.ShapeDtypeStruct((BE, n_frames), jnp.float32),
                       jax.ShapeDtypeStruct((BE, F * CC), jnp.float32)),
            in_specs=[VMEM] * len(a_in),
            out_specs=(VMEM, VMEM),
        )(*a_in)

        # filter -> (BE*F, 2*NPAD): pad bins 65->128, duplicate for [re | im]
        filt = filt.reshape(BE, F, CC)
        filt = jnp.pad(filt, ((0, 0), (0, 0), (0, NPAD - CC)))
        filt = jnp.concatenate([filt, filt], axis=-1).reshape(BE * F, 2 * NPAD)

        # white-noise frames, 50% overlap, built from two hop-aligned views
        # (no per-frame slicing / stack).
        noise = jax.random.uniform(noise_key, (BE, n_samples), jnp.float32, -1.0, 1.0)
        noise = jnp.concatenate([noise, jnp.zeros((BE, hop), jnp.float32)], axis=1)
        chunks = noise.reshape(BE, F + 1, hop)
        frames = jnp.concatenate([chunks[:, :F, :], chunks[:, 1:, :]], axis=-1)
        frames = frames.reshape(BE * F, window)

        # ---- kernel B1: DFT -> filter -> windowed inverse DFT (parallel grid)
        time = pl.pallas_call(
            _spectral_kernel,
            out_shape=jax.ShapeDtypeStruct((BE * F, window), jnp.float32),
            grid=(BE * F // row_block,),
            in_specs=[
                pl.BlockSpec((row_block, window), lambda i: (i, 0)),
                pl.BlockSpec((row_block, 2 * NPAD), lambda i: (i, 0)),
                pl.BlockSpec((window, 2 * NPAD), lambda i: (0, 0)),
                pl.BlockSpec((2 * NPAD, window), lambda i: (0, 0)),
            ],
            out_specs=pl.BlockSpec((row_block, window), lambda i: (i, 0)),
            compiler_params=pltpu.CompilerParams(
                dimension_semantics=("parallel",)),
        )(frames, filt, arrays['dft'], arrays['idft'])

        # even / odd frame streams (even frames tile [0, n_samples) exactly)
        time = time.reshape(BE, F, window)
        ev = time[:, 0::2, :].reshape(BE, n_samples)
        od = time[:, 1::2, :].reshape(BE, n_samples)

        # ---- kernel B2: overlap-add + env interpolation + mix (parallel grid)
        out = pl.pallas_call(
            mix_kernel,
            out_shape=jax.ShapeDtypeStruct((BE, n_samples), jnp.float32),
            grid=(BE // be_block,),
            in_specs=[
                pl.BlockSpec((be_block, n_samples), lambda i: (i, 0)),
                pl.BlockSpec((be_block, n_samples), lambda i: (i, 0)),
                pl.BlockSpec((be_block, n_frames), lambda i: (i, 0)),
                # NOTE: at much larger n_samples, add a sample-tile grid axis so
                # the interp-matrix block stays VMEM-bounded on v5e/v7x.
                pl.BlockSpec((n_frames, n_samples), lambda i: (0, 0)),
            ],
            out_specs=pl.BlockSpec((be_block, n_samples), lambda i: (i, 0)),
            compiler_params=pltpu.CompilerParams(
                dimension_semantics=("parallel",)),
        )(ev, od, env_f, arrays['interp'])

        return out.reshape(B, E, n_samples)

    return arrays, apply_fn


if __name__ == "__main__":
    # Small, consistent shapes: latent=16, channels=8, n_samples=2048
    # (-> n_frames=8, 32 noise frames of 128 samples, 65 rFFT bins).
    latent_dim = 16
    channels = 8
    n_samples = 2048
    batch = 2

    key = jax.random.PRNGKey(0)
    k_params, k_x, k_noise = jax.random.split(key, 3)

    arrays, apply_fn = build_generate_impulse(k_params, latent_dim, channels, n_samples)
    x = jax.random.normal(k_x, (batch, N_EVENTS, latent_dim), jnp.float32)

    fwd = jax.jit(apply_fn)
    out = jax.block_until_ready(fwd(arrays, x, k_noise))

    assert out.shape == (batch, N_EVENTS, n_samples), out.shape
    assert bool(jnp.all(jnp.isfinite(out)))
    print("KERNEL_OK")
</pallas_src>

<mosaic_0001>
module attributes {stable_mosaic.version = 11 : i64} {
  func.func @kernel(%arg0: memref<32x16xf32, #tpu.memory_space<vmem>>, %arg1: memref<16x8xf32, #tpu.memory_space<vmem>>, %arg2: memref<1x8xf32, #tpu.memory_space<vmem>>, %arg3: memref<16x32xf32, #tpu.memory_space<vmem>>, %arg4: memref<1x32xf32, #tpu.memory_space<vmem>>, %arg5: memref<32x64xf32, #tpu.memory_space<vmem>>, %arg6: memref<1x8xf32, #tpu.memory_space<vmem>>, %arg7: memref<1x8xf32, #tpu.memory_space<vmem>>, %arg8: memref<64x64xf32, #tpu.memory_space<vmem>>, %arg9: memref<1x64xf32, #tpu.memory_space<vmem>>, %arg10: memref<64x128xf32, #tpu.memory_space<vmem>>, %arg11: memref<1x8xf32, #tpu.memory_space<vmem>>, %arg12: memref<1x8xf32, #tpu.memory_space<vmem>>, %arg13: memref<128x256xf32, #tpu.memory_space<vmem>>, %arg14: memref<1x8xf32, #tpu.memory_space<vmem>>, %arg15: memref<1x8xf32, #tpu.memory_space<vmem>>, %arg16: memref<256x2080xf32, #tpu.memory_space<vmem>>, %arg17: memref<1x2080xf32, #tpu.memory_space<vmem>>, %arg18: memref<256x8xf32, #tpu.memory_space<vmem>>, %arg19: memref<8x256xf32, #tpu.memory_space<vmem>>, %arg20: memref<32x8xf32, #tpu.memory_space<vmem>>, %arg21: memref<32x2080xf32, #tpu.memory_space<vmem>>) attributes {dimension_semantics = [], scalar_prefetch = 0 : i64, scratch_operands = 0 : i64, tpu.core_type = #tpu.core_type<tc>} {
    %c0 = arith.constant 0 : index
    %c0_0 = arith.constant 0 : index
    %0 = vector.load %arg0[%c0, %c0_0] : memref<32x16xf32, #tpu.memory_space<vmem>>, vector<32x16xf32>
    %c0_1 = arith.constant 0 : index
    %c0_2 = arith.constant 0 : index
    %1 = vector.load %arg1[%c0_1, %c0_2] : memref<16x8xf32, #tpu.memory_space<vmem>>, vector<16x8xf32>
    %cst = arith.constant dense<0.000000e+00> : vector<32x8xf32>
    %2 = tpu.matmul %0, %1, %cst {dimension_numbers = #tpu.dot_dimension_numbers<[1], [0], [0], [1], [0, 0, 1, 1], [], []>} : vector<32x16xf32>, vector<16x8xf32>, vector<32x8xf32> -> vector<32x8xf32>
    %c0_3 = arith.constant 0 : index
    %c0_4 = arith.constant 0 : index
    %3 = vector.load %arg2[%c0_3, %c0_4] : memref<1x8xf32, #tpu.memory_space<vmem>>, vector<1x8xf32>
    %4 = vector.broadcast %3 : vector<1x8xf32> to vector<32x8xf32>
    %5 = arith.addf %2, %4 : vector<32x8xf32>
    %6 = arith.mulf %5, %5 : vector<32x8xf32>
    %c0_5 = arith.constant 0 : index
    %c0_6 = arith.constant 0 : index
    %7 = vector.load %arg20[%c0_5, %c0_6] : memref<32x8xf32, #tpu.memory_space<vmem>>, vector<32x8xf32>
    tpu.vector_store %arg20[%c0_5, %c0_6], %6 {strides = array<i32>} : memref<32x8xf32, #tpu.memory_space<vmem>>, vector<32x8xf32>,
    %c0_7 = arith.constant 0 : index
    %c0_8 = arith.constant 0 : index
    %8 = vector.load %arg3[%c0_7, %c0_8] : memref<16x32xf32, #tpu.memory_space<vmem>>, vector<16x32xf32>
    %cst_9 = arith.constant dense<0.000000e+00> : vector<32x32xf32>
    %9 = tpu.matmul %0, %8, %cst_9 {dimension_numbers = #tpu.dot_dimension_numbers<[1], [0], [0], [1], [0, 0, 1, 1], [], []>} : vector<32x16xf32>, vector<16x32xf32>, vector<32x32xf32> -> vector<32x32xf32>
    %c0_10 = arith.constant 0 : index
    %c0_11 = arith.constant 0 : index
    %10 = vector.load %arg4[%c0_10, %c0_11] : memref<1x32xf32, #tpu.memory_space<vmem>>, vector<1x32xf32>
    %11 = vector.broadcast %10 : vector<1x32xf32> to vector<32x32xf32>
    %12 = arith.addf %9, %11 : vector<32x32xf32>
    %c0_12 = arith.constant 0 : index
    %c0_13 = arith.constant 0 : index
    %13 = vector.load %arg5[%c0_12, %c0_13] : memref<32x64xf32, #tpu.memory_space<vmem>>, vector<32x64xf32>
    %cst_14 = arith.constant dense<0.000000e+00> : vector<32x64xf32>
    %14 = tpu.matmul %12, %13, %cst_14 {dimension_numbers = #tpu.dot_dimension_numbers<[1], [0], [0], [1], [0, 0, 1, 1], [], []>} : vector<32x32xf32>, vector<32x64xf32>, vector<32x64xf32> -> vector<32x64xf32>
    %c0_15 = arith.constant 0 : index
    %c0_16 = arith.constant 0 : index
    %15 = vector.load %arg18[%c0_15, %c0_16] : memref<256x8xf32, #tpu.memory_space<vmem>>, vector<64x8xf32>
    %c0_17 = arith.constant 0 : index
    %c0_18 = arith.constant 0 : index
    %16 = vector.load %arg19[%c0_17, %c0_18] : memref<8x256xf32, #tpu.memory_space<vmem>>, vector<8x64xf32>
    %cst_19 = arith.constant dense<0.000000e+00> : vector<32x8xf32>
    %17 = tpu.matmul %14, %15, %cst_19 {dimension_numbers = #tpu.dot_dimension_numbers<[1], [0], [0], [1], [0, 0, 1, 1], [], []>} : vector<32x64xf32>, vector<64x8xf32>, vector<32x8xf32> -> vector<32x8xf32>
    %cst_20 = arith.constant dense<0.000000e+00> : vector<8xf32>
    %18 = vector.multi_reduction <add>, %17, %cst_20 [0] : vector<32x8xf32> to vector<8xf32>
    %19 = vector.shape_cast %18 : vector<8xf32> to vector<1x8xf32>
    %20 = arith.mulf %14, %14 : vector<32x64xf32>
    %cst_21 = arith.constant dense<0.000000e+00> : vector<32x8xf32>
    %21 = tpu.matmul %20, %15, %cst_21 {dimension_numbers = #tpu.dot_dimension_numbers<[1], [0], [0], [1], [0, 0, 1, 1], [], []>} : vector<32x64xf32>, vector<64x8xf32>, vector<32x8xf32> -> vector<32x8xf32>
    %cst_22 = arith.constant dense<0.000000e+00> : vector<8xf32>
    %22 = vector.multi_reduction <add>, %21, %cst_22 [0] : vector<32x8xf32> to vector<8xf32>
    %23 = vector.shape_cast %22 : vector<8xf32> to vector<1x8xf32>
    %cst_23 = arith.constant 2.560000e+02 : f32
    %24 = vector.broadcast %cst_23 : f32 to vector<1x8xf32>
    %25 = arith.divf %19, %24 : vector<1x8xf32>
    %cst_24 = arith.constant 2.560000e+02 : f32
    %26 = vector.broadcast %cst_24 : f32 to vector<1x8xf32>
    %27 = arith.divf %23, %26 : vector<1x8xf32>
    %28 = arith.mulf %25, %25 : vector<1x8xf32>
    %29 = arith.subf %27, %28 : vector<1x8xf32>
    %cst_25 = arith.constant 9.99999974E-6 : f32
    %30 = vector.broadcast %cst_25 : f32 to vector<1x8xf32>
    %31 = arith.addf %29, %30 : vector<1x8xf32>
    %32 = math.rsqrt %31 : vector<1x8xf32>
    %c0_26 = arith.constant 0 : index
    %c0_27 = arith.constant 0 : index
    %33 = vector.load %arg6[%c0_26, %c0_27] : memref<1x8xf32, #tpu.memory_space<vmem>>, vector<1x8xf32>
    %34 = arith.mulf %32, %33 : vector<1x8xf32>
    %c0_28 = arith.constant 0 : index
    %c0_29 = arith.constant 0 : index
    %35 = vector.load %arg7[%c0_28, %c0_29] : memref<1x8xf32, #tpu.memory_space<vmem>>, vector<1x8xf32>
    %36 = arith.mulf %25, %34 : vector<1x8xf32>
    %37 = arith.subf %35, %36 : vector<1x8xf32>
    %cst_30 = arith.constant dense<0.000000e+00> : vector<1x64xf32>
    %38 = tpu.matmul %34, %16, %cst_30 {dimension_numbers = #tpu.dot_dimension_numbers<[1], [0], [0], [1], [0, 0, 1, 1], [], []>} : vector<1x8xf32>, vector<8x64xf32>, vector<1x64xf32> -> vector<1x64xf32>
    %39 = vector.broadcast %38 : vector<1x64xf32> to vector<32x64xf32>
    %40 = arith.mulf %14, %39 : vector<32x64xf32>
    %cst_31 = arith.constant dense<0.000000e+00> : vector<1x64xf32>
    %41 = tpu.matmul %37, %16, %cst_31 {dimension_numbers = #tpu.dot_dimension_numbers<[1], [0], [0], [1], [0, 0, 1, 1], [], []>} : vector<1x8xf32>, vector<8x64xf32>, vector<1x64xf32> -> vector<1x64xf32>
    %42 = vector.broadcast %41 : vector<1x64xf32> to vector<32x64xf32>
    %43 = arith.addf %40, %42 : vector<32x64xf32>
    %cst_32 = arith.constant 0.000000e+00 : f32
    %44 = vector.broadcast %cst_32 : f32 to vector<32x64xf32>
    %45 = arith.cmpf ogt, %43, %44 : vector<32x64xf32>
    %cst_33 = arith.constant 2.000000e-01 : f32
    %46 = vector.broadcast %cst_33 : f32 to vector<32x64xf32>
    %47 = arith.mulf %46, %43 : vector<32x64xf32>
    %48 = arith.select %45, %43, %47 : vector<32x64xi1>, vector<32x64xf32>
    %c0_34 = arith.constant 0 : index
    %c0_35 = arith.constant 0 : index
    %49 = vector.load %arg8[%c0_34, %c0_35] : memref<64x64xf32, #tpu.memory_space<vmem>>, vector<64x64xf32>
    %cst_36 = arith.constant dense<0.000000e+00> : vector<32x64xf32>
    %50 = tpu.matmul %48, %49, %cst_36 {dimension_numbers = #tpu.dot_dimension_numbers<[1], [0], [0], [1], [0, 0, 1, 1], [], []>} : vector<32x64xf32>, vector<64x64xf32>, vector<32x64xf32> -> vector<32x64xf32>
    %c0_37 = arith.constant 0 : index
    %c0_38 = arith.constant 0 : index
    %51 = vector.load %arg9[%c0_37, %c0_38] : memref<1x64xf32, #tpu.memory_space<vmem>>, vector<1x64xf32>
    %52 = vector.broadcast %51 : vector<1x64xf32> to vector<32x64xf32>
    %53 = arith.addf %50, %52 : vector<32x64xf32>
    %c0_39 = arith.constant 0 : index
    %c0_40 = arith.constant 0 : index
    %54 = vector.load %arg10[%c0_39, %c0_40] : memref<64x128xf32, #tpu.memory_space<vmem>>, vector<64x128xf32>
    %cst_41 = arith.constant dense<0.000000e+00> : vector<32x128xf32>
    %55 = tpu.matmul %53, %54, %cst_41 {dimension_numbers = #tpu.dot_dimension_numbers<[1], [0], [0], [1], [0, 0, 1, 1], [], []>} : vector<32x64xf32>, vector<64x128xf32>, vector<32x128xf32> -> vector<32x128xf32>
    %c0_42 = arith.constant 0 : index
    %c0_43 = arith.constant 0 : index
    %56 = vector.load %arg18[%c0_42, %c0_43] : memref<256x8xf32, #tpu.memory_space<vmem>>, vector<128x8xf32>
    %c0_44 = arith.constant 0 : index
    %c0_45 = arith.constant 0 : index
    %57 = vector.load %arg19[%c0_44, %c0_45] : memref<8x256xf32, #tpu.memory_space<vmem>>, vector<8x128xf32>
    %cst_46 = arith.constant dense<0.000000e+00> : vector<32x8xf32>
    %58 = tpu.matmul %55, %56, %cst_46 {dimension_numbers = #tpu.dot_dimension_numbers<[1], [0], [0], [1], [0, 0, 1, 1], [], []>} : vector<32x128xf32>, vector<128x8xf32>, vector<32x8xf32> -> vector<32x8xf32>
    %cst_47 = arith.constant dense<0.000000e+00> : vector<8xf32>
    %59 = vector.multi_reduction <add>, %58, %cst_47 [0] : vector<32x8xf32> to vector<8xf32>
    %60 = vector.shape_cast %59 : vector<8xf32> to vector<1x8xf32>
    %61 = arith.mulf %55, %55 : vector<32x128xf32>
    %cst_48 = arith.constant dense<0.000000e+00> : vector<32x8xf32>
    %62 = tpu.matmul %61, %56, %cst_48 {dimension_numbers = #tpu.dot_dimension_numbers<[1], [0], [0], [1], [0, 0, 1, 1], [], []>} : vector<32x128xf32>, vector<128x8xf32>, vector<32x8xf32> -> vector<32x8xf32>
    %cst_49 = arith.constant dense<0.000000e+00> : vector<8xf32>
    %63 = vector.multi_reduction <add>, %62, %cst_49 [0] : vector<32x8xf32> to vector<8xf32>
    %64 = vector.shape_cast %63 : vector<8xf32> to vector<1x8xf32>
    %cst_50 = arith.constant 5.120000e+02 : f32
    %65 = vector.broadcast %cst_50 : f32 to vector<1x8xf32>
    %66 = arith.divf %60, %65 : vector<1x8xf32>
    %cst_51 = arith.constant 5.120000e+02 : f32
    %67 = vector.broadcast %cst_51 : f32 to vector<1x8xf32>
    %68 = arith.divf %64, %67 : vector<1x8xf32>
    %69 = arith.mulf %66, %66 : vector<1x8xf32>
    %70 = arith.subf %68, %69 : vector<1x8xf32>
    %cst_52 = arith.constant 9.99999974E-6 : f32
    %71 = vector.broadcast %cst_52 : f32 to vector<1x8xf32>
    %72 = arith.addf %70, %71 : vector<1x8xf32>
    %73 = math.rsqrt %72 : vector<1x8xf32>
    %c0_53 = arith.constant 0 : index
    %c0_54 = arith.constant 0 : index
    %74 = vector.load %arg11[%c0_53, %c0_54] : memref<1x8xf32, #tpu.memory_space<vmem>>, vector<1x8xf32>
    %75 = arith.mulf %73, %74 : vector<1x8xf32>
    %c0_55 = arith.constant 0 : index
    %c0_56 = arith.constant 0 : index
    %76 = vector.load %arg12[%c0_55, %c0_56] : memref<1x8xf32, #tpu.memory_space<vmem>>, vector<1x8xf32>
    %77 = arith.mulf %66, %75 : vector<1x8xf32>
    %78 = arith.subf %76, %77 : vector<1x8xf32>
    %cst_57 = arith.constant dense<0.000000e+00> : vector<1x128xf32>
    %79 = tpu.matmul %75, %57, %cst_57 {dimension_numbers = #tpu.dot_dimension_numbers<[1], [0], [0], [1], [0, 0, 1, 1], [], []>} : vector<1x8xf32>, vector<8x128xf32>, vector<1x128xf32> -> vector<1x128xf32>
    %80 = vector.broadcast %79 : vector<1x128xf32> to vector<32x128xf32>
    %81 = arith.mulf %55, %80 : vector<32x128xf32>
    %cst_58 = arith.constant dense<0.000000e+00> : vector<1x128xf32>
    %82 = tpu.matmul %78, %57, %cst_58 {dimension_numbers = #tpu.dot_dimension_numbers<[1], [0], [0], [1], [0, 0, 1, 1], [], []>} : vector<1x8xf32>, vector<8x128xf32>, vector<1x128xf32> -> vector<1x128xf32>
    %83 = vector.broadcast %82 : vector<1x128xf32> to vector<32x128xf32>
    %84 = arith.addf %81, %83 : vector<32x128xf32>
    %cst_59 = arith.constant 0.000000e+00 : f32
    %85 = vector.broadcast %cst_59 : f32 to vector<32x128xf32>
    %86 = arith.cmpf ogt, %84, %85 : vector<32x128xf32>
    %cst_60 = arith.constant 2.000000e-01 : f32
    %87 = vector.broadcast %cst_60 : f32 to vector<32x128xf32>
    %88 = arith.mulf %87, %84 : vector<32x128xf32>
    %89 = arith.select %86, %84, %88 : vector<32x128xi1>, vector<32x128xf32>
    %c0_61 = arith.constant 0 : index
    %c0_62 = arith.constant 0 : index
    %90 = vector.load %arg13[%c0_61, %c0_62] : memref<128x256xf32, #tpu.memory_space<vmem>>, vector<128x256xf32>
    %cst_63 = arith.constant dense<0.000000e+00> : vector<32x256xf32>
    %91 = tpu.matmul %89, %90, %cst_63 {dimension_numbers = #tpu.dot_dimension_numbers<[1], [0], [0], [1], [0, 0, 1, 1], [], []>} : vector<32x128xf32>, vector<128x256xf32>, vector<32x256xf32> -> vector<32x256xf32>
    %c0_64 = arith.constant 0 : index
    %c0_65 = arith.constant 0 : index
    %92 = vector.load %arg18[%c0_64, %c0_65] : memref<256x8xf32, #tpu.memory_space<vmem>>, vector<256x8xf32>
    %c0_66 = arith.constant 0 : index
    %c0_67 = arith.constant 0 : index
    %93 = vector.load %arg19[%c0_66, %c0_67] : memref<8x256xf32, #tpu.memory_space<vmem>>, vector<8x256xf32>
    %cst_68 = arith.constant dense<0.000000e+00> : vector<32x8xf32>
    %94 = tpu.matmul %91, %92, %cst_68 {dimension_numbers = #tpu.dot_dimension_numbers<[1], [0], [0], [1], [0, 0, 1, 1], [], []>} : vector<32x256xf32>, vector<256x8xf32>, vector<32x8xf32> -> vector<32x8xf32>
    %cst_69 = arith.constant dense<0.000000e+00> : vector<8xf32>
    %95 = vector.multi_reduction <add>, %94, %cst_69 [0] : vector<32x8xf32> to vector<8xf32>
    %96 = vector.shape_cast %95 : vector<8xf32> to vector<1x8xf32>
    %97 = arith.mulf %91, %91 : vector<32x256xf32>
    %cst_70 = arith.constant dense<0.000000e+00> : vector<32x8xf32>
    %98 = tpu.matmul %97, %92, %cst_70 {dimension_numbers = #tpu.dot_dimension_numbers<[1], [0], [0], [1], [0, 0, 1, 1], [], []>} : vector<32x256xf32>, vector<256x8xf32>, vector<32x8xf32> -> vector<32x8xf32>
    %cst_71 = arith.constant dense<0.000000e+00> : vector<8xf32>
    %99 = vector.multi_reduction <add>, %98, %cst_71 [0] : vector<32x8xf32> to vector<8xf32>
    %100 = vector.shape_cast %99 : vector<8xf32> to vector<1x8xf32>
    %cst_72 = arith.constant 1.024000e+03 : f32
    %101 = vector.broadcast %cst_72 : f32 to vector<1x8xf32>
    %102 = arith.divf %96, %101 : vector<1x8xf32>
    %cst_73 = arith.constant 1.024000e+03 : f32
    %103 = vector.broadcast %cst_73 : f32 to vector<1x8xf32>
    %104 = arith.divf %100, %103 : vector<1x8xf32>
    %105 = arith.mulf %102, %102 : vector<1x8xf32>
    %106 = arith.subf %104, %105 : vector<1x8xf32>
    %cst_74 = arith.constant 9.99999974E-6 : f32
    %107 = vector.broadcast %cst_74 : f32 to vector<1x8xf32>
    %108 = arith.addf %106, %107 : vector<1x8xf32>
    %109 = math.rsqrt %108 : vector<1x8xf32>
    %c0_75 = arith.constant 0 : index
    %c0_76 = arith.constant 0 : index
    %110 = vector.load %arg14[%c0_75, %c0_76] : memref<1x8xf32, #tpu.memory_space<vmem>>, vector<1x8xf32>
    %111 = arith.mulf %109, %110 : vector<1x8xf32>
    %c0_77 = arith.constant 0 : index
    %c0_78 = arith.constant 0 : index
    %112 = vector.load %arg15[%c0_77, %c0_78] : memref<1x8xf32, #tpu.memory_space<vmem>>, vector<1x8xf32>
    %113 = arith.mulf %102, %111 : vector<1x8xf32>
    %114 = arith.subf %112, %113 : vector<1x8xf32>
    %cst_79 = arith.constant dense<0.000000e+00> : vector<1x256xf32>
    %115 = tpu.matmul %111, %93, %cst_79 {dimension_numbers = #tpu.dot_dimension_numbers<[1], [0], [0], [1], [0, 0, 1, 1], [], []>} : vector<1x8xf32>, vector<8x256xf32>, vector<1x256xf32> -> vector<1x256xf32>
    %116 = vector.broadcast %115 : vector<1x256xf32> to vector<32x256xf32>
    %117 = arith.mulf %91, %116 : vector<32x256xf32>
    %cst_80 = arith.constant dense<0.000000e+00> : vector<1x256xf32>
    %118 = tpu.matmul %114, %93, %cst_80 {dimension_numbers = #tpu.dot_dimension_numbers<[1], [0], [0], [1], [0, 0, 1, 1], [], []>} : vector<1x8xf32>, vector<8x256xf32>, vector<1x256xf32> -> vector<1x256xf32>
    %119 = vector.broadcast %118 : vector<1x256xf32> to vector<32x256xf32>
    %120 = arith.addf %117, %119 : vector<32x256xf32>
    %cst_81 = arith.constant 0.000000e+00 : f32
    %121 = vector.broadcast %cst_81 : f32 to vector<32x256xf32>
    %122 = arith.cmpf ogt, %120, %121 : vector<32x256xf32>
    %cst_82 = arith.constant 2.000000e-01 : f32
    %123 = vector.broadcast %cst_82 : f32 to vector<32x256xf32>
    %124 = arith.mulf %123, %120 : vector<32x256xf32>
    %125 = arith.select %122, %120, %124 : vector<32x256xi1>, vector<32x256xf32>
    %c0_83 = arith.constant 0 : index
    %c0_84 = arith.constant 0 : index
    %126 = vector.load %arg16[%c0_83, %c0_84] : memref<256x2080xf32, #tpu.memory_space<vmem>>, vector<256x2080xf32>
    %cst_85 = arith.constant dense<0.000000e+00> : vector<32x2080xf32>
    %127 = tpu.matmul %125, %126, %cst_85 {dimension_numbers = #tpu.dot_dimension_numbers<[1], [0], [0], [1], [0, 0, 1, 1], [], []>} : vector<32x256xf32>, vector<256x2080xf32>, vector<32x2080xf32> -> vector<32x2080xf32>
    %c0_86 = arith.constant 0 : index
    %c0_87 = arith.constant 0 : index
    %128 = vector.load %arg17[%c0_86, %c0_87] : memref<1x2080xf32, #tpu.memory_space<vmem>>, vector<1x2080xf32>
    %129 = vector.broadcast %128 : vector<1x2080xf32> to vector<32x2080xf32>
    %130 = arith.addf %127, %129 : vector<32x2080xf32>
    %131 = arith.negf %130 : vector<32x2080xf32>
    %132 = math.exp %131 : vector<32x2080xf32>
    %cst_88 = arith.constant 1.000000e+00 : f32
    %133 = vector.broadcast %cst_88 : f32 to vector<32x2080xf32>
    %134 = arith.addf %133, %132 : vector<32x2080xf32>
    %135 = arith.divf %133, %134 : vector<32x2080xf32>
    %136 = arith.mulf %135, %135 : vector<32x2080xf32>
    %137 = tpu.iota {dimensions = array<i32: 1>} : vector<32x2080xi32>
    %c65_i32 = arith.constant 65 : i32
    %138 = vector.broadcast %c65_i32 : i32 to vector<32x2080xi32>
    %139 = arith.cmpi slt, %137, %138 : vector<32x2080xi32>
    %cst_89 = arith.constant 0.000000e+00 : f32
    %140 = vector.broadcast %cst_89 : f32 to vector<32x2080xf32>
    %141 = arith.select %139, %136, %140 : vector<32x2080xi1>, vector<32x2080xf32>
    %c0_90 = arith.constant 0 : index
    %c0_91 = arith.constant 0 : index
    %142 = vector.load %arg21[%c0_90, %c0_91] : memref<32x2080xf32, #tpu.memory_space<vmem>>, vector<32x2080xf32>
    tpu.vector_store %arg21[%c0_90, %c0_91], %141 {strides = array<i32>} : memref<32x2080xf32, #tpu.memory_space<vmem>>, vector<32x2080xf32>,
    return
  }
}

module attributes {stable_mosaic.version = 11 : i64} {
  func.func @_spectral_kernel(%arg0: i32, %arg1: memref<256x128xf32, #tpu.memory_space<vmem>>, %arg2: memref<256x256xf32, #tpu.memory_space<vmem>>, %arg3: memref<128x256xf32, #tpu.memory_space<vmem>>, %arg4: memref<256x128xf32, #tpu.memory_space<vmem>>, %arg5: memref<256x128xf32, #tpu.memory_space<vmem>>) attributes {dimension_semantics = [#tpu.dimension_semantics<parallel>], iteration_bounds = array<i64: 4>, scalar_prefetch = 0 : i64, scratch_operands = 0 : i64, tpu.core_type = #tpu.core_type<tc>, window_params = [{transform_indices = @transform_0, window_bounds = array<i64: 256, 128>}, {transform_indices = @transform_1, window_bounds = array<i64: 256, 256>}, {pipeline_mode = #tpu.pipeline_mode<synchronous>, transform_indices = @transform_2, window_bounds = array<i64: 128, 256>}, {pipeline_mode = #tpu.pipeline_mode<synchronous>, transform_indices = @transform_3, window_bounds = array<i64: 256, 128>}, {transform_indices = @transform_4, window_bounds = array<i64: 256, 128>}]} {
    %c0 = arith.constant 0 : index
    %c0_0 = arith.constant 0 : index
    %0 = vector.load %arg1[%c0, %c0_0] : memref<256x128xf32, #tpu.memory_space<vmem>>, vector<256x128xf32>
    %c0_1 = arith.constant 0 : index
    %c0_2 = arith.constant 0 : index
    %1 = vector.load %arg3[%c0_1, %c0_2] : memref<128x256xf32, #tpu.memory_space<vmem>>, vector<128x256xf32>
    %cst = arith.constant dense<0.000000e+00> : vector<256x256xf32>
    %2 = tpu.matmul %0, %1, %cst {dimension_numbers = #tpu.dot_dimension_numbers<[1], [0], [0], [1], [0, 0, 1, 1], [], []>} : vector<256x128xf32>, vector<128x256xf32>, vector<256x256xf32> -> vector<256x256xf32>
    %c0_3 = arith.constant 0 : index
    %c0_4 = arith.constant 0 : index
    %3 = vector.load %arg2[%c0_3, %c0_4] : memref<256x256xf32, #tpu.memory_space<vmem>>, vector<256x256xf32>
    %4 = arith.mulf %2, %3 : vector<256x256xf32>
    %c0_5 = arith.constant 0 : index
    %c0_6 = arith.constant 0 : index
    %5 = vector.load %arg4[%c0_5, %c0_6] : memref<256x128xf32, #tpu.memory_space<vmem>>, vector<256x128xf32>
    %cst_7 = arith.constant dense<0.000000e+00> : vector<256x128xf32>
    %6 = tpu.matmul %4, %5, %cst_7 {dimension_numbers = #tpu.dot_dimension_numbers<[1], [0], [0], [1], [0, 0, 1, 1], [], []>} : vector<256x256xf32>, vector<256x128xf32>, vector<256x128xf32> -> vector<256x128xf32>
    %c0_8 = arith.constant 0 : index
    %c0_9 = arith.constant 0 : index
    %7 = vector.load %arg5[%c0_8, %c0_9] : memref<256x128xf32, #tpu.memory_space<vmem>>, vector<256x128xf32>
    tpu.vector_store %arg5[%c0_8, %c0_9], %6 {strides = array<i32>} : memref<256x128xf32, #tpu.memory_space<vmem>>, vector<256x128xf32>,
    return
  }
  func.func @transform_0(%arg0: i32) -> (i32, i32) {
    %c0_i32 = arith.constant 0 : i32
    %c0_i32_0 = arith.constant 0 : i32
    return %arg0, %c0_i32 : i32, i32
  }
  func.func @transform_1(%arg0: i32) -> (i32, i32) {
    %c0_i32 = arith.constant 0 : i32
    %c0_i32_0 = arith.constant 0 : i32
    return %arg0, %c0_i32 : i32, i32
  }
  func.func @transform_2(%arg0: i32) -> (i32, i32) {
    %c0_i32 = arith.constant 0 : i32
    %c0_i32_0 = arith.constant 0 : i32
    %c0_i32_1 = arith.constant 0 : i32
    return %c0_i32, %c0_i32_0 : i32, i32
  }
  func.func @transform_3(%arg0: i32) -> (i32, i32) {
    %c0_i32 = arith.constant 0 : i32
    %c0_i32_0 = arith.constant 0 : i32
    %c0_i32_1 = arith.constant 0 : i32
    return %c0_i32, %c0_i32_0 : i32, i32
  }
  func.func @transform_4(%arg0: i32) -> (i32, i32) {
    %c0_i32 = arith.constant 0 : i32
    %c0_i32_0 = arith.constant 0 : i32
    return %arg0, %c0_i32 : i32, i32
  }
}

module attributes {stable_mosaic.version = 11 : i64} {
  func.func @kernel(%arg0: i32, %arg1: memref<8x2048xf32, #tpu.memory_space<vmem>>, %arg2: memref<8x2048xf32, #tpu.memory_space<vmem>>, %arg3: memref<8x8xf32, #tpu.memory_space<vmem>>, %arg4: memref<8x2048xf32, #tpu.memory_space<vmem>>, %arg5: memref<8x2048xf32, #tpu.memory_space<vmem>>) attributes {dimension_semantics = [#tpu.dimension_semantics<parallel>], iteration_bounds = array<i64: 4>, scalar_prefetch = 0 : i64, scratch_operands = 0 : i64, tpu.core_type = #tpu.core_type<tc>, window_params = [{transform_indices = @transform_0, window_bounds = array<i64: 8, 2048>}, {transform_indices = @transform_1, window_bounds = array<i64: 8, 2048>}, {transform_indices = @transform_2, window_bounds = array<i64: 8, 8>}, {pipeline_mode = #tpu.pipeline_mode<synchronous>, transform_indices = @transform_3, window_bounds = array<i64: 8, 2048>}, {transform_indices = @transform_4, window_bounds = array<i64: 8, 2048>}]} {
    %c0 = arith.constant 0 : index
    %c0_0 = arith.constant 0 : index
    %0 = vector.load %arg2[%c0, %c0_0] : memref<8x2048xf32, #tpu.memory_space<vmem>>, vector<8x2048xf32>
    %cst = arith.constant 0.000000e+00 : f32
    %1 = vector.broadcast %cst : f32 to vector<8x64xf32>
    %2 = vector.extract_strided_slice %0 {offsets = [0, 0], sizes = [8, 1984], strides = [1, 1]} : vector<8x2048xf32> to vector<8x1984xf32>
    %3 = tpu.concatenate %1, %2 in 1 : vector<8x64xf32>, vector<8x1984xf32> -> vector<8x2048xf32>
    %c0_1 = arith.constant 0 : index
    %c0_2 = arith.constant 0 : index
    %4 = vector.load %arg3[%c0_1, %c0_2] : memref<8x8xf32, #tpu.memory_space<vmem>>, vector<8x8xf32>
    %c0_3 = arith.constant 0 : index
    %c0_4 = arith.constant 0 : index
    %5 = vector.load %arg4[%c0_3, %c0_4] : memref<8x2048xf32, #tpu.memory_space<vmem>>, vector<8x2048xf32>
    %cst_5 = arith.constant dense<0.000000e+00> : vector<8x2048xf32>
    %6 = tpu.matmul %4, %5, %cst_5 {dimension_numbers = #tpu.dot_dimension_numbers<[1], [0], [0], [1], [0, 0, 1, 1], [], []>} : vector<8x8xf32>, vector<8x2048xf32>, vector<8x2048xf32> -> vector<8x2048xf32>
    %c0_6 = arith.constant 0 : index
    %c0_7 = arith.constant 0 : index
    %7 = vector.load %arg1[%c0_6, %c0_7] : memref<8x2048xf32, #tpu.memory_space<vmem>>, vector<8x2048xf32>
    %8 = arith.addf %7, %3 : vector<8x2048xf32>
    %9 = arith.mulf %8, %6 : vector<8x2048xf32>
    %c0_8 = arith.constant 0 : index
    %c0_9 = arith.constant 0 : index
    %10 = vector.load %arg5[%c0_8, %c0_9] : memref<8x2048xf32, #tpu.memory_space<vmem>>, vector<8x2048xf32>
    tpu.vector_store %arg5[%c0_8, %c0_9], %9 {strides = array<i32>} : memref<8x2048xf32, #tpu.memory_space<vmem>>, vector<8x2048xf32>,
    return
  }
  func.func @transform_0(%arg0: i32) -> (i32, i32) {
    %c0_i32 = arith.constant 0 : i32
    %c0_i32_0 = arith.constant 0 : i32
    return %arg0, %c0_i32 : i32, i32
  }
  func.func @transform_1(%arg0: i32) -> (i32, i32) {
    %c0_i32 = arith.constant 0 : i32
    %c0_i32_0 = arith.constant 0 : i32
    return %arg0, %c0_i32 : i32, i32
  }
  func.func @transform_2(%arg0: i32) -> (i32, i32) {
    %c0_i32 = arith.constant 0 : i32
    %c0_i32_0 = arith.constant 0 : i32
    return %arg0, %c0_i32 : i32, i32
  }
  func.func @transform_3(%arg0: i32) -> (i32, i32) {
    %c0_i32 = arith.constant 0 : i32
    %c0_i32_0 = arith.constant 0 : i32
    %c0_i32_1 = arith.constant 0 : i32
    return %c0_i32, %c0_i32_0 : i32, i32
  }
  func.func @transform_4(%arg0: i32) -> (i32, i32) {
    %c0_i32 = arith.constant 0 : i32
    %c0_i32_0 = arith.constant 0 : i32
    return %arg0, %c0_i32 : i32, i32
  }
}

</mosaic_0001>

<llo_original>
// kernel: apply_fn.4
$region0: #{apply_fn.4}
  #allocation0 [shape = 'u32[]', space=smem, size = 0x4, offset = 0x4, fixed_abs, tag = 'smem constant byte address 0x4 - core index']
  #allocation1 [shape = 'u32[144,128]{1,0:T(1,128)}', space=vmem, size = 0x12000, scoped, tag = 'internal scratch']
  %s0 = inlined_call_operand.vmem [shape: f32[1024,128], index: 0, kind: input, shape index: {}]
  %s1 = inlined_call_operand.vmem [shape: f32[1024,256], index: 1, kind: input, shape index: {}]
  %s2 = inlined_call_operand.vmem [shape: f32[128,256], index: 2, kind: input, shape index: {}]
  %s3 = inlined_call_operand.vmem [shape: f32[256,128], index: 3, kind: input, shape index: {}]
  %s4 = inlined_call_operand.vmem [shape: f32[1024,128], index: 4, kind: output, shape index: {}]
  %s5 = sld [smem:[#allocation0]]
  $region49: #{apply_fn.4} parent=0
    _
  %s7 = ssub.s32 1, %s5
  %s8 = scalar_select 0, %s7, %s5
  loop: start=0, step=1, limit=6
  $region2: #{apply_fn.4} parent=0 // loop_pre_header
    _
  $region3: #{apply_fn.4} parent=0 // loop_header
    %s10 = sphi 0, %s14
    %p11 = scmp.ge.s32.totalorder %s10, 6
    %s20 = sphi 0, %s22
    %s23 = sphi 0, %s20
    %s24 = sphi 0, %s23
    %s40 = sphi 0, %s24
    %s46 = sphi 0, %s48
    %s49 = sphi 0, %s46
    %s50 = sphi 0, %s49
    %s66 = sphi 0, %s50
    %s70 = sphi 0, %s70
    %s72 = sphi 0, %s70
    %s73 = sphi 0, %s72
    %s87 = sphi 0, %s73
    %s91 = sphi 0, %s91
    %s93 = sphi 0, %s91
    %s94 = sphi 0, %s93
    %s108 = sphi 0, %s94
    %s114 = sphi 0, %s116
    %s117 = sphi 0, %s114
    %s118 = sphi 0, %s117
    %s134 = sphi 0, %s118
  $region4: #{apply_fn.4} parent=0 // loop_header_branch
    %13 = sbr.rel (%p11) target = $region8
  $region5: #{apply_fn.4} parent=0 // loop_body
    %s15 = ssub.s32 %s10, 1
    %s16 = ssub.s32 %s10, 2
    %s17 = sadd.s32 %s10, 1
    %s18 = ssub.s32 %s10, %s17
    %p19 = scmp.eq.s32.totalorder %s18, 0
    %s21 = sadd.s32 %s20, 1
    %s22 = scalar_select %p19, %s20, %s21
    %p25 = pneg %p19
    %p26 = scmp.eq.s32.totalorder %s10, 3
    %p27 = por %p25, %p26
    %p28 = scmp.ne.s32.totalorder %s20, %s23
    %p29 = scmp.eq.s32.totalorder %s10, 0
    %p30 = por %p28, %p29
    %p31 = scmp.ne.s32.totalorder %s20, %s23
    %p32 = scmp.eq.s32.totalorder %s15, 3
    %p33 = por %p31, %p32
    %p34 = scmp.ne.s32.totalorder %s23, %s24
    %p35 = scmp.eq.s32.totalorder %s15, 0
    %p36 = por %p34, %p35
    %p37 = scmp.ne.s32.totalorder %s23, %s24
    %p38 = scmp.eq.s32.totalorder %s16, 3
    %p39 = por %p37, %p38
    %p41 = scmp.ne.s32.totalorder %s24, %s40
    %p42 = scmp.eq.s32.totalorder %s16, 0
    %p43 = por %p41, %p42
    %s44 = ssub.s32 %s10, %s17
    %p45 = scmp.eq.s32.totalorder %s44, 0
    %s47 = sadd.s32 %s46, 1
    %s48 = scalar_select %p45, %s46, %s47
    %p51 = pneg %p45
    %p52 = scmp.eq.s32.totalorder %s10, 3
    %p53 = por %p51, %p52
    %p54 = scmp.ne.s32.totalorder %s46, %s49
    %p55 = scmp.eq.s32.totalorder %s10, 0
    %p56 = por %p54, %p55
    %p57 = scmp.ne.s32.totalorder %s46, %s49
    %p58 = scmp.eq.s32.totalorder %s15, 3
    %p59 = por %p57, %p58
    %p60 = scmp.ne.s32.totalorder %s49, %s50
    %p61 = scmp.eq.s32.totalorder %s15, 0
    %p62 = por %p60, %p61
    %p63 = scmp.ne.s32.totalorder %s49, %s50
    %p64 = scmp.eq.s32.totalorder %s16, 3
    %p65 = por %p63, %p64
    %p67 = scmp.ne.s32.totalorder %s50, %s66
    %p68 = scmp.eq.s32.totalorder %s16, 0
    %p69 = por %p67, %p68
    %s71 = sadd.s32 %s70, 1
    %p74 = scmp.eq.s32.totalorder %s10, 3
    %p75 = scmp.ne.s32.totalorder %s70, %s72
    %p76 = scmp.eq.s32.totalorder %s10, 0
    %p77 = por %p75, %p76
    %p78 = scmp.ne.s32.totalorder %s70, %s72
    %p79 = scmp.eq.s32.totalorder %s15, 3
    %p80 = por %p78, %p79
    %p81 = scmp.ne.s32.totalorder %s72, %s73
    %p82 = scmp.eq.s32.totalorder %s15, 0
    %p83 = por %p81, %p82
    %p84 = scmp.ne.s32.totalorder %s72, %s73
    %p85 = scmp.eq.s32.totalorder %s16, 3
    %p86 = por %p84, %p85
    %p88 = scmp.ne.s32.totalorder %s73, %s87
    %p89 = scmp.eq.s32.totalorder %s16, 0
    %p90 = por %p88, %p89
    %s92 = sadd.s32 %s91, 1
    %p95 = scmp.eq.s32.totalorder %s10, 3
    %p96 = scmp.ne.s32.totalorder %s91, %s93
    %p97 = scmp.eq.s32.totalorder %s10, 0
    %p98 = por %p96, %p97
    %p99 = scmp.ne.s32.totalorder %s91, %s93
    %p100 = scmp.eq.s32.totalorder %s15, 3
    %p101 = por %p99, %p100
    %p102 = scmp.ne.s32.totalorder %s93, %s94
    %p103 = scmp.eq.s32.totalorder %s15, 0
    %p104 = por %p102, %p103
    %p105 = scmp.ne.s32.totalorder %s93, %s94
    %p106 = scmp.eq.s32.totalorder %s16, 3
    %p107 = por %p105, %p106
    %p109 = scmp.ne.s32.totalorder %s94, %s108
    %p110 = scmp.eq.s32.totalorder %s16, 0
    %p111 = por %p109, %p110
    %s112 = ssub.s32 %s10, %s17
    %p113 = scmp.eq.s32.totalorder %s112, 0
    %s115 = sadd.s32 %s114, 1
    %s116 = scalar_select %p113, %s114, %s115
    %p119 = pneg %p113
    %p120 = scmp.eq.s32.totalorder %s10, 3
    %p121 = por %p119, %p120
    %p122 = scmp.ne.s32.totalorder %s114, %s117
    %p123 = scmp.eq.s32.totalorder %s10, 0
    %p124 = por %p122, %p123
    %p125 = scmp.ne.s32.totalorder %s114, %s117
    %p126 = scmp.eq.s32.totalorder %s15, 3
    %p127 = por %p125, %p126
    %p128 = scmp.ne.s32.totalorder %s117, %s118
    %p129 = scmp.eq.s32.totalorder %s15, 0
    %p130 = por %p128, %p129
    %p131 = scmp.ne.s32.totalorder %s117, %s118
    %p132 = scmp.eq.s32.totalorder %s16, 3
    %p133 = por %p131, %p132
    %p135 = scmp.ne.s32.totalorder %s118, %s134
    %p136 = scmp.eq.s32.totalorder %s16, 0
    %p137 = por %p135, %p136
    %p138 = scmp.le.s32.totalorder 1, %s10
    %p139 = scmp.lt.s32.totalorder %s10, 5
    %p140 = pnand %p138, %p139
    %p141 = pneg %p140
    // Predicated region
    $region9: #{apply_fn.4} parent=5 // pred_check
      _
    $region10: #{apply_fn.4} parent=5 // pred_check_branch
      %143 = sbr.rel (%p140) target = $region12
    $region11: #{apply_fn.4} parent=5 // pred_region
      %s144 = ssub.s32 %s10, 1
      // Predicated region
      $region13: #{apply_fn.4} parent=11 // pred_check
        %p145 = pneg %p83
      $region14: #{apply_fn.4} parent=11 // pred_check_branch
        %147 = sbr.rel (%p145) target = $region16
      $region15: #{apply_fn.4} parent=11 // pred_region
        _
      $region16: #{apply_fn.4} parent=11 // pred_fallthru
        _
      // Predicated region
      $region17: #{apply_fn.4} parent=11 // pred_check
        %p148 = pneg %p104
      $region18: #{apply_fn.4} parent=11 // pred_check_branch
        %150 = sbr.rel (%p148) target = $region20
      $region19: #{apply_fn.4} parent=11 // pred_region
        _
      $region20: #{apply_fn.4} parent=11 // pred_fallthru
        _
    $region12: #{apply_fn.4} parent=5 // pred_fallthru
      _
    %p151 = scmp.lt.s32.totalorder %s10, 4
    // Predicated region
    $region21: #{apply_fn.4} parent=5 // pred_check
      %p152 = pneg %p151
    $region22: #{apply_fn.4} parent=5 // pred_check_branch
      %154 = sbr.rel (%p152) target = $region24
    $region23: #{apply_fn.4} parent=5 // pred_region
      // Predicated region
      $region25: #{apply_fn.4} parent=23 // pred_check
        %p155 = pneg %p30
      $region26: #{apply_fn.4} parent=23 // pred_check_branch
        %157 = sbr.rel (%p155) target = $region28
      $region27: #{apply_fn.4} parent=23 // pred_region
        %s158 = smul.u32 32, %s10
        %p159 = scmp.lt.s32.totalorder %s158, 127
        %s160 = scalar_select %p159, %s158, 127
        %s161 = smul.addr %s160, 8
        %s162 = scalar_lea.vmem %s0, %s161
        %s163 = smul.u32 32, %s10
      $region28: #{apply_fn.4} parent=23 // pred_fallthru
        _
      // Predicated region
      $region29: #{apply_fn.4} parent=23 // pred_check
        %p164 = pneg %p56
      $region30: #{apply_fn.4} parent=23 // pred_check_branch
        %166 = sbr.rel (%p164) target = $region32
      $region31: #{apply_fn.4} parent=23 // pred_region
        %s167 = smul.u32 32, %s10
        %p168 = scmp.lt.s32.totalorder %s167, 127
        %s169 = scalar_select %p168, %s167, 127
        %s170 = smul.addr %s169, 2
        %s171 = smul.addr %s170, 8
        %s172 = scalar_lea.vmem %s1, %s171
        %s173 = smul.u32 32, %s10
      $region32: #{apply_fn.4} parent=23 // pred_fallthru
        _
    $region24: #{apply_fn.4} parent=5 // pred_fallthru
      _
    %p174 = scmp.le.s32.totalorder 1, %s10
    %p175 = scmp.lt.s32.totalorder %s10, 5
    %p176 = pnand %p174, %p175
    %p177 = pneg %p176
    // Predicated region
    $region33: #{apply_fn.4} parent=5 // pred_check
      _
    $region34: #{apply_fn.4} parent=5 // pred_check_branch
      %179 = sbr.rel (%p176) target = $region36
    $region35: #{apply_fn.4} parent=5 // pred_region
      %s180 = ssub.s32 %s10, 1
      %s181 = smul.u32 32, %s15
      %p182 = scmp.lt.s32.totalorder %s181, 127
      %s183 = scalar_select %p182, %s181, 127
      %s184 = smul.addr %s183, 8
      %s185 = scalar_lea.vmem %s0, %s184
      %p186 = pneg %p36
      %p187 = pneg %p33
      %s188 = smul.u32 32, %s15
      %p189 = scmp.lt.s32.totalorder %s188, 127
      %s190 = scalar_select %p189, %s188, 127
      %s191 = smul.addr %s190, 2
      %s192 = smul.addr %s191, 8
      %s193 = scalar_lea.vmem %s1, %s192
      %p194 = pneg %p62
      %p195 = pneg %p59
      %p196 = pneg %p83
      %p197 = pneg %p80
      %p198 = pneg %p104
      %p199 = pneg %p101
      %p200 = pneg %p130
      %p201 = pneg %p127
      %s202 = smul.u32 32, %s15
      %p203 = scmp.lt.s32.totalorder %s202, 127
      %s204 = scalar_select %p203, %s202, 127
      %s205 = smul.addr %s204, 8
      %s206 = scalar_lea.vmem %s4, %s205
      %s207 = smul.u32 32, %s15
      %p208 = scmp.lt.s32.totalorder %s207, 127
      %s209 = scalar_select %p208, %s207, 127
      %s210 = smul.addr %s209, 8
      %s211 = scalar_lea.vmem %s0, %s210
      %s212 = smul.u32 32, %s15
      %s213 = smul.u32 32, %s15
      %p214 = scmp.lt.s32.totalorder %s213, 127
      %s215 = scalar_select %p214, %s213, 127
      %s216 = smul.addr %s215, 2
      %s217 = smul.addr %s216, 8
      %s218 = scalar_lea.vmem %s1, %s217
      %s219 = smul.u32 32, %s15
      %s220 = smul.u32 32, %s15
      %p221 = scmp.lt.s32.totalorder %s220, 127
      %s222 = scalar_select %p221, %s220, 127
      %s223 = smul.addr %s222, 8
      %s224 = scalar_lea.vmem %s4, %s223
      %s225 = smul.u32 32, %s15
      %v226 = vld [vmem:[%s211] sm:$0xff]
      %v227 = vld [vmem:[%s211 + $0x8] sm:$0xff]
      %v228 = vld [vmem:[%s211 + $0x10] sm:$0xff]
      %v229 = vld [vmem:[%s211 + $0x18] sm:$0xff]
      %v230 = vld [vmem:[%s211 + $0x20] sm:$0xff]
      %v231 = vld [vmem:[%s211 + $0x28] sm:$0xff]
      %v232 = vld [vmem:[%s211 + $0x30] sm:$0xff]
      %v233 = vld [vmem:[%s211 + $0x38] sm:$0xff]
      %v234 = vld [vmem:[%s211 + $0x40] sm:$0xff]
      %v235 = vld [vmem:[%s211 + $0x48] sm:$0xff]
      %v236 = vld [vmem:[%s211 + $0x50] sm:$0xff]
      %v237 = vld [vmem:[%s211 + $0x58] sm:$0xff]
      %v238 = vld [vmem:[%s211 + $0x60] sm:$0xff]
      %v239 = vld [vmem:[%s211 + $0x68] sm:$0xff]
      %v240 = vld [vmem:[%s211 + $0x70] sm:$0xff]
      %v241 = vld [vmem:[%s211 + $0x78] sm:$0xff]
      %v242 = vld [vmem:[%s211 + $0x80] sm:$0xff]
      %v243 = vld [vmem:[%s211 + $0x88] sm:$0xff]
      %v244 = vld [vmem:[%s211 + $0x90] sm:$0xff]
      %v245 = vld [vmem:[%s211 + $0x98] sm:$0xff]
      %v246 = vld [vmem:[%s211 + $0xa0] sm:$0xff]
      %v247 = vld [vmem:[%s211 + $0xa8] sm:$0xff]
      %v248 = vld [vmem:[%s211 + $0xb0] sm:$0xff]
      %v249 = vld [vmem:[%s211 + $0xb8] sm:$0xff]
      %v250 = vld [vmem:[%s211 + $0xc0] sm:$0xff]
      %v251 = vld [vmem:[%s211 + $0xc8] sm:$0xff]
      %v252 = vld [vmem:[%s211 + $0xd0] sm:$0xff]
      %v253 = vld [vmem:[%s211 + $0xd8] sm:$0xff]
      %v254 = vld [vmem:[%s211 + $0xe0] sm:$0xff]
      %v255 = vld [vmem:[%s211 + $0xe8] sm:$0xff]
      %v256 = vld [vmem:[%s211 + $0xf0] sm:$0xff]
      %v257 = vld [vmem:[%s211 + $0xf8] sm:$0xff]
      %v258 = vld [vmem:[%s2] sm:$0xff]
      %v259 = vld [vmem:[%s2 + $0x8] sm:$0xff]
      %v260 = vld [vmem:[%s2 + $0x10] sm:$0xff]
      %v261 = vld [vmem:[%s2 + $0x18] sm:$0xff]
      %v262 = vld [vmem:[%s2 + $0x20] sm:$0xff]
      %v263 = vld [vmem:[%s2 + $0x28] sm:$0xff]
      %v264 = vld [vmem:[%s2 + $0x30] sm:$0xff]
      %v265 = vld [vmem:[%s2 + $0x38] sm:$0xff]
      %v266 = vld [vmem:[%s2 + $0x40] sm:$0xff]
      %v267 = vld [vmem:[%s2 + $0x48] sm:$0xff]
      %v268 = vld [vmem:[%s2 + $0x50] sm:$0xff]
      %v269 = vld [vmem:[%s2 + $0x58] sm:$0xff]
      %v270 = vld [vmem:[%s2 + $0x60] sm:$0xff]
      %v271 = vld [vmem:[%s2 + $0x68] sm:$0xff]
      %v272 = vld [vmem:[%s2 + $0x70] sm:$0xff]
      %v273 = vld [vmem:[%s2 + $0x78] sm:$0xff]
      %v274 = vld [vmem:[%s2 + $0x80] sm:$0xff]
      %v275 = vld [vmem:[%s2 + $0x88] sm:$0xff]
      %v276 = vld [vmem:[%s2 + $0x90] sm:$0xff]
      %v277 = vld [vmem:[%s2 + $0x98] sm:$0xff]
      %v278 = vld [vmem:[%s2 + $0xa0] sm:$0xff]
      %v279 = vld [vmem:[%s2 + $0xa8] sm:$0xff]
      %v280 = vld [vmem:[%s2 + $0xb0] sm:$0xff]
      %v281 = vld [vmem:[%s2 + $0xb8] sm:$0xff]
      %v282 = vld [vmem:[%s2 + $0xc0] sm:$0xff]
      %v283 = vld [vmem:[%s2 + $0xc8] sm:$0xff]
      %v284 = vld [vmem:[%s2 + $0xd0] sm:$0xff]
      %v285 = vld [vmem:[%s2 + $0xd8] sm:$0xff]
      %v286 = vld [vmem:[%s2 + $0xe0] sm:$0xff]
      %v287 = vld [vmem:[%s2 + $0xe8] sm:$0xff]
      %v288 = vld [vmem:[%s2 + $0xf0] sm:$0xff]
      %v289 = vld [vmem:[%s2 + $0xf8] sm:$0xff]
      %290 = vmatprep.subr.mxu0 %v289
      %291 = vmatpush1.msra.mxu0 %v288
      %292 = vmatprep.subr.mxu0 %v287
      %293 = vmatpush1.msra.mxu0 %v286
      %294 = vmatprep.subr.mxu0 %v285
      %295 = vmatpush1.msra.mxu0 %v284
      %296 = vmatprep.subr.mxu0 %v283
      %297 = vmatpush1.msra.mxu0 %v282
      %298 = vmatprep.subr.mxu0 %v281
      %299 = vmatpush1.msra.mxu0 %v280
      %300 = vmatprep.subr.mxu0 %v279
      %301 = vmatpush1.msra.mxu0 %v278
      %302 = vmatprep.subr.mxu0 %v277
      %303 = vmatpush1.msra.mxu0 %v276
      %304 = vmatprep.subr.mxu0 %v275
      %305 = vmatpush1.msra.mxu0 %v274
      %306 = vmatprep.subr.mxu0 %v273
      %307 = vmatpush1.msra.mxu0 %v272
      %308 = vmatprep.subr.mxu0 %v271
      %309 = vmatpush1.msra.mxu0 %v270
      %310 = vmatprep.subr.mxu0 %v269
      %311 = vmatpush1.msra.mxu0 %v268
      %312 = vmatprep.subr.mxu0 %v267
      %313 = vmatpush1.msra.mxu0 %v266
      %314 = vmatprep.subr.mxu0 %v265
      %315 = vmatpush1.msra.mxu0 %v264
      %316 = vmatprep.subr.mxu0 %v263
      %317 = vmatpush1.msra.mxu0 %v262
      %318 = vmatprep.subr.mxu0 %v261
      %319 = vmatpush1.msra.mxu0 %v260
      %320 = vmatprep.subr.mxu0 %v259
      %321 = vmatpush1.msra.mxu0 %v258
      %322 = vmatprep.subr.mxu0 0.0
      %323 = vmatpush2.msra.mxu0 0.0
      %324 = vmatprep.subr.mxu0 0.0
      %325 = vmatpush2.msra.mxu0 0.0
      %326 = vmatprep.subr.mxu0 0.0
      %327 = vmatpush2.msra.mxu0 0.0
      %328 = vmatprep.subr.mxu0 0.0
      %329 = vmatpush2.msra.mxu0 0.0
      %330 = vmatprep.subr.mxu0 0.0
      %331 = vmatpush2.msra.mxu0 0.0
      %332 = vmatprep.subr.mxu0 0.0
      %333 = vmatpush2.msra.mxu0 0.0
      %334 = vmatprep.subr.mxu0 0.0
      %335 = vmatpush2.msra.mxu0 0.0
      %336 = vmatprep.subr.mxu0 0.0
      %337 = vmatpush2.msra.mxu0 0.0
      %338 = vmatprep.subr.mxu0 0.0
      %339 = vmatpush2.msra.mxu0 0.0
      %340 = vmatprep.subr.mxu0 0.0
      %341 = vmatpush2.msra.mxu0 0.0
      %342 = vmatprep.subr.mxu0 0.0
      %343 = vmatpush2.msra.mxu0 0.0
      %344 = vmatprep.subr.mxu0 0.0
      %345 = vmatpush2.msra.mxu0 0.0
      %346 = vmatprep.subr.mxu0 0.0
      %347 = vmatpush2.msra.mxu0 0.0
      %348 = vmatprep.subr.mxu0 0.0
      %349 = vmatpush2.msra.mxu0 0.0
      %350 = vmatprep.subr.mxu0 0.0
      %351 = vmatpush2.msra.mxu0 0.0
      %352 = vmatprep.subr.mxu0 0.0
      %353 = vmatpush2.msra.mxu0 0.0
      %354 = vmatprep.mubr.f32.mxu0 0.0
      %355 = vmatmul.mubr.f32.gmra.mxu0 %v226
      %v356 = vpop.f32.mrf.mxu0
      %v357 = vadd.f32 0.0, %v356
      %v358 = vpop.f32.mrf.mxu0
      %v359 = vadd.f32 0.0, %v358
      %360 = vmatprep.mubr.f32.mxu0 0.0
      %361 = vmatmul.mubr.f32.gmra.mxu0 %v227
      %v362 = vpop.f32.mrf.mxu0
      %v363 = vadd.f32 0.0, %v362
      %v364 = vpop.f32.mrf.mxu0
      %v365 = vadd.f32 0.0, %v364
      %366 = vmatprep.mubr.f32.mxu0 0.0
      %367 = vmatmul.mubr.f32.gmra.mxu0 %v228
      %v368 = vpop.f32.mrf.mxu0
      %v369 = vadd.f32 0.0, %v368
      %v370 = vpop.f32.mrf.mxu0
      %v371 = vadd.f32 0.0, %v370
      %372 = vmatprep.mubr.f32.mxu0 0.0
      %373 = vmatmul.mubr.f32.gmra.mxu0 %v229
      %v374 = vpop.f32.mrf.mxu0
      %v375 = vadd.f32 0.0, %v374
      %v376 = vpop.f32.mrf.mxu0
      %v377 = vadd.f32 0.0, %v376
      %378 = vmatprep.mubr.f32.mxu0 0.0
      %379 = vmatmul.mubr.f32.gmra.mxu0 %v230
      %v380 = vpop.f32.mrf.mxu0
      %v381 = vadd.f32 0.0, %v380
      %v382 = vpop.f32.mrf.mxu0
      %v383 = vadd.f32 0.0, %v382
      %384 = vmatprep.mubr.f32.mxu0 0.0
      %385 = vmatmul.mubr.f32.gmra.mxu0 %v231
      %v386 = vpop.f32.mrf.mxu0
      %v387 = vadd.f32 0.0, %v386
      %v388 = vpop.f32.mrf.mxu0
      %v389 = vadd.f32 0.0, %v388
      %390 = vmatprep.mubr.f32.mxu0 0.0
      %391 = vmatmul.mubr.f32.gmra.mxu0 %v232
      %v392 = vpop.f32.mrf.mxu0
      %v393 = vadd.f32 0.0, %v392
      %v394 = vpop.f32.mrf.mxu0
      %v395 = vadd.f32 0.0, %v394
      %396 = vmatprep.mubr.f32.mxu0 0.0
      %397 = vmatmul.mubr.f32.gmra.mxu0 %v233
      %v398 = vpop.f32.mrf.mxu0
      %v399 = vadd.f32 0.0, %v398
      %v400 = vpop.f32.mrf.mxu0
      %v401 = vadd.f32 0.0, %v400
      %402 = vmatprep.mubr.f32.mxu0 0.0
      %403 = vmatmul.mubr.f32.gmra.mxu0 %v234
      %v404 = vpop.f32.mrf.mxu0
      %v405 = vadd.f32 0.0, %v404
      %v406 = vpop.f32.mrf.mxu0
      %v407 = vadd.f32 0.0, %v406
      %408 = vmatprep.mubr.f32.mxu0 0.0
      %409 = vmatmul.mubr.f32.gmra.mxu0 %v235
      %v410 = vpop.f32.mrf.mxu0
      %v411 = vadd.f32 0.0, %v410
      %v412 = vpop.f32.mrf.mxu0
      %v413 = vadd.f32 0.0, %v412
      %414 = vmatprep.mubr.f32.mxu0 0.0
      %415 = vmatmul.mubr.f32.gmra.mxu0 %v236
      %v416 = vpop.f32.mrf.mxu0
      %v417 = vadd.f32 0.0, %v416
      %v418 = vpop.f32.mrf.mxu0
      %v419 = vadd.f32 0.0, %v418
      %420 = vmatprep.mubr.f32.mxu0 0.0
      %421 = vmatmul.mubr.f32.gmra.mxu0 %v237
      %v422 = vpop.f32.mrf.mxu0
      %v423 = vadd.f32 0.0, %v422
      %v424 = vpop.f32.mrf.mxu0
      %v425 = vadd.f32 0.0, %v424
      %426 = vmatprep.mubr.f32.mxu0 0.0
      %427 = vmatmul.mubr.f32.gmra.mxu0 %v238
      %v428 = vpop.f32.mrf.mxu0
      %v429 = vadd.f32 0.0, %v428
      %v430 = vpop.f32.mrf.mxu0
      %v431 = vadd.f32 0.0, %v430
      %432 = vmatprep.mubr.f32.mxu0 0.0
      %433 = vmatmul.mubr.f32.gmra.mxu0 %v239
      %v434 = vpop.f32.mrf.mxu0
      %v435 = vadd.f32 0.0, %v434
      %v436 = vpop.f32.mrf.mxu0
      %v437 = vadd.f32 0.0, %v436
      %438 = vmatprep.mubr.f32.mxu0 0.0
      %439 = vmatmul.mubr.f32.gmra.mxu0 %v240
      %v440 = vpop.f32.mrf.mxu0
      %v441 = vadd.f32 0.0, %v440
      %v442 = vpop.f32.mrf.mxu0
      %v443 = vadd.f32 0.0, %v442
      %444 = vmatprep.mubr.f32.mxu0 0.0
      %445 = vmatmul.mubr.f32.gmra.mxu0 %v241
      %v446 = vpop.f32.mrf.mxu0
      %v447 = vadd.f32 0.0, %v446
      %v448 = vpop.f32.mrf.mxu0
      %v449 = vadd.f32 0.0, %v448
      %450 = vmatprep.mubr.f32.mxu0 0.0
      %451 = vmatmul.mubr.f32.gmra.mxu0 %v242
      %v452 = vpop.f32.mrf.mxu0
      %v453 = vadd.f32 0.0, %v452
      %v454 = vpop.f32.mrf.mxu0
      %v455 = vadd.f32 0.0, %v454
      %456 = vmatprep.mubr.f32.mxu0 0.0
      %457 = vmatmul.mubr.f32.gmra.mxu0 %v243
      %v458 = vpop.f32.mrf.mxu0
      %v459 = vadd.f32 0.0, %v458
      %v460 = vpop.f32.mrf.mxu0
      %v461 = vadd.f32 0.0, %v460
      %462 = vmatprep.mubr.f32.mxu0 0.0
      %463 = vmatmul.mubr.f32.gmra.mxu0 %v244
      %v464 = vpop.f32.mrf.mxu0
      %v465 = vadd.f32 0.0, %v464
      %v466 = vpop.f32.mrf.mxu0
      %v467 = vadd.f32 0.0, %v466
      %468 = vmatprep.mubr.f32.mxu0 0.0
      %469 = vmatmul.mubr.f32.gmra.mxu0 %v245
      %v470 = vpop.f32.mrf.mxu0
      %v471 = vadd.f32 0.0, %v470
      %v472 = vpop.f32.mrf.mxu0
      %v473 = vadd.f32 0.0, %v472
      %474 = vmatprep.mubr.f32.mxu0 0.0
      %475 = vmatmul.mubr.f32.gmra.mxu0 %v246
      %v476 = vpop.f32.mrf.mxu0
      %v477 = vadd.f32 0.0, %v476
      %v478 = vpop.f32.mrf.mxu0
      %v479 = vadd.f32 0.0, %v478
      %480 = vmatprep.mubr.f32.mxu0 0.0
      %481 = vmatmul.mubr.f32.gmra.mxu0 %v247
      %v482 = vpop.f32.mrf.mxu0
      %v483 = vadd.f32 0.0, %v482
      %v484 = vpop.f32.mrf.mxu0
      %v485 = vadd.f32 0.0, %v484
      %486 = vmatprep.mubr.f32.mxu0 0.0
      %487 = vmatmul.mubr.f32.gmra.mxu0 %v248
      %v488 = vpop.f32.mrf.mxu0
      %v489 = vadd.f32 0.0, %v488
      %v490 = vpop.f32.mrf.mxu0
      %v491 = vadd.f32 0.0, %v490
      %492 = vmatprep.mubr.f32.mxu0 0.0
      %493 = vmatmul.mubr.f32.gmra.mxu0 %v249
      %v494 = vpop.f32.mrf.mxu0
      %v495 = vadd.f32 0.0, %v494
      %v496 = vpop.f32.mrf.mxu0
      %v497 = vadd.f32 0.0, %v496
      %498 = vmatprep.mubr.f32.mxu0 0.0
      %499 = vmatmul.mubr.f32.gmra.mxu0 %v250
      %v500 = vpop.f32.mrf.mxu0
      %v501 = vadd.f32 0.0, %v500
      %v502 = vpop.f32.mrf.mxu0
      %v503 = vadd.f32 0.0, %v502
      %504 = vmatprep.mubr.f32.mxu0 0.0
      %505 = vmatmul.mubr.f32.gmra.mxu0 %v251
      %v506 = vpop.f32.mrf.mxu0
      %v507 = vadd.f32 0.0, %v506
      %v508 = vpop.f32.mrf.mxu0
      %v509 = vadd.f32 0.0, %v508
      %510 = vmatprep.mubr.f32.mxu0 0.0
      %511 = vmatmul.mubr.f32.gmra.mxu0 %v252
      %v512 = vpop.f32.mrf.mxu0
      %v513 = vadd.f32 0.0, %v512
      %v514 = vpop.f32.mrf.mxu0
      %v515 = vadd.f32 0.0, %v514
      %516 = vmatprep.mubr.f32.mxu0 0.0
      %517 = vmatmul.mubr.f32.gmra.mxu0 %v253
      %v518 = vpop.f32.mrf.mxu0
      %v519 = vadd.f32 0.0, %v518
      %v520 = vpop.f32.mrf.mxu0
      %v521 = vadd.f32 0.0, %v520
      %522 = vmatprep.mubr.f32.mxu0 0.0
      %523 = vmatmul.mubr.f32.gmra.mxu0 %v254
      %v524 = vpop.f32.mrf.mxu0
      %v525 = vadd.f32 0.0, %v524
      %v526 = vpop.f32.mrf.mxu0
      %v527 = vadd.f32 0.0, %v526
      %528 = vmatprep.mubr.f32.mxu0 0.0
      %529 = vmatmul.mubr.f32.gmra.mxu0 %v255
      %v530 = vpop.f32.mrf.mxu0
      %v531 = vadd.f32 0.0, %v530
      %v532 = vpop.f32.mrf.mxu0
      %v533 = vadd.f32 0.0, %v532
      %534 = vmatprep.mubr.f32.mxu0 0.0
      %535 = vmatmul.mubr.f32.gmra.mxu0 %v256
      %v536 = vpop.f32.mrf.mxu0
      %v537 = vadd.f32 0.0, %v536
      %v538 = vpop.f32.mrf.mxu0
      %v539 = vadd.f32 0.0, %v538
      %540 = vmatprep.mubr.f32.mxu0 0.0
      %541 = vmatmul.mubr.f32.gmra.mxu0 %v257
      %v542 = vpop.f32.mrf.mxu0
      %v543 = vadd.f32 0.0, %v542
      %v544 = vpop.f32.mrf.mxu0
      %v545 = vadd.f32 0.0, %v544
      %546 = vdwg.mxu0
      %v547 = vld [vmem:[%s218] sm:$0xff]
      %v548 = vld [vmem:[%s218 + $0x8] sm:$0xff]
      %v549 = vld [vmem:[%s218 + $0x10] sm:$0xff]
      %v550 = vld [vmem:[%s218 + $0x18] sm:$0xff]
      %v551 = vld [vmem:[%s218 + $0x20] sm:$0xff]
      %v552 = vld [vmem:[%s218 + $0x28] sm:$0xff]
      %v553 = vld [vmem:[%s218 + $0x30] sm:$0xff]
      %v554 = vld [vmem:[%s218 + $0x38] sm:$0xff]
      %v555 = vld [vmem:[%s218 + $0x40] sm:$0xff]
      %v556 = vld [vmem:[%s218 + $0x48] sm:$0xff]
      %v557 = vld [vmem:[%s218 + $0x50] sm:$0xff]
      %v558 = vld [vmem:[%s218 + $0x58] sm:$0xff]
      %v559 = vld [vmem:[%s218 + $0x60] sm:$0xff]
      %v560 = vld [vmem:[%s218 + $0x68] sm:$0xff]
      %v561 = vld [vmem:[%s218 + $0x70] sm:$0xff]
      %v562 = vld [vmem:[%s218 + $0x78] sm:$0xff]
      %v563 = vld [vmem:[%s218 + $0x80] sm:$0xff]
      %v564 = vld [vmem:[%s218 + $0x88] sm:$0xff]
      %v565 = vld [vmem:[%s218 + $0x90] sm:$0xff]
      %v566 = vld [vmem:[%s218 + $0x98] sm:$0xff]
      %v567 = vld [vmem:[%s218 + $0xa0] sm:$0xff]
      %v568 = vld [vmem:[%s218 + $0xa8] sm:$0xff]
      %v569 = vld [vmem:[%s218 + $0xb0] sm:$0xff]
      %v570 = vld [vmem:[%s218 + $0xb8] sm:$0xff]
      %v571 = vld [vmem:[%s218 + $0xc0] sm:$0xff]
      %v572 = vld [vmem:[%s218 + $0xc8] sm:$0xff]
      %v573 = vld [vmem:[%s218 + $0xd0] sm:$0xff]
      %v574 = vld [vmem:[%s218 + $0xd8] sm:$0xff]
      %v575 = vld [vmem:[%s218 + $0xe0] sm:$0xff]
      %v576 = vld [vmem:[%s218 + $0xe8] sm:$0xff]
      %v577 = vld [vmem:[%s218 + $0xf0] sm:$0xff]
      %v578 = vld [vmem:[%s218 + $0xf8] sm:$0xff]
      %v579 = vld [vmem:[%s218 + $0x100] sm:$0xff]
      %v580 = vld [vmem:[%s218 + $0x108] sm:$0xff]
      %v581 = vld [vmem:[%s218 + $0x110] sm:$0xff]
      %v582 = vld [vmem:[%s218 + $0x118] sm:$0xff]
      %v583 = vld [vmem:[%s218 + $0x120] sm:$0xff]
      %v584 = vld [vmem:[%s218 + $0x128] sm:$0xff]
      %v585 = vld [vmem:[%s218 + $0x130] sm:$0xff]
      %v586 = vld [vmem:[%s218 + $0x138] sm:$0xff]
      %v587 = vld [vmem:[%s218 + $0x140] sm:$0xff]
      %v588 = vld [vmem:[%s218 + $0x148] sm:$0xff]
      %v589 = vld [vmem:[%s218 + $0x150] sm:$0xff]
      %v590 = vld [vmem:[%s218 + $0x158] sm:$0xff]
      %v591 = vld [vmem:[%s218 + $0x160] sm:$0xff]
      %v592 = vld [vmem:[%s218 + $0x168] sm:$0xff]
      %v593 = vld [vmem:[%s218 + $0x170] sm:$0xff]
      %v594 = vld [vmem:[%s218 + $0x178] sm:$0xff]
      %v595 = vld [vmem:[%s218 + $0x180] sm:$0xff]
      %v596 = vld [vmem:[%s218 + $0x188] sm:$0xff]
      %v597 = vld [vmem:[%s218 + $0x190] sm:$0xff]
      %v598 = vld [vmem:[%s218 + $0x198] sm:$0xff]
      %v599 = vld [vmem:[%s218 + $0x1a0] sm:$0xff]
      %v600 = vld [vmem:[%s218 + $0x1a8] sm:$0xff]
      %v601 = vld [vmem:[%s218 + $0x1b0] sm:$0xff]
      %v602 = vld [vmem:[%s218 + $0x1b8] sm:$0xff]
      %v603 = vld [vmem:[%s218 + $0x1c0] sm:$0xff]
      %v604 = vld [vmem:[%s218 + $0x1c8] sm:$0xff]
      %v605 = vld [vmem:[%s218 + $0x1d0] sm:$0xff]
      %v606 = vld [vmem:[%s218 + $0x1d8] sm:$0xff]
      %v607 = vld [vmem:[%s218 + $0x1e0] sm:$0xff]
      %v608 = vld [vmem:[%s218 + $0x1e8] sm:$0xff]
      %v609 = vld [vmem:[%s218 + $0x1f0] sm:$0xff]
      %v610 = vld [vmem:[%s218 + $0x1f8] sm:$0xff]
      %v611 = vmul.f32 %v357, %v547
      %v612 = vmul.f32 %v359, %v548
      %v613 = vmul.f32 %v363, %v549
      %v614 = vmul.f32 %v365, %v550
      %v615 = vmul.f32 %v369, %v551
      %v616 = vmul.f32 %v371, %v552
      %v617 = vmul.f32 %v375, %v553
      %v618 = vmul.f32 %v377, %v554
      %v619 = vmul.f32 %v381, %v555
      %v620 = vmul.f32 %v383, %v556
      %v621 = vmul.f32 %v387, %v557
      %v622 = vmul.f32 %v389, %v558
      %v623 = vmul.f32 %v393, %v559
      %v624 = vmul.f32 %v395, %v560
      %v625 = vmul.f32 %v399, %v561
      %v626 = vmul.f32 %v401, %v562
      %v627 = vmul.f32 %v405, %v563
      %v628 = vmul.f32 %v407, %v564
      %v629 = vmul.f32 %v411, %v565
      %v630 = vmul.f32 %v413, %v566
      %v631 = vmul.f32 %v417, %v567
      %v632 = vmul.f32 %v419, %v568
      %v633 = vmul.f32 %v423, %v569
      %v634 = vmul.f32 %v425, %v570
      %v635 = vmul.f32 %v429, %v571
      %v636 = vmul.f32 %v431, %v572
      %v637 = vmul.f32 %v435, %v573
      %v638 = vmul.f32 %v437, %v574
      %v639 = vmul.f32 %v441, %v575
      %v640 = vmul.f32 %v443, %v576
      %v641 = vmul.f32 %v447, %v577
      %v642 = vmul.f32 %v449, %v578
      %v643 = vmul.f32 %v453, %v579
      %v644 = vmul.f32 %v455, %v580
      %v645 = vmul.f32 %v459, %v581
      %v646 = vmul.f32 %v461, %v582
      %v647 = vmul.f32 %v465, %v583
      %v648 = vmul.f32 %v467, %v584
      %v649 = vmul.f32 %v471, %v585
      %v650 = vmul.f32 %v473, %v586
      %v651 = vmul.f32 %v477, %v587
      %v652 = vmul.f32 %v479, %v588
      %v653 = vmul.f32 %v483, %v589
      %v654 = vmul.f32 %v485, %v590
      %v655 = vmul.f32 %v489, %v591
      %v656 = vmul.f32 %v491, %v592
      %v657 = vmul.f32 %v495, %v593
      %v658 = vmul.f32 %v497, %v594
      %v659 = vmul.f32 %v501, %v595
      %v660 = vmul.f32 %v503, %v596
      %v661 = vmul.f32 %v507, %v597
      %v662 = vmul.f32 %v509, %v598
      %v663 = vmul.f32 %v513, %v599
      %v664 = vmul.f32 %v515, %v600
      %v665 = vmul.f32 %v519, %v601
      %v666 = vmul.f32 %v521, %v602
      %v667 = vmul.f32 %v525, %v603
      %v668 = vmul.f32 %v527, %v604
      %v669 = vmul.f32 %v531, %v605
      %v670 = vmul.f32 %v533, %v606
      %v671 = vmul.f32 %v537, %v607
      %v672 = vmul.f32 %v539, %v608
      %v673 = vmul.f32 %v543, %v609
      %v674 = vmul.f32 %v545, %v610
      %v675 = vld [vmem:[%s3] sm:$0xff]
      %v676 = vld [vmem:[%s3 + $0x8] sm:$0xff]
      %v677 = vld [vmem:[%s3 + $0x10] sm:$0xff]
      %v678 = vld [vmem:[%s3 + $0x18] sm:$0xff]
      %v679 = vld [vmem:[%s3 + $0x20] sm:$0xff]
      %v680 = vld [vmem:[%s3 + $0x28] sm:$0xff]
      %v681 = vld [vmem:[%s3 + $0x30] sm:$0xff]
      %v682 = vld [vmem:[%s3 + $0x38] sm:$0xff]
      %v683 = vld [vmem:[%s3 + $0x40] sm:$0xff]
      %v684 = vld [vmem:[%s3 + $0x48] sm:$0xff]
      %v685 = vld [vmem:[%s3 + $0x50] sm:$0xff]
      %v686 = vld [vmem:[%s3 + $0x58] sm:$0xff]
      %v687 = vld [vmem:[%s3 + $0x60] sm:$0xff]
      %v688 = vld [vmem:[%s3 + $0x68] sm:$0xff]
      %v689 = vld [vmem:[%s3 + $0x70] sm:$0xff]
      %v690 = vld [vmem:[%s3 + $0x78] sm:$0xff]
      %v691 = vld [vmem:[%s3 + $0x80] sm:$0xff]
      %v692 = vld [vmem:[%s3 + $0x88] sm:$0xff]
      %v693 = vld [vmem:[%s3 + $0x90] sm:$0xff]
      %v694 = vld [vmem:[%s3 + $0x98] sm:$0xff]
      %v695 = vld [vmem:[%s3 + $0xa0] sm:$0xff]
      %v696 = vld [vmem:[%s3 + $0xa8] sm:$0xff]
      %v697 = vld [vmem:[%s3 + $0xb0] sm:$0xff]
      %v698 = vld [vmem:[%s3 + $0xb8] sm:$0xff]
      %v699 = vld [vmem:[%s3 + $0xc0] sm:$0xff]
      %v700 = vld [vmem:[%s3 + $0xc8] sm:$0xff]
      %v701 = vld [vmem:[%s3 + $0xd0] sm:$0xff]
      %v702 = vld [vmem:[%s3 + $0xd8] sm:$0xff]
      %v703 = vld [vmem:[%s3 + $0xe0] sm:$0xff]
      %v704 = vld [vmem:[%s3 + $0xe8] sm:$0xff]
      %v705 = vld [vmem:[%s3 + $0xf0] sm:$0xff]
      %v706 = vld [vmem:[%s3 + $0xf8] sm:$0xff]
      %707 = vmatprep.subr.mxu0 0.0
      %708 = vmatpush1.msra.mxu0 %v690
      %709 = vmatprep.subr.mxu0 0.0
      %710 = vmatpush1.msra.mxu0 %v689
      %711 = vmatprep.subr.mxu0 0.0
      %712 = vmatpush1.msra.mxu0 %v688
      %713 = vmatprep.subr.mxu0 0.0
      %714 = vmatpush1.msra.mxu0 %v687
      %715 = vmatprep.subr.mxu0 0.0
      %716 = vmatpush1.msra.mxu0 %v686
      %717 = vmatprep.subr.mxu0 0.0
      %718 = vmatpush1.msra.mxu0 %v685
      %719 = vmatprep.subr.mxu0 0.0
      %720 = vmatpush1.msra.mxu0 %v684
      %721 = vmatprep.subr.mxu0 0.0
      %722 = vmatpush1.msra.mxu0 %v683
      %723 = vmatprep.subr.mxu0 0.0
      %724 = vmatpush1.msra.mxu0 %v682
      %725 = vmatprep.subr.mxu0 0.0
      %726 = vmatpush1.msra.mxu0 %v681
      %727 = vmatprep.subr.mxu0 0.0
      %728 = vmatpush1.msra.mxu0 %v680
      %729 = vmatprep.subr.mxu0 0.0
      %730 = vmatpush1.msra.mxu0 %v679
      %731 = vmatprep.subr.mxu0 0.0
      %732 = vmatpush1.msra.mxu0 %v678
      %733 = vmatprep.subr.mxu0 0.0
      %734 = vmatpush1.msra.mxu0 %v677
      %735 = vmatprep.subr.mxu0 0.0
      %736 = vmatpush1.msra.mxu0 %v676
      %737 = vmatprep.subr.mxu0 0.0
      %738 = vmatpush1.msra.mxu0 %v675
      %739 = vmatprep.subr.mxu0 0.0
      %740 = vmatpush2.msra.mxu0 %v706
      %741 = vmatprep.subr.mxu0 0.0
      %742 = vmatpush2.msra.mxu0 %v705
      %743 = vmatprep.subr.mxu0 0.0
      %744 = vmatpush2.msra.mxu0 %v704
      %745 = vmatprep.subr.mxu0 0.0
      %746 = vmatpush2.msra.mxu0 %v703
      %747 = vmatprep.subr.mxu0 0.0
      %748 = vmatpush2.msra.mxu0 %v702
      %749 = vmatprep.subr.mxu0 0.0
      %750 = vmatpush2.msra.mxu0 %v701
      %751 = vmatprep.subr.mxu0 0.0
      %752 = vmatpush2.msra.mxu0 %v700
      %753 = vmatprep.subr.mxu0 0.0
      %754 = vmatpush2.msra.mxu0 %v699
      %755 = vmatprep.subr.mxu0 0.0
      %756 = vmatpush2.msra.mxu0 %v698
      %757 = vmatprep.subr.mxu0 0.0
      %758 = vmatpush2.msra.mxu0 %v697
      %759 = vmatprep.subr.mxu0 0.0
      %760 = vmatpush2.msra.mxu0 %v696
      %761 = vmatprep.subr.mxu0 0.0
      %762 = vmatpush2.msra.mxu0 %v695
      %763 = vmatprep.subr.mxu0 0.0
      %764 = vmatpush2.msra.mxu0 %v694
      %765 = vmatprep.subr.mxu0 0.0
      %766 = vmatpush2.msra.mxu0 %v693
      %767 = vmatprep.subr.mxu0 0.0
      %768 = vmatpush2.msra.mxu0 %v692
      %769 = vmatprep.subr.mxu0 0.0
      %770 = vmatpush2.msra.mxu0 %v691
      %771 = vmatprep.mubr.f32.mxu0 %v612
      %772 = vmatmul.mubr.f32.gmra.mxu0 %v611
      %v773 = vpop.f32.mrf.mxu0
      %v774 = vadd.f32 0.0, %v773
      %v775 = vpop.f32.mrf.mxu0
      %776 = vmatprep.mubr.f32.mxu0 %v614
      %777 = vmatmul.mubr.f32.gmra.mxu0 %v613
      %v778 = vpop.f32.mrf.mxu0
      %v779 = vadd.f32 0.0, %v778
      %v780 = vpop.f32.mrf.mxu0
      %781 = vmatprep.mubr.f32.mxu0 %v616
      %782 = vmatmul.mubr.f32.gmra.mxu0 %v615
      %v783 = vpop.f32.mrf.mxu0
      %v784 = vadd.f32 0.0, %v783
      %v785 = vpop.f32.mrf.mxu0
      %786 = vmatprep.mubr.f32.mxu0 %v618
      %787 = vmatmul.mubr.f32.gmra.mxu0 %v617
      %v788 = vpop.f32.mrf.mxu0
      %v789 = vadd.f32 0.0, %v788
      %v790 = vpop.f32.mrf.mxu0
      %791 = vmatprep.mubr.f32.mxu0 %v620
      %792 = vmatmul.mubr.f32.gmra.mxu0 %v619
      %v793 = vpop.f32.mrf.mxu0
      %v794 = vadd.f32 0.0, %v793
      %v795 = vpop.f32.mrf.mxu0
      %796 = vmatprep.mubr.f32.mxu0 %v622
      %797 = vmatmul.mubr.f32.gmra.mxu0 %v621
      %v798 = vpop.f32.mrf.mxu0
      %v799 = vadd.f32 0.0, %v798
      %v800 = vpop.f32.mrf.mxu0
      %801 = vmatprep.mubr.f32.mxu0 %v624
      %802 = vmatmul.mubr.f32.gmra.mxu0 %v623
      %v803 = vpop.f32.mrf.mxu0
      %v804 = vadd.f32 0.0, %v803
      %v805 = vpop.f32.mrf.mxu0
      %806 = vmatprep.mubr.f32.mxu0 %v626
      %807 = vmatmul.mubr.f32.gmra.mxu0 %v625
      %v808 = vpop.f32.mrf.mxu0
      %v809 = vadd.f32 0.0, %v808
      %v810 = vpop.f32.mrf.mxu0
      %811 = vmatprep.mubr.f32.mxu0 %v628
      %812 = vmatmul.mubr.f32.gmra.mxu0 %v627
      %v813 = vpop.f32.mrf.mxu0
      %v814 = vadd.f32 0.0, %v813
      %v815 = vpop.f32.mrf.mxu0
      %816 = vmatprep.mubr.f32.mxu0 %v630
      %817 = vmatmul.mubr.f32.gmra.mxu0 %v629
      %v818 = vpop.f32.mrf.mxu0
      %v819 = vadd.f32 0.0, %v818
      %v820 = vpop.f32.mrf.mxu0
      %821 = vmatprep.mubr.f32.mxu0 %v632
      %822 = vmatmul.mubr.f32.gmra.mxu0 %v631
      %v823 = vpop.f32.mrf.mxu0
      %v824 = vadd.f32 0.0, %v823
      %v825 = vpop.f32.mrf.mxu0
      %826 = vmatprep.mubr.f32.mxu0 %v634
      %827 = vmatmul.mubr.f32.gmra.mxu0 %v633
      %v828 = vpop.f32.mrf.mxu0
      %v829 = vadd.f32 0.0, %v828
      %v830 = vpop.f32.mrf.mxu0
      %831 = vmatprep.mubr.f32.mxu0 %v636
      %832 = vmatmul.mubr.f32.gmra.mxu0 %v635
      %v833 = vpop.f32.mrf.mxu0
      %v834 = vadd.f32 0.0, %v833
      %v835 = vpop.f32.mrf.mxu0
      %836 = vmatprep.mubr.f32.mxu0 %v638
      %837 = vmatmul.mubr.f32.gmra.mxu0 %v637
      %v838 = vpop.f32.mrf.mxu0
      %v839 = vadd.f32 0.0, %v838
      %v840 = vpop.f32.mrf.mxu0
      %841 = vmatprep.mubr.f32.mxu0 %v640
      %842 = vmatmul.mubr.f32.gmra.mxu0 %v639
      %v843 = vpop.f32.mrf.mxu0
      %v844 = vadd.f32 0.0, %v843
      %v845 = vpop.f32.mrf.mxu0
      %846 = vmatprep.mubr.f32.mxu0 %v642
      %847 = vmatmul.mubr.f32.gmra.mxu0 %v641
      %v848 = vpop.f32.mrf.mxu0
      %v849 = vadd.f32 0.0, %v848
      %v850 = vpop.f32.mrf.mxu0
      %851 = vmatprep.mubr.f32.mxu0 %v644
      %852 = vmatmul.mubr.f32.gmra.mxu0 %v643
      %v853 = vpop.f32.mrf.mxu0
      %v854 = vadd.f32 0.0, %v853
      %v855 = vpop.f32.mrf.mxu0
      %856 = vmatprep.mubr.f32.mxu0 %v646
      %857 = vmatmul.mubr.f32.gmra.mxu0 %v645
      %v858 = vpop.f32.mrf.mxu0
      %v859 = vadd.f32 0.0, %v858
      %v860 = vpop.f32.mrf.mxu0
      %861 = vmatprep.mubr.f32.mxu0 %v648
      %862 = vmatmul.mubr.f32.gmra.mxu0 %v647
      %v863 = vpop.f32.mrf.mxu0
      %v864 = vadd.f32 0.0, %v863
      %v865 = vpop.f32.mrf.mxu0
      %866 = vmatprep.mubr.f32.mxu0 %v650
      %867 = vmatmul.mubr.f32.gmra.mxu0 %v649
      %v868 = vpop.f32.mrf.mxu0
      %v869 = vadd.f32 0.0, %v868
      %v870 = vpop.f32.mrf.mxu0
      %871 = vmatprep.mubr.f32.mxu0 %v652
      %872 = vmatmul.mubr.f32.gmra.mxu0 %v651
      %v873 = vpop.f32.mrf.mxu0
      %v874 = vadd.f32 0.0, %v873
      %v875 = vpop.f32.mrf.mxu0
      %876 = vmatprep.mubr.f32.mxu0 %v654
      %877 = vmatmul.mubr.f32.gmra.mxu0 %v653
      %v878 = vpop.f32.mrf.mxu0
      %v879 = vadd.f32 0.0, %v878
      %v880 = vpop.f32.mrf.mxu0
      %881 = vmatprep.mubr.f32.mxu0 %v656
      %882 = vmatmul.mubr.f32.gmra.mxu0 %v655
      %v883 = vpop.f32.mrf.mxu0
      %v884 = vadd.f32 0.0, %v883
      %v885 = vpop.f32.mrf.mxu0
      %886 = vmatprep.mubr.f32.mxu0 %v658
      %887 = vmatmul.mubr.f32.gmra.mxu0 %v657
      %v888 = vpop.f32.mrf.mxu0
      %v889 = vadd.f32 0.0, %v888
      %v890 = vpop.f32.mrf.mxu0
      %891 = vmatprep.mubr.f32.mxu0 %v660
      %892 = vmatmul.mubr.f32.gmra.mxu0 %v659
      %v893 = vpop.f32.mrf.mxu0
      %v894 = vadd.f32 0.0, %v893
      %v895 = vpop.f32.mrf.mxu0
      %896 = vmatprep.mubr.f32.mxu0 %v662
      %897 = vmatmul.mubr.f32.gmra.mxu0 %v661
      %v898 = vpop.f32.mrf.mxu0
      %v899 = vadd.f32 0.0, %v898
      %v900 = vpop.f32.mrf.mxu0
      %901 = vmatprep.mubr.f32.mxu0 %v664
      %902 = vmatmul.mubr.f32.gmra.mxu0 %v663
      %v903 = vpop.f32.mrf.mxu0
      %v904 = vadd.f32 0.0, %v903
      %v905 = vpop.f32.mrf.mxu0
      %906 = vmatprep.mubr.f32.mxu0 %v666
      %907 = vmatmul.mubr.f32.gmra.mxu0 %v665
      %v908 = vpop.f32.mrf.mxu0
      %v909 = vadd.f32 0.0, %v908
      %v910 = vpop.f32.mrf.mxu0
      %911 = vmatprep.mubr.f32.mxu0 %v668
      %912 = vmatmul.mubr.f32.gmra.mxu0 %v667
      %v913 = vpop.f32.mrf.mxu0
      %v914 = vadd.f32 0.0, %v913
      %v915 = vpop.f32.mrf.mxu0
      %916 = vmatprep.mubr.f32.mxu0 %v670
      %917 = vmatmul.mubr.f32.gmra.mxu0 %v669
      %v918 = vpop.f32.mrf.mxu0
      %v919 = vadd.f32 0.0, %v918
      %v920 = vpop.f32.mrf.mxu0
      %921 = vmatprep.mubr.f32.mxu0 %v672
      %922 = vmatmul.mubr.f32.gmra.mxu0 %v671
      %v923 = vpop.f32.mrf.mxu0
      %v924 = vadd.f32 0.0, %v923
      %v925 = vpop.f32.mrf.mxu0
      %926 = vmatprep.mubr.f32.mxu0 %v674
      %927 = vmatmul.mubr.f32.gmra.mxu0 %v673
      %v928 = vpop.f32.mrf.mxu0
      %v929 = vadd.f32 0.0, %v928
      %v930 = vpop.f32.mrf.mxu0
      %931 = vdwg.mxu0
      %932 = vst [vmem:[%s224] sm:$0xff] %v774
      %933 = vst [vmem:[%s224 + $0x8] sm:$0xff] %v779
      %934 = vst [vmem:[%s224 + $0x10] sm:$0xff] %v784
      %935 = vst [vmem:[%s224 + $0x18] sm:$0xff] %v789
      %936 = vst [vmem:[%s224 + $0x20] sm:$0xff] %v794
      %937 = vst [vmem:[%s224 + $0x28] sm:$0xff] %v799
      %938 = vst [vmem:[%s224 + $0x30] sm:$0xff] %v804
      %939 = vst [vmem:[%s224 + $0x38] sm:$0xff] %v809
      %940 = vst [vmem:[%s224 + $0x40] sm:$0xff] %v814
      %941 = vst [vmem:[%s224 + $0x48] sm:$0xff] %v819
      %942 = vst [vmem:[%s224 + $0x50] sm:$0xff] %v824
      %943 = vst [vmem:[%s224 + $0x58] sm:$0xff] %v829
      %944 = vst [vmem:[%s224 + $0x60] sm:$0xff] %v834
      %945 = vst [vmem:[%s224 + $0x68] sm:$0xff] %v839
      %946 = vst [vmem:[%s224 + $0x70] sm:$0xff] %v844
      %947 = vst [vmem:[%s224 + $0x78] sm:$0xff] %v849
      %948 = vst [vmem:[%s224 + $0x80] sm:$0xff] %v854
      %949 = vst [vmem:[%s224 + $0x88] sm:$0xff] %v859
      %950 = vst [vmem:[%s224 + $0x90] sm:$0xff] %v864
      %951 = vst [vmem:[%s224 + $0x98] sm:$0xff] %v869
      %952 = vst [vmem:[%s224 + $0xa0] sm:$0xff] %v874
      %953 = vst [vmem:[%s224 + $0xa8] sm:$0xff] %v879
      %954 = vst [vmem:[%s224 + $0xb0] sm:$0xff] %v884
      %955 = vst [vmem:[%s224 + $0xb8] sm:$0xff] %v889
      %956 = vst [vmem:[%s224 + $0xc0] sm:$0xff] %v894
      %957 = vst [vmem:[%s224 + $0xc8] sm:$0xff] %v899
      %958 = vst [vmem:[%s224 + $0xd0] sm:$0xff] %v904
      %959 = vst [vmem:[%s224 + $0xd8] sm:$0xff] %v909
      %960 = vst [vmem:[%s224 + $0xe0] sm:$0xff] %v914
      %961 = vst [vmem:[%s224 + $0xe8] sm:$0xff] %v919
      %962 = vst [vmem:[%s224 + $0xf0] sm:$0xff] %v924
      %963 = vst [vmem:[%s224 + $0xf8] sm:$0xff] %v929
      %s964 = smul.u32 32, %s15
      %p965 = scmp.lt.s32.totalorder %s964, 127
      %s966 = scalar_select %p965, %s964, 127
      %s967 = smul.addr %s966, 8
      %s968 = scalar_lea.vmem %s4, %s967
      // Predicated region
      $region37: #{apply_fn.4} parent=35 // pred_check
        %p969 = pneg %p127
      $region38: #{apply_fn.4} parent=35 // pred_check_branch
        %971 = sbr.rel (%p969) target = $region40
      $region39: #{apply_fn.4} parent=35 // pred_region
        %s972 = smul.u32 32, %s15
      $region40: #{apply_fn.4} parent=35 // pred_fallthru
        _
    $region36: #{apply_fn.4} parent=5 // pred_fallthru
      _
    %p973 = scmp.le.s32.totalorder 2, %s10
    // Predicated region
    $region41: #{apply_fn.4} parent=5 // pred_check
      %p974 = pneg %p973
    $region42: #{apply_fn.4} parent=5 // pred_check_branch
      %976 = sbr.rel (%p974) target = $region44
    $region43: #{apply_fn.4} parent=5 // pred_region
      %s977 = ssub.s32 %s10, 2
      // Predicated region
      $region45: #{apply_fn.4} parent=43 // pred_check
        %p978 = pneg %p133
      $region46: #{apply_fn.4} parent=43 // pred_check_branch
        %980 = sbr.rel (%p978) target = $region48
      $region47: #{apply_fn.4} parent=43 // pred_region
        %s981 = smul.u32 32, %s16
        %p982 = scmp.lt.s32.totalorder %s981, 127
        %s983 = scalar_select %p982, %s981, 127
        %s984 = smul.addr %s983, 8
        %s985 = scalar_lea.vmem %s4, %s984
      $region48: #{apply_fn.4} parent=43 // pred_fallthru
        _
    $region44: #{apply_fn.4} parent=5 // pred_fallthru
      _
  $region6: #{apply_fn.4} parent=0 // loop_footer
    %s14 = sadd.s32 1, %s10
  $region7: #{apply_fn.4} parent=0 // loop_footer_branch
    %9 = sbr.rel target = $region3
  $region8: #{apply_fn.4} parent=0 // loop_exit
    _

// kernel: apply_fn.5
$region0: #{apply_fn.5}
  #allocation0 [shape = 'u32[]', space=smem, size = 0x4, offset = 0x4, fixed_abs, tag = 'smem constant byte address 0x4 - core index']
  #allocation1 [shape = 'u32[144,128]{1,0:T(1,128)}', space=vmem, size = 0x12000, scoped, tag = 'internal scratch']
  %s0 = inlined_call_operand.vmem [shape: f32[32,2048], index: 0, kind: input, shape index: {}]
  %s1 = inlined_call_operand.vmem [shape: f32[32,2048], index: 1, kind: input, shape index: {}]
  %s2 = inlined_call_operand.vmem [shape: f32[32,8], index: 2, kind: input, shape index: {}]
  %s3 = inlined_call_operand.vmem [shape: f32[8,2048], index: 3, kind: input, shape index: {}]
  %s4 = inlined_call_operand.hbm [shape: f32[32,2048], index: 4, kind: output, shape index: {}]
  %s5 = sld [smem:[#allocation0]]
  $region49: #{apply_fn.5} parent=0
    _
  %s7 = ssub.s32 1, %s5
  %s8 = scalar_select 0, %s7, %s5
  $region1: #{apply_fn.5} parent=0
    #allocation2 [shape = 'u8[131072]{0}', space=vmem, size = 0x20000, scoped, tag = 'output window, operand 0']
    #allocation3 [shape = 's32[2]{0}', space=sflag, size = 0x8, scoped, tag = 'scoped memory for apply_fn.5']
    %9 = vsyncpa [#allocation3], 0
    %s10 = scalar_lea.sflag [#allocation3], 1
    %11 = vsyncpa %s10, 0
    loop: start=0, step=1, limit=6
    $region2: #{apply_fn.5} parent=1 // loop_pre_header
      _
    $region3: #{apply_fn.5} parent=1 // loop_header
      %s13 = sphi 0, %s17
      %p14 = scmp.ge.s32.totalorder %s13, 6
      %s23 = sphi 0, %s25
      %s26 = sphi 0, %s23
      %s27 = sphi 0, %s26
      %s43 = sphi 0, %s27
      %s49 = sphi 0, %s51
      %s52 = sphi 0, %s49
      %s53 = sphi 0, %s52
      %s69 = sphi 0, %s53
      %s75 = sphi 0, %s77
      %s78 = sphi 0, %s75
      %s79 = sphi 0, %s78
      %s95 = sphi 0, %s79
      %s99 = sphi 0, %s99
      %s101 = sphi 0, %s99
      %s102 = sphi 0, %s101
      %s116 = sphi 0, %s102
      %s122 = sphi 0, %s124
      %s125 = sphi 0, %s122
      %s126 = sphi 0, %s125
      %s142 = sphi 0, %s126
    $region4: #{apply_fn.5} parent=1 // loop_header_branch
      %16 = sbr.rel (%p14) target = $region8
    $region5: #{apply_fn.5} parent=1 // loop_body
      %s18 = ssub.s32 %s13, 1
      %s19 = ssub.s32 %s13, 2
      %s20 = sadd.s32 %s13, 1
      %s21 = ssub.s32 %s13, %s20
      %p22 = scmp.eq.s32.totalorder %s21, 0
      %s24 = sadd.s32 %s23, 1
      %s25 = scalar_select %p22, %s23, %s24
      %p28 = pneg %p22
      %p29 = scmp.eq.s32.totalorder %s13, 3
      %p30 = por %p28, %p29
      %p31 = scmp.ne.s32.totalorder %s23, %s26
      %p32 = scmp.eq.s32.totalorder %s13, 0
      %p33 = por %p31, %p32
      %p34 = scmp.ne.s32.totalorder %s23, %s26
      %p35 = scmp.eq.s32.totalorder %s18, 3
      %p36 = por %p34, %p35
      %p37 = scmp.ne.s32.totalorder %s26, %s27
      %p38 = scmp.eq.s32.totalorder %s18, 0
      %p39 = por %p37, %p38
      %p40 = scmp.ne.s32.totalorder %s26, %s27
      %p41 = scmp.eq.s32.totalorder %s19, 3
      %p42 = por %p40, %p41
      %p44 = scmp.ne.s32.totalorder %s27, %s43
      %p45 = scmp.eq.s32.totalorder %s19, 0
      %p46 = por %p44, %p45
      %s47 = ssub.s32 %s13, %s20
      %p48 = scmp.eq.s32.totalorder %s47, 0
      %s50 = sadd.s32 %s49, 1
      %s51 = scalar_select %p48, %s49, %s50
      %p54 = pneg %p48
      %p55 = scmp.eq.s32.totalorder %s13, 3
      %p56 = por %p54, %p55
      %p57 = scmp.ne.s32.totalorder %s49, %s52
      %p58 = scmp.eq.s32.totalorder %s13, 0
      %p59 = por %p57, %p58
      %p60 = scmp.ne.s32.totalorder %s49, %s52
      %p61 = scmp.eq.s32.totalorder %s18, 3
      %p62 = por %p60, %p61
      %p63 = scmp.ne.s32.totalorder %s52, %s53
      %p64 = scmp.eq.s32.totalorder %s18, 0
      %p65 = por %p63, %p64
      %p66 = scmp.ne.s32.totalorder %s52, %s53
      %p67 = scmp.eq.s32.totalorder %s19, 3
      %p68 = por %p66, %p67
      %p70 = scmp.ne.s32.totalorder %s53, %s69
      %p71 = scmp.eq.s32.totalorder %s19, 0
      %p72 = por %p70, %p71
      %s73 = ssub.s32 %s13, %s20
      %p74 = scmp.eq.s32.totalorder %s73, 0
      %s76 = sadd.s32 %s75, 1
      %s77 = scalar_select %p74, %s75, %s76
      %p80 = pneg %p74
      %p81 = scmp.eq.s32.totalorder %s13, 3
      %p82 = por %p80, %p81
      %p83 = scmp.ne.s32.totalorder %s75, %s78
      %p84 = scmp.eq.s32.totalorder %s13, 0
      %p85 = por %p83, %p84
      %p86 = scmp.ne.s32.totalorder %s75, %s78
      %p87 = scmp.eq.s32.totalorder %s18, 3
      %p88 = por %p86, %p87
      %p89 = scmp.ne.s32.totalorder %s78, %s79
      %p90 = scmp.eq.s32.totalorder %s18, 0
      %p91 = por %p89, %p90
      %p92 = scmp.ne.s32.totalorder %s78, %s79
      %p93 = scmp.eq.s32.totalorder %s19, 3
      %p94 = por %p92, %p93
      %p96 = scmp.ne.s32.totalorder %s79, %s95
      %p97 = scmp.eq.s32.totalorder %s19, 0
      %p98 = por %p96, %p97
      %s100 = sadd.s32 %s99, 1
      %p103 = scmp.eq.s32.totalorder %s13, 3
      %p104 = scmp.ne.s32.totalorder %s99, %s101
      %p105 = scmp.eq.s32.totalorder %s13, 0
      %p106 = por %p104, %p105
      %p107 = scmp.ne.s32.totalorder %s99, %s101
      %p108 = scmp.eq.s32.totalorder %s18, 3
      %p109 = por %p107, %p108
      %p110 = scmp.ne.s32.totalorder %s101, %s102
      %p111 = scmp.eq.s32.totalorder %s18, 0
      %p112 = por %p110, %p111
      %p113 = scmp.ne.s32.totalorder %s101, %s102
      %p114 = scmp.eq.s32.totalorder %s19, 3
      %p115 = por %p113, %p114
      %p117 = scmp.ne.s32.totalorder %s102, %s116
      %p118 = scmp.eq.s32.totalorder %s19, 0
      %p119 = por %p117, %p118
      %s120 = ssub.s32 %s13, %s20
      %p121 = scmp.eq.s32.totalorder %s120, 0
      %s123 = sadd.s32 %s122, 1
      %s124 = scalar_select %p121, %s122, %s123
      %p127 = pneg %p121
      %p128 = scmp.eq.s32.totalorder %s13, 3
      %p129 = por %p127, %p128
      %p130 = scmp.ne.s32.totalorder %s122, %s125
      %p131 = scmp.eq.s32.totalorder %s13, 0
      %p132 = por %p130, %p131
      %p133 = scmp.ne.s32.totalorder %s122, %s125
      %p134 = scmp.eq.s32.totalorder %s18, 3
      %p135 = por %p133, %p134
      %p136 = scmp.ne.s32.totalorder %s125, %s126
      %p137 = scmp.eq.s32.totalorder %s18, 0
      %p138 = por %p136, %p137
      %p139 = scmp.ne.s32.totalorder %s125, %s126
      %p140 = scmp.eq.s32.totalorder %s19, 3
      %p141 = por %p139, %p140
      %p143 = scmp.ne.s32.totalorder %s126, %s142
      %p144 = scmp.eq.s32.totalorder %s19, 0
      %p145 = por %p143, %p144
      %p146 = scmp.le.s32.totalorder 1, %s13
      %p147 = scmp.lt.s32.totalorder %s13, 5
      %p148 = pnand %p146, %p147
      %p149 = pneg %p148
      // Predicated region
      $region9: #{apply_fn.5} parent=5 // pred_check
        _
      $region10: #{apply_fn.5} parent=5 // pred_check_branch
        %151 = sbr.rel (%p148) target = $region12
      $region11: #{apply_fn.5} parent=5 // pred_region
        %s152 = ssub.s32 %s13, 1
        // Predicated region
        $region13: #{apply_fn.5} parent=11 // pred_check
          %p153 = pneg %p112
        $region14: #{apply_fn.5} parent=11 // pred_check_branch
          %155 = sbr.rel (%p153) target = $region16
        $region15: #{apply_fn.5} parent=11 // pred_region
          _
        $region16: #{apply_fn.5} parent=11 // pred_fallthru
          _
      $region12: #{apply_fn.5} parent=5 // pred_fallthru
        _
      %p156 = scmp.lt.s32.totalorder %s13, 4
      // Predicated region
      $region17: #{apply_fn.5} parent=5 // pred_check
        %p157 = pneg %p156
      $region18: #{apply_fn.5} parent=5 // pred_check_branch
        %159 = sbr.rel (%p157) target = $region20
      $region19: #{apply_fn.5} parent=5 // pred_region
        // Predicated region
        $region21: #{apply_fn.5} parent=19 // pred_check
          %p160 = pneg %p33
        $region22: #{apply_fn.5} parent=19 // pred_check_branch
          %162 = sbr.rel (%p160) target = $region24
        $region23: #{apply_fn.5} parent=19 // pred_region
          %p163 = scmp.lt.s32.totalorder %s13, 3
          %s164 = scalar_select %p163, %s13, 3
          %s165 = smul.addr %s164, 16
          %s166 = smul.addr %s165, 8
          %s167 = scalar_lea.vmem %s0, %s166
        $region24: #{apply_fn.5} parent=19 // pred_fallthru
          _
        // Predicated region
        $region25: #{apply_fn.5} parent=19 // pred_check
          %p168 = pneg %p59
        $region26: #{apply_fn.5} parent=19 // pred_check_branch
          %170 = sbr.rel (%p168) target = $region28
        $region27: #{apply_fn.5} parent=19 // pred_region
          %p171 = scmp.lt.s32.totalorder %s13, 3
          %s172 = scalar_select %p171, %s13, 3
          %s173 = smul.addr %s172, 16
          %s174 = smul.addr %s173, 8
          %s175 = scalar_lea.vmem %s1, %s174
        $region28: #{apply_fn.5} parent=19 // pred_fallthru
          _
        // Predicated region
        $region29: #{apply_fn.5} parent=19 // pred_check
          %p176 = pneg %p85
        $region30: #{apply_fn.5} parent=19 // pred_check_branch
          %178 = sbr.rel (%p176) target = $region32
        $region31: #{apply_fn.5} parent=19 // pred_region
          %p179 = scmp.lt.s32.totalorder %s13, 3
          %s180 = scalar_select %p179, %s13, 3
          %s181 = smul.addr %s180, 8
          %s182 = scalar_lea.vmem %s2, %s181
        $region32: #{apply_fn.5} parent=19 // pred_fallthru
          _
      $region20: #{apply_fn.5} parent=5 // pred_fallthru
        _
      %p183 = scmp.le.s32.totalorder 1, %s13
      %p184 = scmp.lt.s32.totalorder %s13, 5
      %p185 = pnand %p183, %p184
      %p186 = pneg %p185
      // Predicated region
      $region33: #{apply_fn.5} parent=5 // pred_check
        _
      $region34: #{apply_fn.5} parent=5 // pred_check_branch
        %188 = sbr.rel (%p185) target = $region36
      $region35: #{apply_fn.5} parent=5 // pred_region
        %s189 = ssub.s32 %s13, 1
        %p190 = scmp.lt.s32.totalorder %s18, 3
        %s191 = scalar_select %p190, %s18, 3
        %s192 = smul.addr %s191, 16
        %s193 = smul.addr %s192, 8
        %s194 = scalar_lea.vmem %s0, %s193
        %p195 = pneg %p39
        %p196 = pneg %p36
        %p197 = scmp.lt.s32.totalorder %s18, 3
        %s198 = scalar_select %p197, %s18, 3
        %s199 = smul.addr %s198, 16
        %s200 = smul.addr %s199, 8
        %s201 = scalar_lea.vmem %s1, %s200
        %p202 = pneg %p65
        %p203 = pneg %p62
        %p204 = scmp.lt.s32.totalorder %s18, 3
        %s205 = scalar_select %p204, %s18, 3
        %s206 = smul.addr %s205, 8
        %s207 = scalar_lea.vmem %s2, %s206
        %p208 = pneg %p91
        %p209 = pneg %p88
        %p210 = pneg %p112
        %p211 = pneg %p109
        %p212 = pneg %p138
        %p213 = pneg %p135
        %s214 = sand.u32 %s125, 1
        %s215 = scalar_lea.sflag [#allocation3], %s214
        %s216 = sand.u32 %s125, 1
        %s217 = smul.addr %s216, 128
        %s218 = scalar_lea.vmem [#allocation2], %s217
        %p219 = scmp.lt.s32.totalorder %s18, 3
        %s220 = scalar_select %p219, %s18, 3
        %s221 = smul.addr %s220, 16
        %s222 = smul.addr %s221, 8
        %s223 = scalar_lea.vmem %s0, %s222
        %p224 = scmp.lt.s32.totalorder %s18, 3
        %s225 = scalar_select %p224, %s18, 3
        %s226 = smul.addr %s225, 16
        %s227 = smul.addr %s226, 8
        %s228 = scalar_lea.vmem %s1, %s227
        %p229 = scmp.lt.s32.totalorder %s18, 3
        %s230 = scalar_select %p229, %s18, 3
        %s231 = smul.addr %s230, 8
        %s232 = scalar_lea.vmem %s2, %s231
        %v233 = vld [vmem:[%s228] sm:$0xff]
        %v234 = vld [vmem:[%s228 + $0x8] sm:$0xff]
        %v235 = vld [vmem:[%s228 + $0x10] sm:$0xff]
        %v236 = vld [vmem:[%s228 + $0x18] sm:$0xff]
        %v237 = vld [vmem:[%s228 + $0x20] sm:$0xff]
        %v238 = vld [vmem:[%s228 + $0x28] sm:$0xff]
        %v239 = vld [vmem:[%s228 + $0x30] sm:$0xff]
        %v240 = vld [vmem:[%s228 + $0x38] sm:$0xff]
        %v241 = vld [vmem:[%s228 + $0x40] sm:$0xff]
        %v242 = vld [vmem:[%s228 + $0x48] sm:$0xff]
        %v243 = vld [vmem:[%s228 + $0x50] sm:$0xff]
        %v244 = vld [vmem:[%s228 + $0x58] sm:$0xff]
        %v245 = vld [vmem:[%s228 + $0x60] sm:$0xff]
        %v246 = vld [vmem:[%s228 + $0x68] sm:$0xff]
        %v247 = vld [vmem:[%s228 + $0x70] sm:$0xff]
        %v248 = vld [vmem:[%s228 + $0x78] sm:$0xff]
        %265 = vrot.lane.b32.xlu0 %v233, 64
        %v266 = vpop.permute.xlu0 %265
        %267 = vrot.lane.b32.xlu0 %v234, 64
        %v268 = vpop.permute.xlu0 %267
        %269 = vrot.lane.b32.xlu0 %v235, 64
        %v270 = vpop.permute.xlu0 %269
        %271 = vrot.lane.b32.xlu0 %v236, 64
        %v272 = vpop.permute.xlu0 %271
        %273 = vrot.lane.b32.xlu0 %v237, 64
        %v274 = vpop.permute.xlu0 %273
        %275 = vrot.lane.b32.xlu0 %v238, 64
        %v276 = vpop.permute.xlu0 %275
        %277 = vrot.lane.b32.xlu0 %v239, 64
        %v278 = vpop.permute.xlu0 %277
        %279 = vrot.lane.b32.xlu0 %v240, 64
        %v280 = vpop.permute.xlu0 %279
        %281 = vrot.lane.b32.xlu0 %v241, 64
        %v282 = vpop.permute.xlu0 %281
        %283 = vrot.lane.b32.xlu0 %v242, 64
        %v284 = vpop.permute.xlu0 %283
        %285 = vrot.lane.b32.xlu0 %v243, 64
        %v286 = vpop.permute.xlu0 %285
        %287 = vrot.lane.b32.xlu0 %v244, 64
        %v288 = vpop.permute.xlu0 %287
        %289 = vrot.lane.b32.xlu0 %v245, 64
        %v290 = vpop.permute.xlu0 %289
        %291 = vrot.lane.b32.xlu0 %v246, 64
        %v292 = vpop.permute.xlu0 %291
        %293 = vrot.lane.b32.xlu0 %v247, 64
        %v294 = vpop.permute.xlu0 %293
        %295 = vrot.lane.b32.xlu0 %v248, 64
        %v296 = vpop.permute.xlu0 %295
        %vm297 = vcmask 523264
        %v298 = vsel %vm297, %v266, %v268
        %v299 = vsel %vm297, %v268, %v270
        %v300 = vsel %vm297, %v270, %v272
        %v301 = vsel %vm297, %v272, %v274
        %v302 = vsel %vm297, %v274, %v276
        %v303 = vsel %vm297, %v276, %v278
        %v304 = vsel %vm297, %v278, %v280
        %v305 = vsel %vm297, %v280, %v282
        %v306 = vsel %vm297, %v282, %v284
        %v307 = vsel %vm297, %v284, %v286
        %v308 = vsel %vm297, %v286, %v288
        %v309 = vsel %vm297, %v288, %v290
        %v310 = vsel %vm297, %v290, %v292
        %v311 = vsel %vm297, %v292, %v294
        %v312 = vsel %vm297, %v294, %v296
        %v329 = vsel %vm297, 0.0, %v266
        %v330 = vld [vmem:[%s232] sm:$0xff]
        %v331 = vld [vmem:[%s3] sm:$0xff]
        %v332 = vld [vmem:[%s3 + $0x8] sm:$0xff]
        %v333 = vld [vmem:[%s3 + $0x10] sm:$0xff]
        %v334 = vld [vmem:[%s3 + $0x18] sm:$0xff]
        %v335 = vld [vmem:[%s3 + $0x20] sm:$0xff]
        %v336 = vld [vmem:[%s3 + $0x28] sm:$0xff]
        %v337 = vld [vmem:[%s3 + $0x30] sm:$0xff]
        %v338 = vld [vmem:[%s3 + $0x38] sm:$0xff]
        %v339 = vld [vmem:[%s3 + $0x40] sm:$0xff]
        %v340 = vld [vmem:[%s3 + $0x48] sm:$0xff]
        %v341 = vld [vmem:[%s3 + $0x50] sm:$0xff]
        %v342 = vld [vmem:[%s3 + $0x58] sm:$0xff]
        %v343 = vld [vmem:[%s3 + $0x60] sm:$0xff]
        %v344 = vld [vmem:[%s3 + $0x68] sm:$0xff]
        %v345 = vld [vmem:[%s3 + $0x70] sm:$0xff]
        %v346 = vld [vmem:[%s3 + $0x78] sm:$0xff]
        %vm347 = vcmask 64512
        %v349 = vsel %vm347, %v330, 0
        %351 = vmatprep.subr.mxu0 0.0
        %352 = vmatpush1.msra.mxu0 0.0
        %353 = vmatprep.subr.mxu0 0.0
        %354 = vmatpush1.msra.mxu0 0.0
        %355 = vmatprep.subr.mxu0 0.0
        %356 = vmatpush1.msra.mxu0 0.0
        %357 = vmatprep.subr.mxu0 0.0
        %358 = vmatpush1.msra.mxu0 0.0
        %359 = vmatprep.subr.mxu0 0.0
        %360 = vmatpush1.msra.mxu0 0.0
        %361 = vmatprep.subr.mxu0 0.0
        %362 = vmatpush1.msra.mxu0 0.0
        %363 = vmatprep.subr.mxu0 0.0
        %364 = vmatpush1.msra.mxu0 0.0
        %365 = vmatprep.subr.mxu0 0.0
        %366 = vmatpush1.msra.mxu0 0.0
        %367 = vmatprep.subr.mxu0 0.0
        %368 = vmatpush1.msra.mxu0 0.0
        %369 = vmatprep.subr.mxu0 0.0
        %370 = vmatpush1.msra.mxu0 0.0
        %371 = vmatprep.subr.mxu0 0.0
        %372 = vmatpush1.msra.mxu0 0.0
        %373 = vmatprep.subr.mxu0 0.0
        %374 = vmatpush1.msra.mxu0 0.0
        %375 = vmatprep.subr.mxu0 0.0
        %376 = vmatpush1.msra.mxu0 0.0
        %377 = vmatprep.subr.mxu0 0.0
        %378 = vmatpush1.msra.mxu0 0.0
        %379 = vmatprep.subr.mxu0 0.0
        %380 = vmatpush1.msra.mxu0 0.0
        %381 = vmatprep.subr.mxu0 %v332
        %382 = vmatpush1.msra.mxu0 %v331
        %383 = vmatprep.subr.mxu0 0.0
        %384 = vmatpush2.msra.mxu0 0.0
        %385 = vmatprep.subr.mxu0 0.0
        %386 = vmatpush2.msra.mxu0 0.0
        %387 = vmatprep.subr.mxu0 0.0
        %388 = vmatpush2.msra.mxu0 0.0
        %389 = vmatprep.subr.mxu0 0.0
        %390 = vmatpush2.msra.mxu0 0.0
        %391 = vmatprep.subr.mxu0 0.0
        %392 = vmatpush2.msra.mxu0 0.0
        %393 = vmatprep.subr.mxu0 0.0
        %394 = vmatpush2.msra.mxu0 0.0
        %395 = vmatprep.subr.mxu0 0.0
        %396 = vmatpush2.msra.mxu0 0.0
        %397 = vmatprep.subr.mxu0 0.0
        %398 = vmatpush2.msra.mxu0 0.0
        %399 = vmatprep.subr.mxu0 0.0
        %400 = vmatpush2.msra.mxu0 0.0
        %401 = vmatprep.subr.mxu0 0.0
        %402 = vmatpush2.msra.mxu0 0.0
        %403 = vmatprep.subr.mxu0 0.0
        %404 = vmatpush2.msra.mxu0 0.0
        %405 = vmatprep.subr.mxu0 0.0
        %406 = vmatpush2.msra.mxu0 0.0
        %407 = vmatprep.subr.mxu0 0.0
        %408 = vmatpush2.msra.mxu0 0.0
        %409 = vmatprep.subr.mxu0 0.0
        %410 = vmatpush2.msra.mxu0 0.0
        %411 = vmatprep.subr.mxu0 0.0
        %412 = vmatpush2.msra.mxu0 0.0
        %413 = vmatprep.subr.mxu0 0.0
        %414 = vmatpush2.msra.mxu0 0.0
        %415 = vmatprep.mubr.f32.mxu0 0.0
        %416 = vmatmul.mubr.f32.gmra.mxu0 %v349
        %v417 = vpop.f32.mrf.mxu0
        %v418 = vadd.f32 0.0, %v417
        %v419 = vpop.f32.mrf.mxu0
        %v420 = vadd.f32 0.0, %v419
        %421 = vdwg.mxu0
        %422 = vmatprep.subr.mxu0 0.0
        %423 = vmatpush1.msra.mxu0 0.0
        %424 = vmatprep.subr.mxu0 0.0
        %425 = vmatpush1.msra.mxu0 0.0
        %426 = vmatprep.subr.mxu0 0.0
        %427 = vmatpush1.msra.mxu0 0.0
        %428 = vmatprep.subr.mxu0 0.0
        %429 = vmatpush1.msra.mxu0 0.0
        %430 = vmatprep.subr.mxu0 0.0
        %431 = vmatpush1.msra.mxu0 0.0
        %432 = vmatprep.subr.mxu0 0.0
        %433 = vmatpush1.msra.mxu0 0.0
        %434 = vmatprep.subr.mxu0 0.0
        %435 = vmatpush1.msra.mxu0 0.0
        %436 = vmatprep.subr.mxu0 0.0
        %437 = vmatpush1.msra.mxu0 0.0
        %438 = vmatprep.subr.mxu0 0.0
        %439 = vmatpush1.msra.mxu0 0.0
        %440 = vmatprep.subr.mxu0 0.0
        %441 = vmatpush1.msra.mxu0 0.0
        %442 = vmatprep.subr.mxu0 0.0
        %443 = vmatpush1.msra.mxu0 0.0
        %444 = vmatprep.subr.mxu0 0.0
        %445 = vmatpush1.msra.mxu0 0.0
        %446 = vmatprep.subr.mxu0 0.0
        %447 = vmatpush1.msra.mxu0 0.0
        %448 = vmatprep.subr.mxu0 0.0
        %449 = vmatpush1.msra.mxu0 0.0
        %450 = vmatprep.subr.mxu0 0.0
        %451 = vmatpush1.msra.mxu0 0.0
        %452 = vmatprep.subr.mxu0 %v334
        %453 = vmatpush1.msra.mxu0 %v333
        %454 = vmatprep.subr.mxu0 0.0
        %455 = vmatpush2.msra.mxu0 0.0
        %456 = vmatprep.subr.mxu0 0.0
        %457 = vmatpush2.msra.mxu0 0.0
        %458 = vmatprep.subr.mxu0 0.0
        %459 = vmatpush2.msra.mxu0 0.0
        %460 = vmatprep.subr.mxu0 0.0
        %461 = vmatpush2.msra.mxu0 0.0
        %462 = vmatprep.subr.mxu0 0.0
        %463 = vmatpush2.msra.mxu0 0.0
        %464 = vmatprep.subr.mxu0 0.0
        %465 = vmatpush2.msra.mxu0 0.0
        %466 = vmatprep.subr.mxu0 0.0
        %467 = vmatpush2.msra.mxu0 0.0
        %468 = vmatprep.subr.mxu0 0.0
        %469 = vmatpush2.msra.mxu0 0.0
        %470 = vmatprep.subr.mxu0 0.0
        %471 = vmatpush2.msra.mxu0 0.0
        %472 = vmatprep.subr.mxu0 0.0
        %473 = vmatpush2.msra.mxu0 0.0
        %474 = vmatprep.subr.mxu0 0.0
        %475 = vmatpush2.msra.mxu0 0.0
        %476 = vmatprep.subr.mxu0 0.0
        %477 = vmatpush2.msra.mxu0 0.0
        %478 = vmatprep.subr.mxu0 0.0
        %479 = vmatpush2.msra.mxu0 0.0
        %480 = vmatprep.subr.mxu0 0.0
        %481 = vmatpush2.msra.mxu0 0.0
        %482 = vmatprep.subr.mxu0 0.0
        %483 = vmatpush2.msra.mxu0 0.0
        %484 = vmatprep.subr.mxu0 0.0
        %485 = vmatpush2.msra.mxu0 0.0
        %486 = vmatprep.mubr.f32.mxu0 0.0
        %487 = vmatmul.mubr.f32.gmra.mxu0 %v349
        %v488 = vpop.f32.mrf.mxu0
        %v489 = vadd.f32 0.0, %v488
        %v490 = vpop.f32.mrf.mxu0
        %v491 = vadd.f32 0.0, %v490
        %492 = vdwg.mxu0
        %493 = vmatprep.subr.mxu0 0.0
        %494 = vmatpush1.msra.mxu0 0.0
        %495 = vmatprep.subr.mxu0 0.0
        %496 = vmatpush1.msra.mxu0 0.0
        %497 = vmatprep.subr.mxu0 0.0
        %498 = vmatpush1.msra.mxu0 0.0
        %499 = vmatprep.subr.mxu0 0.0
        %500 = vmatpush1.msra.mxu0 0.0
        %501 = vmatprep.subr.mxu0 0.0
        %502 = vmatpush1.msra.mxu0 0.0
        %503 = vmatprep.subr.mxu0 0.0
        %504 = vmatpush1.msra.mxu0 0.0
        %505 = vmatprep.subr.mxu0 0.0
        %506 = vmatpush1.msra.mxu0 0.0
        %507 = vmatprep.subr.mxu0 0.0
        %508 = vmatpush1.msra.mxu0 0.0
        %509 = vmatprep.subr.mxu0 0.0
        %510 = vmatpush1.msra.mxu0 0.0
        %511 = vmatprep.subr.mxu0 0.0
        %512 = vmatpush1.msra.mxu0 0.0
        %513 = vmatprep.subr.mxu0 0.0
        %514 = vmatpush1.msra.mxu0 0.0
        %515 = vmatprep.subr.mxu0 0.0
        %516 = vmatpush1.msra.mxu0 0.0
        %517 = vmatprep.subr.mxu0 0.0
        %518 = vmatpush1.msra.mxu0 0.0
        %519 = vmatprep.subr.mxu0 0.0
        %520 = vmatpush1.msra.mxu0 0.0
        %521 = vmatprep.subr.mxu0 0.0
        %522 = vmatpush1.msra.mxu0 0.0
        %523 = vmatprep.subr.mxu0 %v336
        %524 = vmatpush1.msra.mxu0 %v335
        %525 = vmatprep.subr.mxu0 0.0
        %526 = vmatpush2.msra.mxu0 0.0
        %527 = vmatprep.subr.mxu0 0.0
        %528 = vmatpush2.msra.mxu0 0.0
        %529 = vmatprep.subr.mxu0 0.0
        %530 = vmatpush2.msra.mxu0 0.0
        %531 = vmatprep.subr.mxu0 0.0
        %532 = vmatpush2.msra.mxu0 0.0
        %533 = vmatprep.subr.mxu0 0.0
        %534 = vmatpush2.msra.mxu0 0.0
        %535 = vmatprep.subr.mxu0 0.0
        %536 = vmatpush2.msra.mxu0 0.0
        %537 = vmatprep.subr.mxu0 0.0
        %538 = vmatpush2.msra.mxu0 0.0
        %539 = vmatprep.subr.mxu0 0.0
        %540 = vmatpush2.msra.mxu0 0.0
        %541 = vmatprep.subr.mxu0 0.0
        %542 = vmatpush2.msra.mxu0 0.0
        %543 = vmatprep.subr.mxu0 0.0
        %544 = vmatpush2.msra.mxu0 0.0
        %545 = vmatprep.subr.mxu0 0.0
        %546 = vmatpush2.msra.mxu0 0.0
        %547 = vmatprep.subr.mxu0 0.0
        %548 = vmatpush2.msra.mxu0 0.0
        %549 = vmatprep.subr.mxu0 0.0
        %550 = vmatpush2.msra.mxu0 0.0
        %551 = vmatprep.subr.mxu0 0.0
        %552 = vmatpush2.msra.mxu0 0.0
        %553 = vmatprep.subr.mxu0 0.0
        %554 = vmatpush2.msra.mxu0 0.0
        %555 = vmatprep.subr.mxu0 0.0
        %556 = vmatpush2.msra.mxu0 0.0
        %557 = vmatprep.mubr.f32.mxu0 0.0
        %558 = vmatmul.mubr.f32.gmra.mxu0 %v349
        %v559 = vpop.f32.mrf.mxu0
        %v560 = vadd.f32 0.0, %v559
        %v561 = vpop.f32.mrf.mxu0
        %v562 = vadd.f32 0.0, %v561
        %563 = vdwg.mxu0
        %564 = vmatprep.subr.mxu0 0.0
        %565 = vmatpush1.msra.mxu0 0.0
        %566 = vmatprep.subr.mxu0 0.0
        %567 = vmatpush1.msra.mxu0 0.0
        %568 = vmatprep.subr.mxu0 0.0
        %569 = vmatpush1.msra.mxu0 0.0
        %570 = vmatprep.subr.mxu0 0.0
        %571 = vmatpush1.msra.mxu0 0.0
        %572 = vmatprep.subr.mxu0 0.0
        %573 = vmatpush1.msra.mxu0 0.0
        %574 = vmatprep.subr.mxu0 0.0
        %575 = vmatpush1.msra.mxu0 0.0
        %576 = vmatprep.subr.mxu0 0.0
        %577 = vmatpush1.msra.mxu0 0.0
        %578 = vmatprep.subr.mxu0 0.0
        %579 = vmatpush1.msra.mxu0 0.0
        %580 = vmatprep.subr.mxu0 0.0
        %581 = vmatpush1.msra.mxu0 0.0
        %582 = vmatprep.subr.mxu0 0.0
        %583 = vmatpush1.msra.mxu0 0.0
        %584 = vmatprep.subr.mxu0 0.0
        %585 = vmatpush1.msra.mxu0 0.0
        %586 = vmatprep.subr.mxu0 0.0
        %587 = vmatpush1.msra.mxu0 0.0
        %588 = vmatprep.subr.mxu0 0.0
        %589 = vmatpush1.msra.mxu0 0.0
        %590 = vmatprep.subr.mxu0 0.0
        %591 = vmatpush1.msra.mxu0 0.0
        %592 = vmatprep.subr.mxu0 0.0
        %593 = vmatpush1.msra.mxu0 0.0
        %594 = vmatprep.subr.mxu0 %v338
        %595 = vmatpush1.msra.mxu0 %v337
        %596 = vmatprep.subr.mxu0 0.0
        %597 = vmatpush2.msra.mxu0 0.0
        %598 = vmatprep.subr.mxu0 0.0
        %599 = vmatpush2.msra.mxu0 0.0
        %600 = vmatprep.subr.mxu0 0.0
        %601 = vmatpush2.msra.mxu0 0.0
        %602 = vmatprep.subr.mxu0 0.0
        %603 = vmatpush2.msra.mxu0 0.0
        %604 = vmatprep.subr.mxu0 0.0
        %605 = vmatpush2.msra.mxu0 0.0
        %606 = vmatprep.subr.mxu0 0.0
        %607 = vmatpush2.msra.mxu0 0.0
        %608 = vmatprep.subr.mxu0 0.0
        %609 = vmatpush2.msra.mxu0 0.0
        %610 = vmatprep.subr.mxu0 0.0
        %611 = vmatpush2.msra.mxu0 0.0
        %612 = vmatprep.subr.mxu0 0.0
        %613 = vmatpush2.msra.mxu0 0.0
        %614 = vmatprep.subr.mxu0 0.0
        %615 = vmatpush2.msra.mxu0 0.0
        %616 = vmatprep.subr.mxu0 0.0
        %617 = vmatpush2.msra.mxu0 0.0
        %618 = vmatprep.subr.mxu0 0.0
        %619 = vmatpush2.msra.mxu0 0.0
        %620 = vmatprep.subr.mxu0 0.0
        %621 = vmatpush2.msra.mxu0 0.0
        %622 = vmatprep.subr.mxu0 0.0
        %623 = vmatpush2.msra.mxu0 0.0
        %624 = vmatprep.subr.mxu0 0.0
        %625 = vmatpush2.msra.mxu0 0.0
        %626 = vmatprep.subr.mxu0 0.0
        %627 = vmatpush2.msra.mxu0 0.0
        %628 = vmatprep.mubr.f32.mxu0 0.0
        %629 = vmatmul.mubr.f32.gmra.mxu0 %v349
        %v630 = vpop.f32.mrf.mxu0
        %v631 = vadd.f32 0.0, %v630
        %v632 = vpop.f32.mrf.mxu0
        %v633 = vadd.f32 0.0, %v632
        %634 = vdwg.mxu0
        %635 = vmatprep.subr.mxu0 0.0
        %636 = vmatpush1.msra.mxu0 0.0
        %637 = vmatprep.subr.mxu0 0.0
        %638 = vmatpush1.msra.mxu0 0.0
        %639 = vmatprep.subr.mxu0 0.0
        %640 = vmatpush1.msra.mxu0 0.0
        %641 = vmatprep.subr.mxu0 0.0
        %642 = vmatpush1.msra.mxu0 0.0
        %643 = vmatprep.subr.mxu0 0.0
        %644 = vmatpush1.msra.mxu0 0.0
        %645 = vmatprep.subr.mxu0 0.0
        %646 = vmatpush1.msra.mxu0 0.0
        %647 = vmatprep.subr.mxu0 0.0
        %648 = vmatpush1.msra.mxu0 0.0
        %649 = vmatprep.subr.mxu0 0.0
        %650 = vmatpush1.msra.mxu0 0.0
        %651 = vmatprep.subr.mxu0 0.0
        %652 = vmatpush1.msra.mxu0 0.0
        %653 = vmatprep.subr.mxu0 0.0
        %654 = vmatpush1.msra.mxu0 0.0
        %655 = vmatprep.subr.mxu0 0.0
        %656 = vmatpush1.msra.mxu0 0.0
        %657 = vmatprep.subr.mxu0 0.0
        %658 = vmatpush1.msra.mxu0 0.0
        %659 = vmatprep.subr.mxu0 0.0
        %660 = vmatpush1.msra.mxu0 0.0
        %661 = vmatprep.subr.mxu0 0.0
        %662 = vmatpush1.msra.mxu0 0.0
        %663 = vmatprep.subr.mxu0 0.0
        %664 = vmatpush1.msra.mxu0 0.0
        %665 = vmatprep.subr.mxu0 %v340
        %666 = vmatpush1.msra.mxu0 %v339
        %667 = vmatprep.subr.mxu0 0.0
        %668 = vmatpush2.msra.mxu0 0.0
        %669 = vmatprep.subr.mxu0 0.0
        %670 = vmatpush2.msra.mxu0 0.0
        %671 = vmatprep.subr.mxu0 0.0
        %672 = vmatpush2.msra.mxu0 0.0
        %673 = vmatprep.subr.mxu0 0.0
        %674 = vmatpush2.msra.mxu0 0.0
        %675 = vmatprep.subr.mxu0 0.0
        %676 = vmatpush2.msra.mxu0 0.0
        %677 = vmatprep.subr.mxu0 0.0
        %678 = vmatpush2.msra.mxu0 0.0
        %679 = vmatprep.subr.mxu0 0.0
        %680 = vmatpush2.msra.mxu0 0.0
        %681 = vmatprep.subr.mxu0 0.0
        %682 = vmatpush2.msra.mxu0 0.0
        %683 = vmatprep.subr.mxu0 0.0
        %684 = vmatpush2.msra.mxu0 0.0
        %685 = vmatprep.subr.mxu0 0.0
        %686 = vmatpush2.msra.mxu0 0.0
        %687 = vmatprep.subr.mxu0 0.0
        %688 = vmatpush2.msra.mxu0 0.0
        %689 = vmatprep.subr.mxu0 0.0
        %690 = vmatpush2.msra.mxu0 0.0
        %691 = vmatprep.subr.mxu0 0.0
        %692 = vmatpush2.msra.mxu0 0.0
        %693 = vmatprep.subr.mxu0 0.0
        %694 = vmatpush2.msra.mxu0 0.0
        %695 = vmatprep.subr.mxu0 0.0
        %696 = vmatpush2.msra.mxu0 0.0
        %697 = vmatprep.subr.mxu0 0.0
        %698 = vmatpush2.msra.mxu0 0.0
        %699 = vmatprep.mubr.f32.mxu0 0.0
        %700 = vmatmul.mubr.f32.gmra.mxu0 %v349
        %v701 = vpop.f32.mrf.mxu0
        %v702 = vadd.f32 0.0, %v701
        %v703 = vpop.f32.mrf.mxu0
        %v704 = vadd.f32 0.0, %v703
        %705 = vdwg.mxu0
        %706 = vmatprep.subr.mxu0 0.0
        %707 = vmatpush1.msra.mxu0 0.0
        %708 = vmatprep.subr.mxu0 0.0
        %709 = vmatpush1.msra.mxu0 0.0
        %710 = vmatprep.subr.mxu0 0.0
        %711 = vmatpush1.msra.mxu0 0.0
        %712 = vmatprep.subr.mxu0 0.0
        %713 = vmatpush1.msra.mxu0 0.0
        %714 = vmatprep.subr.mxu0 0.0
        %715 = vmatpush1.msra.mxu0 0.0
        %716 = vmatprep.subr.mxu0 0.0
        %717 = vmatpush1.msra.mxu0 0.0
        %718 = vmatprep.subr.mxu0 0.0
        %719 = vmatpush1.msra.mxu0 0.0
        %720 = vmatprep.subr.mxu0 0.0
        %721 = vmatpush1.msra.mxu0 0.0
        %722 = vmatprep.subr.mxu0 0.0
        %723 = vmatpush1.msra.mxu0 0.0
        %724 = vmatprep.subr.mxu0 0.0
        %725 = vmatpush1.msra.mxu0 0.0
        %726 = vmatprep.subr.mxu0 0.0
        %727 = vmatpush1.msra.mxu0 0.0
        %728 = vmatprep.subr.mxu0 0.0
        %729 = vmatpush1.msra.mxu0 0.0
        %730 = vmatprep.subr.mxu0 0.0
        %731 = vmatpush1.msra.mxu0 0.0
        %732 = vmatprep.subr.mxu0 0.0
        %733 = vmatpush1.msra.mxu0 0.0
        %734 = vmatprep.subr.mxu0 0.0
        %735 = vmatpush1.msra.mxu0 0.0
        %736 = vmatprep.subr.mxu0 %v342
        %737 = vmatpush1.msra.mxu0 %v341
        %738 = vmatprep.subr.mxu0 0.0
        %739 = vmatpush2.msra.mxu0 0.0
        %740 = vmatprep.subr.mxu0 0.0
        %741 = vmatpush2.msra.mxu0 0.0
        %742 = vmatprep.subr.mxu0 0.0
        %743 = vmatpush2.msra.mxu0 0.0
        %744 = vmatprep.subr.mxu0 0.0
        %745 = vmatpush2.msra.mxu0 0.0
        %746 = vmatprep.subr.mxu0 0.0
        %747 = vmatpush2.msra.mxu0 0.0
        %748 = vmatprep.subr.mxu0 0.0
        %749 = vmatpush2.msra.mxu0 0.0
        %750 = vmatprep.subr.mxu0 0.0
        %751 = vmatpush2.msra.mxu0 0.0
        %752 = vmatprep.subr.mxu0 0.0
        %753 = vmatpush2.msra.mxu0 0.0
        %754 = vmatprep.subr.mxu0 0.0
        %755 = vmatpush2.msra.mxu0 0.0
        %756 = vmatprep.subr.mxu0 0.0
        %757 = vmatpush2.msra.mxu0 0.0
        %758 = vmatprep.subr.mxu0 0.0
        %759 = vmatpush2.msra.mxu0 0.0
        %760 = vmatprep.subr.mxu0 0.0
        %761 = vmatpush2.msra.mxu0 0.0
        %762 = vmatprep.subr.mxu0 0.0
        %763 = vmatpush2.msra.mxu0 0.0
        %764 = vmatprep.subr.mxu0 0.0
        %765 = vmatpush2.msra.mxu0 0.0
        %766 = vmatprep.subr.mxu0 0.0
        %767 = vmatpush2.msra.mxu0 0.0
        %768 = vmatprep.subr.mxu0 0.0
        %769 = vmatpush2.msra.mxu0 0.0
        %770 = vmatprep.mubr.f32.mxu0 0.0
        %771 = vmatmul.mubr.f32.gmra.mxu0 %v349
        %v772 = vpop.f32.mrf.mxu0
        %v773 = vadd.f32 0.0, %v772
        %v774 = vpop.f32.mrf.mxu0
        %v775 = vadd.f32 0.0, %v774
        %776 = vdwg.mxu0
        %777 = vmatprep.subr.mxu0 0.0
        %778 = vmatpush1.msra.mxu0 0.0
        %779 = vmatprep.subr.mxu0 0.0
        %780 = vmatpush1.msra.mxu0 0.0
        %781 = vmatprep.subr.mxu0 0.0
        %782 = vmatpush1.msra.mxu0 0.0
        %783 = vmatprep.subr.mxu0 0.0
        %784 = vmatpush1.msra.mxu0 0.0
        %785 = vmatprep.subr.mxu0 0.0
        %786 = vmatpush1.msra.mxu0 0.0
        %787 = vmatprep.subr.mxu0 0.0
        %788 = vmatpush1.msra.mxu0 0.0
        %789 = vmatprep.subr.mxu0 0.0
        %790 = vmatpush1.msra.mxu0 0.0
        %791 = vmatprep.subr.mxu0 0.0
        %792 = vmatpush1.msra.mxu0 0.0
        %793 = vmatprep.subr.mxu0 0.0
        %794 = vmatpush1.msra.mxu0 0.0
        %795 = vmatprep.subr.mxu0 0.0
        %796 = vmatpush1.msra.mxu0 0.0
        %797 = vmatprep.subr.mxu0 0.0
        %798 = vmatpush1.msra.mxu0 0.0
        %799 = vmatprep.subr.mxu0 0.0
        %800 = vmatpush1.msra.mxu0 0.0
        %801 = vmatprep.subr.mxu0 0.0
        %802 = vmatpush1.msra.mxu0 0.0
        %803 = vmatprep.subr.mxu0 0.0
        %804 = vmatpush1.msra.mxu0 0.0
        %805 = vmatprep.subr.mxu0 0.0
        %806 = vmatpush1.msra.mxu0 0.0
        %807 = vmatprep.subr.mxu0 %v344
        %808 = vmatpush1.msra.mxu0 %v343
        %809 = vmatprep.subr.mxu0 0.0
        %810 = vmatpush2.msra.mxu0 0.0
        %811 = vmatprep.subr.mxu0 0.0
        %812 = vmatpush2.msra.mxu0 0.0
        %813 = vmatprep.subr.mxu0 0.0
        %814 = vmatpush2.msra.mxu0 0.0
        %815 = vmatprep.subr.mxu0 0.0
        %816 = vmatpush2.msra.mxu0 0.0
        %817 = vmatprep.subr.mxu0 0.0
        %818 = vmatpush2.msra.mxu0 0.0
        %819 = vmatprep.subr.mxu0 0.0
        %820 = vmatpush2.msra.mxu0 0.0
        %821 = vmatprep.subr.mxu0 0.0
        %822 = vmatpush2.msra.mxu0 0.0
        %823 = vmatprep.subr.mxu0 0.0
        %824 = vmatpush2.msra.mxu0 0.0
        %825 = vmatprep.subr.mxu0 0.0
        %826 = vmatpush2.msra.mxu0 0.0
        %827 = vmatprep.subr.mxu0 0.0
        %828 = vmatpush2.msra.mxu0 0.0
        %829 = vmatprep.subr.mxu0 0.0
        %830 = vmatpush2.msra.mxu0 0.0
        %831 = vmatprep.subr.mxu0 0.0
        %832 = vmatpush2.msra.mxu0 0.0
        %833 = vmatprep.subr.mxu0 0.0
        %834 = vmatpush2.msra.mxu0 0.0
        %835 = vmatprep.subr.mxu0 0.0
        %836 = vmatpush2.msra.mxu0 0.0
        %837 = vmatprep.subr.mxu0 0.0
        %838 = vmatpush2.msra.mxu0 0.0
        %839 = vmatprep.subr.mxu0 0.0
        %840 = vmatpush2.msra.mxu0 0.0
        %841 = vmatprep.mubr.f32.mxu0 0.0
        %842 = vmatmul.mubr.f32.gmra.mxu0 %v349
        %v843 = vpop.f32.mrf.mxu0
        %v844 = vadd.f32 0.0, %v843
        %v845 = vpop.f32.mrf.mxu0
        %v846 = vadd.f32 0.0, %v845
        %847 = vdwg.mxu0
        %848 = vmatprep.subr.mxu0 0.0
        %849 = vmatpush1.msra.mxu0 0.0
        %850 = vmatprep.subr.mxu0 0.0
        %851 = vmatpush1.msra.mxu0 0.0
        %852 = vmatprep.subr.mxu0 0.0
        %853 = vmatpush1.msra.mxu0 0.0
        %854 = vmatprep.subr.mxu0 0.0
        %855 = vmatpush1.msra.mxu0 0.0
        %856 = vmatprep.subr.mxu0 0.0
        %857 = vmatpush1.msra.mxu0 0.0
        %858 = vmatprep.subr.mxu0 0.0
        %859 = vmatpush1.msra.mxu0 0.0
        %860 = vmatprep.subr.mxu0 0.0
        %861 = vmatpush1.msra.mxu0 0.0
        %862 = vmatprep.subr.mxu0 0.0
        %863 = vmatpush1.msra.mxu0 0.0
        %864 = vmatprep.subr.mxu0 0.0
        %865 = vmatpush1.msra.mxu0 0.0
        %866 = vmatprep.subr.mxu0 0.0
        %867 = vmatpush1.msra.mxu0 0.0
        %868 = vmatprep.subr.mxu0 0.0
        %869 = vmatpush1.msra.mxu0 0.0
        %870 = vmatprep.subr.mxu0 0.0
        %871 = vmatpush1.msra.mxu0 0.0
        %872 = vmatprep.subr.mxu0 0.0
        %873 = vmatpush1.msra.mxu0 0.0
        %874 = vmatprep.subr.mxu0 0.0
        %875 = vmatpush1.msra.mxu0 0.0
        %876 = vmatprep.subr.mxu0 0.0
        %877 = vmatpush1.msra.mxu0 0.0
        %878 = vmatprep.subr.mxu0 %v346
        %879 = vmatpush1.msra.mxu0 %v345
        %880 = vmatprep.subr.mxu0 0.0
        %881 = vmatpush2.msra.mxu0 0.0
        %882 = vmatprep.subr.mxu0 0.0
        %883 = vmatpush2.msra.mxu0 0.0
        %884 = vmatprep.subr.mxu0 0.0
        %885 = vmatpush2.msra.mxu0 0.0
        %886 = vmatprep.subr.mxu0 0.0
        %887 = vmatpush2.msra.mxu0 0.0
        %888 = vmatprep.subr.mxu0 0.0
        %889 = vmatpush2.msra.mxu0 0.0
        %890 = vmatprep.subr.mxu0 0.0
        %891 = vmatpush2.msra.mxu0 0.0
        %892 = vmatprep.subr.mxu0 0.0
        %893 = vmatpush2.msra.mxu0 0.0
        %894 = vmatprep.subr.mxu0 0.0
        %895 = vmatpush2.msra.mxu0 0.0
        %896 = vmatprep.subr.mxu0 0.0
        %897 = vmatpush2.msra.mxu0 0.0
        %898 = vmatprep.subr.mxu0 0.0
        %899 = vmatpush2.msra.mxu0 0.0
        %900 = vmatprep.subr.mxu0 0.0
        %901 = vmatpush2.msra.mxu0 0.0
        %902 = vmatprep.subr.mxu0 0.0
        %903 = vmatpush2.msra.mxu0 0.0
        %904 = vmatprep.subr.mxu0 0.0
        %905 = vmatpush2.msra.mxu0 0.0
        %906 = vmatprep.subr.mxu0 0.0
        %907 = vmatpush2.msra.mxu0 0.0
        %908 = vmatprep.subr.mxu0 0.0
        %909 = vmatpush2.msra.mxu0 0.0
        %910 = vmatprep.subr.mxu0 0.0
        %911 = vmatpush2.msra.mxu0 0.0
        %912 = vmatprep.mubr.f32.mxu0 0.0
        %913 = vmatmul.mubr.f32.gmra.mxu0 %v349
        %v914 = vpop.f32.mrf.mxu0
        %v915 = vadd.f32 0.0, %v914
        %v916 = vpop.f32.mrf.mxu0
        %v917 = vadd.f32 0.0, %v916
        %918 = vdwg.mxu0
        %v919 = vld [vmem:[%s223] sm:$0xff]
        %v920 = vld [vmem:[%s223 + $0x8] sm:$0xff]
        %v921 = vld [vmem:[%s223 + $0x10] sm:$0xff]
        %v922 = vld [vmem:[%s223 + $0x18] sm:$0xff]
        %v923 = vld [vmem:[%s223 + $0x20] sm:$0xff]
        %v924 = vld [vmem:[%s223 + $0x28] sm:$0xff]
        %v925 = vld [vmem:[%s223 + $0x30] sm:$0xff]
        %v926 = vld [vmem:[%s223 + $0x38] sm:$0xff]
        %v927 = vld [vmem:[%s223 + $0x40] sm:$0xff]
        %v928 = vld [vmem:[%s223 + $0x48] sm:$0xff]
        %v929 = vld [vmem:[%s223 + $0x50] sm:$0xff]
        %v930 = vld [vmem:[%s223 + $0x58] sm:$0xff]
        %v931 = vld [vmem:[%s223 + $0x60] sm:$0xff]
        %v932 = vld [vmem:[%s223 + $0x68] sm:$0xff]
        %v933 = vld [vmem:[%s223 + $0x70] sm:$0xff]
        %v934 = vld [vmem:[%s223 + $0x78] sm:$0xff]
        %v935 = vadd.f32 %v919, %v329
        %v936 = vadd.f32 %v920, %v298
        %v937 = vadd.f32 %v921, %v299
        %v938 = vadd.f32 %v922, %v300
        %v939 = vadd.f32 %v923, %v301
        %v940 = vadd.f32 %v924, %v302
        %v941 = vadd.f32 %v925, %v303
        %v942 = vadd.f32 %v926, %v304
        %v943 = vadd.f32 %v927, %v305
        %v944 = vadd.f32 %v928, %v306
        %v945 = vadd.f32 %v929, %v307
        %v946 = vadd.f32 %v930, %v308
        %v947 = vadd.f32 %v931, %v309
        %v948 = vadd.f32 %v932, %v310
        %v949 = vadd.f32 %v933, %v311
        %v950 = vadd.f32 %v934, %v312
        %v951 = vmul.f32 %v935, %v418
        %v952 = vmul.f32 %v936, %v420
        %v953 = vmul.f32 %v937, %v489
        %v954 = vmul.f32 %v938, %v491
        %v955 = vmul.f32 %v939, %v560
        %v956 = vmul.f32 %v940, %v562
        %v957 = vmul.f32 %v941, %v631
        %v958 = vmul.f32 %v942, %v633
        %v959 = vmul.f32 %v943, %v702
        %v960 = vmul.f32 %v944, %v704
        %v961 = vmul.f32 %v945, %v773
        %v962 = vmul.f32 %v946, %v775
        %v963 = vmul.f32 %v947, %v844
        %v964 = vmul.f32 %v948, %v846
        %v965 = vmul.f32 %v949, %v915
        %v966 = vmul.f32 %v950, %v917
        %967 = vst [vmem:[%s218] sm:$0xff] %v951
        %968 = vst [vmem:[%s218 + $0x8] sm:$0xff] %v952
        %969 = vst [vmem:[%s218 + $0x10] sm:$0xff] %v953
        %970 = vst [vmem:[%s218 + $0x18] sm:$0xff] %v954
        %971 = vst [vmem:[%s218 + $0x20] sm:$0xff] %v955
        %972 = vst [vmem:[%s218 + $0x28] sm:$0xff] %v956
        %973 = vst [vmem:[%s218 + $0x30] sm:$0xff] %v957
        %974 = vst [vmem:[%s218 + $0x38] sm:$0xff] %v958
        %975 = vst [vmem:[%s218 + $0x40] sm:$0xff] %v959
        %976 = vst [vmem:[%s218 + $0x48] sm:$0xff] %v960
        %977 = vst [vmem:[%s218 + $0x50] sm:$0xff] %v961
        %978 = vst [vmem:[%s218 + $0x58] sm:$0xff] %v962
        %979 = vst [vmem:[%s218 + $0x60] sm:$0xff] %v963
        %980 = vst [vmem:[%s218 + $0x68] sm:$0xff] %v964
        %981 = vst [vmem:[%s218 + $0x70] sm:$0xff] %v965
        %982 = vst [vmem:[%s218 + $0x78] sm:$0xff] %v966
        %s983 = sand.u32 %s125, 1
        %s984 = scalar_lea.sflag [#allocation3], %s983
        %s985 = sand.u32 %s125, 1
        %s986 = smul.addr %s985, 128
        %s987 = scalar_lea.vmem [#allocation2], %s986
        // Predicated region
        $region37: #{apply_fn.5} parent=35 // pred_check
          %p988 = pneg %p135
        $region38: #{apply_fn.5} parent=35 // pred_check_branch
          %990 = sbr.rel (%p988) target = $region40
        $region39: #{apply_fn.5} parent=35 // pred_region
          %s992 = ssub.s32 2048, 2048
          %993 = vsyncadd %s984, %s992
          %s994 = smul.addr %s18, 16
          %s995 = smul.addr %s994, 128
          %s996 = scalar_lea.hbm %s4, %s995
          %s998 = sshll.u32 %s987, 4
          %s999 = int_to_ptr.vmem [resolvable:$true] %s998
          %1001 = dma.vmem_to_hbm [thread:$0]  %s999, 2048, %s996, %s984
        $region40: #{apply_fn.5} parent=35 // pred_fallthru
          _
      $region36: #{apply_fn.5} parent=5 // pred_fallthru
        _
      %p1002 = scmp.le.s32.totalorder 2, %s13
      // Predicated region
      $region41: #{apply_fn.5} parent=5 // pred_check
        %p1003 = pneg %p1002
      $region42: #{apply_fn.5} parent=5 // pred_check_branch
        %1005 = sbr.rel (%p1003) target = $region44
      $region43: #{apply_fn.5} parent=5 // pred_region
        %s1006 = ssub.s32 %s13, 2
        // Predicated region
        $region45: #{apply_fn.5} parent=43 // pred_check
          %p1007 = pneg %p141
        $region46: #{apply_fn.5} parent=43 // pred_check_branch
          %1009 = sbr.rel (%p1007) target = $region48
        $region47: #{apply_fn.5} parent=43 // pred_region
          %s1010 = sand.u32 %s126, 1
          %s1011 = scalar_lea.sflag [#allocation3], %s1010
          %s1012 = sand.u32 %s126, 1
          %s1013 = smul.addr %s1012, 128
          %s1014 = scalar_lea.vmem [#allocation2], %s1013
          %1015 = dma.done %s1011, 2048
        $region48: #{apply_fn.5} parent=43 // pred_fallthru
          _
      $region44: #{apply_fn.5} parent=5 // pred_fallthru
        _
    $region6: #{apply_fn.5} parent=1 // loop_footer
      %s17 = sadd.s32 1, %s13
    $region7: #{apply_fn.5} parent=1 // loop_footer_branch
      %12 = sbr.rel target = $region3
    $region8: #{apply_fn.5} parent=1 // loop_exit
      _
    %1016 = vsyncpa [#allocation3], 1
    %s1017 = scalar_lea.sflag [#allocation3], 1
    %1018 = vsyncpa %s1017, 1

// kernel: apply_fn.3
$region0: #{apply_fn.3}
  #allocation0 [shape = 'u32[]', space=smem, size = 0x4, offset = 0x4, fixed_abs, tag = 'smem constant byte address 0x4 - core index']
  #allocation1 [shape = 'u32[144,128]{1,0:T(1,128)}', space=vmem, size = 0x12000, scoped, tag = 'internal scratch']
  %s0 = inlined_call_operand.vmem [shape: f32[32,16], index: 0, kind: input, shape index: {}]
  %s1 = inlined_call_operand.vmem [shape: f32[16,8], index: 1, kind: input, shape index: {}]
  %s2 = inlined_call_operand.vmem [shape: f32[1,8], index: 2, kind: input, shape index: {}]
  %s3 = inlined_call_operand.vmem [shape: f32[16,32], index: 3, kind: input, shape index: {}]
  %s4 = inlined_call_operand.vmem [shape: f32[1,32], index: 4, kind: input, shape index: {}]
  %s5 = inlined_call_operand.vmem [shape: f32[32,64], index: 5, kind: input, shape index: {}]
  %s6 = inlined_call_operand.vmem [shape: f32[1,8], index: 6, kind: input, shape index: {}]
  %s7 = inlined_call_operand.vmem [shape: f32[1,8], index: 7, kind: input, shape index: {}]
  %s8 = inlined_call_operand.vmem [shape: f32[64,64], index: 8, kind: input, shape index: {}]
  %s9 = inlined_call_operand.vmem [shape: f32[1,64], index: 9, kind: input, shape index: {}]
  %s10 = inlined_call_operand.vmem [shape: f32[64,128], index: 10, kind: input, shape index: {}]
  %s11 = inlined_call_operand.vmem [shape: f32[1,8], index: 11, kind: input, shape index: {}]
  %s12 = inlined_call_operand.vmem [shape: f32[1,8], index: 12, kind: input, shape index: {}]
  %s13 = inlined_call_operand.vmem [shape: f32[128,256], index: 13, kind: input, shape index: {}]
  %s14 = inlined_call_operand.vmem [shape: f32[1,8], index: 14, kind: input, shape index: {}]
  %s15 = inlined_call_operand.vmem [shape: f32[1,8], index: 15, kind: input, shape index: {}]
  %s16 = inlined_call_operand.vmem [shape: f32[256,2080], index: 16, kind: input, shape index: {}]
  %s17 = inlined_call_operand.vmem [shape: f32[1,2080], index: 17, kind: input, shape index: {}]
  %s18 = inlined_call_operand.vmem [shape: f32[256,8], index: 18, kind: input, shape index: {}]
  %s19 = inlined_call_operand.vmem [shape: f32[8,256], index: 19, kind: input, shape index: {}]
  %s20 = inlined_call_operand.vmem [shape: f32[32,8], index: 20, kind: output, shape index: {0}]
  %s21 = inlined_call_operand.vmem [shape: f32[32,2080], index: 21, kind: output, shape index: {1}]
  %22 = xla_tuple %s20, %s21
  %s23 = sld [smem:[#allocation0]]
  $region98: #{apply_fn.3} parent=0
    _
  %s25 = ssub.s32 1, %s23
  %s26 = scalar_select 0, %s25, %s23
  // Predicated region
  $region2: #{apply_fn.3} parent=0 // pred_check
    _
  $region3: #{apply_fn.3} parent=0 // pred_check_branch
    %28 = sbr.rel (0) target = $region5
  $region4: #{apply_fn.3} parent=0 // pred_region
    _
  $region5: #{apply_fn.3} parent=0 // pred_fallthru
    _
  // Predicated region
  $region6: #{apply_fn.3} parent=0 // pred_check
    _
  $region7: #{apply_fn.3} parent=0 // pred_check_branch
    %30 = sbr.rel (0) target = $region9
  $region8: #{apply_fn.3} parent=0 // pred_region
    _
  $region9: #{apply_fn.3} parent=0 // pred_fallthru
    _
  // Predicated region
  $region10: #{apply_fn.3} parent=0 // pred_check
    _
  $region11: #{apply_fn.3} parent=0 // pred_check_branch
    %32 = sbr.rel (0) target = $region13
  $region12: #{apply_fn.3} parent=0 // pred_region
    _
  $region13: #{apply_fn.3} parent=0 // pred_fallthru
    _
  // Predicated region
  $region14: #{apply_fn.3} parent=0 // pred_check
    _
  $region15: #{apply_fn.3} parent=0 // pred_check_branch
    %34 = sbr.rel (0) target = $region17
  $region16: #{apply_fn.3} parent=0 // pred_region
    _
  $region17: #{apply_fn.3} parent=0 // pred_fallthru
    _
  // Predicated region
  $region18: #{apply_fn.3} parent=0 // pred_check
    _
  $region19: #{apply_fn.3} parent=0 // pred_check_branch
    %36 = sbr.rel (0) target = $region21
  $region20: #{apply_fn.3} parent=0 // pred_region
    _
  $region21: #{apply_fn.3} parent=0 // pred_fallthru
    _
  // Predicated region
  $region22: #{apply_fn.3} parent=0 // pred_check
    _
  $region23: #{apply_fn.3} parent=0 // pred_check_branch
    %38 = sbr.rel (0) target = $region25
  $region24: #{apply_fn.3} parent=0 // pred_region
    _
  $region25: #{apply_fn.3} parent=0 // pred_fallthru
    _
  // Predicated region
  $region26: #{apply_fn.3} parent=0 // pred_check
    _
  $region27: #{apply_fn.3} parent=0 // pred_check_branch
    %40 = sbr.rel (0) target = $region29
  $region28: #{apply_fn.3} parent=0 // pred_region
    _
  $region29: #{apply_fn.3} parent=0 // pred_fallthru
    _
  // Predicated region
  $region30: #{apply_fn.3} parent=0 // pred_check
    _
  $region31: #{apply_fn.3} parent=0 // pred_check_branch
    %42 = sbr.rel (0) target = $region33
  $region32: #{apply_fn.3} parent=0 // pred_region
    _
  $region33: #{apply_fn.3} parent=0 // pred_fallthru
    _
  // Predicated region
  $region34: #{apply_fn.3} parent=0 // pred_check
    _
  $region35: #{apply_fn.3} parent=0 // pred_check_branch
    %44 = sbr.rel (0) target = $region37
  $region36: #{apply_fn.3} parent=0 // pred_region
    _
  $region37: #{apply_fn.3} parent=0 // pred_fallthru
    _
  // Predicated region
  $region38: #{apply_fn.3} parent=0 // pred_check
    _
  $region39: #{apply_fn.3} parent=0 // pred_check_branch
    %46 = sbr.rel (0) target = $region41
  $region40: #{apply_fn.3} parent=0 // pred_region
    _
  $region41: #{apply_fn.3} parent=0 // pred_fallthru
    _
  // Predicated region
  $region42: #{apply_fn.3} parent=0 // pred_check
    _
  $region43: #{apply_fn.3} parent=0 // pred_check_branch
    %48 = sbr.rel (0) target = $region45
  $region44: #{apply_fn.3} parent=0 // pred_region
    _
  $region45: #{apply_fn.3} parent=0 // pred_fallthru
    _
  // Predicated region
  $region46: #{apply_fn.3} parent=0 // pred_check
    _
  $region47: #{apply_fn.3} parent=0 // pred_check_branch
    %50 = sbr.rel (0) target = $region49
  $region48: #{apply_fn.3} parent=0 // pred_region
    _
  $region49: #{apply_fn.3} parent=0 // pred_fallthru
    _
  // Predicated region
  $region50: #{apply_fn.3} parent=0 // pred_check
    _
  $region51: #{apply_fn.3} parent=0 // pred_check_branch
    %52 = sbr.rel (0) target = $region53
  $region52: #{apply_fn.3} parent=0 // pred_region
    _
  $region53: #{apply_fn.3} parent=0 // pred_fallthru
    _
  // Predicated region
  $region54: #{apply_fn.3} parent=0 // pred_check
    _
  $region55: #{apply_fn.3} parent=0 // pred_check_branch
    %54 = sbr.rel (0) target = $region57
  $region56: #{apply_fn.3} parent=0 // pred_region
    _
  $region57: #{apply_fn.3} parent=0 // pred_fallthru
    _
  // Predicated region
  $region58: #{apply_fn.3} parent=0 // pred_check
    _
  $region59: #{apply_fn.3} parent=0 // pred_check_branch
    %56 = sbr.rel (0) target = $region61
  $region60: #{apply_fn.3} parent=0 // pred_region
    _
  $region61: #{apply_fn.3} parent=0 // pred_fallthru
    _
  // Predicated region
  $region62: #{apply_fn.3} parent=0 // pred_check
    _
  $region63: #{apply_fn.3} parent=0 // pred_check_branch
    %58 = sbr.rel (0) target = $region65
  $region64: #{apply_fn.3} parent=0 // pred_region
    _
  $region65: #{apply_fn.3} parent=0 // pred_fallthru
    _
  // Predicated region
  $region66: #{apply_fn.3} parent=0 // pred_check
    _
  $region67: #{apply_fn.3} parent=0 // pred_check_branch
    %60 = sbr.rel (0) target = $region69
  $region68: #{apply_fn.3} parent=0 // pred_region
    _
  $region69: #{apply_fn.3} parent=0 // pred_fallthru
    _
  // Predicated region
  $region70: #{apply_fn.3} parent=0 // pred_check
    _
  $region71: #{apply_fn.3} parent=0 // pred_check_branch
    %62 = sbr.rel (0) target = $region73
  $region72: #{apply_fn.3} parent=0 // pred_region
    _
  $region73: #{apply_fn.3} parent=0 // pred_fallthru
    _
  // Predicated region
  $region74: #{apply_fn.3} parent=0 // pred_check
    _
  $region75: #{apply_fn.3} parent=0 // pred_check_branch
    %64 = sbr.rel (0) target = $region77
  $region76: #{apply_fn.3} parent=0 // pred_region
    _
  $region77: #{apply_fn.3} parent=0 // pred_fallthru
    _
  // Predicated region
  $region78: #{apply_fn.3} parent=0 // pred_check
    _
  $region79: #{apply_fn.3} parent=0 // pred_check_branch
    %66 = sbr.rel (0) target = $region81
  $region80: #{apply_fn.3} parent=0 // pred_region
    _
  $region81: #{apply_fn.3} parent=0 // pred_fallthru
    _
  %v67 = vld [vmem:[%s0] sm:$0xff]
  %v68 = vld [vmem:[%s0 + $0x8] sm:$0xff]
  %v69 = vld [vmem:[%s0 + $0x10] sm:$0xff]
  %v70 = vld [vmem:[%s0 + $0x18] sm:$0xff]
  %v71 = vld [vmem:[%s1] sm:$0xff]
  %v72 = vld [vmem:[%s1 + $0x8] sm:$0xff]
  %v73 = vld [vmem:[%s2] sm:$0x1]
  %v75 = vlaneseq
  %v76 = vshrl.u32 %v75, 7
  %v77 = vsub.s32 0, %v76
  %v78 = vrot.slane %v73, %v77
  %vm80 = vcmask 130048
  %v82 = vsel %vm80, %v67, 0
  %v85 = vsel %vm80, %v68, 0
  %v88 = vsel %vm80, %v69, 0
  %v91 = vsel %vm80, %v70, 0
  %93 = vmatprep.subr.mxu0 0.0
  %94 = vmatpush1.msra.mxu0 0.0
  %95 = vmatprep.subr.mxu0 0.0
  %96 = vmatpush1.msra.mxu0 0.0
  %97 = vmatprep.subr.mxu0 0.0
  %98 = vmatpush1.msra.mxu0 0.0
  %99 = vmatprep.subr.mxu0 0.0
  %100 = vmatpush1.msra.mxu0 0.0
  %101 = vmatprep.subr.mxu0 0.0
  %102 = vmatpush1.msra.mxu0 0.0
  %103 = vmatprep.subr.mxu0 0.0
  %104 = vmatpush1.msra.mxu0 0.0
  %105 = vmatprep.subr.mxu0 0.0
  %106 = vmatpush1.msra.mxu0 0.0
  %107 = vmatprep.subr.mxu0 0.0
  %108 = vmatpush1.msra.mxu0 0.0
  %109 = vmatprep.subr.mxu0 0.0
  %110 = vmatpush1.msra.mxu0 0.0
  %111 = vmatprep.subr.mxu0 0.0
  %112 = vmatpush1.msra.mxu0 0.0
  %113 = vmatprep.subr.mxu0 0.0
  %114 = vmatpush1.msra.mxu0 0.0
  %115 = vmatprep.subr.mxu0 0.0
  %116 = vmatpush1.msra.mxu0 0.0
  %117 = vmatprep.subr.mxu0 0.0
  %118 = vmatpush1.msra.mxu0 0.0
  %119 = vmatprep.subr.mxu0 0.0
  %120 = vmatpush1.msra.mxu0 0.0
  %121 = vmatprep.subr.mxu0 0.0
  %122 = vmatpush1.msra.mxu0 %v72
  %123 = vmatprep.subr.mxu0 0.0
  %124 = vmatpush1.msra.mxu0 %v71
  %125 = vmatprep.subr.mxu0 0.0
  %126 = vmatpush2.msra.mxu0 0.0
  %127 = vmatprep.subr.mxu0 0.0
  %128 = vmatpush2.msra.mxu0 0.0
  %129 = vmatprep.subr.mxu0 0.0
  %130 = vmatpush2.msra.mxu0 0.0
  %131 = vmatprep.subr.mxu0 0.0
  %132 = vmatpush2.msra.mxu0 0.0
  %133 = vmatprep.subr.mxu0 0.0
  %134 = vmatpush2.msra.mxu0 0.0
  %135 = vmatprep.subr.mxu0 0.0
  %136 = vmatpush2.msra.mxu0 0.0
  %137 = vmatprep.subr.mxu0 0.0
  %138 = vmatpush2.msra.mxu0 0.0
  %139 = vmatprep.subr.mxu0 0.0
  %140 = vmatpush2.msra.mxu0 0.0
  %141 = vmatprep.subr.mxu0 0.0
  %142 = vmatpush2.msra.mxu0 0.0
  %143 = vmatprep.subr.mxu0 0.0
  %144 = vmatpush2.msra.mxu0 0.0
  %145 = vmatprep.subr.mxu0 0.0
  %146 = vmatpush2.msra.mxu0 0.0
  %147 = vmatprep.subr.mxu0 0.0
  %148 = vmatpush2.msra.mxu0 0.0
  %149 = vmatprep.subr.mxu0 0.0
  %150 = vmatpush2.msra.mxu0 0.0
  %151 = vmatprep.subr.mxu0 0.0
  %152 = vmatpush2.msra.mxu0 0.0
  %153 = vmatprep.subr.mxu0 0.0
  %154 = vmatpush2.msra.mxu0 0.0
  %155 = vmatprep.subr.mxu0 0.0
  %156 = vmatpush2.msra.mxu0 0.0
  %157 = vmatprep.mubr.f32.mxu0 0.0
  %158 = vmatmul.mubr.f32.gmra.mxu0 %v82
  %v159 = vpop.f32.mrf.mxu0
  %v160 = vadd.f32 %v78, %v159
  %v161 = vpop.f32.mrf.mxu0
  %162 = vmatprep.mubr.f32.mxu0 0.0
  %163 = vmatmul.mubr.f32.gmra.mxu0 %v85
  %v164 = vpop.f32.mrf.mxu0
  %v165 = vadd.f32 %v78, %v164
  %v166 = vpop.f32.mrf.mxu0
  %167 = vmatprep.mubr.f32.mxu0 0.0
  %168 = vmatmul.mubr.f32.gmra.mxu0 %v88
  %v169 = vpop.f32.mrf.mxu0
  %v170 = vadd.f32 %v78, %v169
  %v171 = vpop.f32.mrf.mxu0
  %172 = vmatprep.mubr.f32.mxu0 0.0
  %173 = vmatmul.mubr.f32.gmra.mxu0 %v91
  %v174 = vpop.f32.mrf.mxu0
  %v175 = vadd.f32 %v78, %v174
  %v176 = vpop.f32.mrf.mxu0
  %177 = vdwg.mxu0
  %v178 = vmul.f32 %v160, %v160
  %v179 = vmul.f32 %v165, %v165
  %v180 = vmul.f32 %v170, %v170
  %v181 = vmul.f32 %v175, %v175
  %vm182 = vcmask 64512
  %183 = vst.msk [vmem:[%s20] sm:$0xff] %vm182, %v178
  %184 = vst.msk [vmem:[%s20 + $0x8] sm:$0xff] %vm182, %v179
  %185 = vst.msk [vmem:[%s20 + $0x10] sm:$0xff] %vm182, %v180
  %186 = vst.msk [vmem:[%s20 + $0x18] sm:$0xff] %vm182, %v181
  %v187 = vld [vmem:[%s3] sm:$0xff]
  %v188 = vld [vmem:[%s3 + $0x8] sm:$0xff]
  %v189 = vld [vmem:[%s4] sm:$0x1]
  %v191 = vlaneseq
  %v192 = vshrl.u32 %v191, 7
  %v193 = vsub.s32 0, %v192
  %v194 = vrot.slane %v189, %v193
  %196 = vmatprep.subr.mxu0 0.0
  %197 = vmatpush1.msra.mxu0 0.0
  %198 = vmatprep.subr.mxu0 0.0
  %199 = vmatpush1.msra.mxu0 0.0
  %200 = vmatprep.subr.mxu0 0.0
  %201 = vmatpush1.msra.mxu0 0.0
  %202 = vmatprep.subr.mxu0 0.0
  %203 = vmatpush1.msra.mxu0 0.0
  %204 = vmatprep.subr.mxu0 0.0
  %205 = vmatpush1.msra.mxu0 0.0
  %206 = vmatprep.subr.mxu0 0.0
  %207 = vmatpush1.msra.mxu0 0.0
  %208 = vmatprep.subr.mxu0 0.0
  %209 = vmatpush1.msra.mxu0 0.0
  %210 = vmatprep.subr.mxu0 0.0
  %211 = vmatpush1.msra.mxu0 0.0
  %212 = vmatprep.subr.mxu0 0.0
  %213 = vmatpush1.msra.mxu0 0.0
  %214 = vmatprep.subr.mxu0 0.0
  %215 = vmatpush1.msra.mxu0 0.0
  %216 = vmatprep.subr.mxu0 0.0
  %217 = vmatpush1.msra.mxu0 0.0
  %218 = vmatprep.subr.mxu0 0.0
  %219 = vmatpush1.msra.mxu0 0.0
  %220 = vmatprep.subr.mxu0 0.0
  %221 = vmatpush1.msra.mxu0 0.0
  %222 = vmatprep.subr.mxu0 0.0
  %223 = vmatpush1.msra.mxu0 0.0
  %224 = vmatprep.subr.mxu0 0.0
  %225 = vmatpush1.msra.mxu0 %v188
  %226 = vmatprep.subr.mxu0 0.0
  %227 = vmatpush1.msra.mxu0 %v187
  %228 = vmatprep.subr.mxu0 0.0
  %229 = vmatpush2.msra.mxu0 0.0
  %230 = vmatprep.subr.mxu0 0.0
  %231 = vmatpush2.msra.mxu0 0.0
  %232 = vmatprep.subr.mxu0 0.0
  %233 = vmatpush2.msra.mxu0 0.0
  %234 = vmatprep.subr.mxu0 0.0
  %235 = vmatpush2.msra.mxu0 0.0
  %236 = vmatprep.subr.mxu0 0.0
  %237 = vmatpush2.msra.mxu0 0.0
  %238 = vmatprep.subr.mxu0 0.0
  %239 = vmatpush2.msra.mxu0 0.0
  %240 = vmatprep.subr.mxu0 0.0
  %241 = vmatpush2.msra.mxu0 0.0
  %242 = vmatprep.subr.mxu0 0.0
  %243 = vmatpush2.msra.mxu0 0.0
  %244 = vmatprep.subr.mxu0 0.0
  %245 = vmatpush2.msra.mxu0 0.0
  %246 = vmatprep.subr.mxu0 0.0
  %247 = vmatpush2.msra.mxu0 0.0
  %248 = vmatprep.subr.mxu0 0.0
  %249 = vmatpush2.msra.mxu0 0.0
  %250 = vmatprep.subr.mxu0 0.0
  %251 = vmatpush2.msra.mxu0 0.0
  %252 = vmatprep.subr.mxu0 0.0
  %253 = vmatpush2.msra.mxu0 0.0
  %254 = vmatprep.subr.mxu0 0.0
  %255 = vmatpush2.msra.mxu0 0.0
  %256 = vmatprep.subr.mxu0 0.0
  %257 = vmatpush2.msra.mxu0 0.0
  %258 = vmatprep.subr.mxu0 0.0
  %259 = vmatpush2.msra.mxu0 0.0
  %260 = vmatprep.mubr.f32.mxu0 0.0
  %261 = vmatmul.mubr.f32.gmra.mxu0 %v82
  %v262 = vpop.f32.mrf.mxu0
  %v263 = vadd.f32 %v194, %v262
  %v264 = vpop.f32.mrf.mxu0
  %265 = vmatprep.mubr.f32.mxu0 0.0
  %266 = vmatmul.mubr.f32.gmra.mxu0 %v85
  %v267 = vpop.f32.mrf.mxu0
  %v268 = vadd.f32 %v194, %v267
  %v269 = vpop.f32.mrf.mxu0
  %270 = vmatprep.mubr.f32.mxu0 0.0
  %271 = vmatmul.mubr.f32.gmra.mxu0 %v88
  %v272 = vpop.f32.mrf.mxu0
  %v273 = vadd.f32 %v194, %v272
  %v274 = vpop.f32.mrf.mxu0
  %275 = vmatprep.mubr.f32.mxu0 0.0
  %276 = vmatmul.mubr.f32.gmra.mxu0 %v91
  %v277 = vpop.f32.mrf.mxu0
  %v278 = vadd.f32 %v194, %v277
  %v279 = vpop.f32.mrf.mxu0
  %280 = vdwg.mxu0
  %v281 = vld [vmem:[%s5] sm:$0xff]
  %v282 = vld [vmem:[%s5 + $0x8] sm:$0xff]
  %v283 = vld [vmem:[%s5 + $0x10] sm:$0xff]
  %v284 = vld [vmem:[%s5 + $0x18] sm:$0xff]
  %vm285 = vcmask 261120
  %v287 = vsel %vm285, %v263, 0
  %v290 = vsel %vm285, %v268, 0
  %v293 = vsel %vm285, %v273, 0
  %v296 = vsel %vm285, %v278, 0
  %298 = vmatprep.subr.mxu0 0.0
  %299 = vmatpush1.msra.mxu0 0.0
  %300 = vmatprep.subr.mxu0 0.0
  %301 = vmatpush1.msra.mxu0 0.0
  %302 = vmatprep.subr.mxu0 0.0
  %303 = vmatpush1.msra.mxu0 0.0
  %304 = vmatprep.subr.mxu0 0.0
  %305 = vmatpush1.msra.mxu0 0.0
  %306 = vmatprep.subr.mxu0 0.0
  %307 = vmatpush1.msra.mxu0 0.0
  %308 = vmatprep.subr.mxu0 0.0
  %309 = vmatpush1.msra.mxu0 0.0
  %310 = vmatprep.subr.mxu0 0.0
  %311 = vmatpush1.msra.mxu0 0.0
  %312 = vmatprep.subr.mxu0 0.0
  %313 = vmatpush1.msra.mxu0 0.0
  %314 = vmatprep.subr.mxu0 0.0
  %315 = vmatpush1.msra.mxu0 0.0
  %316 = vmatprep.subr.mxu0 0.0
  %317 = vmatpush1.msra.mxu0 0.0
  %318 = vmatprep.subr.mxu0 0.0
  %319 = vmatpush1.msra.mxu0 0.0
  %320 = vmatprep.subr.mxu0 0.0
  %321 = vmatpush1.msra.mxu0 0.0
  %322 = vmatprep.subr.mxu0 0.0
  %323 = vmatpush1.msra.mxu0 %v284
  %324 = vmatprep.subr.mxu0 0.0
  %325 = vmatpush1.msra.mxu0 %v283
  %326 = vmatprep.subr.mxu0 0.0
  %327 = vmatpush1.msra.mxu0 %v282
  %328 = vmatprep.subr.mxu0 0.0
  %329 = vmatpush1.msra.mxu0 %v281
  %330 = vmatprep.subr.mxu0 0.0
  %331 = vmatpush2.msra.mxu0 0.0
  %332 = vmatprep.subr.mxu0 0.0
  %333 = vmatpush2.msra.mxu0 0.0
  %334 = vmatprep.subr.mxu0 0.0
  %335 = vmatpush2.msra.mxu0 0.0
  %336 = vmatprep.subr.mxu0 0.0
  %337 = vmatpush2.msra.mxu0 0.0
  %338 = vmatprep.subr.mxu0 0.0
  %339 = vmatpush2.msra.mxu0 0.0
  %340 = vmatprep.subr.mxu0 0.0
  %341 = vmatpush2.msra.mxu0 0.0
  %342 = vmatprep.subr.mxu0 0.0
  %343 = vmatpush2.msra.mxu0 0.0
  %344 = vmatprep.subr.mxu0 0.0
  %345 = vmatpush2.msra.mxu0 0.0
  %346 = vmatprep.subr.mxu0 0.0
  %347 = vmatpush2.msra.mxu0 0.0
  %348 = vmatprep.subr.mxu0 0.0
  %349 = vmatpush2.msra.mxu0 0.0
  %350 = vmatprep.subr.mxu0 0.0
  %351 = vmatpush2.msra.mxu0 0.0
  %352 = vmatprep.subr.mxu0 0.0
  %353 = vmatpush2.msra.mxu0 0.0
  %354 = vmatprep.subr.mxu0 0.0
  %355 = vmatpush2.msra.mxu0 0.0
  %356 = vmatprep.subr.mxu0 0.0
  %357 = vmatpush2.msra.mxu0 0.0
  %358 = vmatprep.subr.mxu0 0.0
  %359 = vmatpush2.msra.mxu0 0.0
  %360 = vmatprep.subr.mxu0 0.0
  %361 = vmatpush2.msra.mxu0 0.0
  %362 = vmatprep.mubr.f32.mxu0 0.0
  %363 = vmatmul.mubr.f32.gmra.mxu0 %v287
  %v364 = vpop.f32.mrf.mxu0
  %v365 = vadd.f32 0.0, %v364
  %v366 = vpop.f32.mrf.mxu0
  %367 = vmatprep.mubr.f32.mxu0 0.0
  %368 = vmatmul.mubr.f32.gmra.mxu0 %v290
  %v369 = vpop.f32.mrf.mxu0
  %v370 = vadd.f32 0.0, %v369
  %v371 = vpop.f32.mrf.mxu0
  %372 = vmatprep.mubr.f32.mxu0 0.0
  %373 = vmatmul.mubr.f32.gmra.mxu0 %v293
  %v374 = vpop.f32.mrf.mxu0
  %v375 = vadd.f32 0.0, %v374
  %v376 = vpop.f32.mrf.mxu0
  %377 = vmatprep.mubr.f32.mxu0 0.0
  %378 = vmatmul.mubr.f32.gmra.mxu0 %v296
  %v379 = vpop.f32.mrf.mxu0
  %v380 = vadd.f32 0.0, %v379
  %v381 = vpop.f32.mrf.mxu0
  %382 = vdwg.mxu0
  %v383 = vld [vmem:[%s18] sm:$0xff]
  %v384 = vld [vmem:[%s18 + $0x8] sm:$0xff]
  %v385 = vld [vmem:[%s18 + $0x10] sm:$0xff]
  %v386 = vld [vmem:[%s18 + $0x18] sm:$0xff]
  %v387 = vld [vmem:[%s18 + $0x20] sm:$0xff]
  %v388 = vld [vmem:[%s18 + $0x28] sm:$0xff]
  %v389 = vld [vmem:[%s18 + $0x30] sm:$0xff]
  %v390 = vld [vmem:[%s18 + $0x38] sm:$0xff]
  %v391 = vld [vmem:[%s19] sm:$0xff]
  %vm392 = vcmask 523264
  %v394 = vsel %vm392, %v365, 0
  %v397 = vsel %vm392, %v370, 0
  %v400 = vsel %vm392, %v375, 0
  %v403 = vsel %vm392, %v380, 0
  %405 = vmatprep.subr.mxu0 0.0
  %406 = vmatpush1.msra.mxu0 0.0
  %407 = vmatprep.subr.mxu0 0.0
  %408 = vmatpush1.msra.mxu0 0.0
  %409 = vmatprep.subr.mxu0 0.0
  %410 = vmatpush1.msra.mxu0 0.0
  %411 = vmatprep.subr.mxu0 0.0
  %412 = vmatpush1.msra.mxu0 0.0
  %413 = vmatprep.subr.mxu0 0.0
  %414 = vmatpush1.msra.mxu0 0.0
  %415 = vmatprep.subr.mxu0 0.0
  %416 = vmatpush1.msra.mxu0 0.0
  %417 = vmatprep.subr.mxu0 0.0
  %418 = vmatpush1.msra.mxu0 0.0
  %419 = vmatprep.subr.mxu0 0.0
  %420 = vmatpush1.msra.mxu0 0.0
  %421 = vmatprep.subr.mxu0 0.0
  %422 = vmatpush1.msra.mxu0 %v390
  %423 = vmatprep.subr.mxu0 0.0
  %424 = vmatpush1.msra.mxu0 %v389
  %425 = vmatprep.subr.mxu0 0.0
  %426 = vmatpush1.msra.mxu0 %v388
  %427 = vmatprep.subr.mxu0 0.0
  %428 = vmatpush1.msra.mxu0 %v387
  %429 = vmatprep.subr.mxu0 0.0
  %430 = vmatpush1.msra.mxu0 %v386
  %431 = vmatprep.subr.mxu0 0.0
  %432 = vmatpush1.msra.mxu0 %v385
  %433 = vmatprep.subr.mxu0 0.0
  %434 = vmatpush1.msra.mxu0 %v384
  %435 = vmatprep.subr.mxu0 0.0
  %436 = vmatpush1.msra.mxu0 %v383
  %437 = vmatprep.subr.mxu0 0.0
  %438 = vmatpush2.msra.mxu0 0.0
  %439 = vmatprep.subr.mxu0 0.0
  %440 = vmatpush2.msra.mxu0 0.0
  %441 = vmatprep.subr.mxu0 0.0
  %442 = vmatpush2.msra.mxu0 0.0
  %443 = vmatprep.subr.mxu0 0.0
  %444 = vmatpush2.msra.mxu0 0.0
  %445 = vmatprep.subr.mxu0 0.0
  %446 = vmatpush2.msra.mxu0 0.0
  %447 = vmatprep.subr.mxu0 0.0
  %448 = vmatpush2.msra.mxu0 0.0
  %449 = vmatprep.subr.mxu0 0.0
  %450 = vmatpush2.msra.mxu0 0.0
  %451 = vmatprep.subr.mxu0 0.0
  %452 = vmatpush2.msra.mxu0 0.0
  %453 = vmatprep.subr.mxu0 0.0
  %454 = vmatpush2.msra.mxu0 0.0
  %455 = vmatprep.subr.mxu0 0.0
  %456 = vmatpush2.msra.mxu0 0.0
  %457 = vmatprep.subr.mxu0 0.0
  %458 = vmatpush2.msra.mxu0 0.0
  %459 = vmatprep.subr.mxu0 0.0
  %460 = vmatpush2.msra.mxu0 0.0
  %461 = vmatprep.subr.mxu0 0.0
  %462 = vmatpush2.msra.mxu0 0.0
  %463 = vmatprep.subr.mxu0 0.0
  %464 = vmatpush2.msra.mxu0 0.0
  %465 = vmatprep.subr.mxu0 0.0
  %466 = vmatpush2.msra.mxu0 0.0
  %467 = vmatprep.subr.mxu0 0.0
  %468 = vmatpush2.msra.mxu0 0.0
  %469 = vmatprep.mubr.f32.mxu0 0.0
  %470 = vmatmul.mubr.f32.gmra.mxu0 %v394
  %v471 = vpop.f32.mrf.mxu0
  %v472 = vadd.f32 0.0, %v471
  %v473 = vpop.f32.mrf.mxu0
  %474 = vmatprep.mubr.f32.mxu0 0.0
  %475 = vmatmul.mubr.f32.gmra.mxu0 %v397
  %v476 = vpop.f32.mrf.mxu0
  %v477 = vadd.f32 0.0, %v476
  %v478 = vpop.f32.mrf.mxu0
  %479 = vmatprep.mubr.f32.mxu0 0.0
  %480 = vmatmul.mubr.f32.gmra.mxu0 %v400
  %v481 = vpop.f32.mrf.mxu0
  %v482 = vadd.f32 0.0, %v481
  %v483 = vpop.f32.mrf.mxu0
  %484 = vmatprep.mubr.f32.mxu0 0.0
  %485 = vmatmul.mubr.f32.gmra.mxu0 %v403
  %v486 = vpop.f32.mrf.mxu0
  %v487 = vadd.f32 0.0, %v486
  %v488 = vpop.f32.mrf.mxu0
  %489 = vdwg.mxu0
  %v490 = vsel %vm182, %v472, 0.0
  %v491 = vsel %vm182, %v477, 0.0
  %v492 = vadd.f32 %v490, %v491
  %v493 = vsel %vm182, %v482, 0.0
  %v494 = vadd.f32 %v492, %v493
  %v495 = vsel %vm182, %v487, 0.0
  %v496 = vadd.f32 %v494, %v495
  %v497 = vrot.slane %v496, 4
  %v498 = vadd.f32 %v496, %v497
  %v499 = vrot.slane %v498, 2
  %v500 = vadd.f32 %v498, %v499
  %v501 = vrot.slane %v500, 1
  %v502 = vadd.f32 %v500, %v501
  %v503 = vmul.f32 %v365, %v365
  %v504 = vmul.f32 %v370, %v370
  %v505 = vmul.f32 %v375, %v375
  %v506 = vmul.f32 %v380, %v380
  %v508 = vsel %vm392, %v503, 0
  %v511 = vsel %vm392, %v504, 0
  %v514 = vsel %vm392, %v505, 0
  %v517 = vsel %vm392, %v506, 0
  %519 = vmatprep.subr.mxu0 0.0
  %520 = vmatpush1.msra.mxu0 0.0
  %521 = vmatprep.subr.mxu0 0.0
  %522 = vmatpush1.msra.mxu0 0.0
  %523 = vmatprep.subr.mxu0 0.0
  %524 = vmatpush1.msra.mxu0 0.0
  %525 = vmatprep.subr.mxu0 0.0
  %526 = vmatpush1.msra.mxu0 0.0
  %527 = vmatprep.subr.mxu0 0.0
  %528 = vmatpush1.msra.mxu0 0.0
  %529 = vmatprep.subr.mxu0 0.0
  %530 = vmatpush1.msra.mxu0 0.0
  %531 = vmatprep.subr.mxu0 0.0
  %532 = vmatpush1.msra.mxu0 0.0
  %533 = vmatprep.subr.mxu0 0.0
  %534 = vmatpush1.msra.mxu0 0.0
  %535 = vmatprep.subr.mxu0 0.0
  %536 = vmatpush1.msra.mxu0 %v390
  %537 = vmatprep.subr.mxu0 0.0
  %538 = vmatpush1.msra.mxu0 %v389
  %539 = vmatprep.subr.mxu0 0.0
  %540 = vmatpush1.msra.mxu0 %v388
  %541 = vmatprep.subr.mxu0 0.0
  %542 = vmatpush1.msra.mxu0 %v387
  %543 = vmatprep.subr.mxu0 0.0
  %544 = vmatpush1.msra.mxu0 %v386
  %545 = vmatprep.subr.mxu0 0.0
  %546 = vmatpush1.msra.mxu0 %v385
  %547 = vmatprep.subr.mxu0 0.0
  %548 = vmatpush1.msra.mxu0 %v384
  %549 = vmatprep.subr.mxu0 0.0
  %550 = vmatpush1.msra.mxu0 %v383
  %551 = vmatprep.subr.mxu0 0.0
  %552 = vmatpush2.msra.mxu0 0.0
  %553 = vmatprep.subr.mxu0 0.0
  %554 = vmatpush2.msra.mxu0 0.0
  %555 = vmatprep.subr.mxu0 0.0
  %556 = vmatpush2.msra.mxu0 0.0
  %557 = vmatprep.subr.mxu0 0.0
  %558 = vmatpush2.msra.mxu0 0.0
  %559 = vmatprep.subr.mxu0 0.0
  %560 = vmatpush2.msra.mxu0 0.0
  %561 = vmatprep.subr.mxu0 0.0
  %562 = vmatpush2.msra.mxu0 0.0
  %563 = vmatprep.subr.mxu0 0.0
  %564 = vmatpush2.msra.mxu0 0.0
  %565 = vmatprep.subr.mxu0 0.0
  %566 = vmatpush2.msra.mxu0 0.0
  %567 = vmatprep.subr.mxu0 0.0
  %568 = vmatpush2.msra.mxu0 0.0
  %569 = vmatprep.subr.mxu0 0.0
  %570 = vmatpush2.msra.mxu0 0.0
  %571 = vmatprep.subr.mxu0 0.0
  %572 = vmatpush2.msra.mxu0 0.0
  %573 = vmatprep.subr.mxu0 0.0
  %574 = vmatpush2.msra.mxu0 0.0
  %575 = vmatprep.subr.mxu0 0.0
  %576 = vmatpush2.msra.mxu0 0.0
  %577 = vmatprep.subr.mxu0 0.0
  %578 = vmatpush2.msra.mxu0 0.0
  %579 = vmatprep.subr.mxu0 0.0
  %580 = vmatpush2.msra.mxu0 0.0
  %581 = vmatprep.subr.mxu0 0.0
  %582 = vmatpush2.msra.mxu0 0.0
  %583 = vmatprep.mubr.f32.mxu0 0.0
  %584 = vmatmul.mubr.f32.gmra.mxu0 %v508
  %v585 = vpop.f32.mrf.mxu0
  %v586 = vadd.f32 0.0, %v585
  %v587 = vpop.f32.mrf.mxu0
  %588 = vmatprep.mubr.f32.mxu0 0.0
  %589 = vmatmul.mubr.f32.gmra.mxu0 %v511
  %v590 = vpop.f32.mrf.mxu0
  %v591 = vadd.f32 0.0, %v590
  %v592 = vpop.f32.mrf.mxu0
  %593 = vmatprep.mubr.f32.mxu0 0.0
  %594 = vmatmul.mubr.f32.gmra.mxu0 %v514
  %v595 = vpop.f32.mrf.mxu0
  %v596 = vadd.f32 0.0, %v595
  %v597 = vpop.f32.mrf.mxu0
  %598 = vmatprep.mubr.f32.mxu0 0.0
  %599 = vmatmul.mubr.f32.gmra.mxu0 %v517
  %v600 = vpop.f32.mrf.mxu0
  %v601 = vadd.f32 0.0, %v600
  %v602 = vpop.f32.mrf.mxu0
  %603 = vdwg.mxu0
  %v604 = vsel %vm182, %v586, 0.0
  %v605 = vsel %vm182, %v591, 0.0
  %v606 = vadd.f32 %v604, %v605
  %v607 = vsel %vm182, %v596, 0.0
  %v608 = vadd.f32 %v606, %v607
  %v609 = vsel %vm182, %v601, 0.0
  %v610 = vadd.f32 %v608, %v609
  %v611 = vrot.slane %v610, 4
  %v612 = vadd.f32 %v610, %v611
  %v613 = vrot.slane %v612, 2
  %v614 = vadd.f32 %v612, %v613
  %v615 = vrot.slane %v614, 1
  %v616 = vadd.f32 %v614, %v615
  %v617 = vrcp.pop 256.0
  %v618 = vmul.f32 %v502, %v617
  %v619 = vmul.f32 %v616, %v617
  %v620 = vmul.f32 %v618, %v618
  %v621 = vsub.f32 %v619, %v620
  %v622 = vadd.f32 %v621, 1e-05
  %v623 = vrsqrt.pop %v622
  %v624 = vld [vmem:[%s6] sm:$0x1]
  %v625 = vmul.f32 %v623, %v624
  %v626 = vld [vmem:[%s7] sm:$0x1]
  %v627 = vmul.f32 %v618, %v625
  %v628 = vsub.f32 %v626, %v627
  %v630 = vsel %vm182, %v625, 0
  %632 = vmatprep.subr.mxu0 0.0
  %633 = vmatpush1.msra.mxu0 0.0
  %634 = vmatprep.subr.mxu0 0.0
  %635 = vmatpush1.msra.mxu0 0.0
  %636 = vmatprep.subr.mxu0 0.0
  %637 = vmatpush1.msra.mxu0 0.0
  %638 = vmatprep.subr.mxu0 0.0
  %639 = vmatpush1.msra.mxu0 0.0
  %640 = vmatprep.subr.mxu0 0.0
  %641 = vmatpush1.msra.mxu0 0.0
  %642 = vmatprep.subr.mxu0 0.0
  %643 = vmatpush1.msra.mxu0 0.0
  %644 = vmatprep.subr.mxu0 0.0
  %645 = vmatpush1.msra.mxu0 0.0
  %646 = vmatprep.subr.mxu0 0.0
  %647 = vmatpush1.msra.mxu0 0.0
  %648 = vmatprep.subr.mxu0 0.0
  %649 = vmatpush1.msra.mxu0 0.0
  %650 = vmatprep.subr.mxu0 0.0
  %651 = vmatpush1.msra.mxu0 0.0
  %652 = vmatprep.subr.mxu0 0.0
  %653 = vmatpush1.msra.mxu0 0.0
  %654 = vmatprep.subr.mxu0 0.0
  %655 = vmatpush1.msra.mxu0 0.0
  %656 = vmatprep.subr.mxu0 0.0
  %657 = vmatpush1.msra.mxu0 0.0
  %658 = vmatprep.subr.mxu0 0.0
  %659 = vmatpush1.msra.mxu0 0.0
  %660 = vmatprep.subr.mxu0 0.0
  %661 = vmatpush1.msra.mxu0 0.0
  %662 = vmatprep.subr.mxu0 0.0
  %663 = vmatpush1.msra.mxu0 %v391
  %664 = vmatprep.subr.mxu0 0.0
  %665 = vmatpush2.msra.mxu0 0.0
  %666 = vmatprep.subr.mxu0 0.0
  %667 = vmatpush2.msra.mxu0 0.0
  %668 = vmatprep.subr.mxu0 0.0
  %669 = vmatpush2.msra.mxu0 0.0
  %670 = vmatprep.subr.mxu0 0.0
  %671 = vmatpush2.msra.mxu0 0.0
  %672 = vmatprep.subr.mxu0 0.0
  %673 = vmatpush2.msra.mxu0 0.0
  %674 = vmatprep.subr.mxu0 0.0
  %675 = vmatpush2.msra.mxu0 0.0
  %676 = vmatprep.subr.mxu0 0.0
  %677 = vmatpush2.msra.mxu0 0.0
  %678 = vmatprep.subr.mxu0 0.0
  %679 = vmatpush2.msra.mxu0 0.0
  %680 = vmatprep.subr.mxu0 0.0
  %681 = vmatpush2.msra.mxu0 0.0
  %682 = vmatprep.subr.mxu0 0.0
  %683 = vmatpush2.msra.mxu0 0.0
  %684 = vmatprep.subr.mxu0 0.0
  %685 = vmatpush2.msra.mxu0 0.0
  %686 = vmatprep.subr.mxu0 0.0
  %687 = vmatpush2.msra.mxu0 0.0
  %688 = vmatprep.subr.mxu0 0.0
  %689 = vmatpush2.msra.mxu0 0.0
  %690 = vmatprep.subr.mxu0 0.0
  %691 = vmatpush2.msra.mxu0 0.0
  %692 = vmatprep.subr.mxu0 0.0
  %693 = vmatpush2.msra.mxu0 0.0
  %694 = vmatprep.subr.mxu0 0.0
  %695 = vmatpush2.msra.mxu0 0.0
  %696 = vmatprep.mubr.f32.mxu0 0.0
  %697 = vmatmul.mubr.f32.gmra.mxu0 %v630
  %v698 = vpop.f32.mrf.mxu0
  %v699 = vadd.f32 0.0, %v698
  %v700 = vpop.f32.mrf.mxu0
  %701 = vdwg.mxu0
  %v702 = vlaneseq
  %v703 = vshrl.u32 %v702, 7
  %v704 = vsub.s32 0, %v703
  %v705 = vrot.slane %v699, %v704
  %v706 = vmul.f32 %v365, %v705
  %v707 = vmul.f32 %v370, %v705
  %v708 = vmul.f32 %v375, %v705
  %v709 = vmul.f32 %v380, %v705
  %v711 = vsel %vm182, %v628, 0
  %713 = vmatprep.subr.mxu0 0.0
  %714 = vmatpush1.msra.mxu0 0.0
  %715 = vmatprep.subr.mxu0 0.0
  %716 = vmatpush1.msra.mxu0 0.0
  %717 = vmatprep.subr.mxu0 0.0
  %718 = vmatpush1.msra.mxu0 0.0
  %719 = vmatprep.subr.mxu0 0.0
  %720 = vmatpush1.msra.mxu0 0.0
  %721 = vmatprep.subr.mxu0 0.0
  %722 = vmatpush1.msra.mxu0 0.0
  %723 = vmatprep.subr.mxu0 0.0
  %724 = vmatpush1.msra.mxu0 0.0
  %725 = vmatprep.subr.mxu0 0.0
  %726 = vmatpush1.msra.mxu0 0.0
  %727 = vmatprep.subr.mxu0 0.0
  %728 = vmatpush1.msra.mxu0 0.0
  %729 = vmatprep.subr.mxu0 0.0
  %730 = vmatpush1.msra.mxu0 0.0
  %731 = vmatprep.subr.mxu0 0.0
  %732 = vmatpush1.msra.mxu0 0.0
  %733 = vmatprep.subr.mxu0 0.0
  %734 = vmatpush1.msra.mxu0 0.0
  %735 = vmatprep.subr.mxu0 0.0
  %736 = vmatpush1.msra.mxu0 0.0
  %737 = vmatprep.subr.mxu0 0.0
  %738 = vmatpush1.msra.mxu0 0.0
  %739 = vmatprep.subr.mxu0 0.0
  %740 = vmatpush1.msra.mxu0 0.0
  %741 = vmatprep.subr.mxu0 0.0
  %742 = vmatpush1.msra.mxu0 0.0
  %743 = vmatprep.subr.mxu0 0.0
  %744 = vmatpush1.msra.mxu0 %v391
  %745 = vmatprep.subr.mxu0 0.0
  %746 = vmatpush2.msra.mxu0 0.0
  %747 = vmatprep.subr.mxu0 0.0
  %748 = vmatpush2.msra.mxu0 0.0
  %749 = vmatprep.subr.mxu0 0.0
  %750 = vmatpush2.msra.mxu0 0.0
  %751 = vmatprep.subr.mxu0 0.0
  %752 = vmatpush2.msra.mxu0 0.0
  %753 = vmatprep.subr.mxu0 0.0
  %754 = vmatpush2.msra.mxu0 0.0
  %755 = vmatprep.subr.mxu0 0.0
  %756 = vmatpush2.msra.mxu0 0.0
  %757 = vmatprep.subr.mxu0 0.0
  %758 = vmatpush2.msra.mxu0 0.0
  %759 = vmatprep.subr.mxu0 0.0
  %760 = vmatpush2.msra.mxu0 0.0
  %761 = vmatprep.subr.mxu0 0.0
  %762 = vmatpush2.msra.mxu0 0.0
  %763 = vmatprep.subr.mxu0 0.0
  %764 = vmatpush2.msra.mxu0 0.0
  %765 = vmatprep.subr.mxu0 0.0
  %766 = vmatpush2.msra.mxu0 0.0
  %767 = vmatprep.subr.mxu0 0.0
  %768 = vmatpush2.msra.mxu0 0.0
  %769 = vmatprep.subr.mxu0 0.0
  %770 = vmatpush2.msra.mxu0 0.0
  %771 = vmatprep.subr.mxu0 0.0
  %772 = vmatpush2.msra.mxu0 0.0
  %773 = vmatprep.subr.mxu0 0.0
  %774 = vmatpush2.msra.mxu0 0.0
  %775 = vmatprep.subr.mxu0 0.0
  %776 = vmatpush2.msra.mxu0 0.0
  %777 = vmatprep.mubr.f32.mxu0 0.0
  %778 = vmatmul.mubr.f32.gmra.mxu0 %v711
  %v779 = vpop.f32.mrf.mxu0
  %v780 = vadd.f32 0.0, %v779
  %v781 = vpop.f32.mrf.mxu0
  %782 = vdwg.mxu0
  %v783 = vlaneseq
  %v784 = vshrl.u32 %v783, 7
  %v785 = vsub.s32 0, %v784
  %v786 = vrot.slane %v780, %v785
  %v787 = vadd.f32 %v706, %v786
  %v788 = vadd.f32 %v707, %v786
  %v789 = vadd.f32 %v708, %v786
  %v790 = vadd.f32 %v709, %v786
  %vm791 = vcmp.gt.f32.partialorder %v787, 0.0
  %vm792 = vcmp.gt.f32.partialorder %v788, 0.0
  %vm793 = vcmp.gt.f32.partialorder %v789, 0.0
  %vm794 = vcmp.gt.f32.partialorder %v790, 0.0
  %v795 = vmul.f32 %v787, 0.2
  %v796 = vmul.f32 %v788, 0.2
  %v797 = vmul.f32 %v789, 0.2
  %v798 = vmul.f32 %v790, 0.2
  %v799 = vsel %vm791, %v787, %v795
  %v800 = vsel %vm792, %v788, %v796
  %v801 = vsel %vm793, %v789, %v797
  %v802 = vsel %vm794, %v790, %v798
  %v803 = vld [vmem:[%s8] sm:$0xff]
  %v804 = vld [vmem:[%s8 + $0x8] sm:$0xff]
  %v805 = vld [vmem:[%s8 + $0x10] sm:$0xff]
  %v806 = vld [vmem:[%s8 + $0x18] sm:$0xff]
  %v807 = vld [vmem:[%s8 + $0x20] sm:$0xff]
  %v808 = vld [vmem:[%s8 + $0x28] sm:$0xff]
  %v809 = vld [vmem:[%s8 + $0x30] sm:$0xff]
  %v810 = vld [vmem:[%s8 + $0x38] sm:$0xff]
  %v811 = vld [vmem:[%s9] sm:$0x1]
  %v813 = vlaneseq
  %v814 = vshrl.u32 %v813, 7
  %v815 = vsub.s32 0, %v814
  %v816 = vrot.slane %v811, %v815
  %v819 = vsel %vm392, %v799, 0
  %v822 = vsel %vm392, %v800, 0
  %v825 = vsel %vm392, %v801, 0
  %v828 = vsel %vm392, %v802, 0
  %830 = vmatprep.subr.mxu0 0.0
  %831 = vmatpush1.msra.mxu0 0.0
  %832 = vmatprep.subr.mxu0 0.0
  %833 = vmatpush1.msra.mxu0 0.0
  %834 = vmatprep.subr.mxu0 0.0
  %835 = vmatpush1.msra.mxu0 0.0
  %836 = vmatprep.subr.mxu0 0.0
  %837 = vmatpush1.msra.mxu0 0.0
  %838 = vmatprep.subr.mxu0 0.0
  %839 = vmatpush1.msra.mxu0 0.0
  %840 = vmatprep.subr.mxu0 0.0
  %841 = vmatpush1.msra.mxu0 0.0
  %842 = vmatprep.subr.mxu0 0.0
  %843 = vmatpush1.msra.mxu0 0.0
  %844 = vmatprep.subr.mxu0 0.0
  %845 = vmatpush1.msra.mxu0 0.0
  %846 = vmatprep.subr.mxu0 0.0
  %847 = vmatpush1.msra.mxu0 %v810
  %848 = vmatprep.subr.mxu0 0.0
  %849 = vmatpush1.msra.mxu0 %v809
  %850 = vmatprep.subr.mxu0 0.0
  %851 = vmatpush1.msra.mxu0 %v808
  %852 = vmatprep.subr.mxu0 0.0
  %853 = vmatpush1.msra.mxu0 %v807
  %854 = vmatprep.subr.mxu0 0.0
  %855 = vmatpush1.msra.mxu0 %v806
  %856 = vmatprep.subr.mxu0 0.0
  %857 = vmatpush1.msra.mxu0 %v805
  %858 = vmatprep.subr.mxu0 0.0
  %859 = vmatpush1.msra.mxu0 %v804
  %860 = vmatprep.subr.mxu0 0.0
  %861 = vmatpush1.msra.mxu0 %v803
  %862 = vmatprep.subr.mxu0 0.0
  %863 = vmatpush2.msra.mxu0 0.0
  %864 = vmatprep.subr.mxu0 0.0
  %865 = vmatpush2.msra.mxu0 0.0
  %866 = vmatprep.subr.mxu0 0.0
  %867 = vmatpush2.msra.mxu0 0.0
  %868 = vmatprep.subr.mxu0 0.0
  %869 = vmatpush2.msra.mxu0 0.0
  %870 = vmatprep.subr.mxu0 0.0
  %871 = vmatpush2.msra.mxu0 0.0
  %872 = vmatprep.subr.mxu0 0.0
  %873 = vmatpush2.msra.mxu0 0.0
  %874 = vmatprep.subr.mxu0 0.0
  %875 = vmatpush2.msra.mxu0 0.0
  %876 = vmatprep.subr.mxu0 0.0
  %877 = vmatpush2.msra.mxu0 0.0
  %878 = vmatprep.subr.mxu0 0.0
  %879 = vmatpush2.msra.mxu0 0.0
  %880 = vmatprep.subr.mxu0 0.0
  %881 = vmatpush2.msra.mxu0 0.0
  %882 = vmatprep.subr.mxu0 0.0
  %883 = vmatpush2.msra.mxu0 0.0
  %884 = vmatprep.subr.mxu0 0.0
  %885 = vmatpush2.msra.mxu0 0.0
  %886 = vmatprep.subr.mxu0 0.0
  %887 = vmatpush2.msra.mxu0 0.0
  %888 = vmatprep.subr.mxu0 0.0
  %889 = vmatpush2.msra.mxu0 0.0
  %890 = vmatprep.subr.mxu0 0.0
  %891 = vmatpush2.msra.mxu0 0.0
  %892 = vmatprep.subr.mxu0 0.0
  %893 = vmatpush2.msra.mxu0 0.0
  %894 = vmatprep.mubr.f32.mxu0 0.0
  %895 = vmatmul.mubr.f32.gmra.mxu0 %v819
  %v896 = vpop.f32.mrf.mxu0
  %v897 = vadd.f32 %v816, %v896
  %v898 = vpop.f32.mrf.mxu0
  %899 = vmatprep.mubr.f32.mxu0 0.0
  %900 = vmatmul.mubr.f32.gmra.mxu0 %v822
  %v901 = vpop.f32.mrf.mxu0
  %v902 = vadd.f32 %v816, %v901
  %v903 = vpop.f32.mrf.mxu0
  %904 = vmatprep.mubr.f32.mxu0 0.0
  %905 = vmatmul.mubr.f32.gmra.mxu0 %v825
  %v906 = vpop.f32.mrf.mxu0
  %v907 = vadd.f32 %v816, %v906
  %v908 = vpop.f32.mrf.mxu0
  %909 = vmatprep.mubr.f32.mxu0 0.0
  %910 = vmatmul.mubr.f32.gmra.mxu0 %v828
  %v911 = vpop.f32.mrf.mxu0
  %v912 = vadd.f32 %v816, %v911
  %v913 = vpop.f32.mrf.mxu0
  %914 = vdwg.mxu0
  %v915 = vld [vmem:[%s10] sm:$0xff]
  %v916 = vld [vmem:[%s10 + $0x8] sm:$0xff]
  %v917 = vld [vmem:[%s10 + $0x10] sm:$0xff]
  %v918 = vld [vmem:[%s10 + $0x18] sm:$0xff]
  %v919 = vld [vmem:[%s10 + $0x20] sm:$0xff]
  %v920 = vld [vmem:[%s10 + $0x28] sm:$0xff]
  %v921 = vld [vmem:[%s10 + $0x30] sm:$0xff]
  %v922 = vld [vmem:[%s10 + $0x38] sm:$0xff]
  %v924 = vsel %vm392, %v897, 0
  %v927 = vsel %vm392, %v902, 0
  %v930 = vsel %vm392, %v907, 0
  %v933 = vsel %vm392, %v912, 0
  %935 = vmatprep.subr.mxu0 0.0
  %936 = vmatpush1.msra.mxu0 0.0
  %937 = vmatprep.subr.mxu0 0.0
  %938 = vmatpush1.msra.mxu0 0.0
  %939 = vmatprep.subr.mxu0 0.0
  %940 = vmatpush1.msra.mxu0 0.0
  %941 = vmatprep.subr.mxu0 0.0
  %942 = vmatpush1.msra.mxu0 0.0
  %943 = vmatprep.subr.mxu0 0.0
  %944 = vmatpush1.msra.mxu0 0.0
  %945 = vmatprep.subr.mxu0 0.0
  %946 = vmatpush1.msra.mxu0 0.0
  %947 = vmatprep.subr.mxu0 0.0
  %948 = vmatpush1.msra.mxu0 0.0
  %949 = vmatprep.subr.mxu0 0.0
  %950 = vmatpush1.msra.mxu0 0.0
  %951 = vmatprep.subr.mxu0 0.0
  %952 = vmatpush1.msra.mxu0 %v922
  %953 = vmatprep.subr.mxu0 0.0
  %954 = vmatpush1.msra.mxu0 %v921
  %955 = vmatprep.subr.mxu0 0.0
  %956 = vmatpush1.msra.mxu0 %v920
  %957 = vmatprep.subr.mxu0 0.0
  %958 = vmatpush1.msra.mxu0 %v919
  %959 = vmatprep.subr.mxu0 0.0
  %960 = vmatpush1.msra.mxu0 %v918
  %961 = vmatprep.subr.mxu0 0.0
  %962 = vmatpush1.msra.mxu0 %v917
  %963 = vmatprep.subr.mxu0 0.0
  %964 = vmatpush1.msra.mxu0 %v916
  %965 = vmatprep.subr.mxu0 0.0
  %966 = vmatpush1.msra.mxu0 %v915
  %967 = vmatprep.subr.mxu0 0.0
  %968 = vmatpush2.msra.mxu0 0.0
  %969 = vmatprep.subr.mxu0 0.0
  %970 = vmatpush2.msra.mxu0 0.0
  %971 = vmatprep.subr.mxu0 0.0
  %972 = vmatpush2.msra.mxu0 0.0
  %973 = vmatprep.subr.mxu0 0.0
  %974 = vmatpush2.msra.mxu0 0.0
  %975 = vmatprep.subr.mxu0 0.0
  %976 = vmatpush2.msra.mxu0 0.0
  %977 = vmatprep.subr.mxu0 0.0
  %978 = vmatpush2.msra.mxu0 0.0
  %979 = vmatprep.subr.mxu0 0.0
  %980 = vmatpush2.msra.mxu0 0.0
  %981 = vmatprep.subr.mxu0 0.0
  %982 = vmatpush2.msra.mxu0 0.0
  %983 = vmatprep.subr.mxu0 0.0
  %984 = vmatpush2.msra.mxu0 0.0
  %985 = vmatprep.subr.mxu0 0.0
  %986 = vmatpush2.msra.mxu0 0.0
  %987 = vmatprep.subr.mxu0 0.0
  %988 = vmatpush2.msra.mxu0 0.0
  %989 = vmatprep.subr.mxu0 0.0
  %990 = vmatpush2.msra.mxu0 0.0
  %991 = vmatprep.subr.mxu0 0.0
  %992 = vmatpush2.msra.mxu0 0.0
  %993 = vmatprep.subr.mxu0 0.0
  %994 = vmatpush2.msra.mxu0 0.0
  %995 = vmatprep.subr.mxu0 0.0
  %996 = vmatpush2.msra.mxu0 0.0
  %997 = vmatprep.subr.mxu0 0.0
  %998 = vmatpush2.msra.mxu0 0.0
  %999 = vmatprep.mubr.f32.mxu0 0.0
  %1000 = vmatmul.mubr.f32.gmra.mxu0 %v924
  %v1001 = vpop.f32.mrf.mxu0
  %v1002 = vadd.f32 0.0, %v1001
  %v1003 = vpop.f32.mrf.mxu0
  %1004 = vmatprep.mubr.f32.mxu0 0.0
  %1005 = vmatmul.mubr.f32.gmra.mxu0 %v927
  %v1006 = vpop.f32.mrf.mxu0
  %v1007 = vadd.f32 0.0, %v1006
  %v1008 = vpop.f32.mrf.mxu0
  %1009 = vmatprep.mubr.f32.mxu0 0.0
  %1010 = vmatmul.mubr.f32.gmra.mxu0 %v930
  %v1011 = vpop.f32.mrf.mxu0
  %v1012 = vadd.f32 0.0, %v1011
  %v1013 = vpop.f32.mrf.mxu0
  %1014 = vmatprep.mubr.f32.mxu0 0.0
  %1015 = vmatmul.mubr.f32.gmra.mxu0 %v933
  %v1016 = vpop.f32.mrf.mxu0
  %v1017 = vadd.f32 0.0, %v1016
  %v1018 = vpop.f32.mrf.mxu0
  %1019 = vdwg.mxu0
  %v1020 = vld [vmem:[%s18] sm:$0xff]
  %v1021 = vld [vmem:[%s18 + $0x8] sm:$0xff]
  %v1022 = vld [vmem:[%s18 + $0x10] sm:$0xff]
  %v1023 = vld [vmem:[%s18 + $0x18] sm:$0xff]
  %v1024 = vld [vmem:[%s18 + $0x20] sm:$0xff]
  %v1025 = vld [vmem:[%s18 + $0x28] sm:$0xff]
  %v1026 = vld [vmem:[%s18 + $0x30] sm:$0xff]
  %v1027 = vld [vmem:[%s18 + $0x38] sm:$0xff]
  %v1028 = vld [vmem:[%s18 + $0x40] sm:$0xff]
  %v1029 = vld [vmem:[%s18 + $0x48] sm:$0xff]
  %v1030 = vld [vmem:[%s18 + $0x50] sm:$0xff]
  %v1031 = vld [vmem:[%s18 + $0x58] sm:$0xff]
  %v1032 = vld [vmem:[%s18 + $0x60] sm:$0xff]
  %v1033 = vld [vmem:[%s18 + $0x68] sm:$0xff]
  %v1034 = vld [vmem:[%s18 + $0x70] sm:$0xff]
  %v1035 = vld [vmem:[%s18 + $0x78] sm:$0xff]
  %1036 = vmatprep.subr.mxu0 0.0
  %1037 = vmatpush1.msra.mxu0 %v1035
  %1038 = vmatprep.subr.mxu0 0.0
  %1039 = vmatpush1.msra.mxu0 %v1034
  %1040 = vmatprep.subr.mxu0 0.0
  %1041 = vmatpush1.msra.mxu0 %v1033
  %1042 = vmatprep.subr.mxu0 0.0
  %1043 = vmatpush1.msra.mxu0 %v1032
  %1044 = vmatprep.subr.mxu0 0.0
  %1045 = vmatpush1.msra.mxu0 %v1031
  %1046 = vmatprep.subr.mxu0 0.0
  %1047 = vmatpush1.msra.mxu0 %v1030
  %1048 = vmatprep.subr.mxu0 0.0
  %1049 = vmatpush1.msra.mxu0 %v1029
  %1050 = vmatprep.subr.mxu0 0.0
  %1051 = vmatpush1.msra.mxu0 %v1028
  %1052 = vmatprep.subr.mxu0 0.0
  %1053 = vmatpush1.msra.mxu0 %v1027
  %1054 = vmatprep.subr.mxu0 0.0
  %1055 = vmatpush1.msra.mxu0 %v1026
  %1056 = vmatprep.subr.mxu0 0.0
  %1057 = vmatpush1.msra.mxu0 %v1025
  %1058 = vmatprep.subr.mxu0 0.0
  %1059 = vmatpush1.msra.mxu0 %v1024
  %1060 = vmatprep.subr.mxu0 0.0
  %1061 = vmatpush1.msra.mxu0 %v1023
  %1062 = vmatprep.subr.mxu0 0.0
  %1063 = vmatpush1.msra.mxu0 %v1022
  %1064 = vmatprep.subr.mxu0 0.0
  %1065 = vmatpush1.msra.mxu0 %v1021
  %1066 = vmatprep.subr.mxu0 0.0
  %1067 = vmatpush1.msra.mxu0 %v1020
  %1068 = vmatprep.subr.mxu0 0.0
  %1069 = vmatpush2.msra.mxu0 0.0
  %1070 = vmatprep.subr.mxu0 0.0
  %1071 = vmatpush2.msra.mxu0 0.0
  %1072 = vmatprep.subr.mxu0 0.0
  %1073 = vmatpush2.msra.mxu0 0.0
  %1074 = vmatprep.subr.mxu0 0.0
  %1075 = vmatpush2.msra.mxu0 0.0
  %1076 = vmatprep.subr.mxu0 0.0
  %1077 = vmatpush2.msra.mxu0 0.0
  %1078 = vmatprep.subr.mxu0 0.0
  %1079 = vmatpush2.msra.mxu0 0.0
  %1080 = vmatprep.subr.mxu0 0.0
  %1081 = vmatpush2.msra.mxu0 0.0
  %1082 = vmatprep.subr.mxu0 0.0
  %1083 = vmatpush2.msra.mxu0 0.0
  %1084 = vmatprep.subr.mxu0 0.0
  %1085 = vmatpush2.msra.mxu0 0.0
  %1086 = vmatprep.subr.mxu0 0.0
  %1087 = vmatpush2.msra.mxu0 0.0
  %1088 = vmatprep.subr.mxu0 0.0
  %1089 = vmatpush2.msra.mxu0 0.0
  %1090 = vmatprep.subr.mxu0 0.0
  %1091 = vmatpush2.msra.mxu0 0.0
  %1092 = vmatprep.subr.mxu0 0.0
  %1093 = vmatpush2.msra.mxu0 0.0
  %1094 = vmatprep.subr.mxu0 0.0
  %1095 = vmatpush2.msra.mxu0 0.0
  %1096 = vmatprep.subr.mxu0 0.0
  %1097 = vmatpush2.msra.mxu0 0.0
  %1098 = vmatprep.subr.mxu0 0.0
  %1099 = vmatpush2.msra.mxu0 0.0
  %1100 = vmatprep.mubr.f32.mxu0 0.0
  %1101 = vmatmul.mubr.f32.gmra.mxu0 %v1002
  %v1102 = vpop.f32.mrf.mxu0
  %v1103 = vadd.f32 0.0, %v1102
  %v1104 = vpop.f32.mrf.mxu0
  %1105 = vmatprep.mubr.f32.mxu0 0.0
  %1106 = vmatmul.mubr.f32.gmra.mxu0 %v1007
  %v1107 = vpop.f32.mrf.mxu0
  %v1108 = vadd.f32 0.0, %v1107
  %v1109 = vpop.f32.mrf.mxu0
  %1110 = vmatprep.mubr.f32.mxu0 0.0
  %1111 = vmatmul.mubr.f32.gmra.mxu0 %v1012
  %v1112 = vpop.f32.mrf.mxu0
  %v1113 = vadd.f32 0.0, %v1112
  %v1114 = vpop.f32.mrf.mxu0
  %1115 = vmatprep.mubr.f32.mxu0 0.0
  %1116 = vmatmul.mubr.f32.gmra.mxu0 %v1017
  %v1117 = vpop.f32.mrf.mxu0
  %v1118 = vadd.f32 0.0, %v1117
  %v1119 = vpop.f32.mrf.mxu0
  %1120 = vdwg.mxu0
  %v1121 = vsel %vm182, %v1103, 0.0
  %v1122 = vsel %vm182, %v1108, 0.0
  %v1123 = vadd.f32 %v1121, %v1122
  %v1124 = vsel %vm182, %v1113, 0.0
  %v1125 = vadd.f32 %v1123, %v1124
  %v1126 = vsel %vm182, %v1118, 0.0
  %v1127 = vadd.f32 %v1125, %v1126
  %v1128 = vrot.slane %v1127, 4
  %v1129 = vadd.f32 %v1127, %v1128
  %v1130 = vrot.slane %v1129, 2
  %v1131 = vadd.f32 %v1129, %v1130
  %v1132 = vrot.slane %v1131, 1
  %v1133 = vadd.f32 %v1131, %v1132
  %v1134 = vmul.f32 %v1002, %v1002
  %v1135 = vmul.f32 %v1007, %v1007
  %v1136 = vmul.f32 %v1012, %v1012
  %v1137 = vmul.f32 %v1017, %v1017
  %1138 = vmatprep.subr.mxu0 0.0
  %1139 = vmatpush1.msra.mxu0 %v1035
  %1140 = vmatprep.subr.mxu0 0.0
  %1141 = vmatpush1.msra.mxu0 %v1034
  %1142 = vmatprep.subr.mxu0 0.0
  %1143 = vmatpush1.msra.mxu0 %v1033
  %1144 = vmatprep.subr.mxu0 0.0
  %1145 = vmatpush1.msra.mxu0 %v1032
  %1146 = vmatprep.subr.mxu0 0.0
  %1147 = vmatpush1.msra.mxu0 %v1031
  %1148 = vmatprep.subr.mxu0 0.0
  %1149 = vmatpush1.msra.mxu0 %v1030
  %1150 = vmatprep.subr.mxu0 0.0
  %1151 = vmatpush1.msra.mxu0 %v1029
  %1152 = vmatprep.subr.mxu0 0.0
  %1153 = vmatpush1.msra.mxu0 %v1028
  %1154 = vmatprep.subr.mxu0 0.0
  %1155 = vmatpush1.msra.mxu0 %v1027
  %1156 = vmatprep.subr.mxu0 0.0
  %1157 = vmatpush1.msra.mxu0 %v1026
  %1158 = vmatprep.subr.mxu0 0.0
  %1159 = vmatpush1.msra.mxu0 %v1025
  %1160 = vmatprep.subr.mxu0 0.0
  %1161 = vmatpush1.msra.mxu0 %v1024
  %1162 = vmatprep.subr.mxu0 0.0
  %1163 = vmatpush1.msra.mxu0 %v1023
  %1164 = vmatprep.subr.mxu0 0.0
  %1165 = vmatpush1.msra.mxu0 %v1022
  %1166 = vmatprep.subr.mxu0 0.0
  %1167 = vmatpush1.msra.mxu0 %v1021
  %1168 = vmatprep.subr.mxu0 0.0
  %1169 = vmatpush1.msra.mxu0 %v1020
  %1170 = vmatprep.subr.mxu0 0.0
  %1171 = vmatpush2.msra.mxu0 0.0
  %1172 = vmatprep.subr.mxu0 0.0
  %1173 = vmatpush2.msra.mxu0 0.0
  %1174 = vmatprep.subr.mxu0 0.0
  %1175 = vmatpush2.msra.mxu0 0.0
  %1176 = vmatprep.subr.mxu0 0.0
  %1177 = vmatpush2.msra.mxu0 0.0
  %1178 = vmatprep.subr.mxu0 0.0
  %1179 = vmatpush2.msra.mxu0 0.0
  %1180 = vmatprep.subr.mxu0 0.0
  %1181 = vmatpush2.msra.mxu0 0.0
  %1182 = vmatprep.subr.mxu0 0.0
  %1183 = vmatpush2.msra.mxu0 0.0
  %1184 = vmatprep.subr.mxu0 0.0
  %1185 = vmatpush2.msra.mxu0 0.0
  %1186 = vmatprep.subr.mxu0 0.0
  %1187 = vmatpush2.msra.mxu0 0.0
  %1188 = vmatprep.subr.mxu0 0.0
  %1189 = vmatpush2.msra.mxu0 0.0
  %1190 = vmatprep.subr.mxu0 0.0
  %1191 = vmatpush2.msra.mxu0 0.0
  %1192 = vmatprep.subr.mxu0 0.0
  %1193 = vmatpush2.msra.mxu0 0.0
  %1194 = vmatprep.subr.mxu0 0.0
  %1195 = vmatpush2.msra.mxu0 0.0
  %1196 = vmatprep.subr.mxu0 0.0
  %1197 = vmatpush2.msra.mxu0 0.0
  %1198 = vmatprep.subr.mxu0 0.0
  %1199 = vmatpush2.msra.mxu0 0.0
  %1200 = vmatprep.subr.mxu0 0.0
  %1201 = vmatpush2.msra.mxu0 0.0
  %1202 = vmatprep.mubr.f32.mxu0 0.0
  %1203 = vmatmul.mubr.f32.gmra.mxu0 %v1134
  %v1204 = vpop.f32.mrf.mxu0
  %v1205 = vadd.f32 0.0, %v1204
  %v1206 = vpop.f32.mrf.mxu0
  %1207 = vmatprep.mubr.f32.mxu0 0.0
  %1208 = vmatmul.mubr.f32.gmra.mxu0 %v1135
  %v1209 = vpop.f32.mrf.mxu0
  %v1210 = vadd.f32 0.0, %v1209
  %v1211 = vpop.f32.mrf.mxu0
  %1212 = vmatprep.mubr.f32.mxu0 0.0
  %1213 = vmatmul.mubr.f32.gmra.mxu0 %v1136
  %v1214 = vpop.f32.mrf.mxu0
  %v1215 = vadd.f32 0.0, %v1214
  %v1216 = vpop.f32.mrf.mxu0
  %1217 = vmatprep.mubr.f32.mxu0 0.0
  %1218 = vmatmul.mubr.f32.gmra.mxu0 %v1137
  %v1219 = vpop.f32.mrf.mxu0
  %v1220 = vadd.f32 0.0, %v1219
  %v1221 = vpop.f32.mrf.mxu0
  %1222 = vdwg.mxu0
  %v1223 = vsel %vm182, %v1205, 0.0
  %v1224 = vsel %vm182, %v1210, 0.0
  %v1225 = vadd.f32 %v1223, %v1224
  %v1226 = vsel %vm182, %v1215, 0.0
  %v1227 = vadd.f32 %v1225, %v1226
  %v1228 = vsel %vm182, %v1220, 0.0
  %v1229 = vadd.f32 %v1227, %v1228
  %v1230 = vrot.slane %v1229, 4
  %v1231 = vadd.f32 %v1229, %v1230
  %v1232 = vrot.slane %v1231, 2
  %v1233 = vadd.f32 %v1231, %v1232
  %v1234 = vrot.slane %v1233, 1
  %v1235 = vadd.f32 %v1233, %v1234
  %v1236 = vrcp.pop 512.0
  %v1237 = vmul.f32 %v1133, %v1236
  %v1238 = vmul.f32 %v1235, %v1236
  %v1239 = vmul.f32 %v1237, %v1237
  %v1240 = vsub.f32 %v1238, %v1239
  %v1241 = vadd.f32 %v1240, 1e-05
  %v1242 = vrsqrt.pop %v1241
  %v1243 = vld [vmem:[%s11] sm:$0x1]
  %v1244 = vmul.f32 %v1242, %v1243
  %v1245 = vld [vmem:[%s12] sm:$0x1]
  %v1246 = vmul.f32 %v1237, %v1244
  %v1247 = vsub.f32 %v1245, %v1246
  %v1249 = vsel %vm182, %v1244, 0
  %1251 = vmatprep.subr.mxu0 0.0
  %1252 = vmatpush1.msra.mxu0 0.0
  %1253 = vmatprep.subr.mxu0 0.0
  %1254 = vmatpush1.msra.mxu0 0.0
  %1255 = vmatprep.subr.mxu0 0.0
  %1256 = vmatpush1.msra.mxu0 0.0
  %1257 = vmatprep.subr.mxu0 0.0
  %1258 = vmatpush1.msra.mxu0 0.0
  %1259 = vmatprep.subr.mxu0 0.0
  %1260 = vmatpush1.msra.mxu0 0.0
  %1261 = vmatprep.subr.mxu0 0.0
  %1262 = vmatpush1.msra.mxu0 0.0
  %1263 = vmatprep.subr.mxu0 0.0
  %1264 = vmatpush1.msra.mxu0 0.0
  %1265 = vmatprep.subr.mxu0 0.0
  %1266 = vmatpush1.msra.mxu0 0.0
  %1267 = vmatprep.subr.mxu0 0.0
  %1268 = vmatpush1.msra.mxu0 0.0
  %1269 = vmatprep.subr.mxu0 0.0
  %1270 = vmatpush1.msra.mxu0 0.0
  %1271 = vmatprep.subr.mxu0 0.0
  %1272 = vmatpush1.msra.mxu0 0.0
  %1273 = vmatprep.subr.mxu0 0.0
  %1274 = vmatpush1.msra.mxu0 0.0
  %1275 = vmatprep.subr.mxu0 0.0
  %1276 = vmatpush1.msra.mxu0 0.0
  %1277 = vmatprep.subr.mxu0 0.0
  %1278 = vmatpush1.msra.mxu0 0.0
  %1279 = vmatprep.subr.mxu0 0.0
  %1280 = vmatpush1.msra.mxu0 0.0
  %1281 = vmatprep.subr.mxu0 0.0
  %1282 = vmatpush1.msra.mxu0 %v391
  %1283 = vmatprep.subr.mxu0 0.0
  %1284 = vmatpush2.msra.mxu0 0.0
  %1285 = vmatprep.subr.mxu0 0.0
  %1286 = vmatpush2.msra.mxu0 0.0
  %1287 = vmatprep.subr.mxu0 0.0
  %1288 = vmatpush2.msra.mxu0 0.0
  %1289 = vmatprep.subr.mxu0 0.0
  %1290 = vmatpush2.msra.mxu0 0.0
  %1291 = vmatprep.subr.mxu0 0.0
  %1292 = vmatpush2.msra.mxu0 0.0
  %1293 = vmatprep.subr.mxu0 0.0
  %1294 = vmatpush2.msra.mxu0 0.0
  %1295 = vmatprep.subr.mxu0 0.0
  %1296 = vmatpush2.msra.mxu0 0.0
  %1297 = vmatprep.subr.mxu0 0.0
  %1298 = vmatpush2.msra.mxu0 0.0
  %1299 = vmatprep.subr.mxu0 0.0
  %1300 = vmatpush2.msra.mxu0 0.0
  %1301 = vmatprep.subr.mxu0 0.0
  %1302 = vmatpush2.msra.mxu0 0.0
  %1303 = vmatprep.subr.mxu0 0.0
  %1304 = vmatpush2.msra.mxu0 0.0
  %1305 = vmatprep.subr.mxu0 0.0
  %1306 = vmatpush2.msra.mxu0 0.0
  %1307 = vmatprep.subr.mxu0 0.0
  %1308 = vmatpush2.msra.mxu0 0.0
  %1309 = vmatprep.subr.mxu0 0.0
  %1310 = vmatpush2.msra.mxu0 0.0
  %1311 = vmatprep.subr.mxu0 0.0
  %1312 = vmatpush2.msra.mxu0 0.0
  %1313 = vmatprep.subr.mxu0 0.0
  %1314 = vmatpush2.msra.mxu0 0.0
  %1315 = vmatprep.mubr.f32.mxu0 0.0
  %1316 = vmatmul.mubr.f32.gmra.mxu0 %v1249
  %v1317 = vpop.f32.mrf.mxu0
  %v1318 = vadd.f32 0.0, %v1317
  %v1319 = vpop.f32.mrf.mxu0
  %1320 = vdwg.mxu0
  %v1321 = vlaneseq
  %v1322 = vshrl.u32 %v1321, 7
  %v1323 = vsub.s32 0, %v1322
  %v1324 = vrot.slane %v1318, %v1323
  %v1325 = vmul.f32 %v1002, %v1324
  %v1326 = vmul.f32 %v1007, %v1324
  %v1327 = vmul.f32 %v1012, %v1324
  %v1328 = vmul.f32 %v1017, %v1324
  %v1330 = vsel %vm182, %v1247, 0
  %1332 = vmatprep.subr.mxu0 0.0
  %1333 = vmatpush1.msra.mxu0 0.0
  %1334 = vmatprep.subr.mxu0 0.0
  %1335 = vmatpush1.msra.mxu0 0.0
  %1336 = vmatprep.subr.mxu0 0.0
  %1337 = vmatpush1.msra.mxu0 0.0
  %1338 = vmatprep.subr.mxu0 0.0
  %1339 = vmatpush1.msra.mxu0 0.0
  %1340 = vmatprep.subr.mxu0 0.0
  %1341 = vmatpush1.msra.mxu0 0.0
  %1342 = vmatprep.subr.mxu0 0.0
  %1343 = vmatpush1.msra.mxu0 0.0
  %1344 = vmatprep.subr.mxu0 0.0
  %1345 = vmatpush1.msra.mxu0 0.0
  %1346 = vmatprep.subr.mxu0 0.0
  %1347 = vmatpush1.msra.mxu0 0.0
  %1348 = vmatprep.subr.mxu0 0.0
  %1349 = vmatpush1.msra.mxu0 0.0
  %1350 = vmatprep.subr.mxu0 0.0
  %1351 = vmatpush1.msra.mxu0 0.0
  %1352 = vmatprep.subr.mxu0 0.0
  %1353 = vmatpush1.msra.mxu0 0.0
  %1354 = vmatprep.subr.mxu0 0.0
  %1355 = vmatpush1.msra.mxu0 0.0
  %1356 = vmatprep.subr.mxu0 0.0
  %1357 = vmatpush1.msra.mxu0 0.0
  %1358 = vmatprep.subr.mxu0 0.0
  %1359 = vmatpush1.msra.mxu0 0.0
  %1360 = vmatprep.subr.mxu0 0.0
  %1361 = vmatpush1.msra.mxu0 0.0
  %1362 = vmatprep.subr.mxu0 0.0
  %1363 = vmatpush1.msra.mxu0 %v391
  %1364 = vmatprep.subr.mxu0 0.0
  %1365 = vmatpush2.msra.mxu0 0.0
  %1366 = vmatprep.subr.mxu0 0.0
  %1367 = vmatpush2.msra.mxu0 0.0
  %1368 = vmatprep.subr.mxu0 0.0
  %1369 = vmatpush2.msra.mxu0 0.0
  %1370 = vmatprep.subr.mxu0 0.0
  %1371 = vmatpush2.msra.mxu0 0.0
  %1372 = vmatprep.subr.mxu0 0.0
  %1373 = vmatpush2.msra.mxu0 0.0
  %1374 = vmatprep.subr.mxu0 0.0
  %1375 = vmatpush2.msra.mxu0 0.0
  %1376 = vmatprep.subr.mxu0 0.0
  %1377 = vmatpush2.msra.mxu0 0.0
  %1378 = vmatprep.subr.mxu0 0.0
  %1379 = vmatpush2.msra.mxu0 0.0
  %1380 = vmatprep.subr.mxu0 0.0
  %1381 = vmatpush2.msra.mxu0 0.0
  %1382 = vmatprep.subr.mxu0 0.0
  %1383 = vmatpush2.msra.mxu0 0.0
  %1384 = vmatprep.subr.mxu0 0.0
  %1385 = vmatpush2.msra.mxu0 0.0
  %1386 = vmatprep.subr.mxu0 0.0
  %1387 = vmatpush2.msra.mxu0 0.0
  %1388 = vmatprep.subr.mxu0 0.0
  %1389 = vmatpush2.msra.mxu0 0.0
  %1390 = vmatprep.subr.mxu0 0.0
  %1391 = vmatpush2.msra.mxu0 0.0
  %1392 = vmatprep.subr.mxu0 0.0
  %1393 = vmatpush2.msra.mxu0 0.0
  %1394 = vmatprep.subr.mxu0 0.0
  %1395 = vmatpush2.msra.mxu0 0.0
  %1396 = vmatprep.mubr.f32.mxu0 0.0
  %1397 = vmatmul.mubr.f32.gmra.mxu0 %v1330
  %v1398 = vpop.f32.mrf.mxu0
  %v1399 = vadd.f32 0.0, %v1398
  %v1400 = vpop.f32.mrf.mxu0
  %1401 = vdwg.mxu0
  %v1402 = vlaneseq
  %v1403 = vshrl.u32 %v1402, 7
  %v1404 = vsub.s32 0, %v1403
  %v1405 = vrot.slane %v1399, %v1404
  %v1406 = vadd.f32 %v1325, %v1405
  %v1407 = vadd.f32 %v1326, %v1405
  %v1408 = vadd.f32 %v1327, %v1405
  %v1409 = vadd.f32 %v1328, %v1405
  %vm1410 = vcmp.gt.f32.partialorder %v1406, 0.0
  %vm1411 = vcmp.gt.f32.partialorder %v1407, 0.0
  %vm1412 = vcmp.gt.f32.partialorder %v1408, 0.0
  %vm1413 = vcmp.gt.f32.partialorder %v1409, 0.0
  %v1414 = vmul.f32 %v1406, 0.2
  %v1415 = vmul.f32 %v1407, 0.2
  %v1416 = vmul.f32 %v1408, 0.2
  %v1417 = vmul.f32 %v1409, 0.2
  %v1418 = vsel %vm1410, %v1406, %v1414
  %v1419 = vsel %vm1411, %v1407, %v1415
  %v1420 = vsel %vm1412, %v1408, %v1416
  %v1421 = vsel %vm1413, %v1409, %v1417
  %v1422 = vld [vmem:[%s13] sm:$0xff]
  %v1423 = vld [vmem:[%s13 + $0x8] sm:$0xff]
  %v1424 = vld [vmem:[%s13 + $0x10] sm:$0xff]
  %v1425 = vld [vmem:[%s13 + $0x18] sm:$0xff]
  %v1426 = vld [vmem:[%s13 + $0x20] sm:$0xff]
  %v1427 = vld [vmem:[%s13 + $0x28] sm:$0xff]
  %v1428 = vld [vmem:[%s13 + $0x30] sm:$0xff]
  %v1429 = vld [vmem:[%s13 + $0x38] sm:$0xff]
  %v1430 = vld [vmem:[%s13 + $0x40] sm:$0xff]
  %v1431 = vld [vmem:[%s13 + $0x48] sm:$0xff]
  %v1432 = vld [vmem:[%s13 + $0x50] sm:$0xff]
  %v1433 = vld [vmem:[%s13 + $0x58] sm:$0xff]
  %v1434 = vld [vmem:[%s13 + $0x60] sm:$0xff]
  %v1435 = vld [vmem:[%s13 + $0x68] sm:$0xff]
  %v1436 = vld [vmem:[%s13 + $0x70] sm:$0xff]
  %v1437 = vld [vmem:[%s13 + $0x78] sm:$0xff]
  %v1438 = vld [vmem:[%s13 + $0x80] sm:$0xff]
  %v1439 = vld [vmem:[%s13 + $0x88] sm:$0xff]
  %v1440 = vld [vmem:[%s13 + $0x90] sm:$0xff]
  %v1441 = vld [vmem:[%s13 + $0x98] sm:$0xff]
  %v1442 = vld [vmem:[%s13 + $0xa0] sm:$0xff]
  %v1443 = vld [vmem:[%s13 + $0xa8] sm:$0xff]
  %v1444 = vld [vmem:[%s13 + $0xb0] sm:$0xff]
  %v1445 = vld [vmem:[%s13 + $0xb8] sm:$0xff]
  %v1446 = vld [vmem:[%s13 + $0xc0] sm:$0xff]
  %v1447 = vld [vmem:[%s13 + $0xc8] sm:$0xff]
  %v1448 = vld [vmem:[%s13 + $0xd0] sm:$0xff]
  %v1449 = vld [vmem:[%s13 + $0xd8] sm:$0xff]
  %v1450 = vld [vmem:[%s13 + $0xe0] sm:$0xff]
  %v1451 = vld [vmem:[%s13 + $0xe8] sm:$0xff]
  %v1452 = vld [vmem:[%s13 + $0xf0] sm:$0xff]
  %v1453 = vld [vmem:[%s13 + $0xf8] sm:$0xff]
  %1454 = vmatprep.subr.mxu0 %v1453
  %1455 = vmatpush1.msra.mxu0 %v1452
  %1456 = vmatprep.subr.mxu0 %v1451
  %1457 = vmatpush1.msra.mxu0 %v1450
  %1458 = vmatprep.subr.mxu0 %v1449
  %1459 = vmatpush1.msra.mxu0 %v1448
  %1460 = vmatprep.subr.mxu0 %v1447
  %1461 = vmatpush1.msra.mxu0 %v1446
  %1462 = vmatprep.subr.mxu0 %v1445
  %1463 = vmatpush1.msra.mxu0 %v1444
  %1464 = vmatprep.subr.mxu0 %v1443
  %1465 = vmatpush1.msra.mxu0 %v1442
  %1466 = vmatprep.subr.mxu0 %v1441
  %1467 = vmatpush1.msra.mxu0 %v1440
  %1468 = vmatprep.subr.mxu0 %v1439
  %1469 = vmatpush1.msra.mxu0 %v1438
  %1470 = vmatprep.subr.mxu0 %v1437
  %1471 = vmatpush1.msra.mxu0 %v1436
  %1472 = vmatprep.subr.mxu0 %v1435
  %1473 = vmatpush1.msra.mxu0 %v1434
  %1474 = vmatprep.subr.mxu0 %v1433
  %1475 = vmatpush1.msra.mxu0 %v1432
  %1476 = vmatprep.subr.mxu0 %v1431
  %1477 = vmatpush1.msra.mxu0 %v1430
  %1478 = vmatprep.subr.mxu0 %v1429
  %1479 = vmatpush1.msra.mxu0 %v1428
  %1480 = vmatprep.subr.mxu0 %v1427
  %1481 = vmatpush1.msra.mxu0 %v1426
  %1482 = vmatprep.subr.mxu0 %v1425
  %1483 = vmatpush1.msra.mxu0 %v1424
  %1484 = vmatprep.subr.mxu0 %v1423
  %1485 = vmatpush1.msra.mxu0 %v1422
  %1486 = vmatprep.subr.mxu0 0.0
  %1487 = vmatpush2.msra.mxu0 0.0
  %1488 = vmatprep.subr.mxu0 0.0
  %1489 = vmatpush2.msra.mxu0 0.0
  %1490 = vmatprep.subr.mxu0 0.0
  %1491 = vmatpush2.msra.mxu0 0.0
  %1492 = vmatprep.subr.mxu0 0.0
  %1493 = vmatpush2.msra.mxu0 0.0
  %1494 = vmatprep.subr.mxu0 0.0
  %1495 = vmatpush2.msra.mxu0 0.0
  %1496 = vmatprep.subr.mxu0 0.0
  %1497 = vmatpush2.msra.mxu0 0.0
  %1498 = vmatprep.subr.mxu0 0.0
  %1499 = vmatpush2.msra.mxu0 0.0
  %1500 = vmatprep.subr.mxu0 0.0
  %1501 = vmatpush2.msra.mxu0 0.0
  %1502 = vmatprep.subr.mxu0 0.0
  %1503 = vmatpush2.msra.mxu0 0.0
  %1504 = vmatprep.subr.mxu0 0.0
  %1505 = vmatpush2.msra.mxu0 0.0
  %1506 = vmatprep.subr.mxu0 0.0
  %1507 = vmatpush2.msra.mxu0 0.0
  %1508 = vmatprep.subr.mxu0 0.0
  %1509 = vmatpush2.msra.mxu0 0.0
  %1510 = vmatprep.subr.mxu0 0.0
  %1511 = vmatpush2.msra.mxu0 0.0
  %1512 = vmatprep.subr.mxu0 0.0
  %1513 = vmatpush2.msra.mxu0 0.0
  %1514 = vmatprep.subr.mxu0 0.0
  %1515 = vmatpush2.msra.mxu0 0.0
  %1516 = vmatprep.subr.mxu0 0.0
  %1517 = vmatpush2.msra.mxu0 0.0
  %1518 = vmatprep.mubr.f32.mxu0 0.0
  %1519 = vmatmul.mubr.f32.gmra.mxu0 %v1418
  %v1520 = vpop.f32.mrf.mxu0
  %v1521 = vadd.f32 0.0, %v1520
  %v1522 = vpop.f32.mrf.mxu0
  %v1523 = vadd.f32 0.0, %v1522
  %1524 = vmatprep.mubr.f32.mxu0 0.0
  %1525 = vmatmul.mubr.f32.gmra.mxu0 %v1419
  %v1526 = vpop.f32.mrf.mxu0
  %v1527 = vadd.f32 0.0, %v1526
  %v1528 = vpop.f32.mrf.mxu0
  %v1529 = vadd.f32 0.0, %v1528
  %1530 = vmatprep.mubr.f32.mxu0 0.0
  %1531 = vmatmul.mubr.f32.gmra.mxu0 %v1420
  %v1532 = vpop.f32.mrf.mxu0
  %v1533 = vadd.f32 0.0, %v1532
  %v1534 = vpop.f32.mrf.mxu0
  %v1535 = vadd.f32 0.0, %v1534
  %1536 = vmatprep.mubr.f32.mxu0 0.0
  %1537 = vmatmul.mubr.f32.gmra.mxu0 %v1421
  %v1538 = vpop.f32.mrf.mxu0
  %v1539 = vadd.f32 0.0, %v1538
  %v1540 = vpop.f32.mrf.mxu0
  %v1541 = vadd.f32 0.0, %v1540
  %1542 = vdwg.mxu0
  %v1543 = vld [vmem:[%s18] sm:$0xff]
  %v1544 = vld [vmem:[%s18 + $0x8] sm:$0xff]
  %v1545 = vld [vmem:[%s18 + $0x10] sm:$0xff]
  %v1546 = vld [vmem:[%s18 + $0x18] sm:$0xff]
  %v1547 = vld [vmem:[%s18 + $0x20] sm:$0xff]
  %v1548 = vld [vmem:[%s18 + $0x28] sm:$0xff]
  %v1549 = vld [vmem:[%s18 + $0x30] sm:$0xff]
  %v1550 = vld [vmem:[%s18 + $0x38] sm:$0xff]
  %v1551 = vld [vmem:[%s18 + $0x40] sm:$0xff]
  %v1552 = vld [vmem:[%s18 + $0x48] sm:$0xff]
  %v1553 = vld [vmem:[%s18 + $0x50] sm:$0xff]
  %v1554 = vld [vmem:[%s18 + $0x58] sm:$0xff]
  %v1555 = vld [vmem:[%s18 + $0x60] sm:$0xff]
  %v1556 = vld [vmem:[%s18 + $0x68] sm:$0xff]
  %v1557 = vld [vmem:[%s18 + $0x70] sm:$0xff]
  %v1558 = vld [vmem:[%s18 + $0x78] sm:$0xff]
  %v1559 = vld [vmem:[%s18 + $0x80] sm:$0xff]
  %v1560 = vld [vmem:[%s18 + $0x88] sm:$0xff]
  %v1561 = vld [vmem:[%s18 + $0x90] sm:$0xff]
  %v1562 = vld [vmem:[%s18 + $0x98] sm:$0xff]
  %v1563 = vld [vmem:[%s18 + $0xa0] sm:$0xff]
  %v1564 = vld [vmem:[%s18 + $0xa8] sm:$0xff]
  %v1565 = vld [vmem:[%s18 + $0xb0] sm:$0xff]
  %v1566 = vld [vmem:[%s18 + $0xb8] sm:$0xff]
  %v1567 = vld [vmem:[%s18 + $0xc0] sm:$0xff]
  %v1568 = vld [vmem:[%s18 + $0xc8] sm:$0xff]
  %v1569 = vld [vmem:[%s18 + $0xd0] sm:$0xff]
  %v1570 = vld [vmem:[%s18 + $0xd8] sm:$0xff]
  %v1571 = vld [vmem:[%s18 + $0xe0] sm:$0xff]
  %v1572 = vld [vmem:[%s18 + $0xe8] sm:$0xff]
  %v1573 = vld [vmem:[%s18 + $0xf0] sm:$0xff]
  %v1574 = vld [vmem:[%s18 + $0xf8] sm:$0xff]
  %v1575 = vld [vmem:[%s19] sm:$0xff]
  %v1576 = vld [vmem:[%s19 + $0x8] sm:$0xff]
  %1577 = vmatprep.subr.mxu0 0.0
  %1578 = vmatpush1.msra.mxu0 %v1558
  %1579 = vmatprep.subr.mxu0 0.0
  %1580 = vmatpush1.msra.mxu0 %v1557
  %1581 = vmatprep.subr.mxu0 0.0
  %1582 = vmatpush1.msra.mxu0 %v1556
  %1583 = vmatprep.subr.mxu0 0.0
  %1584 = vmatpush1.msra.mxu0 %v1555
  %1585 = vmatprep.subr.mxu0 0.0
  %1586 = vmatpush1.msra.mxu0 %v1554
  %1587 = vmatprep.subr.mxu0 0.0
  %1588 = vmatpush1.msra.mxu0 %v1553
  %1589 = vmatprep.subr.mxu0 0.0
  %1590 = vmatpush1.msra.mxu0 %v1552
  %1591 = vmatprep.subr.mxu0 0.0
  %1592 = vmatpush1.msra.mxu0 %v1551
  %1593 = vmatprep.subr.mxu0 0.0
  %1594 = vmatpush1.msra.mxu0 %v1550
  %1595 = vmatprep.subr.mxu0 0.0
  %1596 = vmatpush1.msra.mxu0 %v1549
  %1597 = vmatprep.subr.mxu0 0.0
  %1598 = vmatpush1.msra.mxu0 %v1548
  %1599 = vmatprep.subr.mxu0 0.0
  %1600 = vmatpush1.msra.mxu0 %v1547
  %1601 = vmatprep.subr.mxu0 0.0
  %1602 = vmatpush1.msra.mxu0 %v1546
  %1603 = vmatprep.subr.mxu0 0.0
  %1604 = vmatpush1.msra.mxu0 %v1545
  %1605 = vmatprep.subr.mxu0 0.0
  %1606 = vmatpush1.msra.mxu0 %v1544
  %1607 = vmatprep.subr.mxu0 0.0
  %1608 = vmatpush1.msra.mxu0 %v1543
  %1609 = vmatprep.subr.mxu0 0.0
  %1610 = vmatpush2.msra.mxu0 %v1574
  %1611 = vmatprep.subr.mxu0 0.0
  %1612 = vmatpush2.msra.mxu0 %v1573
  %1613 = vmatprep.subr.mxu0 0.0
  %1614 = vmatpush2.msra.mxu0 %v1572
  %1615 = vmatprep.subr.mxu0 0.0
  %1616 = vmatpush2.msra.mxu0 %v1571
  %1617 = vmatprep.subr.mxu0 0.0
  %1618 = vmatpush2.msra.mxu0 %v1570
  %1619 = vmatprep.subr.mxu0 0.0
  %1620 = vmatpush2.msra.mxu0 %v1569
  %1621 = vmatprep.subr.mxu0 0.0
  %1622 = vmatpush2.msra.mxu0 %v1568
  %1623 = vmatprep.subr.mxu0 0.0
  %1624 = vmatpush2.msra.mxu0 %v1567
  %1625 = vmatprep.subr.mxu0 0.0
  %1626 = vmatpush2.msra.mxu0 %v1566
  %1627 = vmatprep.subr.mxu0 0.0
  %1628 = vmatpush2.msra.mxu0 %v1565
  %1629 = vmatprep.subr.mxu0 0.0
  %1630 = vmatpush2.msra.mxu0 %v1564
  %1631 = vmatprep.subr.mxu0 0.0
  %1632 = vmatpush2.msra.mxu0 %v1563
  %1633 = vmatprep.subr.mxu0 0.0
  %1634 = vmatpush2.msra.mxu0 %v1562
  %1635 = vmatprep.subr.mxu0 0.0
  %1636 = vmatpush2.msra.mxu0 %v1561
  %1637 = vmatprep.subr.mxu0 0.0
  %1638 = vmatpush2.msra.mxu0 %v1560
  %1639 = vmatprep.subr.mxu0 0.0
  %1640 = vmatpush2.msra.mxu0 %v1559
  %1641 = vmatprep.mubr.f32.mxu0 %v1523
  %1642 = vmatmul.mubr.f32.gmra.mxu0 %v1521
  %v1643 = vpop.f32.mrf.mxu0
  %v1644 = vadd.f32 0.0, %v1643
  %v1645 = vpop.f32.mrf.mxu0
  %1646 = vmatprep.mubr.f32.mxu0 %v1529
  %1647 = vmatmul.mubr.f32.gmra.mxu0 %v1527
  %v1648 = vpop.f32.mrf.mxu0
  %v1649 = vadd.f32 0.0, %v1648
  %v1650 = vpop.f32.mrf.mxu0
  %1651 = vmatprep.mubr.f32.mxu0 %v1535
  %1652 = vmatmul.mubr.f32.gmra.mxu0 %v1533
  %v1653 = vpop.f32.mrf.mxu0
  %v1654 = vadd.f32 0.0, %v1653
  %v1655 = vpop.f32.mrf.mxu0
  %1656 = vmatprep.mubr.f32.mxu0 %v1541
  %1657 = vmatmul.mubr.f32.gmra.mxu0 %v1539
  %v1658 = vpop.f32.mrf.mxu0
  %v1659 = vadd.f32 0.0, %v1658
  %v1660 = vpop.f32.mrf.mxu0
  %1661 = vdwg.mxu0
  %v1662 = vsel %vm182, %v1644, 0.0
  %v1663 = vsel %vm182, %v1649, 0.0
  %v1664 = vadd.f32 %v1662, %v1663
  %v1665 = vsel %vm182, %v1654, 0.0
  %v1666 = vadd.f32 %v1664, %v1665
  %v1667 = vsel %vm182, %v1659, 0.0
  %v1668 = vadd.f32 %v1666, %v1667
  %v1669 = vrot.slane %v1668, 4
  %v1670 = vadd.f32 %v1668, %v1669
  %v1671 = vrot.slane %v1670, 2
  %v1672 = vadd.f32 %v1670, %v1671
  %v1673 = vrot.slane %v1672, 1
  %v1674 = vadd.f32 %v1672, %v1673
  %v1675 = vmul.f32 %v1521, %v1521
  %v1676 = vmul.f32 %v1523, %v1523
  %v1677 = vmul.f32 %v1527, %v1527
  %v1678 = vmul.f32 %v1529, %v1529
  %v1679 = vmul.f32 %v1533, %v1533
  %v1680 = vmul.f32 %v1535, %v1535
  %v1681 = vmul.f32 %v1539, %v1539
  %v1682 = vmul.f32 %v1541, %v1541
  %1683 = vmatprep.subr.mxu0 0.0
  %1684 = vmatpush1.msra.mxu0 %v1558
  %1685 = vmatprep.subr.mxu0 0.0
  %1686 = vmatpush1.msra.mxu0 %v1557
  %1687 = vmatprep.subr.mxu0 0.0
  %1688 = vmatpush1.msra.mxu0 %v1556
  %1689 = vmatprep.subr.mxu0 0.0
  %1690 = vmatpush1.msra.mxu0 %v1555
  %1691 = vmatprep.subr.mxu0 0.0
  %1692 = vmatpush1.msra.mxu0 %v1554
  %1693 = vmatprep.subr.mxu0 0.0
  %1694 = vmatpush1.msra.mxu0 %v1553
  %1695 = vmatprep.subr.mxu0 0.0
  %1696 = vmatpush1.msra.mxu0 %v1552
  %1697 = vmatprep.subr.mxu0 0.0
  %1698 = vmatpush1.msra.mxu0 %v1551
  %1699 = vmatprep.subr.mxu0 0.0
  %1700 = vmatpush1.msra.mxu0 %v1550
  %1701 = vmatprep.subr.mxu0 0.0
  %1702 = vmatpush1.msra.mxu0 %v1549
  %1703 = vmatprep.subr.mxu0 0.0
  %1704 = vmatpush1.msra.mxu0 %v1548
  %1705 = vmatprep.subr.mxu0 0.0
  %1706 = vmatpush1.msra.mxu0 %v1547
  %1707 = vmatprep.subr.mxu0 0.0
  %1708 = vmatpush1.msra.mxu0 %v1546
  %1709 = vmatprep.subr.mxu0 0.0
  %1710 = vmatpush1.msra.mxu0 %v1545
  %1711 = vmatprep.subr.mxu0 0.0
  %1712 = vmatpush1.msra.mxu0 %v1544
  %1713 = vmatprep.subr.mxu0 0.0
  %1714 = vmatpush1.msra.mxu0 %v1543
  %1715 = vmatprep.subr.mxu0 0.0
  %1716 = vmatpush2.msra.mxu0 %v1574
  %1717 = vmatprep.subr.mxu0 0.0
  %1718 = vmatpush2.msra.mxu0 %v1573
  %1719 = vmatprep.subr.mxu0 0.0
  %1720 = vmatpush2.msra.mxu0 %v1572
  %1721 = vmatprep.subr.mxu0 0.0
  %1722 = vmatpush2.msra.mxu0 %v1571
  %1723 = vmatprep.subr.mxu0 0.0
  %1724 = vmatpush2.msra.mxu0 %v1570
  %1725 = vmatprep.subr.mxu0 0.0
  %1726 = vmatpush2.msra.mxu0 %v1569
  %1727 = vmatprep.subr.mxu0 0.0
  %1728 = vmatpush2.msra.mxu0 %v1568
  %1729 = vmatprep.subr.mxu0 0.0
  %1730 = vmatpush2.msra.mxu0 %v1567
  %1731 = vmatprep.subr.mxu0 0.0
  %1732 = vmatpush2.msra.mxu0 %v1566
  %1733 = vmatprep.subr.mxu0 0.0
  %1734 = vmatpush2.msra.mxu0 %v1565
  %1735 = vmatprep.subr.mxu0 0.0
  %1736 = vmatpush2.msra.mxu0 %v1564
  %1737 = vmatprep.subr.mxu0 0.0
  %1738 = vmatpush2.msra.mxu0 %v1563
  %1739 = vmatprep.subr.mxu0 0.0
  %1740 = vmatpush2.msra.mxu0 %v1562
  %1741 = vmatprep.subr.mxu0 0.0
  %1742 = vmatpush2.msra.mxu0 %v1561
  %1743 = vmatprep.subr.mxu0 0.0
  %1744 = vmatpush2.msra.mxu0 %v1560
  %1745 = vmatprep.subr.mxu0 0.0
  %1746 = vmatpush2.msra.mxu0 %v1559
  %1747 = vmatprep.mubr.f32.mxu0 %v1676
  %1748 = vmatmul.mubr.f32.gmra.mxu0 %v1675
  %v1749 = vpop.f32.mrf.mxu0
  %v1750 = vadd.f32 0.0, %v1749
  %v1751 = vpop.f32.mrf.mxu0
  %1752 = vmatprep.mubr.f32.mxu0 %v1678
  %1753 = vmatmul.mubr.f32.gmra.mxu0 %v1677
  %v1754 = vpop.f32.mrf.mxu0
  %v1755 = vadd.f32 0.0, %v1754
  %v1756 = vpop.f32.mrf.mxu0
  %1757 = vmatprep.mubr.f32.mxu0 %v1680
  %1758 = vmatmul.mubr.f32.gmra.mxu0 %v1679
  %v1759 = vpop.f32.mrf.mxu0
  %v1760 = vadd.f32 0.0, %v1759
  %v1761 = vpop.f32.mrf.mxu0
  %1762 = vmatprep.mubr.f32.mxu0 %v1682
  %1763 = vmatmul.mubr.f32.gmra.mxu0 %v1681
  %v1764 = vpop.f32.mrf.mxu0
  %v1765 = vadd.f32 0.0, %v1764
  %v1766 = vpop.f32.mrf.mxu0
  %1767 = vdwg.mxu0
  %v1768 = vsel %vm182, %v1750, 0.0
  %v1769 = vsel %vm182, %v1755, 0.0
  %v1770 = vadd.f32 %v1768, %v1769
  %v1771 = vsel %vm182, %v1760, 0.0
  %v1772 = vadd.f32 %v1770, %v1771
  %v1773 = vsel %vm182, %v1765, 0.0
  %v1774 = vadd.f32 %v1772, %v1773
  %v1775 = vrot.slane %v1774, 4
  %v1776 = vadd.f32 %v1774, %v1775
  %v1777 = vrot.slane %v1776, 2
  %v1778 = vadd.f32 %v1776, %v1777
  %v1779 = vrot.slane %v1778, 1
  %v1780 = vadd.f32 %v1778, %v1779
  %v1781 = vrcp.pop 1024.0
  %v1782 = vmul.f32 %v1674, %v1781
  %v1783 = vmul.f32 %v1780, %v1781
  %v1784 = vmul.f32 %v1782, %v1782
  %v1785 = vsub.f32 %v1783, %v1784
  %v1786 = vadd.f32 %v1785, 1e-05
  %v1787 = vrsqrt.pop %v1786
  %v1788 = vld [vmem:[%s14] sm:$0x1]
  %v1789 = vmul.f32 %v1787, %v1788
  %v1790 = vld [vmem:[%s15] sm:$0x1]
  %v1791 = vmul.f32 %v1782, %v1789
  %v1792 = vsub.f32 %v1790, %v1791
  %v1794 = vsel %vm182, %v1789, 0
  %1796 = vmatprep.subr.mxu0 0.0
  %1797 = vmatpush1.msra.mxu0 0.0
  %1798 = vmatprep.subr.mxu0 0.0
  %1799 = vmatpush1.msra.mxu0 0.0
  %1800 = vmatprep.subr.mxu0 0.0
  %1801 = vmatpush1.msra.mxu0 0.0
  %1802 = vmatprep.subr.mxu0 0.0
  %1803 = vmatpush1.msra.mxu0 0.0
  %1804 = vmatprep.subr.mxu0 0.0
  %1805 = vmatpush1.msra.mxu0 0.0
  %1806 = vmatprep.subr.mxu0 0.0
  %1807 = vmatpush1.msra.mxu0 0.0
  %1808 = vmatprep.subr.mxu0 0.0
  %1809 = vmatpush1.msra.mxu0 0.0
  %1810 = vmatprep.subr.mxu0 0.0
  %1811 = vmatpush1.msra.mxu0 0.0
  %1812 = vmatprep.subr.mxu0 0.0
  %1813 = vmatpush1.msra.mxu0 0.0
  %1814 = vmatprep.subr.mxu0 0.0
  %1815 = vmatpush1.msra.mxu0 0.0
  %1816 = vmatprep.subr.mxu0 0.0
  %1817 = vmatpush1.msra.mxu0 0.0
  %1818 = vmatprep.subr.mxu0 0.0
  %1819 = vmatpush1.msra.mxu0 0.0
  %1820 = vmatprep.subr.mxu0 0.0
  %1821 = vmatpush1.msra.mxu0 0.0
  %1822 = vmatprep.subr.mxu0 0.0
  %1823 = vmatpush1.msra.mxu0 0.0
  %1824 = vmatprep.subr.mxu0 0.0
  %1825 = vmatpush1.msra.mxu0 0.0
  %1826 = vmatprep.subr.mxu0 %v1576
  %1827 = vmatpush1.msra.mxu0 %v1575
  %1828 = vmatprep.subr.mxu0 0.0
  %1829 = vmatpush2.msra.mxu0 0.0
  %1830 = vmatprep.subr.mxu0 0.0
  %1831 = vmatpush2.msra.mxu0 0.0
  %1832 = vmatprep.subr.mxu0 0.0
  %1833 = vmatpush2.msra.mxu0 0.0
  %1834 = vmatprep.subr.mxu0 0.0
  %1835 = vmatpush2.msra.mxu0 0.0
  %1836 = vmatprep.subr.mxu0 0.0
  %1837 = vmatpush2.msra.mxu0 0.0
  %1838 = vmatprep.subr.mxu0 0.0
  %1839 = vmatpush2.msra.mxu0 0.0
  %1840 = vmatprep.subr.mxu0 0.0
  %1841 = vmatpush2.msra.mxu0 0.0
  %1842 = vmatprep.subr.mxu0 0.0
  %1843 = vmatpush2.msra.mxu0 0.0
  %1844 = vmatprep.subr.mxu0 0.0
  %1845 = vmatpush2.msra.mxu0 0.0
  %1846 = vmatprep.subr.mxu0 0.0
  %1847 = vmatpush2.msra.mxu0 0.0
  %1848 = vmatprep.subr.mxu0 0.0
  %1849 = vmatpush2.msra.mxu0 0.0
  %1850 = vmatprep.subr.mxu0 0.0
  %1851 = vmatpush2.msra.mxu0 0.0
  %1852 = vmatprep.subr.mxu0 0.0
  %1853 = vmatpush2.msra.mxu0 0.0
  %1854 = vmatprep.subr.mxu0 0.0
  %1855 = vmatpush2.msra.mxu0 0.0
  %1856 = vmatprep.subr.mxu0 0.0
  %1857 = vmatpush2.msra.mxu0 0.0
  %1858 = vmatprep.subr.mxu0 0.0
  %1859 = vmatpush2.msra.mxu0 0.0
  %1860 = vmatprep.mubr.f32.mxu0 0.0
  %1861 = vmatmul.mubr.f32.gmra.mxu0 %v1794
  %v1862 = vpop.f32.mrf.mxu0
  %v1863 = vadd.f32 0.0, %v1862
  %v1864 = vpop.f32.mrf.mxu0
  %v1865 = vadd.f32 0.0, %v1864
  %1866 = vdwg.mxu0
  %v1867 = vlaneseq
  %v1868 = vshrl.u32 %v1867, 7
  %v1869 = vsub.s32 0, %v1868
  %v1870 = vrot.slane %v1863, %v1869
  %v1871 = vlaneseq
  %v1872 = vshrl.u32 %v1871, 7
  %v1873 = vsub.s32 0, %v1872
  %v1874 = vrot.slane %v1865, %v1873
  %v1875 = vmul.f32 %v1521, %v1870
  %v1876 = vmul.f32 %v1523, %v1874
  %v1877 = vmul.f32 %v1527, %v1870
  %v1878 = vmul.f32 %v1529, %v1874
  %v1879 = vmul.f32 %v1533, %v1870
  %v1880 = vmul.f32 %v1535, %v1874
  %v1881 = vmul.f32 %v1539, %v1870
  %v1882 = vmul.f32 %v1541, %v1874
  %v1884 = vsel %vm182, %v1792, 0
  %1886 = vmatprep.subr.mxu0 0.0
  %1887 = vmatpush1.msra.mxu0 0.0
  %1888 = vmatprep.subr.mxu0 0.0
  %1889 = vmatpush1.msra.mxu0 0.0
  %1890 = vmatprep.subr.mxu0 0.0
  %1891 = vmatpush1.msra.mxu0 0.0
  %1892 = vmatprep.subr.mxu0 0.0
  %1893 = vmatpush1.msra.mxu0 0.0
  %1894 = vmatprep.subr.mxu0 0.0
  %1895 = vmatpush1.msra.mxu0 0.0
  %1896 = vmatprep.subr.mxu0 0.0
  %1897 = vmatpush1.msra.mxu0 0.0
  %1898 = vmatprep.subr.mxu0 0.0
  %1899 = vmatpush1.msra.mxu0 0.0
  %1900 = vmatprep.subr.mxu0 0.0
  %1901 = vmatpush1.msra.mxu0 0.0
  %1902 = vmatprep.subr.mxu0 0.0
  %1903 = vmatpush1.msra.mxu0 0.0
  %1904 = vmatprep.subr.mxu0 0.0
  %1905 = vmatpush1.msra.mxu0 0.0
  %1906 = vmatprep.subr.mxu0 0.0
  %1907 = vmatpush1.msra.mxu0 0.0
  %1908 = vmatprep.subr.mxu0 0.0
  %1909 = vmatpush1.msra.mxu0 0.0
  %1910 = vmatprep.subr.mxu0 0.0
  %1911 = vmatpush1.msra.mxu0 0.0
  %1912 = vmatprep.subr.mxu0 0.0
  %1913 = vmatpush1.msra.mxu0 0.0
  %1914 = vmatprep.subr.mxu0 0.0
  %1915 = vmatpush1.msra.mxu0 0.0
  %1916 = vmatprep.subr.mxu0 %v1576
  %1917 = vmatpush1.msra.mxu0 %v1575
  %1918 = vmatprep.subr.mxu0 0.0
  %1919 = vmatpush2.msra.mxu0 0.0
  %1920 = vmatprep.subr.mxu0 0.0
  %1921 = vmatpush2.msra.mxu0 0.0
  %1922 = vmatprep.subr.mxu0 0.0
  %1923 = vmatpush2.msra.mxu0 0.0
  %1924 = vmatprep.subr.mxu0 0.0
  %1925 = vmatpush2.msra.mxu0 0.0
  %1926 = vmatprep.subr.mxu0 0.0
  %1927 = vmatpush2.msra.mxu0 0.0
  %1928 = vmatprep.subr.mxu0 0.0
  %1929 = vmatpush2.msra.mxu0 0.0
  %1930 = vmatprep.subr.mxu0 0.0
  %1931 = vmatpush2.msra.mxu0 0.0
  %1932 = vmatprep.subr.mxu0 0.0
  %1933 = vmatpush2.msra.mxu0 0.0
  %1934 = vmatprep.subr.mxu0 0.0
  %1935 = vmatpush2.msra.mxu0 0.0
  %1936 = vmatprep.subr.mxu0 0.0
  %1937 = vmatpush2.msra.mxu0 0.0
  %1938 = vmatprep.subr.mxu0 0.0
  %1939 = vmatpush2.msra.mxu0 0.0
  %1940 = vmatprep.subr.mxu0 0.0
  %1941 = vmatpush2.msra.mxu0 0.0
  %1942 = vmatprep.subr.mxu0 0.0
  %1943 = vmatpush2.msra.mxu0 0.0
  %1944 = vmatprep.subr.mxu0 0.0
  %1945 = vmatpush2.msra.mxu0 0.0
  %1946 = vmatprep.subr.mxu0 0.0
  %1947 = vmatpush2.msra.mxu0 0.0
  %1948 = vmatprep.subr.mxu0 0.0
  %1949 = vmatpush2.msra.mxu0 0.0
  %1950 = vmatprep.mubr.f32.mxu0 0.0
  %1951 = vmatmul.mubr.f32.gmra.mxu0 %v1884
  %v1952 = vpop.f32.mrf.mxu0
  %v1953 = vadd.f32 0.0, %v1952
  %v1954 = vpop.f32.mrf.mxu0
  %v1955 = vadd.f32 0.0, %v1954
  %1956 = vdwg.mxu0
  %v1957 = vlaneseq
  %v1958 = vshrl.u32 %v1957, 7
  %v1959 = vsub.s32 0, %v1958
  %v1960 = vrot.slane %v1953, %v1959
  %v1961 = vlaneseq
  %v1962 = vshrl.u32 %v1961, 7
  %v1963 = vsub.s32 0, %v1962
  %v1964 = vrot.slane %v1955, %v1963
  %v1965 = vadd.f32 %v1875, %v1960
  %v1966 = vadd.f32 %v1876, %v1964
  %v1967 = vadd.f32 %v1877, %v1960
  %v1968 = vadd.f32 %v1878, %v1964
  %v1969 = vadd.f32 %v1879, %v1960
  %v1970 = vadd.f32 %v1880, %v1964
  %v1971 = vadd.f32 %v1881, %v1960
  %v1972 = vadd.f32 %v1882, %v1964
  %vm1973 = vcmp.gt.f32.partialorder %v1965, 0.0
  %vm1974 = vcmp.gt.f32.partialorder %v1966, 0.0
  %vm1975 = vcmp.gt.f32.partialorder %v1967, 0.0
  %vm1976 = vcmp.gt.f32.partialorder %v1968, 0.0
  %vm1977 = vcmp.gt.f32.partialorder %v1969, 0.0
  %vm1978 = vcmp.gt.f32.partialorder %v1970, 0.0
  %vm1979 = vcmp.gt.f32.partialorder %v1971, 0.0
  %vm1980 = vcmp.gt.f32.partialorder %v1972, 0.0
  %v1981 = vmul.f32 %v1965, 0.2
  %v1982 = vmul.f32 %v1966, 0.2
  %v1983 = vmul.f32 %v1967, 0.2
  %v1984 = vmul.f32 %v1968, 0.2
  %v1985 = vmul.f32 %v1969, 0.2
  %v1986 = vmul.f32 %v1970, 0.2
  %v1987 = vmul.f32 %v1971, 0.2
  %v1988 = vmul.f32 %v1972, 0.2
  %v1989 = vsel %vm1973, %v1965, %v1981
  %v1990 = vsel %vm1974, %v1966, %v1982
  %v1991 = vsel %vm1975, %v1967, %v1983
  %v1992 = vsel %vm1976, %v1968, %v1984
  %v1993 = vsel %vm1977, %v1969, %v1985
  %v1994 = vsel %vm1978, %v1970, %v1986
  %v1995 = vsel %vm1979, %v1971, %v1987
  %v1996 = vsel %vm1980, %v1972, %v1988
  %v1997 = vld [vmem:[%s16] sm:$0xff]
  %v1998 = vld [vmem:[%s16 + $0x8] sm:$0xff]
  %v1999 = vld [vmem:[%s16 + $0x10] sm:$0xff]
  %v2000 = vld [vmem:[%s16 + $0x18] sm:$0xff]
  %v2001 = vld [vmem:[%s16 + $0x20] sm:$0xff]
  %v2002 = vld [vmem:[%s16 + $0x28] sm:$0xff]
  %v2003 = vld [vmem:[%s16 + $0x30] sm:$0xff]
  %v2004 = vld [vmem:[%s16 + $0x38] sm:$0xff]
  %v2005 = vld [vmem:[%s16 + $0x40] sm:$0xff]
  %v2006 = vld [vmem:[%s16 + $0x48] sm:$0xff]
  %v2007 = vld [vmem:[%s16 + $0x50] sm:$0xff]
  %v2008 = vld [vmem:[%s16 + $0x58] sm:$0xff]
  %v2009 = vld [vmem:[%s16 + $0x60] sm:$0xff]
  %v2010 = vld [vmem:[%s16 + $0x68] sm:$0xff]
  %v2011 = vld [vmem:[%s16 + $0x70] sm:$0xff]
  %v2012 = vld [vmem:[%s16 + $0x78] sm:$0xff]
  %v2013 = vld [vmem:[%s16 + $0x80] sm:$0xff]
  %v2014 = vld [vmem:[%s16 + $0x88] sm:$0xff]
  %v2015 = vld [vmem:[%s16 + $0x90] sm:$0xff]
  %v2016 = vld [vmem:[%s16 + $0x98] sm:$0xff]
  %v2017 = vld [vmem:[%s16 + $0xa0] sm:$0xff]
  %v2018 = vld [vmem:[%s16 + $0xa8] sm:$0xff]
  %v2019 = vld [vmem:[%s16 + $0xb0] sm:$0xff]
  %v2020 = vld [vmem:[%s16 + $0xb8] sm:$0xff]
  %v2021 = vld [vmem:[%s16 + $0xc0] sm:$0xff]
  %v2022 = vld [vmem:[%s16 + $0xc8] sm:$0xff]
  %v2023 = vld [vmem:[%s16 + $0xd0] sm:$0xff]
  %v2024 = vld [vmem:[%s16 + $0xd8] sm:$0xff]
  %v2025 = vld [vmem:[%s16 + $0xe0] sm:$0xff]
  %v2026 = vld [vmem:[%s16 + $0xe8] sm:$0xff]
  %v2027 = vld [vmem:[%s16 + $0xf0] sm:$0xff]
  %v2028 = vld [vmem:[%s16 + $0xf8] sm:$0xff]
  %v2029 = vld [vmem:[%s16 + $0x100] sm:$0xff]
  %v2030 = vld [vmem:[%s16 + $0x108] sm:$0xff]
  %v2031 = vld [vmem:[%s16 + $0x110] sm:$0xff]
  %v2032 = vld [vmem:[%s16 + $0x118] sm:$0xff]
  %v2033 = vld [vmem:[%s16 + $0x120] sm:$0xff]
  %v2034 = vld [vmem:[%s16 + $0x128] sm:$0xff]
  %v2035 = vld [vmem:[%s16 + $0x130] sm:$0xff]
  %v2036 = vld [vmem:[%s16 + $0x138] sm:$0xff]
  %v2037 = vld [vmem:[%s16 + $0x140] sm:$0xff]
  %v2038 = vld [vmem:[%s16 + $0x148] sm:$0xff]
  %v2039 = vld [vmem:[%s16 + $0x150] sm:$0xff]
  %v2040 = vld [vmem:[%s16 + $0x158] sm:$0xff]
  %v2041 = vld [vmem:[%s16 + $0x160] sm:$0xff]
  %v2042 = vld [vmem:[%s16 + $0x168] sm:$0xff]
  %v2043 = vld [vmem:[%s16 + $0x170] sm:$0xff]
  %v2044 = vld [vmem:[%s16 + $0x178] sm:$0xff]
  %v2045 = vld [vmem:[%s16 + $0x180] sm:$0xff]
  %v2046 = vld [vmem:[%s16 + $0x188] sm:$0xff]
  %v2047 = vld [vmem:[%s16 + $0x190] sm:$0xff]
  %v2048 = vld [vmem:[%s16 + $0x198] sm:$0xff]
  %v2049 = vld [vmem:[%s16 + $0x1a0] sm:$0xff]
  %v2050 = vld [vmem:[%s16 + $0x1a8] sm:$0xff]
  %v2051 = vld [vmem:[%s16 + $0x1b0] sm:$0xff]
  %v2052 = vld [vmem:[%s16 + $0x1b8] sm:$0xff]
  %v2053 = vld [vmem:[%s16 + $0x1c0] sm:$0xff]
  %v2054 = vld [vmem:[%s16 + $0x1c8] sm:$0xff]
  %v2055 = vld [vmem:[%s16 + $0x1d0] sm:$0xff]
  %v2056 = vld [vmem:[%s16 + $0x1d8] sm:$0xff]
  %v2057 = vld [vmem:[%s16 + $0x1e0] sm:$0xff]
  %v2058 = vld [vmem:[%s16 + $0x1e8] sm:$0xff]
  %v2059 = vld [vmem:[%s16 + $0x1f0] sm:$0xff]
  %v2060 = vld [vmem:[%s16 + $0x1f8] sm:$0xff]
  %v2061 = vld [vmem:[%s16 + $0x200] sm:$0xff]
  %v2062 = vld [vmem:[%s16 + $0x208] sm:$0xff]
  %v2063 = vld [vmem:[%s16 + $0x210] sm:$0xff]
  %v2064 = vld [vmem:[%s16 + $0x218] sm:$0xff]
  %v2065 = vld [vmem:[%s16 + $0x220] sm:$0xff]
  %v2066 = vld [vmem:[%s16 + $0x228] sm:$0xff]
  %v2067 = vld [vmem:[%s16 + $0x230] sm:$0xff]
  %v2068 = vld [vmem:[%s16 + $0x238] sm:$0xff]
  %v2069 = vld [vmem:[%s16 + $0x240] sm:$0xff]
  %v2070 = vld [vmem:[%s16 + $0x248] sm:$0xff]
  %v2071 = vld [vmem:[%s16 + $0x250] sm:$0xff]
  %v2072 = vld [vmem:[%s16 + $0x258] sm:$0xff]
  %v2073 = vld [vmem:[%s16 + $0x260] sm:$0xff]
  %v2074 = vld [vmem:[%s16 + $0x268] sm:$0xff]
  %v2075 = vld [vmem:[%s16 + $0x270] sm:$0xff]
  %v2076 = vld [vmem:[%s16 + $0x278] sm:$0xff]
  %v2077 = vld [vmem:[%s16 + $0x280] sm:$0xff]
  %v2078 = vld [vmem:[%s16 + $0x288] sm:$0xff]
  %v2079 = vld [vmem:[%s16 + $0x290] sm:$0xff]
  %v2080 = vld [vmem:[%s16 + $0x298] sm:$0xff]
  %v2081 = vld [vmem:[%s16 + $0x2a0] sm:$0xff]
  %v2082 = vld [vmem:[%s16 + $0x2a8] sm:$0xff]
  %v2083 = vld [vmem:[%s16 + $0x2b0] sm:$0xff]
  %v2084 = vld [vmem:[%s16 + $0x2b8] sm:$0xff]
  %v2085 = vld [vmem:[%s16 + $0x2c0] sm:$0xff]
  %v2086 = vld [vmem:[%s16 + $0x2c8] sm:$0xff]
  %v2087 = vld [vmem:[%s16 + $0x2d0] sm:$0xff]
  %v2088 = vld [vmem:[%s16 + $0x2d8] sm:$0xff]
  %v2089 = vld [vmem:[%s16 + $0x2e0] sm:$0xff]
  %v2090 = vld [vmem:[%s16 + $0x2e8] sm:$0xff]
  %v2091 = vld [vmem:[%s16 + $0x2f0] sm:$0xff]
  %v2092 = vld [vmem:[%s16 + $0x2f8] sm:$0xff]
  %v2093 = vld [vmem:[%s16 + $0x300] sm:$0xff]
  %v2094 = vld [vmem:[%s16 + $0x308] sm:$0xff]
  %v2095 = vld [vmem:[%s16 + $0x310] sm:$0xff]
  %v2096 = vld [vmem:[%s16 + $0x318] sm:$0xff]
  %v2097 = vld [vmem:[%s16 + $0x320] sm:$0xff]
  %v2098 = vld [vmem:[%s16 + $0x328] sm:$0xff]
  %v2099 = vld [vmem:[%s16 + $0x330] sm:$0xff]
  %v2100 = vld [vmem:[%s16 + $0x338] sm:$0xff]
  %v2101 = vld [vmem:[%s16 + $0x340] sm:$0xff]
  %v2102 = vld [vmem:[%s16 + $0x348] sm:$0xff]
  %v2103 = vld [vmem:[%s16 + $0x350] sm:$0xff]
  %v2104 = vld [vmem:[%s16 + $0x358] sm:$0xff]
  %v2105 = vld [vmem:[%s16 + $0x360] sm:$0xff]
  %v2106 = vld [vmem:[%s16 + $0x368] sm:$0xff]
  %v2107 = vld [vmem:[%s16 + $0x370] sm:$0xff]
  %v2108 = vld [vmem:[%s16 + $0x378] sm:$0xff]
  %v2109 = vld [vmem:[%s16 + $0x380] sm:$0xff]
  %v2110 = vld [vmem:[%s16 + $0x388] sm:$0xff]
  %v2111 = vld [vmem:[%s16 + $0x390] sm:$0xff]
  %v2112 = vld [vmem:[%s16 + $0x398] sm:$0xff]
  %v2113 = vld [vmem:[%s16 + $0x3a0] sm:$0xff]
  %v2114 = vld [vmem:[%s16 + $0x3a8] sm:$0xff]
  %v2115 = vld [vmem:[%s16 + $0x3b0] sm:$0xff]
  %v2116 = vld [vmem:[%s16 + $0x3b8] sm:$0xff]
  %v2117 = vld [vmem:[%s16 + $0x3c0] sm:$0xff]
  %v2118 = vld [vmem:[%s16 + $0x3c8] sm:$0xff]
  %v2119 = vld [vmem:[%s16 + $0x3d0] sm:$0xff]
  %v2120 = vld [vmem:[%s16 + $0x3d8] sm:$0xff]
  %v2121 = vld [vmem:[%s16 + $0x3e0] sm:$0xff]
  %v2122 = vld [vmem:[%s16 + $0x3e8] sm:$0xff]
  %v2123 = vld [vmem:[%s16 + $0x3f0] sm:$0xff]
  %v2124 = vld [vmem:[%s16 + $0x3f8] sm:$0xff]
  %v2125 = vld [vmem:[%s16 + $0x400] sm:$0xff]
  %v2126 = vld [vmem:[%s16 + $0x408] sm:$0xff]
  %v2127 = vld [vmem:[%s16 + $0x410] sm:$0xff]
  %v2128 = vld [vmem:[%s16 + $0x418] sm:$0xff]
  %v2129 = vld [vmem:[%s16 + $0x420] sm:$0xff]
  %v2130 = vld [vmem:[%s16 + $0x428] sm:$0xff]
  %v2131 = vld [vmem:[%s16 + $0x430] sm:$0xff]
  %v2132 = vld [vmem:[%s16 + $0x438] sm:$0xff]
  %v2133 = vld [vmem:[%s16 + $0x440] sm:$0xff]
  %v2134 = vld [vmem:[%s16 + $0x448] sm:$0xff]
  %v2135 = vld [vmem:[%s16 + $0x450] sm:$0xff]
  %v2136 = vld [vmem:[%s16 + $0x458] sm:$0xff]
  %v2137 = vld [vmem:[%s16 + $0x460] sm:$0xff]
  %v2138 = vld [vmem:[%s16 + $0x468] sm:$0xff]
  %v2139 = vld [vmem:[%s16 + $0x470] sm:$0xff]
  %v2140 = vld [vmem:[%s16 + $0x478] sm:$0xff]
  %v2141 = vld [vmem:[%s16 + $0x480] sm:$0xff]
  %v2142 = vld [vmem:[%s16 + $0x488] sm:$0xff]
  %v2143 = vld [vmem:[%s16 + $0x490] sm:$0xff]
  %v2144 = vld [vmem:[%s16 + $0x498] sm:$0xff]
  %v2145 = vld [vmem:[%s16 + $0x4a0] sm:$0xff]
  %v2146 = vld [vmem:[%s16 + $0x4a8] sm:$0xff]
  %v2147 = vld [vmem:[%s16 + $0x4b0] sm:$0xff]
  %v2148 = vld [vmem:[%s16 + $0x4b8] sm:$0xff]
  %v2149 = vld [vmem:[%s16 + $0x4c0] sm:$0xff]
  %v2150 = vld [vmem:[%s16 + $0x4c8] sm:$0xff]
  %v2151 = vld [vmem:[%s16 + $0x4d0] sm:$0xff]
  %v2152 = vld [vmem:[%s16 + $0x4d8] sm:$0xff]
  %v2153 = vld [vmem:[%s16 + $0x4e0] sm:$0xff]
  %v2154 = vld [vmem:[%s16 + $0x4e8] sm:$0xff]
  %v2155 = vld [vmem:[%s16 + $0x4f0] sm:$0xff]
  %v2156 = vld [vmem:[%s16 + $0x4f8] sm:$0xff]
  %v2157 = vld [vmem:[%s16 + $0x500] sm:$0xff]
  %v2158 = vld [vmem:[%s16 + $0x508] sm:$0xff]
  %v2159 = vld [vmem:[%s16 + $0x510] sm:$0xff]
  %v2160 = vld [vmem:[%s16 + $0x518] sm:$0xff]
  %v2161 = vld [vmem:[%s16 + $0x520] sm:$0xff]
  %v2162 = vld [vmem:[%s16 + $0x528] sm:$0xff]
  %v2163 = vld [vmem:[%s16 + $0x530] sm:$0xff]
  %v2164 = vld [vmem:[%s16 + $0x538] sm:$0xff]
  %v2165 = vld [vmem:[%s16 + $0x540] sm:$0xff]
  %v2166 = vld [vmem:[%s16 + $0x548] sm:$0xff]
  %v2167 = vld [vmem:[%s16 + $0x550] sm:$0xff]
  %v2168 = vld [vmem:[%s16 + $0x558] sm:$0xff]
  %v2169 = vld [vmem:[%s16 + $0x560] sm:$0xff]
  %v2170 = vld [vmem:[%s16 + $0x568] sm:$0xff]
  %v2171 = vld [vmem:[%s16 + $0x570] sm:$0xff]
  %v2172 = vld [vmem:[%s16 + $0x578] sm:$0xff]
  %v2173 = vld [vmem:[%s16 + $0x580] sm:$0xff]
  %v2174 = vld [vmem:[%s16 + $0x588] sm:$0xff]
  %v2175 = vld [vmem:[%s16 + $0x590] sm:$0xff]
  %v2176 = vld [vmem:[%s16 + $0x598] sm:$0xff]
  %v2177 = vld [vmem:[%s16 + $0x5a0] sm:$0xff]
  %v2178 = vld [vmem:[%s16 + $0x5a8] sm:$0xff]
  %v2179 = vld [vmem:[%s16 + $0x5b0] sm:$0xff]
  %v2180 = vld [vmem:[%s16 + $0x5b8] sm:$0xff]
  %v2181 = vld [vmem:[%s16 + $0x5c0] sm:$0xff]
  %v2182 = vld [vmem:[%s16 + $0x5c8] sm:$0xff]
  %v2183 = vld [vmem:[%s16 + $0x5d0] sm:$0xff]
  %v2184 = vld [vmem:[%s16 + $0x5d8] sm:$0xff]
  %v2185 = vld [vmem:[%s16 + $0x5e0] sm:$0xff]
  %v2186 = vld [vmem:[%s16 + $0x5e8] sm:$0xff]
  %v2187 = vld [vmem:[%s16 + $0x5f0] sm:$0xff]
  %v2188 = vld [vmem:[%s16 + $0x5f8] sm:$0xff]
  %v2189 = vld [vmem:[%s16 + $0x600] sm:$0xff]
  %v2190 = vld [vmem:[%s16 + $0x608] sm:$0xff]
  %v2191 = vld [vmem:[%s16 + $0x610] sm:$0xff]
  %v2192 = vld [vmem:[%s16 + $0x618] sm:$0xff]
  %v2193 = vld [vmem:[%s16 + $0x620] sm:$0xff]
  %v2194 = vld [vmem:[%s16 + $0x628] sm:$0xff]
  %v2195 = vld [vmem:[%s16 + $0x630] sm:$0xff]
  %v2196 = vld [vmem:[%s16 + $0x638] sm:$0xff]
  %v2197 = vld [vmem:[%s16 + $0x640] sm:$0xff]
  %v2198 = vld [vmem:[%s16 + $0x648] sm:$0xff]
  %v2199 = vld [vmem:[%s16 + $0x650] sm:$0xff]
  %v2200 = vld [vmem:[%s16 + $0x658] sm:$0xff]
  %v2201 = vld [vmem:[%s16 + $0x660] sm:$0xff]
  %v2202 = vld [vmem:[%s16 + $0x668] sm:$0xff]
  %v2203 = vld [vmem:[%s16 + $0x670] sm:$0xff]
  %v2204 = vld [vmem:[%s16 + $0x678] sm:$0xff]
  %v2205 = vld [vmem:[%s16 + $0x680] sm:$0xff]
  %v2206 = vld [vmem:[%s16 + $0x688] sm:$0xff]
  %v2207 = vld [vmem:[%s16 + $0x690] sm:$0xff]
  %v2208 = vld [vmem:[%s16 + $0x698] sm:$0xff]
  %v2209 = vld [vmem:[%s16 + $0x6a0] sm:$0xff]
  %v2210 = vld [vmem:[%s16 + $0x6a8] sm:$0xff]
  %v2211 = vld [vmem:[%s16 + $0x6b0] sm:$0xff]
  %v2212 = vld [vmem:[%s16 + $0x6b8] sm:$0xff]
  %v2213 = vld [vmem:[%s16 + $0x6c0] sm:$0xff]
  %v2214 = vld [vmem:[%s16 + $0x6c8] sm:$0xff]
  %v2215 = vld [vmem:[%s16 + $0x6d0] sm:$0xff]
  %v2216 = vld [vmem:[%s16 + $0x6d8] sm:$0xff]
  %v2217 = vld [vmem:[%s16 + $0x6e0] sm:$0xff]
  %v2218 = vld [vmem:[%s16 + $0x6e8] sm:$0xff]
  %v2219 = vld [vmem:[%s16 + $0x6f0] sm:$0xff]
  %v2220 = vld [vmem:[%s16 + $0x6f8] sm:$0xff]
  %v2221 = vld [vmem:[%s16 + $0x700] sm:$0xff]
  %v2222 = vld [vmem:[%s16 + $0x708] sm:$0xff]
  %v2223 = vld [vmem:[%s16 + $0x710] sm:$0xff]
  %v2224 = vld [vmem:[%s16 + $0x718] sm:$0xff]
  %v2225 = vld [vmem:[%s16 + $0x720] sm:$0xff]
  %v2226 = vld [vmem:[%s16 + $0x728] sm:$0xff]
  %v2227 = vld [vmem:[%s16 + $0x730] sm:$0xff]
  %v2228 = vld [vmem:[%s16 + $0x738] sm:$0xff]
  %v2229 = vld [vmem:[%s16 + $0x740] sm:$0xff]
  %v2230 = vld [vmem:[%s16 + $0x748] sm:$0xff]
  %v2231 = vld [vmem:[%s16 + $0x750] sm:$0xff]
  %v2232 = vld [vmem:[%s16 + $0x758] sm:$0xff]
  %v2233 = vld [vmem:[%s16 + $0x760] sm:$0xff]
  %v2234 = vld [vmem:[%s16 + $0x768] sm:$0xff]
  %v2235 = vld [vmem:[%s16 + $0x770] sm:$0xff]
  %v2236 = vld [vmem:[%s16 + $0x778] sm:$0xff]
  %v2237 = vld [vmem:[%s16 + $0x780] sm:$0xff]
  %v2238 = vld [vmem:[%s16 + $0x788] sm:$0xff]
  %v2239 = vld [vmem:[%s16 + $0x790] sm:$0xff]
  %v2240 = vld [vmem:[%s16 + $0x798] sm:$0xff]
  %v2241 = vld [vmem:[%s16 + $0x7a0] sm:$0xff]
  %v2242 = vld [vmem:[%s16 + $0x7a8] sm:$0xff]
  %v2243 = vld [vmem:[%s16 + $0x7b0] sm:$0xff]
  %v2244 = vld [vmem:[%s16 + $0x7b8] sm:$0xff]
  %v2245 = vld [vmem:[%s16 + $0x7c0] sm:$0xff]
  %v2246 = vld [vmem:[%s16 + $0x7c8] sm:$0xff]
  %v2247 = vld [vmem:[%s16 + $0x7d0] sm:$0xff]
  %v2248 = vld [vmem:[%s16 + $0x7d8] sm:$0xff]
  %v2249 = vld [vmem:[%s16 + $0x7e0] sm:$0xff]
  %v2250 = vld [vmem:[%s16 + $0x7e8] sm:$0xff]
  %v2251 = vld [vmem:[%s16 + $0x7f0] sm:$0xff]
  %v2252 = vld [vmem:[%s16 + $0x7f8] sm:$0xff]
  %v2253 = vld [vmem:[%s16 + $0x800] sm:$0xff]
  %v2254 = vld [vmem:[%s16 + $0x808] sm:$0xff]
  %v2255 = vld [vmem:[%s16 + $0x810] sm:$0xff]
  %v2256 = vld [vmem:[%s16 + $0x818] sm:$0xff]
  %v2257 = vld [vmem:[%s16 + $0x820] sm:$0xff]
  %v2258 = vld [vmem:[%s16 + $0x828] sm:$0xff]
  %v2259 = vld [vmem:[%s16 + $0x830] sm:$0xff]
  %v2260 = vld [vmem:[%s16 + $0x838] sm:$0xff]
  %v2261 = vld [vmem:[%s16 + $0x840] sm:$0xff]
  %v2262 = vld [vmem:[%s16 + $0x848] sm:$0xff]
  %v2263 = vld [vmem:[%s16 + $0x850] sm:$0xff]
  %v2264 = vld [vmem:[%s16 + $0x858] sm:$0xff]
  %v2265 = vld [vmem:[%s16 + $0x860] sm:$0xff]
  %v2266 = vld [vmem:[%s16 + $0x868] sm:$0xff]
  %v2267 = vld [vmem:[%s16 + $0x870] sm:$0xff]
  %v2268 = vld [vmem:[%s16 + $0x878] sm:$0xff]
  %v2269 = vld [vmem:[%s16 + $0x880] sm:$0xff]
  %v2270 = vld [vmem:[%s16 + $0x888] sm:$0xff]
  %v2271 = vld [vmem:[%s16 + $0x890] sm:$0xff]
  %v2272 = vld [vmem:[%s16 + $0x898] sm:$0xff]
  %v2273 = vld [vmem:[%s16 + $0x8a0] sm:$0xff]
  %v2274 = vld [vmem:[%s16 + $0x8a8] sm:$0xff]
  %v2275 = vld [vmem:[%s16 + $0x8b0] sm:$0xff]
  %v2276 = vld [vmem:[%s16 + $0x8b8] sm:$0xff]
  %v2277 = vld [vmem:[%s16 + $0x8c0] sm:$0xff]
  %v2278 = vld [vmem:[%s16 + $0x8c8] sm:$0xff]
  %v2279 = vld [vmem:[%s16 + $0x8d0] sm:$0xff]
  %v2280 = vld [vmem:[%s16 + $0x8d8] sm:$0xff]
  %v2281 = vld [vmem:[%s16 + $0x8e0] sm:$0xff]
  %v2282 = vld [vmem:[%s16 + $0x8e8] sm:$0xff]
  %v2283 = vld [vmem:[%s16 + $0x8f0] sm:$0xff]
  %v2284 = vld [vmem:[%s16 + $0x8f8] sm:$0xff]
  %v2285 = vld [vmem:[%s16 + $0x900] sm:$0xff]
  %v2286 = vld [vmem:[%s16 + $0x908] sm:$0xff]
  %v2287 = vld [vmem:[%s16 + $0x910] sm:$0xff]
  %v2288 = vld [vmem:[%s16 + $0x918] sm:$0xff]
  %v2289 = vld [vmem:[%s16 + $0x920] sm:$0xff]
  %v2290 = vld [vmem:[%s16 + $0x928] sm:$0xff]
  %v2291 = vld [vmem:[%s16 + $0x930] sm:$0xff]
  %v2292 = vld [vmem:[%s16 + $0x938] sm:$0xff]
  %v2293 = vld [vmem:[%s16 + $0x940] sm:$0xff]
  %v2294 = vld [vmem:[%s16 + $0x948] sm:$0xff]
  %v2295 = vld [vmem:[%s16 + $0x950] sm:$0xff]
  %v2296 = vld [vmem:[%s16 + $0x958] sm:$0xff]
  %v2297 = vld [vmem:[%s16 + $0x960] sm:$0xff]
  %v2298 = vld [vmem:[%s16 + $0x968] sm:$0xff]
  %v2299 = vld [vmem:[%s16 + $0x970] sm:$0xff]
  %v2300 = vld [vmem:[%s16 + $0x978] sm:$0xff]
  %v2301 = vld [vmem:[%s16 + $0x980] sm:$0xff]
  %v2302 = vld [vmem:[%s16 + $0x988] sm:$0xff]
  %v2303 = vld [vmem:[%s16 + $0x990] sm:$0xff]
  %v2304 = vld [vmem:[%s16 + $0x998] sm:$0xff]
  %v2305 = vld [vmem:[%s16 + $0x9a0] sm:$0xff]
  %v2306 = vld [vmem:[%s16 + $0x9a8] sm:$0xff]
  %v2307 = vld [vmem:[%s16 + $0x9b0] sm:$0xff]
  %v2308 = vld [vmem:[%s16 + $0x9b8] sm:$0xff]
  %v2309 = vld [vmem:[%s16 + $0x9c0] sm:$0xff]
  %v2310 = vld [vmem:[%s16 + $0x9c8] sm:$0xff]
  %v2311 = vld [vmem:[%s16 + $0x9d0] sm:$0xff]
  %v2312 = vld [vmem:[%s16 + $0x9d8] sm:$0xff]
  %v2313 = vld [vmem:[%s16 + $0x9e0] sm:$0xff]
  %v2314 = vld [vmem:[%s16 + $0x9e8] sm:$0xff]
  %v2315 = vld [vmem:[%s16 + $0x9f0] sm:$0xff]
  %v2316 = vld [vmem:[%s16 + $0x9f8] sm:$0xff]
  %v2317 = vld [vmem:[%s16 + $0xa00] sm:$0xff]
  %v2318 = vld [vmem:[%s16 + $0xa08] sm:$0xff]
  %v2319 = vld [vmem:[%s16 + $0xa10] sm:$0xff]
  %v2320 = vld [vmem:[%s16 + $0xa18] sm:$0xff]
  %v2321 = vld [vmem:[%s16 + $0xa20] sm:$0xff]
  %v2322 = vld [vmem:[%s16 + $0xa28] sm:$0xff]
  %v2323 = vld [vmem:[%s16 + $0xa30] sm:$0xff]
  %v2324 = vld [vmem:[%s16 + $0xa38] sm:$0xff]
  %v2325 = vld [vmem:[%s16 + $0xa40] sm:$0xff]
  %v2326 = vld [vmem:[%s16 + $0xa48] sm:$0xff]
  %v2327 = vld [vmem:[%s16 + $0xa50] sm:$0xff]
  %v2328 = vld [vmem:[%s16 + $0xa58] sm:$0xff]
  %v2329 = vld [vmem:[%s16 + $0xa60] sm:$0xff]
  %v2330 = vld [vmem:[%s16 + $0xa68] sm:$0xff]
  %v2331 = vld [vmem:[%s16 + $0xa70] sm:$0xff]
  %v2332 = vld [vmem:[%s16 + $0xa78] sm:$0xff]
  %v2333 = vld [vmem:[%s16 + $0xa80] sm:$0xff]
  %v2334 = vld [vmem:[%s16 + $0xa88] sm:$0xff]
  %v2335 = vld [vmem:[%s16 + $0xa90] sm:$0xff]
  %v2336 = vld [vmem:[%s16 + $0xa98] sm:$0xff]
  %v2337 = vld [vmem:[%s16 + $0xaa0] sm:$0xff]
  %v2338 = vld [vmem:[%s16 + $0xaa8] sm:$0xff]
  %v2339 = vld [vmem:[%s16 + $0xab0] sm:$0xff]
  %v2340 = vld [vmem:[%s16 + $0xab8] sm:$0xff]
  %v2341 = vld [vmem:[%s16 + $0xac0] sm:$0xff]
  %v2342 = vld [vmem:[%s16 + $0xac8] sm:$0xff]
  %v2343 = vld [vmem:[%s16 + $0xad0] sm:$0xff]
  %v2344 = vld [vmem:[%s16 + $0xad8] sm:$0xff]
  %v2345 = vld [vmem:[%s16 + $0xae0] sm:$0xff]
  %v2346 = vld [vmem:[%s16 + $0xae8] sm:$0xff]
  %v2347 = vld [vmem:[%s16 + $0xaf0] sm:$0xff]
  %v2348 = vld [vmem:[%s16 + $0xaf8] sm:$0xff]
  %v2349 = vld [vmem:[%s16 + $0xb00] sm:$0xff]
  %v2350 = vld [vmem:[%s16 + $0xb08] sm:$0xff]
  %v2351 = vld [vmem:[%s16 + $0xb10] sm:$0xff]
  %v2352 = vld [vmem:[%s16 + $0xb18] sm:$0xff]
  %v2353 = vld [vmem:[%s16 + $0xb20] sm:$0xff]
  %v2354 = vld [vmem:[%s16 + $0xb28] sm:$0xff]
  %v2355 = vld [vmem:[%s16 + $0xb30] sm:$0xff]
  %v2356 = vld [vmem:[%s16 + $0xb38] sm:$0xff]
  %v2357 = vld [vmem:[%s16 + $0xb40] sm:$0xff]
  %v2358 = vld [vmem:[%s16 + $0xb48] sm:$0xff]
  %v2359 = vld [vmem:[%s16 + $0xb50] sm:$0xff]
  %v2360 = vld [vmem:[%s16 + $0xb58] sm:$0xff]
  %v2361 = vld [vmem:[%s16 + $0xb60] sm:$0xff]
  %v2362 = vld [vmem:[%s16 + $0xb68] sm:$0xff]
  %v2363 = vld [vmem:[%s16 + $0xb70] sm:$0xff]
  %v2364 = vld [vmem:[%s16 + $0xb78] sm:$0xff]
  %v2365 = vld [vmem:[%s16 + $0xb80] sm:$0xff]
  %v2366 = vld [vmem:[%s16 + $0xb88] sm:$0xff]
  %v2367 = vld [vmem:[%s16 + $0xb90] sm:$0xff]
  %v2368 = vld [vmem:[%s16 + $0xb98] sm:$0xff]
  %v2369 = vld [vmem:[%s16 + $0xba0] sm:$0xff]
  %v2370 = vld [vmem:[%s16 + $0xba8] sm:$0xff]
  %v2371 = vld [vmem:[%s16 + $0xbb0] sm:$0xff]
  %v2372 = vld [vmem:[%s16 + $0xbb8] sm:$0xff]
  %v2373 = vld [vmem:[%s16 + $0xbc0] sm:$0xff]
  %v2374 = vld [vmem:[%s16 + $0xbc8] sm:$0xff]
  %v2375 = vld [vmem:[%s16 + $0xbd0] sm:$0xff]
  %v2376 = vld [vmem:[%s16 + $0xbd8] sm:$0xff]
  %v2377 = vld [vmem:[%s16 + $0xbe0] sm:$0xff]
  %v2378 = vld [vmem:[%s16 + $0xbe8] sm:$0xff]
  %v2379 = vld [vmem:[%s16 + $0xbf0] sm:$0xff]
  %v2380 = vld [vmem:[%s16 + $0xbf8] sm:$0xff]
  %v2381 = vld [vmem:[%s16 + $0xc00] sm:$0xff]
  %v2382 = vld [vmem:[%s16 + $0xc08] sm:$0xff]
  %v2383 = vld [vmem:[%s16 + $0xc10] sm:$0xff]
  %v2384 = vld [vmem:[%s16 + $0xc18] sm:$0xff]
  %v2385 = vld [vmem:[%s16 + $0xc20] sm:$0xff]
  %v2386 = vld [vmem:[%s16 + $0xc28] sm:$0xff]
  %v2387 = vld [vmem:[%s16 + $0xc30] sm:$0xff]
  %v2388 = vld [vmem:[%s16 + $0xc38] sm:$0xff]
  %v2389 = vld [vmem:[%s16 + $0xc40] sm:$0xff]
  %v2390 = vld [vmem:[%s16 + $0xc48] sm:$0xff]
  %v2391 = vld [vmem:[%s16 + $0xc50] sm:$0xff]
  %v2392 = vld [vmem:[%s16 + $0xc58] sm:$0xff]
  %v2393 = vld [vmem:[%s16 + $0xc60] sm:$0xff]
  %v2394 = vld [vmem:[%s16 + $0xc68] sm:$0xff]
  %v2395 = vld [vmem:[%s16 + $0xc70] sm:$0xff]
  %v2396 = vld [vmem:[%s16 + $0xc78] sm:$0xff]
  %v2397 = vld [vmem:[%s16 + $0xc80] sm:$0xff]
  %v2398 = vld [vmem:[%s16 + $0xc88] sm:$0xff]
  %v2399 = vld [vmem:[%s16 + $0xc90] sm:$0xff]
  %v2400 = vld [vmem:[%s16 + $0xc98] sm:$0xff]
  %v2401 = vld [vmem:[%s16 + $0xca0] sm:$0xff]
  %v2402 = vld [vmem:[%s16 + $0xca8] sm:$0xff]
  %v2403 = vld [vmem:[%s16 + $0xcb0] sm:$0xff]
  %v2404 = vld [vmem:[%s16 + $0xcb8] sm:$0xff]
  %v2405 = vld [vmem:[%s16 + $0xcc0] sm:$0xff]
  %v2406 = vld [vmem:[%s16 + $0xcc8] sm:$0xff]
  %v2407 = vld [vmem:[%s16 + $0xcd0] sm:$0xff]
  %v2408 = vld [vmem:[%s16 + $0xcd8] sm:$0xff]
  %v2409 = vld [vmem:[%s16 + $0xce0] sm:$0xff]
  %v2410 = vld [vmem:[%s16 + $0xce8] sm:$0xff]
  %v2411 = vld [vmem:[%s16 + $0xcf0] sm:$0xff]
  %v2412 = vld [vmem:[%s16 + $0xcf8] sm:$0xff]
  %v2413 = vld [vmem:[%s16 + $0xd00] sm:$0xff]
  %v2414 = vld [vmem:[%s16 + $0xd08] sm:$0xff]
  %v2415 = vld [vmem:[%s16 + $0xd10] sm:$0xff]
  %v2416 = vld [vmem:[%s16 + $0xd18] sm:$0xff]
  %v2417 = vld [vmem:[%s16 + $0xd20] sm:$0xff]
  %v2418 = vld [vmem:[%s16 + $0xd28] sm:$0xff]
  %v2419 = vld [vmem:[%s16 + $0xd30] sm:$0xff]
  %v2420 = vld [vmem:[%s16 + $0xd38] sm:$0xff]
  %v2421 = vld [vmem:[%s16 + $0xd40] sm:$0xff]
  %v2422 = vld [vmem:[%s16 + $0xd48] sm:$0xff]
  %v2423 = vld [vmem:[%s16 + $0xd50] sm:$0xff]
  %v2424 = vld [vmem:[%s16 + $0xd58] sm:$0xff]
  %v2425 = vld [vmem:[%s16 + $0xd60] sm:$0xff]
  %v2426 = vld [vmem:[%s16 + $0xd68] sm:$0xff]
  %v2427 = vld [vmem:[%s16 + $0xd70] sm:$0xff]
  %v2428 = vld [vmem:[%s16 + $0xd78] sm:$0xff]
  %v2429 = vld [vmem:[%s16 + $0xd80] sm:$0xff]
  %v2430 = vld [vmem:[%s16 + $0xd88] sm:$0xff]
  %v2431 = vld [vmem:[%s16 + $0xd90] sm:$0xff]
  %v2432 = vld [vmem:[%s16 + $0xd98] sm:$0xff]
  %v2433 = vld [vmem:[%s16 + $0xda0] sm:$0xff]
  %v2434 = vld [vmem:[%s16 + $0xda8] sm:$0xff]
  %v2435 = vld [vmem:[%s16 + $0xdb0] sm:$0xff]
  %v2436 = vld [vmem:[%s16 + $0xdb8] sm:$0xff]
  %v2437 = vld [vmem:[%s16 + $0xdc0] sm:$0xff]
  %v2438 = vld [vmem:[%s16 + $0xdc8] sm:$0xff]
  %v2439 = vld [vmem:[%s16 + $0xdd0] sm:$0xff]
  %v2440 = vld [vmem:[%s16 + $0xdd8] sm:$0xff]
  %v2441 = vld [vmem:[%s16 + $0xde0] sm:$0xff]
  %v2442 = vld [vmem:[%s16 + $0xde8] sm:$0xff]
  %v2443 = vld [vmem:[%s16 + $0xdf0] sm:$0xff]
  %v2444 = vld [vmem:[%s16 + $0xdf8] sm:$0xff]
  %v2445 = vld [vmem:[%s16 + $0xe00] sm:$0xff]
  %v2446 = vld [vmem:[%s16 + $0xe08] sm:$0xff]
  %v2447 = vld [vmem:[%s16 + $0xe10] sm:$0xff]
  %v2448 = vld [vmem:[%s16 + $0xe18] sm:$0xff]
  %v2449 = vld [vmem:[%s16 + $0xe20] sm:$0xff]
  %v2450 = vld [vmem:[%s16 + $0xe28] sm:$0xff]
  %v2451 = vld [vmem:[%s16 + $0xe30] sm:$0xff]
  %v2452 = vld [vmem:[%s16 + $0xe38] sm:$0xff]
  %v2453 = vld [vmem:[%s16 + $0xe40] sm:$0xff]
  %v2454 = vld [vmem:[%s16 + $0xe48] sm:$0xff]
  %v2455 = vld [vmem:[%s16 + $0xe50] sm:$0xff]
  %v2456 = vld [vmem:[%s16 + $0xe58] sm:$0xff]
  %v2457 = vld [vmem:[%s16 + $0xe60] sm:$0xff]
  %v2458 = vld [vmem:[%s16 + $0xe68] sm:$0xff]
  %v2459 = vld [vmem:[%s16 + $0xe70] sm:$0xff]
  %v2460 = vld [vmem:[%s16 + $0xe78] sm:$0xff]
  %v2461 = vld [vmem:[%s16 + $0xe80] sm:$0xff]
  %v2462 = vld [vmem:[%s16 + $0xe88] sm:$0xff]
  %v2463 = vld [vmem:[%s16 + $0xe90] sm:$0xff]
  %v2464 = vld [vmem:[%s16 + $0xe98] sm:$0xff]
  %v2465 = vld [vmem:[%s16 + $0xea0] sm:$0xff]
  %v2466 = vld [vmem:[%s16 + $0xea8] sm:$0xff]
  %v2467 = vld [vmem:[%s16 + $0xeb0] sm:$0xff]
  %v2468 = vld [vmem:[%s16 + $0xeb8] sm:$0xff]
  %v2469 = vld [vmem:[%s16 + $0xec0] sm:$0xff]
  %v2470 = vld [vmem:[%s16 + $0xec8] sm:$0xff]
  %v2471 = vld [vmem:[%s16 + $0xed0] sm:$0xff]
  %v2472 = vld [vmem:[%s16 + $0xed8] sm:$0xff]
  %v2473 = vld [vmem:[%s16 + $0xee0] sm:$0xff]
  %v2474 = vld [vmem:[%s16 + $0xee8] sm:$0xff]
  %v2475 = vld [vmem:[%s16 + $0xef0] sm:$0xff]
  %v2476 = vld [vmem:[%s16 + $0xef8] sm:$0xff]
  %v2477 = vld [vmem:[%s16 + $0xf00] sm:$0xff]
  %v2478 = vld [vmem:[%s16 + $0xf08] sm:$0xff]
  %v2479 = vld [vmem:[%s16 + $0xf10] sm:$0xff]
  %v2480 = vld [vmem:[%s16 + $0xf18] sm:$0xff]
  %v2481 = vld [vmem:[%s16 + $0xf20] sm:$0xff]
  %v2482 = vld [vmem:[%s16 + $0xf28] sm:$0xff]
  %v2483 = vld [vmem:[%s16 + $0xf30] sm:$0xff]
  %v2484 = vld [vmem:[%s16 + $0xf38] sm:$0xff]
  %v2485 = vld [vmem:[%s16 + $0xf40] sm:$0xff]
  %v2486 = vld [vmem:[%s16 + $0xf48] sm:$0xff]
  %v2487 = vld [vmem:[%s16 + $0xf50] sm:$0xff]
  %v2488 = vld [vmem:[%s16 + $0xf58] sm:$0xff]
  %v2489 = vld [vmem:[%s16 + $0xf60] sm:$0xff]
  %v2490 = vld [vmem:[%s16 + $0xf68] sm:$0xff]
  %v2491 = vld [vmem:[%s16 + $0xf70] sm:$0xff]
  %v2492 = vld [vmem:[%s16 + $0xf78] sm:$0xff]
  %v2493 = vld [vmem:[%s16 + $0xf80] sm:$0xff]
  %v2494 = vld [vmem:[%s16 + $0xf88] sm:$0xff]
  %v2495 = vld [vmem:[%s16 + $0xf90] sm:$0xff]
  %v2496 = vld [vmem:[%s16 + $0xf98] sm:$0xff]
  %v2497 = vld [vmem:[%s16 + $0xfa0] sm:$0xff]
  %v2498 = vld [vmem:[%s16 + $0xfa8] sm:$0xff]
  %v2499 = vld [vmem:[%s16 + $0xfb0] sm:$0xff]
  %v2500 = vld [vmem:[%s16 + $0xfb8] sm:$0xff]
  %v2501 = vld [vmem:[%s16 + $0xfc0] sm:$0xff]
  %v2502 = vld [vmem:[%s16 + $0xfc8] sm:$0xff]
  %v2503 = vld [vmem:[%s16 + $0xfd0] sm:$0xff]
  %v2504 = vld [vmem:[%s16 + $0xfd8] sm:$0xff]
  %v2505 = vld [vmem:[%s16 + $0xfe0] sm:$0xff]
  %v2506 = vld [vmem:[%s16 + $0xfe8] sm:$0xff]
  %v2507 = vld [vmem:[%s16 + $0xff0] sm:$0xff]
  %v2508 = vld [vmem:[%s16 + $0xff8] sm:$0xff]
  %v2509 = vld [vmem:[%s16 + $0x1000] sm:$0xff]
  %v2510 = vld [vmem:[%s16 + $0x1008] sm:$0xff]
  %v2511 = vld [vmem:[%s16 + $0x1010] sm:$0xff]
  %v2512 = vld [vmem:[%s16 + $0x1018] sm:$0xff]
  %v2513 = vld [vmem:[%s16 + $0x1020] sm:$0xff]
  %v2514 = vld [vmem:[%s16 + $0x1028] sm:$0xff]
  %v2515 = vld [vmem:[%s16 + $0x1030] sm:$0xff]
  %v2516 = vld [vmem:[%s16 + $0x1038] sm:$0xff]
  %v2517 = vld [vmem:[%s16 + $0x1040] sm:$0xff]
  %v2518 = vld [vmem:[%s16 + $0x1048] sm:$0xff]
  %v2519 = vld [vmem:[%s16 + $0x1050] sm:$0xff]
  %v2520 = vld [vmem:[%s16 + $0x1058] sm:$0xff]
  %v2521 = vld [vmem:[%s16 + $0x1060] sm:$0xff]
  %v2522 = vld [vmem:[%s16 + $0x1068] sm:$0xff]
  %v2523 = vld [vmem:[%s16 + $0x1070] sm:$0xff]
  %v2524 = vld [vmem:[%s16 + $0x1078] sm:$0xff]
  %v2525 = vld [vmem:[%s16 + $0x1080] sm:$0xff]
  %v2526 = vld [vmem:[%s16 + $0x1088] sm:$0xff]
  %v2527 = vld [vmem:[%s16 + $0x1090] sm:$0xff]
  %v2528 = vld [vmem:[%s16 + $0x1098] sm:$0xff]
  %v2529 = vld [vmem:[%s16 + $0x10a0] sm:$0xff]
  %v2530 = vld [vmem:[%s16 + $0x10a8] sm:$0xff]
  %v2531 = vld [vmem:[%s16 + $0x10b0] sm:$0xff]
  %v2532 = vld [vmem:[%s16 + $0x10b8] sm:$0xff]
  %v2533 = vld [vmem:[%s16 + $0x10c0] sm:$0xff]
  %v2534 = vld [vmem:[%s16 + $0x10c8] sm:$0xff]
  %v2535 = vld [vmem:[%s16 + $0x10d0] sm:$0xff]
  %v2536 = vld [vmem:[%s16 + $0x10d8] sm:$0xff]
  %v2537 = vld [vmem:[%s16 + $0x10e0] sm:$0xff]
  %v2538 = vld [vmem:[%s16 + $0x10e8] sm:$0xff]
  %v2539 = vld [vmem:[%s16 + $0x10f0] sm:$0xff]
  %v2540 = vld [vmem:[%s16 + $0x10f8] sm:$0xff]
  %v2541 = vld [vmem:[%s17] sm:$0xff]
  %v2542 = vld [vmem:[%s17 + $0x8] sm:$0xff]
  %v2543 = vld [vmem:[%s17 + $0x10] sm:$0x1]
  %v2547 = vlaneseq
  %v2548 = vshrl.u32 %v2547, 7
  %v2549 = vsub.s32 0, %v2548
  %v2550 = vrot.slane %v2541, %v2549
  %v2551 = vlaneseq
  %v2552 = vshrl.u32 %v2551, 7
  %v2553 = vsub.s32 1, %v2552
  %v2554 = vrot.slane %v2541, %v2553
  %v2555 = vlaneseq
  %v2556 = vshrl.u32 %v2555, 7
  %v2557 = vsub.s32 2, %v2556
  %v2558 = vrot.slane %v2541, %v2557
  %v2559 = vlaneseq
  %v2560 = vshrl.u32 %v2559, 7
  %v2561 = vsub.s32 3, %v2560
  %v2562 = vrot.slane %v2541, %v2561
  %v2563 = vlaneseq
  %v2564 = vshrl.u32 %v2563, 7
  %v2565 = vsub.s32 4, %v2564
  %v2566 = vrot.slane %v2541, %v2565
  %v2567 = vlaneseq
  %v2568 = vshrl.u32 %v2567, 7
  %v2569 = vsub.s32 5, %v2568
  %v2570 = vrot.slane %v2541, %v2569
  %v2571 = vlaneseq
  %v2572 = vshrl.u32 %v2571, 7
  %v2573 = vsub.s32 6, %v2572
  %v2574 = vrot.slane %v2541, %v2573
  %v2575 = vlaneseq
  %v2576 = vshrl.u32 %v2575, 7
  %v2577 = vsub.s32 7, %v2576
  %v2578 = vrot.slane %v2541, %v2577
  %v2579 = vlaneseq
  %v2580 = vshrl.u32 %v2579, 7
  %v2581 = vsub.s32 0, %v2580
  %v2582 = vrot.slane %v2542, %v2581
  %v2583 = vlaneseq
  %v2584 = vshrl.u32 %v2583, 7
  %v2585 = vsub.s32 1, %v2584
  %v2586 = vrot.slane %v2542, %v2585
  %v2587 = vlaneseq
  %v2588 = vshrl.u32 %v2587, 7
  %v2589 = vsub.s32 2, %v2588
  %v2590 = vrot.slane %v2542, %v2589
  %v2591 = vlaneseq
  %v2592 = vshrl.u32 %v2591, 7
  %v2593 = vsub.s32 3, %v2592
  %v2594 = vrot.slane %v2542, %v2593
  %v2595 = vlaneseq
  %v2596 = vshrl.u32 %v2595, 7
  %v2597 = vsub.s32 4, %v2596
  %v2598 = vrot.slane %v2542, %v2597
  %v2599 = vlaneseq
  %v2600 = vshrl.u32 %v2599, 7
  %v2601 = vsub.s32 5, %v2600
  %v2602 = vrot.slane %v2542, %v2601
  %v2603 = vlaneseq
  %v2604 = vshrl.u32 %v2603, 7
  %v2605 = vsub.s32 6, %v2604
  %v2606 = vrot.slane %v2542, %v2605
  %v2607 = vlaneseq
  %v2608 = vshrl.u32 %v2607, 7
  %v2609 = vsub.s32 7, %v2608
  %v2610 = vrot.slane %v2542, %v2609
  %v2611 = vlaneseq
  %v2612 = vshrl.u32 %v2611, 7
  %v2613 = vsub.s32 0, %v2612
  %v2614 = vrot.slane %v2543, %v2613
  %2632 = vmatprep.subr.mxu0 %v2253
  %2633 = vmatpush1.msra.mxu0 %v2252
  %2634 = vmatprep.subr.mxu0 %v2236
  %2635 = vmatpush1.msra.mxu0 %v2235
  %2636 = vmatprep.subr.mxu0 %v2219
  %2637 = vmatpush1.msra.mxu0 %v2218
  %2638 = vmatprep.subr.mxu0 %v2202
  %2639 = vmatpush1.msra.mxu0 %v2201
  %2640 = vmatprep.subr.mxu0 %v2185
  %2641 = vmatpush1.msra.mxu0 %v2184
  %2642 = vmatprep.subr.mxu0 %v2168
  %2643 = vmatpush1.msra.mxu0 %v2167
  %2644 = vmatprep.subr.mxu0 %v2151
  %2645 = vmatpush1.msra.mxu0 %v2150
  %2646 = vmatprep.subr.mxu0 %v2134
  %2647 = vmatpush1.msra.mxu0 %v2133
  %2648 = vmatprep.subr.mxu0 %v2117
  %2649 = vmatpush1.msra.mxu0 %v2116
  %2650 = vmatprep.subr.mxu0 %v2100
  %2651 = vmatpush1.msra.mxu0 %v2099
  %2652 = vmatprep.subr.mxu0 %v2083
  %2653 = vmatpush1.msra.mxu0 %v2082
  %2654 = vmatprep.subr.mxu0 %v2066
  %2655 = vmatpush1.msra.mxu0 %v2065
  %2656 = vmatprep.subr.mxu0 %v2049
  %2657 = vmatpush1.msra.mxu0 %v2048
  %2658 = vmatprep.subr.mxu0 %v2032
  %2659 = vmatpush1.msra.mxu0 %v2031
  %2660 = vmatprep.subr.mxu0 %v2015
  %2661 = vmatpush1.msra.mxu0 %v2014
  %2662 = vmatprep.subr.mxu0 %v1998
  %2663 = vmatpush1.msra.mxu0 %v1997
  %2664 = vmatprep.subr.mxu0 %v2525
  %2665 = vmatpush2.msra.mxu0 %v2524
  %2666 = vmatprep.subr.mxu0 %v2508
  %2667 = vmatpush2.msra.mxu0 %v2507
  %2668 = vmatprep.subr.mxu0 %v2491
  %2669 = vmatpush2.msra.mxu0 %v2490
  %2670 = vmatprep.subr.mxu0 %v2474
  %2671 = vmatpush2.msra.mxu0 %v2473
  %2672 = vmatprep.subr.mxu0 %v2457
  %2673 = vmatpush2.msra.mxu0 %v2456
  %2674 = vmatprep.subr.mxu0 %v2440
  %2675 = vmatpush2.msra.mxu0 %v2439
  %2676 = vmatprep.subr.mxu0 %v2423
  %2677 = vmatpush2.msra.mxu0 %v2422
  %2678 = vmatprep.subr.mxu0 %v2406
  %2679 = vmatpush2.msra.mxu0 %v2405
  %2680 = vmatprep.subr.mxu0 %v2389
  %2681 = vmatpush2.msra.mxu0 %v2388
  %2682 = vmatprep.subr.mxu0 %v2372
  %2683 = vmatpush2.msra.mxu0 %v2371
  %2684 = vmatprep.subr.mxu0 %v2355
  %2685 = vmatpush2.msra.mxu0 %v2354
  %2686 = vmatprep.subr.mxu0 %v2338
  %2687 = vmatpush2.msra.mxu0 %v2337
  %2688 = vmatprep.subr.mxu0 %v2321
  %2689 = vmatpush2.msra.mxu0 %v2320
  %2690 = vmatprep.subr.mxu0 %v2304
  %2691 = vmatpush2.msra.mxu0 %v2303
  %2692 = vmatprep.subr.mxu0 %v2287
  %2693 = vmatpush2.msra.mxu0 %v2286
  %2694 = vmatprep.subr.mxu0 %v2270
  %2695 = vmatpush2.msra.mxu0 %v2269
  %2696 = vmatprep.mubr.f32.mxu0 %v1990
  %2697 = vmatmul.mubr.f32.gmra.mxu0 %v1989
  %v2698 = vpop.f32.mrf.mxu0
  %v2699 = vadd.f32 %v2550, %v2698
  %v2700 = vpop.f32.mrf.mxu0
  %v2701 = vadd.f32 %v2554, %v2700
  %2702 = vmatprep.mubr.f32.mxu0 %v1992
  %2703 = vmatmul.mubr.f32.gmra.mxu0 %v1991
  %v2704 = vpop.f32.mrf.mxu0
  %v2705 = vadd.f32 %v2550, %v2704
  %v2706 = vpop.f32.mrf.mxu0
  %v2707 = vadd.f32 %v2554, %v2706
  %2708 = vmatprep.mubr.f32.mxu0 %v1994
  %2709 = vmatmul.mubr.f32.gmra.mxu0 %v1993
  %v2710 = vpop.f32.mrf.mxu0
  %v2711 = vadd.f32 %v2550, %v2710
  %v2712 = vpop.f32.mrf.mxu0
  %v2713 = vadd.f32 %v2554, %v2712
  %2714 = vmatprep.mubr.f32.mxu0 %v1996
  %2715 = vmatmul.mubr.f32.gmra.mxu0 %v1995
  %v2716 = vpop.f32.mrf.mxu0
  %v2717 = vadd.f32 %v2550, %v2716
  %v2718 = vpop.f32.mrf.mxu0
  %v2719 = vadd.f32 %v2554, %v2718
  %2720 = vdwg.mxu0
  %2721 = vmatprep.subr.mxu0 %v2255
  %2722 = vmatpush1.msra.mxu0 %v2254
  %2723 = vmatprep.subr.mxu0 %v2238
  %2724 = vmatpush1.msra.mxu0 %v2237
  %2725 = vmatprep.subr.mxu0 %v2221
  %2726 = vmatpush1.msra.mxu0 %v2220
  %2727 = vmatprep.subr.mxu0 %v2204
  %2728 = vmatpush1.msra.mxu0 %v2203
  %2729 = vmatprep.subr.mxu0 %v2187
  %2730 = vmatpush1.msra.mxu0 %v2186
  %2731 = vmatprep.subr.mxu0 %v2170
  %2732 = vmatpush1.msra.mxu0 %v2169
  %2733 = vmatprep.subr.mxu0 %v2153
  %2734 = vmatpush1.msra.mxu0 %v2152
  %2735 = vmatprep.subr.mxu0 %v2136
  %2736 = vmatpush1.msra.mxu0 %v2135
  %2737 = vmatprep.subr.mxu0 %v2119
  %2738 = vmatpush1.msra.mxu0 %v2118
  %2739 = vmatprep.subr.mxu0 %v2102
  %2740 = vmatpush1.msra.mxu0 %v2101
  %2741 = vmatprep.subr.mxu0 %v2085
  %2742 = vmatpush1.msra.mxu0 %v2084
  %2743 = vmatprep.subr.mxu0 %v2068
  %2744 = vmatpush1.msra.mxu0 %v2067
  %2745 = vmatprep.subr.mxu0 %v2051
  %2746 = vmatpush1.msra.mxu0 %v2050
  %2747 = vmatprep.subr.mxu0 %v2034
  %2748 = vmatpush1.msra.mxu0 %v2033
  %2749 = vmatprep.subr.mxu0 %v2017
  %2750 = vmatpush1.msra.mxu0 %v2016
  %2751 = vmatprep.subr.mxu0 %v2000
  %2752 = vmatpush1.msra.mxu0 %v1999
  %2753 = vmatprep.subr.mxu0 %v2527
  %2754 = vmatpush2.msra.mxu0 %v2526
  %2755 = vmatprep.subr.mxu0 %v2510
  %2756 = vmatpush2.msra.mxu0 %v2509
  %2757 = vmatprep.subr.mxu0 %v2493
  %2758 = vmatpush2.msra.mxu0 %v2492
  %2759 = vmatprep.subr.mxu0 %v2476
  %2760 = vmatpush2.msra.mxu0 %v2475
  %2761 = vmatprep.subr.mxu0 %v2459
  %2762 = vmatpush2.msra.mxu0 %v2458
  %2763 = vmatprep.subr.mxu0 %v2442
  %2764 = vmatpush2.msra.mxu0 %v2441
  %2765 = vmatprep.subr.mxu0 %v2425
  %2766 = vmatpush2.msra.mxu0 %v2424
  %2767 = vmatprep.subr.mxu0 %v2408
  %2768 = vmatpush2.msra.mxu0 %v2407
  %2769 = vmatprep.subr.mxu0 %v2391
  %2770 = vmatpush2.msra.mxu0 %v2390
  %2771 = vmatprep.subr.mxu0 %v2374
  %2772 = vmatpush2.msra.mxu0 %v2373
  %2773 = vmatprep.subr.mxu0 %v2357
  %2774 = vmatpush2.msra.mxu0 %v2356
  %2775 = vmatprep.subr.mxu0 %v2340
  %2776 = vmatpush2.msra.mxu0 %v2339
  %2777 = vmatprep.subr.mxu0 %v2323
  %2778 = vmatpush2.msra.mxu0 %v2322
  %2779 = vmatprep.subr.mxu0 %v2306
  %2780 = vmatpush2.msra.mxu0 %v2305
  %2781 = vmatprep.subr.mxu0 %v2289
  %2782 = vmatpush2.msra.mxu0 %v2288
  %2783 = vmatprep.subr.mxu0 %v2272
  %2784 = vmatpush2.msra.mxu0 %v2271
  %2785 = vmatprep.mubr.f32.mxu0 %v1990
  %2786 = vmatmul.mubr.f32.gmra.mxu0 %v1989
  %v2787 = vpop.f32.mrf.mxu0
  %v2788 = vadd.f32 %v2558, %v2787
  %v2789 = vpop.f32.mrf.mxu0
  %v2790 = vadd.f32 %v2562, %v2789
  %2791 = vmatprep.mubr.f32.mxu0 %v1992
  %2792 = vmatmul.mubr.f32.gmra.mxu0 %v1991
  %v2793 = vpop.f32.mrf.mxu0
  %v2794 = vadd.f32 %v2558, %v2793
  %v2795 = vpop.f32.mrf.mxu0
  %v2796 = vadd.f32 %v2562, %v2795
  %2797 = vmatprep.mubr.f32.mxu0 %v1994
  %2798 = vmatmul.mubr.f32.gmra.mxu0 %v1993
  %v2799 = vpop.f32.mrf.mxu0
  %v2800 = vadd.f32 %v2558, %v2799
  %v2801 = vpop.f32.mrf.mxu0
  %v2802 = vadd.f32 %v2562, %v2801
  %2803 = vmatprep.mubr.f32.mxu0 %v1996
  %2804 = vmatmul.mubr.f32.gmra.mxu0 %v1995
  %v2805 = vpop.f32.mrf.mxu0
  %v2806 = vadd.f32 %v2558, %v2805
  %v2807 = vpop.f32.mrf.mxu0
  %v2808 = vadd.f32 %v2562, %v2807
  %2809 = vdwg.mxu0
  %2810 = vmatprep.subr.mxu0 %v2257
  %2811 = vmatpush1.msra.mxu0 %v2256
  %2812 = vmatprep.subr.mxu0 %v2240
  %2813 = vmatpush1.msra.mxu0 %v2239
  %2814 = vmatprep.subr.mxu0 %v2223
  %2815 = vmatpush1.msra.mxu0 %v2222
  %2816 = vmatprep.subr.mxu0 %v2206
  %2817 = vmatpush1.msra.mxu0 %v2205
  %2818 = vmatprep.subr.mxu0 %v2189
  %2819 = vmatpush1.msra.mxu0 %v2188
  %2820 = vmatprep.subr.mxu0 %v2172
  %2821 = vmatpush1.msra.mxu0 %v2171
  %2822 = vmatprep.subr.mxu0 %v2155
  %2823 = vmatpush1.msra.mxu0 %v2154
  %2824 = vmatprep.subr.mxu0 %v2138
  %2825 = vmatpush1.msra.mxu0 %v2137
  %2826 = vmatprep.subr.mxu0 %v2121
  %2827 = vmatpush1.msra.mxu0 %v2120
  %2828 = vmatprep.subr.mxu0 %v2104
  %2829 = vmatpush1.msra.mxu0 %v2103
  %2830 = vmatprep.subr.mxu0 %v2087
  %2831 = vmatpush1.msra.mxu0 %v2086
  %2832 = vmatprep.subr.mxu0 %v2070
  %2833 = vmatpush1.msra.mxu0 %v2069
  %2834 = vmatprep.subr.mxu0 %v2053
  %2835 = vmatpush1.msra.mxu0 %v2052
  %2836 = vmatprep.subr.mxu0 %v2036
  %2837 = vmatpush1.msra.mxu0 %v2035
  %2838 = vmatprep.subr.mxu0 %v2019
  %2839 = vmatpush1.msra.mxu0 %v2018
  %2840 = vmatprep.subr.mxu0 %v2002
  %2841 = vmatpush1.msra.mxu0 %v2001
  %2842 = vmatprep.subr.mxu0 %v2529
  %2843 = vmatpush2.msra.mxu0 %v2528
  %2844 = vmatprep.subr.mxu0 %v2512
  %2845 = vmatpush2.msra.mxu0 %v2511
  %2846 = vmatprep.subr.mxu0 %v2495
  %2847 = vmatpush2.msra.mxu0 %v2494
  %2848 = vmatprep.subr.mxu0 %v2478
  %2849 = vmatpush2.msra.mxu0 %v2477
  %2850 = vmatprep.subr.mxu0 %v2461
  %2851 = vmatpush2.msra.mxu0 %v2460
  %2852 = vmatprep.subr.mxu0 %v2444
  %2853 = vmatpush2.msra.mxu0 %v2443
  %2854 = vmatprep.subr.mxu0 %v2427
  %2855 = vmatpush2.msra.mxu0 %v2426
  %2856 = vmatprep.subr.mxu0 %v2410
  %2857 = vmatpush2.msra.mxu0 %v2409
  %2858 = vmatprep.subr.mxu0 %v2393
  %2859 = vmatpush2.msra.mxu0 %v2392
  %2860 = vmatprep.subr.mxu0 %v2376
  %2861 = vmatpush2.msra.mxu0 %v2375
  %2862 = vmatprep.subr.mxu0 %v2359
  %2863 = vmatpush2.msra.mxu0 %v2358
  %2864 = vmatprep.subr.mxu0 %v2342
  %2865 = vmatpush2.msra.mxu0 %v2341
  %2866 = vmatprep.subr.mxu0 %v2325
  %2867 = vmatpush2.msra.mxu0 %v2324
  %2868 = vmatprep.subr.mxu0 %v2308
  %2869 = vmatpush2.msra.mxu0 %v2307
  %2870 = vmatprep.subr.mxu0 %v2291
  %2871 = vmatpush2.msra.mxu0 %v2290
  %2872 = vmatprep.subr.mxu0 %v2274
  %2873 = vmatpush2.msra.mxu0 %v2273
  %2874 = vmatprep.mubr.f32.mxu0 %v1990
  %2875 = vmatmul.mubr.f32.gmra.mxu0 %v1989
  %v2876 = vpop.f32.mrf.mxu0
  %v2877 = vadd.f32 %v2566, %v2876
  %v2878 = vpop.f32.mrf.mxu0
  %v2879 = vadd.f32 %v2570, %v2878
  %2880 = vmatprep.mubr.f32.mxu0 %v1992
  %2881 = vmatmul.mubr.f32.gmra.mxu0 %v1991
  %v2882 = vpop.f32.mrf.mxu0
  %v2883 = vadd.f32 %v2566, %v2882
  %v2884 = vpop.f32.mrf.mxu0
  %v2885 = vadd.f32 %v2570, %v2884
  %2886 = vmatprep.mubr.f32.mxu0 %v1994
  %2887 = vmatmul.mubr.f32.gmra.mxu0 %v1993
  %v2888 = vpop.f32.mrf.mxu0
  %v2889 = vadd.f32 %v2566, %v2888
  %v2890 = vpop.f32.mrf.mxu0
  %v2891 = vadd.f32 %v2570, %v2890
  %2892 = vmatprep.mubr.f32.mxu0 %v1996
  %2893 = vmatmul.mubr.f32.gmra.mxu0 %v1995
  %v2894 = vpop.f32.mrf.mxu0
  %v2895 = vadd.f32 %v2566, %v2894
  %v2896 = vpop.f32.mrf.mxu0
  %v2897 = vadd.f32 %v2570, %v2896
  %2898 = vdwg.mxu0
  %2899 = vmatprep.subr.mxu0 %v2259
  %2900 = vmatpush1.msra.mxu0 %v2258
  %2901 = vmatprep.subr.mxu0 %v2242
  %2902 = vmatpush1.msra.mxu0 %v2241
  %2903 = vmatprep.subr.mxu0 %v2225
  %2904 = vmatpush1.msra.mxu0 %v2224
  %2905 = vmatprep.subr.mxu0 %v2208
  %2906 = vmatpush1.msra.mxu0 %v2207
  %2907 = vmatprep.subr.mxu0 %v2191
  %2908 = vmatpush1.msra.mxu0 %v2190
  %2909 = vmatprep.subr.mxu0 %v2174
  %2910 = vmatpush1.msra.mxu0 %v2173
  %2911 = vmatprep.subr.mxu0 %v2157
  %2912 = vmatpush1.msra.mxu0 %v2156
  %2913 = vmatprep.subr.mxu0 %v2140
  %2914 = vmatpush1.msra.mxu0 %v2139
  %2915 = vmatprep.subr.mxu0 %v2123
  %2916 = vmatpush1.msra.mxu0 %v2122
  %2917 = vmatprep.subr.mxu0 %v2106
  %2918 = vmatpush1.msra.mxu0 %v2105
  %2919 = vmatprep.subr.mxu0 %v2089
  %2920 = vmatpush1.msra.mxu0 %v2088
  %2921 = vmatprep.subr.mxu0 %v2072
  %2922 = vmatpush1.msra.mxu0 %v2071
  %2923 = vmatprep.subr.mxu0 %v2055
  %2924 = vmatpush1.msra.mxu0 %v2054
  %2925 = vmatprep.subr.mxu0 %v2038
  %2926 = vmatpush1.msra.mxu0 %v2037
  %2927 = vmatprep.subr.mxu0 %v2021
  %2928 = vmatpush1.msra.mxu0 %v2020
  %2929 = vmatprep.subr.mxu0 %v2004
  %2930 = vmatpush1.msra.mxu0 %v2003
  %2931 = vmatprep.subr.mxu0 %v2531
  %2932 = vmatpush2.msra.mxu0 %v2530
  %2933 = vmatprep.subr.mxu0 %v2514
  %2934 = vmatpush2.msra.mxu0 %v2513
  %2935 = vmatprep.subr.mxu0 %v2497
  %2936 = vmatpush2.msra.mxu0 %v2496
  %2937 = vmatprep.subr.mxu0 %v2480
  %2938 = vmatpush2.msra.mxu0 %v2479
  %2939 = vmatprep.subr.mxu0 %v2463
  %2940 = vmatpush2.msra.mxu0 %v2462
  %2941 = vmatprep.subr.mxu0 %v2446
  %2942 = vmatpush2.msra.mxu0 %v2445
  %2943 = vmatprep.subr.mxu0 %v2429
  %2944 = vmatpush2.msra.mxu0 %v2428
  %2945 = vmatprep.subr.mxu0 %v2412
  %2946 = vmatpush2.msra.mxu0 %v2411
  %2947 = vmatprep.subr.mxu0 %v2395
  %2948 = vmatpush2.msra.mxu0 %v2394
  %2949 = vmatprep.subr.mxu0 %v2378
  %2950 = vmatpush2.msra.mxu0 %v2377
  %2951 = vmatprep.subr.mxu0 %v2361
  %2952 = vmatpush2.msra.mxu0 %v2360
  %2953 = vmatprep.subr.mxu0 %v2344
  %2954 = vmatpush2.msra.mxu0 %v2343
  %2955 = vmatprep.subr.mxu0 %v2327
  %2956 = vmatpush2.msra.mxu0 %v2326
  %2957 = vmatprep.subr.mxu0 %v2310
  %2958 = vmatpush2.msra.mxu0 %v2309
  %2959 = vmatprep.subr.mxu0 %v2293
  %2960 = vmatpush2.msra.mxu0 %v2292
  %2961 = vmatprep.subr.mxu0 %v2276
  %2962 = vmatpush2.msra.mxu0 %v2275
  %2963 = vmatprep.mubr.f32.mxu0 %v1990
  %2964 = vmatmul.mubr.f32.gmra.mxu0 %v1989
  %v2965 = vpop.f32.mrf.mxu0
  %v2966 = vadd.f32 %v2574, %v2965
  %v2967 = vpop.f32.mrf.mxu0
  %v2968 = vadd.f32 %v2578, %v2967
  %2969 = vmatprep.mubr.f32.mxu0 %v1992
  %2970 = vmatmul.mubr.f32.gmra.mxu0 %v1991
  %v2971 = vpop.f32.mrf.mxu0
  %v2972 = vadd.f32 %v2574, %v2971
  %v2973 = vpop.f32.mrf.mxu0
  %v2974 = vadd.f32 %v2578, %v2973
  %2975 = vmatprep.mubr.f32.mxu0 %v1994
  %2976 = vmatmul.mubr.f32.gmra.mxu0 %v1993
  %v2977 = vpop.f32.mrf.mxu0
  %v2978 = vadd.f32 %v2574, %v2977
  %v2979 = vpop.f32.mrf.mxu0
  %v2980 = vadd.f32 %v2578, %v2979
  %2981 = vmatprep.mubr.f32.mxu0 %v1996
  %2982 = vmatmul.mubr.f32.gmra.mxu0 %v1995
  %v2983 = vpop.f32.mrf.mxu0
  %v2984 = vadd.f32 %v2574, %v2983
  %v2985 = vpop.f32.mrf.mxu0
  %v2986 = vadd.f32 %v2578, %v2985
  %2987 = vdwg.mxu0
  %2988 = vmatprep.subr.mxu0 %v2261
  %2989 = vmatpush1.msra.mxu0 %v2260
  %2990 = vmatprep.subr.mxu0 %v2244
  %2991 = vmatpush1.msra.mxu0 %v2243
  %2992 = vmatprep.subr.mxu0 %v2227
  %2993 = vmatpush1.msra.mxu0 %v2226
  %2994 = vmatprep.subr.mxu0 %v2210
  %2995 = vmatpush1.msra.mxu0 %v2209
  %2996 = vmatprep.subr.mxu0 %v2193
  %2997 = vmatpush1.msra.mxu0 %v2192
  %2998 = vmatprep.subr.mxu0 %v2176
  %2999 = vmatpush1.msra.mxu0 %v2175
  %3000 = vmatprep.subr.mxu0 %v2159
  %3001 = vmatpush1.msra.mxu0 %v2158
  %3002 = vmatprep.subr.mxu0 %v2142
  %3003 = vmatpush1.msra.mxu0 %v2141
  %3004 = vmatprep.subr.mxu0 %v2125
  %3005 = vmatpush1.msra.mxu0 %v2124
  %3006 = vmatprep.subr.mxu0 %v2108
  %3007 = vmatpush1.msra.mxu0 %v2107
  %3008 = vmatprep.subr.mxu0 %v2091
  %3009 = vmatpush1.msra.mxu0 %v2090
  %3010 = vmatprep.subr.mxu0 %v2074
  %3011 = vmatpush1.msra.mxu0 %v2073
  %3012 = vmatprep.subr.mxu0 %v2057
  %3013 = vmatpush1.msra.mxu0 %v2056
  %3014 = vmatprep.subr.mxu0 %v2040
  %3015 = vmatpush1.msra.mxu0 %v2039
  %3016 = vmatprep.subr.mxu0 %v2023
  %3017 = vmatpush1.msra.mxu0 %v2022
  %3018 = vmatprep.subr.mxu0 %v2006
  %3019 = vmatpush1.msra.mxu0 %v2005
  %3020 = vmatprep.subr.mxu0 %v2533
  %3021 = vmatpush2.msra.mxu0 %v2532
  %3022 = vmatprep.subr.mxu0 %v2516
  %3023 = vmatpush2.msra.mxu0 %v2515
  %3024 = vmatprep.subr.mxu0 %v2499
  %3025 = vmatpush2.msra.mxu0 %v2498
  %3026 = vmatprep.subr.mxu0 %v2482
  %3027 = vmatpush2.msra.mxu0 %v2481
  %3028 = vmatprep.subr.mxu0 %v2465
  %3029 = vmatpush2.msra.mxu0 %v2464
  %3030 = vmatprep.subr.mxu0 %v2448
  %3031 = vmatpush2.msra.mxu0 %v2447
  %3032 = vmatprep.subr.mxu0 %v2431
  %3033 = vmatpush2.msra.mxu0 %v2430
  %3034 = vmatprep.subr.mxu0 %v2414
  %3035 = vmatpush2.msra.mxu0 %v2413
  %3036 = vmatprep.subr.mxu0 %v2397
  %3037 = vmatpush2.msra.mxu0 %v2396
  %3038 = vmatprep.subr.mxu0 %v2380
  %3039 = vmatpush2.msra.mxu0 %v2379
  %3040 = vmatprep.subr.mxu0 %v2363
  %3041 = vmatpush2.msra.mxu0 %v2362
  %3042 = vmatprep.subr.mxu0 %v2346
  %3043 = vmatpush2.msra.mxu0 %v2345
  %3044 = vmatprep.subr.mxu0 %v2329
  %3045 = vmatpush2.msra.mxu0 %v2328
  %3046 = vmatprep.subr.mxu0 %v2312
  %3047 = vmatpush2.msra.mxu0 %v2311
  %3048 = vmatprep.subr.mxu0 %v2295
  %3049 = vmatpush2.msra.mxu0 %v2294
  %3050 = vmatprep.subr.mxu0 %v2278
  %3051 = vmatpush2.msra.mxu0 %v2277
  %3052 = vmatprep.mubr.f32.mxu0 %v1990
  %3053 = vmatmul.mubr.f32.gmra.mxu0 %v1989
  %v3054 = vpop.f32.mrf.mxu0
  %v3055 = vadd.f32 %v2582, %v3054
  %v3056 = vpop.f32.mrf.mxu0
  %v3057 = vadd.f32 %v2586, %v3056
  %3058 = vmatprep.mubr.f32.mxu0 %v1992
  %3059 = vmatmul.mubr.f32.gmra.mxu0 %v1991
  %v3060 = vpop.f32.mrf.mxu0
  %v3061 = vadd.f32 %v2582, %v3060
  %v3062 = vpop.f32.mrf.mxu0
  %v3063 = vadd.f32 %v2586, %v3062
  %3064 = vmatprep.mubr.f32.mxu0 %v1994
  %3065 = vmatmul.mubr.f32.gmra.mxu0 %v1993
  %v3066 = vpop.f32.mrf.mxu0
  %v3067 = vadd.f32 %v2582, %v3066
  %v3068 = vpop.f32.mrf.mxu0
  %v3069 = vadd.f32 %v2586, %v3068
  %3070 = vmatprep.mubr.f32.mxu0 %v1996
  %3071 = vmatmul.mubr.f32.gmra.mxu0 %v1995
  %v3072 = vpop.f32.mrf.mxu0
  %v3073 = vadd.f32 %v2582, %v3072
  %v3074 = vpop.f32.mrf.mxu0
  %v3075 = vadd.f32 %v2586, %v3074
  %3076 = vdwg.mxu0
  %3077 = vmatprep.subr.mxu0 %v2263
  %3078 = vmatpush1.msra.mxu0 %v2262
  %3079 = vmatprep.subr.mxu0 %v2246
  %3080 = vmatpush1.msra.mxu0 %v2245
  %3081 = vmatprep.subr.mxu0 %v2229
  %3082 = vmatpush1.msra.mxu0 %v2228
  %3083 = vmatprep.subr.mxu0 %v2212
  %3084 = vmatpush1.msra.mxu0 %v2211
  %3085 = vmatprep.subr.mxu0 %v2195
  %3086 = vmatpush1.msra.mxu0 %v2194
  %3087 = vmatprep.subr.mxu0 %v2178
  %3088 = vmatpush1.msra.mxu0 %v2177
  %3089 = vmatprep.subr.mxu0 %v2161
  %3090 = vmatpush1.msra.mxu0 %v2160
  %3091 = vmatprep.subr.mxu0 %v2144
  %3092 = vmatpush1.msra.mxu0 %v2143
  %3093 = vmatprep.subr.mxu0 %v2127
  %3094 = vmatpush1.msra.mxu0 %v2126
  %3095 = vmatprep.subr.mxu0 %v2110
  %3096 = vmatpush1.msra.mxu0 %v2109
  %3097 = vmatprep.subr.mxu0 %v2093
  %3098 = vmatpush1.msra.mxu0 %v2092
  %3099 = vmatprep.subr.mxu0 %v2076
  %3100 = vmatpush1.msra.mxu0 %v2075
  %3101 = vmatprep.subr.mxu0 %v2059
  %3102 = vmatpush1.msra.mxu0 %v2058
  %3103 = vmatprep.subr.mxu0 %v2042
  %3104 = vmatpush1.msra.mxu0 %v2041
  %3105 = vmatprep.subr.mxu0 %v2025
  %3106 = vmatpush1.msra.mxu0 %v2024
  %3107 = vmatprep.subr.mxu0 %v2008
  %3108 = vmatpush1.msra.mxu0 %v2007
  %3109 = vmatprep.subr.mxu0 %v2535
  %3110 = vmatpush2.msra.mxu0 %v2534
  %3111 = vmatprep.subr.mxu0 %v2518
  %3112 = vmatpush2.msra.mxu0 %v2517
  %3113 = vmatprep.subr.mxu0 %v2501
  %3114 = vmatpush2.msra.mxu0 %v2500
  %3115 = vmatprep.subr.mxu0 %v2484
  %3116 = vmatpush2.msra.mxu0 %v2483
  %3117 = vmatprep.subr.mxu0 %v2467
  %3118 = vmatpush2.msra.mxu0 %v2466
  %3119 = vmatprep.subr.mxu0 %v2450
  %3120 = vmatpush2.msra.mxu0 %v2449
  %3121 = vmatprep.subr.mxu0 %v2433
  %3122 = vmatpush2.msra.mxu0 %v2432
  %3123 = vmatprep.subr.mxu0 %v2416
  %3124 = vmatpush2.msra.mxu0 %v2415
  %3125 = vmatprep.subr.mxu0 %v2399
  %3126 = vmatpush2.msra.mxu0 %v2398
  %3127 = vmatprep.subr.mxu0 %v2382
  %3128 = vmatpush2.msra.mxu0 %v2381
  %3129 = vmatprep.subr.mxu0 %v2365
  %3130 = vmatpush2.msra.mxu0 %v2364
  %3131 = vmatprep.subr.mxu0 %v2348
  %3132 = vmatpush2.msra.mxu0 %v2347
  %3133 = vmatprep.subr.mxu0 %v2331
  %3134 = vmatpush2.msra.mxu0 %v2330
  %3135 = vmatprep.subr.mxu0 %v2314
  %3136 = vmatpush2.msra.mxu0 %v2313
  %3137 = vmatprep.subr.mxu0 %v2297
  %3138 = vmatpush2.msra.mxu0 %v2296
  %3139 = vmatprep.subr.mxu0 %v2280
  %3140 = vmatpush2.msra.mxu0 %v2279
  %3141 = vmatprep.mubr.f32.mxu0 %v1990
  %3142 = vmatmul.mubr.f32.gmra.mxu0 %v1989
  %v3143 = vpop.f32.mrf.mxu0
  %v3144 = vadd.f32 %v2590, %v3143
  %v3145 = vpop.f32.mrf.mxu0
  %v3146 = vadd.f32 %v2594, %v3145
  %3147 = vmatprep.mubr.f32.mxu0 %v1992
  %3148 = vmatmul.mubr.f32.gmra.mxu0 %v1991
  %v3149 = vpop.f32.mrf.mxu0
  %v3150 = vadd.f32 %v2590, %v3149
  %v3151 = vpop.f32.mrf.mxu0
  %v3152 = vadd.f32 %v2594, %v3151
  %3153 = vmatprep.mubr.f32.mxu0 %v1994
  %3154 = vmatmul.mubr.f32.gmra.mxu0 %v1993
  %v3155 = vpop.f32.mrf.mxu0
  %v3156 = vadd.f32 %v2590, %v3155
  %v3157 = vpop.f32.mrf.mxu0
  %v3158 = vadd.f32 %v2594, %v3157
  %3159 = vmatprep.mubr.f32.mxu0 %v1996
  %3160 = vmatmul.mubr.f32.gmra.mxu0 %v1995
  %v3161 = vpop.f32.mrf.mxu0
  %v3162 = vadd.f32 %v2590, %v3161
  %v3163 = vpop.f32.mrf.mxu0
  %v3164 = vadd.f32 %v2594, %v3163
  %3165 = vdwg.mxu0
  %3166 = vmatprep.subr.mxu0 %v2265
  %3167 = vmatpush1.msra.mxu0 %v2264
  %3168 = vmatprep.subr.mxu0 %v2248
  %3169 = vmatpush1.msra.mxu0 %v2247
  %3170 = vmatprep.subr.mxu0 %v2231
  %3171 = vmatpush1.msra.mxu0 %v2230
  %3172 = vmatprep.subr.mxu0 %v2214
  %3173 = vmatpush1.msra.mxu0 %v2213
  %3174 = vmatprep.subr.mxu0 %v2197
  %3175 = vmatpush1.msra.mxu0 %v2196
  %3176 = vmatprep.subr.mxu0 %v2180
  %3177 = vmatpush1.msra.mxu0 %v2179
  %3178 = vmatprep.subr.mxu0 %v2163
  %3179 = vmatpush1.msra.mxu0 %v2162
  %3180 = vmatprep.subr.mxu0 %v2146
  %3181 = vmatpush1.msra.mxu0 %v2145
  %3182 = vmatprep.subr.mxu0 %v2129
  %3183 = vmatpush1.msra.mxu0 %v2128
  %3184 = vmatprep.subr.mxu0 %v2112
  %3185 = vmatpush1.msra.mxu0 %v2111
  %3186 = vmatprep.subr.mxu0 %v2095
  %3187 = vmatpush1.msra.mxu0 %v2094
  %3188 = vmatprep.subr.mxu0 %v2078
  %3189 = vmatpush1.msra.mxu0 %v2077
  %3190 = vmatprep.subr.mxu0 %v2061
  %3191 = vmatpush1.msra.mxu0 %v2060
  %3192 = vmatprep.subr.mxu0 %v2044
  %3193 = vmatpush1.msra.mxu0 %v2043
  %3194 = vmatprep.subr.mxu0 %v2027
  %3195 = vmatpush1.msra.mxu0 %v2026
  %3196 = vmatprep.subr.mxu0 %v2010
  %3197 = vmatpush1.msra.mxu0 %v2009
  %3198 = vmatprep.subr.mxu0 %v2537
  %3199 = vmatpush2.msra.mxu0 %v2536
  %3200 = vmatprep.subr.mxu0 %v2520
  %3201 = vmatpush2.msra.mxu0 %v2519
  %3202 = vmatprep.subr.mxu0 %v2503
  %3203 = vmatpush2.msra.mxu0 %v2502
  %3204 = vmatprep.subr.mxu0 %v2486
  %3205 = vmatpush2.msra.mxu0 %v2485
  %3206 = vmatprep.subr.mxu0 %v2469
  %3207 = vmatpush2.msra.mxu0 %v2468
  %3208 = vmatprep.subr.mxu0 %v2452
  %3209 = vmatpush2.msra.mxu0 %v2451
  %3210 = vmatprep.subr.mxu0 %v2435
  %3211 = vmatpush2.msra.mxu0 %v2434
  %3212 = vmatprep.subr.mxu0 %v2418
  %3213 = vmatpush2.msra.mxu0 %v2417
  %3214 = vmatprep.subr.mxu0 %v2401
  %3215 = vmatpush2.msra.mxu0 %v2400
  %3216 = vmatprep.subr.mxu0 %v2384
  %3217 = vmatpush2.msra.mxu0 %v2383
  %3218 = vmatprep.subr.mxu0 %v2367
  %3219 = vmatpush2.msra.mxu0 %v2366
  %3220 = vmatprep.subr.mxu0 %v2350
  %3221 = vmatpush2.msra.mxu0 %v2349
  %3222 = vmatprep.subr.mxu0 %v2333
  %3223 = vmatpush2.msra.mxu0 %v2332
  %3224 = vmatprep.subr.mxu0 %v2316
  %3225 = vmatpush2.msra.mxu0 %v2315
  %3226 = vmatprep.subr.mxu0 %v2299
  %3227 = vmatpush2.msra.mxu0 %v2298
  %3228 = vmatprep.subr.mxu0 %v2282
  %3229 = vmatpush2.msra.mxu0 %v2281
  %3230 = vmatprep.mubr.f32.mxu0 %v1990
  %3231 = vmatmul.mubr.f32.gmra.mxu0 %v1989
  %v3232 = vpop.f32.mrf.mxu0
  %v3233 = vadd.f32 %v2598, %v3232
  %v3234 = vpop.f32.mrf.mxu0
  %v3235 = vadd.f32 %v2602, %v3234
  %3236 = vmatprep.mubr.f32.mxu0 %v1992
  %3237 = vmatmul.mubr.f32.gmra.mxu0 %v1991
  %v3238 = vpop.f32.mrf.mxu0
  %v3239 = vadd.f32 %v2598, %v3238
  %v3240 = vpop.f32.mrf.mxu0
  %v3241 = vadd.f32 %v2602, %v3240
  %3242 = vmatprep.mubr.f32.mxu0 %v1994
  %3243 = vmatmul.mubr.f32.gmra.mxu0 %v1993
  %v3244 = vpop.f32.mrf.mxu0
  %v3245 = vadd.f32 %v2598, %v3244
  %v3246 = vpop.f32.mrf.mxu0
  %v3247 = vadd.f32 %v2602, %v3246
  %3248 = vmatprep.mubr.f32.mxu0 %v1996
  %3249 = vmatmul.mubr.f32.gmra.mxu0 %v1995
  %v3250 = vpop.f32.mrf.mxu0
  %v3251 = vadd.f32 %v2598, %v3250
  %v3252 = vpop.f32.mrf.mxu0
  %v3253 = vadd.f32 %v2602, %v3252
  %3254 = vdwg.mxu0
  %3255 = vmatprep.subr.mxu0 %v2267
  %3256 = vmatpush1.msra.mxu0 %v2266
  %3257 = vmatprep.subr.mxu0 %v2250
  %3258 = vmatpush1.msra.mxu0 %v2249
  %3259 = vmatprep.subr.mxu0 %v2233
  %3260 = vmatpush1.msra.mxu0 %v2232
  %3261 = vmatprep.subr.mxu0 %v2216
  %3262 = vmatpush1.msra.mxu0 %v2215
  %3263 = vmatprep.subr.mxu0 %v2199
  %3264 = vmatpush1.msra.mxu0 %v2198
  %3265 = vmatprep.subr.mxu0 %v2182
  %3266 = vmatpush1.msra.mxu0 %v2181
  %3267 = vmatprep.subr.mxu0 %v2165
  %3268 = vmatpush1.msra.mxu0 %v2164
  %3269 = vmatprep.subr.mxu0 %v2148
  %3270 = vmatpush1.msra.mxu0 %v2147
  %3271 = vmatprep.subr.mxu0 %v2131
  %3272 = vmatpush1.msra.mxu0 %v2130
  %3273 = vmatprep.subr.mxu0 %v2114
  %3274 = vmatpush1.msra.mxu0 %v2113
  %3275 = vmatprep.subr.mxu0 %v2097
  %3276 = vmatpush1.msra.mxu0 %v2096
  %3277 = vmatprep.subr.mxu0 %v2080
  %3278 = vmatpush1.msra.mxu0 %v2079
  %3279 = vmatprep.subr.mxu0 %v2063
  %3280 = vmatpush1.msra.mxu0 %v2062
  %3281 = vmatprep.subr.mxu0 %v2046
  %3282 = vmatpush1.msra.mxu0 %v2045
  %3283 = vmatprep.subr.mxu0 %v2029
  %3284 = vmatpush1.msra.mxu0 %v2028
  %3285 = vmatprep.subr.mxu0 %v2012
  %3286 = vmatpush1.msra.mxu0 %v2011
  %3287 = vmatprep.subr.mxu0 %v2539
  %3288 = vmatpush2.msra.mxu0 %v2538
  %3289 = vmatprep.subr.mxu0 %v2522
  %3290 = vmatpush2.msra.mxu0 %v2521
  %3291 = vmatprep.subr.mxu0 %v2505
  %3292 = vmatpush2.msra.mxu0 %v2504
  %3293 = vmatprep.subr.mxu0 %v2488
  %3294 = vmatpush2.msra.mxu0 %v2487
  %3295 = vmatprep.subr.mxu0 %v2471
  %3296 = vmatpush2.msra.mxu0 %v2470
  %3297 = vmatprep.subr.mxu0 %v2454
  %3298 = vmatpush2.msra.mxu0 %v2453
  %3299 = vmatprep.subr.mxu0 %v2437
  %3300 = vmatpush2.msra.mxu0 %v2436
  %3301 = vmatprep.subr.mxu0 %v2420
  %3302 = vmatpush2.msra.mxu0 %v2419
  %3303 = vmatprep.subr.mxu0 %v2403
  %3304 = vmatpush2.msra.mxu0 %v2402
  %3305 = vmatprep.subr.mxu0 %v2386
  %3306 = vmatpush2.msra.mxu0 %v2385
  %3307 = vmatprep.subr.mxu0 %v2369
  %3308 = vmatpush2.msra.mxu0 %v2368
  %3309 = vmatprep.subr.mxu0 %v2352
  %3310 = vmatpush2.msra.mxu0 %v2351
  %3311 = vmatprep.subr.mxu0 %v2335
  %3312 = vmatpush2.msra.mxu0 %v2334
  %3313 = vmatprep.subr.mxu0 %v2318
  %3314 = vmatpush2.msra.mxu0 %v2317
  %3315 = vmatprep.subr.mxu0 %v2301
  %3316 = vmatpush2.msra.mxu0 %v2300
  %3317 = vmatprep.subr.mxu0 %v2284
  %3318 = vmatpush2.msra.mxu0 %v2283
  %3319 = vmatprep.mubr.f32.mxu0 %v1990
  %3320 = vmatmul.mubr.f32.gmra.mxu0 %v1989
  %v3321 = vpop.f32.mrf.mxu0
  %v3322 = vadd.f32 %v2606, %v3321
  %v3323 = vpop.f32.mrf.mxu0
  %v3324 = vadd.f32 %v2610, %v3323
  %3325 = vmatprep.mubr.f32.mxu0 %v1992
  %3326 = vmatmul.mubr.f32.gmra.mxu0 %v1991
  %v3327 = vpop.f32.mrf.mxu0
  %v3328 = vadd.f32 %v2606, %v3327
  %v3329 = vpop.f32.mrf.mxu0
  %v3330 = vadd.f32 %v2610, %v3329
  %3331 = vmatprep.mubr.f32.mxu0 %v1994
  %3332 = vmatmul.mubr.f32.gmra.mxu0 %v1993
  %v3333 = vpop.f32.mrf.mxu0
  %v3334 = vadd.f32 %v2606, %v3333
  %v3335 = vpop.f32.mrf.mxu0
  %v3336 = vadd.f32 %v2610, %v3335
  %3337 = vmatprep.mubr.f32.mxu0 %v1996
  %3338 = vmatmul.mubr.f32.gmra.mxu0 %v1995
  %v3339 = vpop.f32.mrf.mxu0
  %v3340 = vadd.f32 %v2606, %v3339
  %v3341 = vpop.f32.mrf.mxu0
  %v3342 = vadd.f32 %v2610, %v3341
  %3343 = vdwg.mxu0
  %3344 = vmatprep.subr.mxu0 0.0
  %3345 = vmatpush1.msra.mxu0 %v2268
  %3346 = vmatprep.subr.mxu0 0.0
  %3347 = vmatpush1.msra.mxu0 %v2251
  %3348 = vmatprep.subr.mxu0 0.0
  %3349 = vmatpush1.msra.mxu0 %v2234
  %3350 = vmatprep.subr.mxu0 0.0
  %3351 = vmatpush1.msra.mxu0 %v2217
  %3352 = vmatprep.subr.mxu0 0.0
  %3353 = vmatpush1.msra.mxu0 %v2200
  %3354 = vmatprep.subr.mxu0 0.0
  %3355 = vmatpush1.msra.mxu0 %v2183
  %3356 = vmatprep.subr.mxu0 0.0
  %3357 = vmatpush1.msra.mxu0 %v2166
  %3358 = vmatprep.subr.mxu0 0.0
  %3359 = vmatpush1.msra.mxu0 %v2149
  %3360 = vmatprep.subr.mxu0 0.0
  %3361 = vmatpush1.msra.mxu0 %v2132
  %3362 = vmatprep.subr.mxu0 0.0
  %3363 = vmatpush1.msra.mxu0 %v2115
  %3364 = vmatprep.subr.mxu0 0.0
  %3365 = vmatpush1.msra.mxu0 %v2098
  %3366 = vmatprep.subr.mxu0 0.0
  %3367 = vmatpush1.msra.mxu0 %v2081
  %3368 = vmatprep.subr.mxu0 0.0
  %3369 = vmatpush1.msra.mxu0 %v2064
  %3370 = vmatprep.subr.mxu0 0.0
  %3371 = vmatpush1.msra.mxu0 %v2047
  %3372 = vmatprep.subr.mxu0 0.0
  %3373 = vmatpush1.msra.mxu0 %v2030
  %3374 = vmatprep.subr.mxu0 0.0
  %3375 = vmatpush1.msra.mxu0 %v2013
  %3376 = vmatprep.subr.mxu0 0.0
  %3377 = vmatpush2.msra.mxu0 %v2540
  %3378 = vmatprep.subr.mxu0 0.0
  %3379 = vmatpush2.msra.mxu0 %v2523
  %3380 = vmatprep.subr.mxu0 0.0
  %3381 = vmatpush2.msra.mxu0 %v2506
  %3382 = vmatprep.subr.mxu0 0.0
  %3383 = vmatpush2.msra.mxu0 %v2489
  %3384 = vmatprep.subr.mxu0 0.0
  %3385 = vmatpush2.msra.mxu0 %v2472
  %3386 = vmatprep.subr.mxu0 0.0
  %3387 = vmatpush2.msra.mxu0 %v2455
  %3388 = vmatprep.subr.mxu0 0.0
  %3389 = vmatpush2.msra.mxu0 %v2438
  %3390 = vmatprep.subr.mxu0 0.0
  %3391 = vmatpush2.msra.mxu0 %v2421
  %3392 = vmatprep.subr.mxu0 0.0
  %3393 = vmatpush2.msra.mxu0 %v2404
  %3394 = vmatprep.subr.mxu0 0.0
  %3395 = vmatpush2.msra.mxu0 %v2387
  %3396 = vmatprep.subr.mxu0 0.0
  %3397 = vmatpush2.msra.mxu0 %v2370
  %3398 = vmatprep.subr.mxu0 0.0
  %3399 = vmatpush2.msra.mxu0 %v2353
  %3400 = vmatprep.subr.mxu0 0.0
  %3401 = vmatpush2.msra.mxu0 %v2336
  %3402 = vmatprep.subr.mxu0 0.0
  %3403 = vmatpush2.msra.mxu0 %v2319
  %3404 = vmatprep.subr.mxu0 0.0
  %3405 = vmatpush2.msra.mxu0 %v2302
  %3406 = vmatprep.subr.mxu0 0.0
  %3407 = vmatpush2.msra.mxu0 %v2285
  %3408 = vmatprep.mubr.f32.mxu0 %v1990
  %3409 = vmatmul.mubr.f32.gmra.mxu0 %v1989
  %v3410 = vpop.f32.mrf.mxu0
  %v3411 = vadd.f32 %v2614, %v3410
  %v3412 = vpop.f32.mrf.mxu0
  %3413 = vmatprep.mubr.f32.mxu0 %v1992
  %3414 = vmatmul.mubr.f32.gmra.mxu0 %v1991
  %v3415 = vpop.f32.mrf.mxu0
  %v3416 = vadd.f32 %v2614, %v3415
  %v3417 = vpop.f32.mrf.mxu0
  %3418 = vmatprep.mubr.f32.mxu0 %v1994
  %3419 = vmatmul.mubr.f32.gmra.mxu0 %v1993
  %v3420 = vpop.f32.mrf.mxu0
  %v3421 = vadd.f32 %v2614, %v3420
  %v3422 = vpop.f32.mrf.mxu0
  %3423 = vmatprep.mubr.f32.mxu0 %v1996
  %3424 = vmatmul.mubr.f32.gmra.mxu0 %v1995
  %v3425 = vpop.f32.mrf.mxu0
  %v3426 = vadd.f32 %v2614, %v3425
  %v3427 = vpop.f32.mrf.mxu0
  %3428 = vdwg.mxu0
  %v3429 = vxor.u32 %v2699, 2147483648
  %v3430 = vxor.u32 %v2701, 2147483648
  %v3431 = vxor.u32 %v2788, 2147483648
  %v3432 = vxor.u32 %v2790, 2147483648
  %v3433 = vxor.u32 %v2877, 2147483648
  %v3434 = vxor.u32 %v2879, 2147483648
  %v3435 = vxor.u32 %v2966, 2147483648
  %v3436 = vxor.u32 %v2968, 2147483648
  %v3437 = vxor.u32 %v3055, 2147483648
  %v3438 = vxor.u32 %v3057, 2147483648
  %v3439 = vxor.u32 %v3144, 2147483648
  %v3440 = vxor.u32 %v3146, 2147483648
  %v3441 = vxor.u32 %v3233, 2147483648
  %v3442 = vxor.u32 %v3235, 2147483648
  %v3443 = vxor.u32 %v3322, 2147483648
  %v3444 = vxor.u32 %v3324, 2147483648
  %v3445 = vxor.u32 %v3411, 2147483648
  %v3446 = vxor.u32 %v2705, 2147483648
  %v3447 = vxor.u32 %v2707, 2147483648
  %v3448 = vxor.u32 %v2794, 2147483648
  %v3449 = vxor.u32 %v2796, 2147483648
  %v3450 = vxor.u32 %v2883, 2147483648
  %v3451 = vxor.u32 %v2885, 2147483648
  %v3452 = vxor.u32 %v2972, 2147483648
  %v3453 = vxor.u32 %v2974, 2147483648
  %v3454 = vxor.u32 %v3061, 2147483648
  %v3455 = vxor.u32 %v3063, 2147483648
  %v3456 = vxor.u32 %v3150, 2147483648
  %v3457 = vxor.u32 %v3152, 2147483648
  %v3458 = vxor.u32 %v3239, 2147483648
  %v3459 = vxor.u32 %v3241, 2147483648
  %v3460 = vxor.u32 %v3328, 2147483648
  %v3461 = vxor.u32 %v3330, 2147483648
  %v3462 = vxor.u32 %v3416, 2147483648
  %v3463 = vxor.u32 %v2711, 2147483648
  %v3464 = vxor.u32 %v2713, 2147483648
  %v3465 = vxor.u32 %v2800, 2147483648
  %v3466 = vxor.u32 %v2802, 2147483648
  %v3467 = vxor.u32 %v2889, 2147483648
  %v3468 = vxor.u32 %v2891, 2147483648
  %v3469 = vxor.u32 %v2978, 2147483648
  %v3470 = vxor.u32 %v2980, 2147483648
  %v3471 = vxor.u32 %v3067, 2147483648
  %v3472 = vxor.u32 %v3069, 2147483648
  %v3473 = vxor.u32 %v3156, 2147483648
  %v3474 = vxor.u32 %v3158, 2147483648
  %v3475 = vxor.u32 %v3245, 2147483648
  %v3476 = vxor.u32 %v3247, 2147483648
  %v3477 = vxor.u32 %v3334, 2147483648
  %v3478 = vxor.u32 %v3336, 2147483648
  %v3479 = vxor.u32 %v3421, 2147483648
  %v3480 = vxor.u32 %v2717, 2147483648
  %v3481 = vxor.u32 %v2719, 2147483648
  %v3482 = vxor.u32 %v2806, 2147483648
  %v3483 = vxor.u32 %v2808, 2147483648
  %v3484 = vxor.u32 %v2895, 2147483648
  %v3485 = vxor.u32 %v2897, 2147483648
  %v3486 = vxor.u32 %v2984, 2147483648
  %v3487 = vxor.u32 %v2986, 2147483648
  %v3488 = vxor.u32 %v3073, 2147483648
  %v3489 = vxor.u32 %v3075, 2147483648
  %v3490 = vxor.u32 %v3162, 2147483648
  %v3491 = vxor.u32 %v3164, 2147483648
  %v3492 = vxor.u32 %v3251, 2147483648
  %v3493 = vxor.u32 %v3253, 2147483648
  %v3494 = vxor.u32 %v3340, 2147483648
  %v3495 = vxor.u32 %v3342, 2147483648
  %v3496 = vxor.u32 %v3426, 2147483648
  %v3497 = vmul.f32 %v3429, 1.442695
  %v3498 = vpow.pop %v3497
  %v3499 = vmul.f32 %v3430, 1.442695
  %v3500 = vpow.pop %v3499
  %v3501 = vmul.f32 %v3431, 1.442695
  %v3502 = vpow.pop %v3501
  %v3503 = vmul.f32 %v3432, 1.442695
  %v3504 = vpow.pop %v3503
  %v3505 = vmul.f32 %v3433, 1.442695
  %v3506 = vpow.pop %v3505
  %v3507 = vmul.f32 %v3434, 1.442695
  %v3508 = vpow.pop %v3507
  %v3509 = vmul.f32 %v3435, 1.442695
  %v3510 = vpow.pop %v3509
  %v3511 = vmul.f32 %v3436, 1.442695
  %v3512 = vpow.pop %v3511
  %v3513 = vmul.f32 %v3437, 1.442695
  %v3514 = vpow.pop %v3513
  %v3515 = vmul.f32 %v3438, 1.442695
  %v3516 = vpow.pop %v3515
  %v3517 = vmul.f32 %v3439, 1.442695
  %v3518 = vpow.pop %v3517
  %v3519 = vmul.f32 %v3440, 1.442695
  %v3520 = vpow.pop %v3519
  %v3521 = vmul.f32 %v3441, 1.442695
  %v3522 = vpow.pop %v3521
  %v3523 = vmul.f32 %v3442, 1.442695
  %v3524 = vpow.pop %v3523
  %v3525 = vmul.f32 %v3443, 1.442695
  %v3526 = vpow.pop %v3525
  %v3527 = vmul.f32 %v3444, 1.442695
  %v3528 = vpow.pop %v3527
  %v3529 = vmul.f32 %v3445, 1.442695
  %v3530 = vpow.pop %v3529
  %v3531 = vmul.f32 %v3446, 1.442695
  %v3532 = vpow.pop %v3531
  %v3533 = vmul.f32 %v3447, 1.442695
  %v3534 = vpow.pop %v3533
  %v3535 = vmul.f32 %v3448, 1.442695
  %v3536 = vpow.pop %v3535
  %v3537 = vmul.f32 %v3449, 1.442695
  %v3538 = vpow.pop %v3537
  %v3539 = vmul.f32 %v3450, 1.442695
  %v3540 = vpow.pop %v3539
  %v3541 = vmul.f32 %v3451, 1.442695
  %v3542 = vpow.pop %v3541
  %v3543 = vmul.f32 %v3452, 1.442695
  %v3544 = vpow.pop %v3543
  %v3545 = vmul.f32 %v3453, 1.442695
  %v3546 = vpow.pop %v3545
  %v3547 = vmul.f32 %v3454, 1.442695
  %v3548 = vpow.pop %v3547
  %v3549 = vmul.f32 %v3455, 1.442695
  %v3550 = vpow.pop %v3549
  %v3551 = vmul.f32 %v3456, 1.442695
  %v3552 = vpow.pop %v3551
  %v3553 = vmul.f32 %v3457, 1.442695
  %v3554 = vpow.pop %v3553
  %v3555 = vmul.f32 %v3458, 1.442695
  %v3556 = vpow.pop %v3555
  %v3557 = vmul.f32 %v3459, 1.442695
  %v3558 = vpow.pop %v3557
  %v3559 = vmul.f32 %v3460, 1.442695
  %v3560 = vpow.pop %v3559
  %v3561 = vmul.f32 %v3461, 1.442695
  %v3562 = vpow.pop %v3561
  %v3563 = vmul.f32 %v3462, 1.442695
  %v3564 = vpow.pop %v3563
  %v3565 = vmul.f32 %v3463, 1.442695
  %v3566 = vpow.pop %v3565
  %v3567 = vmul.f32 %v3464, 1.442695
  %v3568 = vpow.pop %v3567
  %v3569 = vmul.f32 %v3465, 1.442695
  %v3570 = vpow.pop %v3569
  %v3571 = vmul.f32 %v3466, 1.442695
  %v3572 = vpow.pop %v3571
  %v3573 = vmul.f32 %v3467, 1.442695
  %v3574 = vpow.pop %v3573
  %v3575 = vmul.f32 %v3468, 1.442695
  %v3576 = vpow.pop %v3575
  %v3577 = vmul.f32 %v3469, 1.442695
  %v3578 = vpow.pop %v3577
  %v3579 = vmul.f32 %v3470, 1.442695
  %v3580 = vpow.pop %v3579
  %v3581 = vmul.f32 %v3471, 1.442695
  %v3582 = vpow.pop %v3581
  %v3583 = vmul.f32 %v3472, 1.442695
  %v3584 = vpow.pop %v3583
  %v3585 = vmul.f32 %v3473, 1.442695
  %v3586 = vpow.pop %v3585
  %v3587 = vmul.f32 %v3474, 1.442695
  %v3588 = vpow.pop %v3587
  %v3589 = vmul.f32 %v3475, 1.442695
  %v3590 = vpow.pop %v3589
  %v3591 = vmul.f32 %v3476, 1.442695
  %v3592 = vpow.pop %v3591
  %v3593 = vmul.f32 %v3477, 1.442695
  %v3594 = vpow.pop %v3593
  %v3595 = vmul.f32 %v3478, 1.442695
  %v3596 = vpow.pop %v3595
  %v3597 = vmul.f32 %v3479, 1.442695
  %v3598 = vpow.pop %v3597
  %v3599 = vmul.f32 %v3480, 1.442695
  %v3600 = vpow.pop %v3599
  %v3601 = vmul.f32 %v3481, 1.442695
  %v3602 = vpow.pop %v3601
  %v3603 = vmul.f32 %v3482, 1.442695
  %v3604 = vpow.pop %v3603
  %v3605 = vmul.f32 %v3483, 1.442695
  %v3606 = vpow.pop %v3605
  %v3607 = vmul.f32 %v3484, 1.442695
  %v3608 = vpow.pop %v3607
  %v3609 = vmul.f32 %v3485, 1.442695
  %v3610 = vpow.pop %v3609
  %v3611 = vmul.f32 %v3486, 1.442695
  %v3612 = vpow.pop %v3611
  %v3613 = vmul.f32 %v3487, 1.442695
  %v3614 = vpow.pop %v3613
  %v3615 = vmul.f32 %v3488, 1.442695
  %v3616 = vpow.pop %v3615
  %v3617 = vmul.f32 %v3489, 1.442695
  %v3618 = vpow.pop %v3617
  %v3619 = vmul.f32 %v3490, 1.442695
  %v3620 = vpow.pop %v3619
  %v3621 = vmul.f32 %v3491, 1.442695
  %v3622 = vpow.pop %v3621
  %v3623 = vmul.f32 %v3492, 1.442695
  %v3624 = vpow.pop %v3623
  %v3625 = vmul.f32 %v3493, 1.442695
  %v3626 = vpow.pop %v3625
  %v3627 = vmul.f32 %v3494, 1.442695
  %v3628 = vpow.pop %v3627
  %v3629 = vmul.f32 %v3495, 1.442695
  %v3630 = vpow.pop %v3629
  %v3631 = vmul.f32 %v3496, 1.442695
  %v3632 = vpow.pop %v3631
  %v3633 = vadd.f32 %v3498, 1.0
  %v3634 = vadd.f32 %v3500, 1.0
  %v3635 = vadd.f32 %v3502, 1.0
  %v3636 = vadd.f32 %v3504, 1.0
  %v3637 = vadd.f32 %v3506, 1.0
  %v3638 = vadd.f32 %v3508, 1.0
  %v3639 = vadd.f32 %v3510, 1.0
  %v3640 = vadd.f32 %v3512, 1.0
  %v3641 = vadd.f32 %v3514, 1.0
  %v3642 = vadd.f32 %v3516, 1.0
  %v3643 = vadd.f32 %v3518, 1.0
  %v3644 = vadd.f32 %v3520, 1.0
  %v3645 = vadd.f32 %v3522, 1.0
  %v3646 = vadd.f32 %v3524, 1.0
  %v3647 = vadd.f32 %v3526, 1.0
  %v3648 = vadd.f32 %v3528, 1.0
  %v3649 = vadd.f32 %v3530, 1.0
  %v3650 = vadd.f32 %v3532, 1.0
  %v3651 = vadd.f32 %v3534, 1.0
  %v3652 = vadd.f32 %v3536, 1.0
  %v3653 = vadd.f32 %v3538, 1.0
  %v3654 = vadd.f32 %v3540, 1.0
  %v3655 = vadd.f32 %v3542, 1.0
  %v3656 = vadd.f32 %v3544, 1.0
  %v3657 = vadd.f32 %v3546, 1.0
  %v3658 = vadd.f32 %v3548, 1.0
  %v3659 = vadd.f32 %v3550, 1.0
  %v3660 = vadd.f32 %v3552, 1.0
  %v3661 = vadd.f32 %v3554, 1.0
  %v3662 = vadd.f32 %v3556, 1.0
  %v3663 = vadd.f32 %v3558, 1.0
  %v3664 = vadd.f32 %v3560, 1.0
  %v3665 = vadd.f32 %v3562, 1.0
  %v3666 = vadd.f32 %v3564, 1.0
  %v3667 = vadd.f32 %v3566, 1.0
  %v3668 = vadd.f32 %v3568, 1.0
  %v3669 = vadd.f32 %v3570, 1.0
  %v3670 = vadd.f32 %v3572, 1.0
  %v3671 = vadd.f32 %v3574, 1.0
  %v3672 = vadd.f32 %v3576, 1.0
  %v3673 = vadd.f32 %v3578, 1.0
  %v3674 = vadd.f32 %v3580, 1.0
  %v3675 = vadd.f32 %v3582, 1.0
  %v3676 = vadd.f32 %v3584, 1.0
  %v3677 = vadd.f32 %v3586, 1.0
  %v3678 = vadd.f32 %v3588, 1.0
  %v3679 = vadd.f32 %v3590, 1.0
  %v3680 = vadd.f32 %v3592, 1.0
  %v3681 = vadd.f32 %v3594, 1.0
  %v3682 = vadd.f32 %v3596, 1.0
  %v3683 = vadd.f32 %v3598, 1.0
  %v3684 = vadd.f32 %v3600, 1.0
  %v3685 = vadd.f32 %v3602, 1.0
  %v3686 = vadd.f32 %v3604, 1.0
  %v3687 = vadd.f32 %v3606, 1.0
  %v3688 = vadd.f32 %v3608, 1.0
  %v3689 = vadd.f32 %v3610, 1.0
  %v3690 = vadd.f32 %v3612, 1.0
  %v3691 = vadd.f32 %v3614, 1.0
  %v3692 = vadd.f32 %v3616, 1.0
  %v3693 = vadd.f32 %v3618, 1.0
  %v3694 = vadd.f32 %v3620, 1.0
  %v3695 = vadd.f32 %v3622, 1.0
  %v3696 = vadd.f32 %v3624, 1.0
  %v3697 = vadd.f32 %v3626, 1.0
  %v3698 = vadd.f32 %v3628, 1.0
  %v3699 = vadd.f32 %v3630, 1.0
  %v3700 = vadd.f32 %v3632, 1.0
  %v3701 = vrcp.pop %v3633
  %v3702 = vmul.f32 1.0, %v3701
  %v3703 = vrcp.pop %v3634
  %v3704 = vmul.f32 1.0, %v3703
  %v3705 = vrcp.pop %v3635
  %v3706 = vmul.f32 1.0, %v3705
  %v3707 = vrcp.pop %v3636
  %v3708 = vmul.f32 1.0, %v3707
  %v3709 = vrcp.pop %v3637
  %v3710 = vmul.f32 1.0, %v3709
  %v3711 = vrcp.pop %v3638
  %v3712 = vmul.f32 1.0, %v3711
  %v3713 = vrcp.pop %v3639
  %v3714 = vmul.f32 1.0, %v3713
  %v3715 = vrcp.pop %v3640
  %v3716 = vmul.f32 1.0, %v3715
  %v3717 = vrcp.pop %v3641
  %v3718 = vmul.f32 1.0, %v3717
  %v3719 = vrcp.pop %v3642
  %v3720 = vmul.f32 1.0, %v3719
  %v3721 = vrcp.pop %v3643
  %v3722 = vmul.f32 1.0, %v3721
  %v3723 = vrcp.pop %v3644
  %v3724 = vmul.f32 1.0, %v3723
  %v3725 = vrcp.pop %v3645
  %v3726 = vmul.f32 1.0, %v3725
  %v3727 = vrcp.pop %v3646
  %v3728 = vmul.f32 1.0, %v3727
  %v3729 = vrcp.pop %v3647
  %v3730 = vmul.f32 1.0, %v3729
  %v3731 = vrcp.pop %v3648
  %v3732 = vmul.f32 1.0, %v3731
  %v3733 = vrcp.pop %v3649
  %v3734 = vmul.f32 1.0, %v3733
  %v3735 = vrcp.pop %v3650
  %v3736 = vmul.f32 1.0, %v3735
  %v3737 = vrcp.pop %v3651
  %v3738 = vmul.f32 1.0, %v3737
  %v3739 = vrcp.pop %v3652
  %v3740 = vmul.f32 1.0, %v3739
  %v3741 = vrcp.pop %v3653
  %v3742 = vmul.f32 1.0, %v3741
  %v3743 = vrcp.pop %v3654
  %v3744 = vmul.f32 1.0, %v3743
  %v3745 = vrcp.pop %v3655
  %v3746 = vmul.f32 1.0, %v3745
  %v3747 = vrcp.pop %v3656
  %v3748 = vmul.f32 1.0, %v3747
  %v3749 = vrcp.pop %v3657
  %v3750 = vmul.f32 1.0, %v3749
  %v3751 = vrcp.pop %v3658
  %v3752 = vmul.f32 1.0, %v3751
  %v3753 = vrcp.pop %v3659
  %v3754 = vmul.f32 1.0, %v3753
  %v3755 = vrcp.pop %v3660
  %v3756 = vmul.f32 1.0, %v3755
  %v3757 = vrcp.pop %v3661
  %v3758 = vmul.f32 1.0, %v3757
  %v3759 = vrcp.pop %v3662
  %v3760 = vmul.f32 1.0, %v3759
  %v3761 = vrcp.pop %v3663
  %v3762 = vmul.f32 1.0, %v3761
  %v3763 = vrcp.pop %v3664
  %v3764 = vmul.f32 1.0, %v3763
  %v3765 = vrcp.pop %v3665
  %v3766 = vmul.f32 1.0, %v3765
  %v3767 = vrcp.pop %v3666
  %v3768 = vmul.f32 1.0, %v3767
  %v3769 = vrcp.pop %v3667
  %v3770 = vmul.f32 1.0, %v3769
  %v3771 = vrcp.pop %v3668
  %v3772 = vmul.f32 1.0, %v3771
  %v3773 = vrcp.pop %v3669
  %v3774 = vmul.f32 1.0, %v3773
  %v3775 = vrcp.pop %v3670
  %v3776 = vmul.f32 1.0, %v3775
  %v3777 = vrcp.pop %v3671
  %v3778 = vmul.f32 1.0, %v3777
  %v3779 = vrcp.pop %v3672
  %v3780 = vmul.f32 1.0, %v3779
  %v3781 = vrcp.pop %v3673
  %v3782 = vmul.f32 1.0, %v3781
  %v3783 = vrcp.pop %v3674
  %v3784 = vmul.f32 1.0, %v3783
  %v3785 = vrcp.pop %v3675
  %v3786 = vmul.f32 1.0, %v3785
  %v3787 = vrcp.pop %v3676
  %v3788 = vmul.f32 1.0, %v3787
  %v3789 = vrcp.pop %v3677
  %v3790 = vmul.f32 1.0, %v3789
  %v3791 = vrcp.pop %v3678
  %v3792 = vmul.f32 1.0, %v3791
  %v3793 = vrcp.pop %v3679
  %v3794 = vmul.f32 1.0, %v3793
  %v3795 = vrcp.pop %v3680
  %v3796 = vmul.f32 1.0, %v3795
  %v3797 = vrcp.pop %v3681
  %v3798 = vmul.f32 1.0, %v3797
  %v3799 = vrcp.pop %v3682
  %v3800 = vmul.f32 1.0, %v3799
  %v3801 = vrcp.pop %v3683
  %v3802 = vmul.f32 1.0, %v3801
  %v3803 = vrcp.pop %v3684
  %v3804 = vmul.f32 1.0, %v3803
  %v3805 = vrcp.pop %v3685
  %v3806 = vmul.f32 1.0, %v3805
  %v3807 = vrcp.pop %v3686
  %v3808 = vmul.f32 1.0, %v3807
  %v3809 = vrcp.pop %v3687
  %v3810 = vmul.f32 1.0, %v3809
  %v3811 = vrcp.pop %v3688
  %v3812 = vmul.f32 1.0, %v3811
  %v3813 = vrcp.pop %v3689
  %v3814 = vmul.f32 1.0, %v3813
  %v3815 = vrcp.pop %v3690
  %v3816 = vmul.f32 1.0, %v3815
  %v3817 = vrcp.pop %v3691
  %v3818 = vmul.f32 1.0, %v3817
  %v3819 = vrcp.pop %v3692
  %v3820 = vmul.f32 1.0, %v3819
  %v3821 = vrcp.pop %v3693
  %v3822 = vmul.f32 1.0, %v3821
  %v3823 = vrcp.pop %v3694
  %v3824 = vmul.f32 1.0, %v3823
  %v3825 = vrcp.pop %v3695
  %v3826 = vmul.f32 1.0, %v3825
  %v3827 = vrcp.pop %v3696
  %v3828 = vmul.f32 1.0, %v3827
  %v3829 = vrcp.pop %v3697
  %v3830 = vmul.f32 1.0, %v3829
  %v3831 = vrcp.pop %v3698
  %v3832 = vmul.f32 1.0, %v3831
  %v3833 = vrcp.pop %v3699
  %v3834 = vmul.f32 1.0, %v3833
  %v3835 = vrcp.pop %v3700
  %v3836 = vmul.f32 1.0, %v3835
  %v3837 = vmul.f32 %v3702, %v3702
  %v3838 = vmul.f32 %v3704, %v3704
  %v3839 = vmul.f32 %v3706, %v3706
  %v3840 = vmul.f32 %v3708, %v3708
  %v3841 = vmul.f32 %v3710, %v3710
  %v3842 = vmul.f32 %v3712, %v3712
  %v3843 = vmul.f32 %v3714, %v3714
  %v3844 = vmul.f32 %v3716, %v3716
  %v3845 = vmul.f32 %v3718, %v3718
  %v3846 = vmul.f32 %v3720, %v3720
  %v3847 = vmul.f32 %v3722, %v3722
  %v3848 = vmul.f32 %v3724, %v3724
  %v3849 = vmul.f32 %v3726, %v3726
  %v3850 = vmul.f32 %v3728, %v3728
  %v3851 = vmul.f32 %v3730, %v3730
  %v3852 = vmul.f32 %v3732, %v3732
  %v3853 = vmul.f32 %v3734, %v3734
  %v3854 = vmul.f32 %v3736, %v3736
  %v3855 = vmul.f32 %v3738, %v3738
  %v3856 = vmul.f32 %v3740, %v3740
  %v3857 = vmul.f32 %v3742, %v3742
  %v3858 = vmul.f32 %v3744, %v3744
  %v3859 = vmul.f32 %v3746, %v3746
  %v3860 = vmul.f32 %v3748, %v3748
  %v3861 = vmul.f32 %v3750, %v3750
  %v3862 = vmul.f32 %v3752, %v3752
  %v3863 = vmul.f32 %v3754, %v3754
  %v3864 = vmul.f32 %v3756, %v3756
  %v3865 = vmul.f32 %v3758, %v3758
  %v3866 = vmul.f32 %v3760, %v3760
  %v3867 = vmul.f32 %v3762, %v3762
  %v3868 = vmul.f32 %v3764, %v3764
  %v3869 = vmul.f32 %v3766, %v3766
  %v3870 = vmul.f32 %v3768, %v3768
  %v3871 = vmul.f32 %v3770, %v3770
  %v3872 = vmul.f32 %v3772, %v3772
  %v3873 = vmul.f32 %v3774, %v3774
  %v3874 = vmul.f32 %v3776, %v3776
  %v3875 = vmul.f32 %v3778, %v3778
  %v3876 = vmul.f32 %v3780, %v3780
  %v3877 = vmul.f32 %v3782, %v3782
  %v3878 = vmul.f32 %v3784, %v3784
  %v3879 = vmul.f32 %v3786, %v3786
  %v3880 = vmul.f32 %v3788, %v3788
  %v3881 = vmul.f32 %v3790, %v3790
  %v3882 = vmul.f32 %v3792, %v3792
  %v3883 = vmul.f32 %v3794, %v3794
  %v3884 = vmul.f32 %v3796, %v3796
  %v3885 = vmul.f32 %v3798, %v3798
  %v3886 = vmul.f32 %v3800, %v3800
  %v3887 = vmul.f32 %v3802, %v3802
  %v3888 = vmul.f32 %v3804, %v3804
  %v3889 = vmul.f32 %v3806, %v3806
  %v3890 = vmul.f32 %v3808, %v3808
  %v3891 = vmul.f32 %v3810, %v3810
  %v3892 = vmul.f32 %v3812, %v3812
  %v3893 = vmul.f32 %v3814, %v3814
  %v3894 = vmul.f32 %v3816, %v3816
  %v3895 = vmul.f32 %v3818, %v3818
  %v3896 = vmul.f32 %v3820, %v3820
  %v3897 = vmul.f32 %v3822, %v3822
  %v3898 = vmul.f32 %v3824, %v3824
  %v3899 = vmul.f32 %v3826, %v3826
  %v3900 = vmul.f32 %v3828, %v3828
  %v3901 = vmul.f32 %v3830, %v3830
  %v3902 = vmul.f32 %v3832, %v3832
  %v3903 = vmul.f32 %v3834, %v3834
  %v3904 = vmul.f32 %v3836, %v3836
  %v3905 = vlaneseq
  %v3906 = vand.u32 %v3905, 127
  %v3907 = vadd.s32 %v3906, 128
  %v3908 = vadd.s32 %v3906, 256
  %v3909 = vadd.s32 %v3906, 384
  %v3910 = vadd.s32 %v3906, 512
  %v3911 = vadd.s32 %v3906, 640
  %v3912 = vadd.s32 %v3906, 768
  %v3913 = vadd.s32 %v3906, 896
  %v3914 = vadd.s32 %v3906, 1024
  %v3915 = vadd.s32 %v3906, 1152
  %v3916 = vadd.s32 %v3906, 1280
  %v3917 = vadd.s32 %v3906, 1408
  %v3918 = vadd.s32 %v3906, 1536
  %v3919 = vadd.s32 %v3906, 1664
  %v3920 = vadd.s32 %v3906, 1792
  %v3921 = vadd.s32 %v3906, 1920
  %v3922 = vadd.s32 %v3906, 2048
  %vm3923 = vcmp.lt.s32.totalorder %v3906, 65
  %vm3924 = vcmp.lt.s32.totalorder %v3907, 65
  %vm3925 = vcmp.lt.s32.totalorder %v3908, 65
  %vm3926 = vcmp.lt.s32.totalorder %v3909, 65
  %vm3927 = vcmp.lt.s32.totalorder %v3910, 65
  %vm3928 = vcmp.lt.s32.totalorder %v3911, 65
  %vm3929 = vcmp.lt.s32.totalorder %v3912, 65
  %vm3930 = vcmp.lt.s32.totalorder %v3913, 65
  %vm3931 = vcmp.lt.s32.totalorder %v3914, 65
  %vm3932 = vcmp.lt.s32.totalorder %v3915, 65
  %vm3933 = vcmp.lt.s32.totalorder %v3916, 65
  %vm3934 = vcmp.lt.s32.totalorder %v3917, 65
  %vm3935 = vcmp.lt.s32.totalorder %v3918, 65
  %vm3936 = vcmp.lt.s32.totalorder %v3919, 65
  %vm3937 = vcmp.lt.s32.totalorder %v3920, 65
  %vm3938 = vcmp.lt.s32.totalorder %v3921, 65
  %vm3939 = vcmp.lt.s32.totalorder %v3922, 65
  %v3940 = vsel %vm3923, %v3837, 0.0
  %v3941 = vsel %vm3924, %v3838, 0.0
  %v3942 = vsel %vm3925, %v3839, 0.0
  %v3943 = vsel %vm3926, %v3840, 0.0
  %v3944 = vsel %vm3927, %v3841, 0.0
  %v3945 = vsel %vm3928, %v3842, 0.0
  %v3946 = vsel %vm3929, %v3843, 0.0
  %v3947 = vsel %vm3930, %v3844, 0.0
  %v3948 = vsel %vm3931, %v3845, 0.0
  %v3949 = vsel %vm3932, %v3846, 0.0
  %v3950 = vsel %vm3933, %v3847, 0.0
  %v3951 = vsel %vm3934, %v3848, 0.0
  %v3952 = vsel %vm3935, %v3849, 0.0
  %v3953 = vsel %vm3936, %v3850, 0.0
  %v3954 = vsel %vm3937, %v3851, 0.0
  %v3955 = vsel %vm3938, %v3852, 0.0
  %v3956 = vsel %vm3939, %v3853, 0.0
  %v3957 = vsel %vm3923, %v3854, 0.0
  %v3958 = vsel %vm3924, %v3855, 0.0
  %v3959 = vsel %vm3925, %v3856, 0.0
  %v3960 = vsel %vm3926, %v3857, 0.0
  %v3961 = vsel %vm3927, %v3858, 0.0
  %v3962 = vsel %vm3928, %v3859, 0.0
  %v3963 = vsel %vm3929, %v3860, 0.0
  %v3964 = vsel %vm3930, %v3861, 0.0
  %v3965 = vsel %vm3931, %v3862, 0.0
  %v3966 = vsel %vm3932, %v3863, 0.0
  %v3967 = vsel %vm3933, %v3864, 0.0
  %v3968 = vsel %vm3934, %v3865, 0.0
  %v3969 = vsel %vm3935, %v3866, 0.0
  %v3970 = vsel %vm3936, %v3867, 0.0
  %v3971 = vsel %vm3937, %v3868, 0.0
  %v3972 = vsel %vm3938, %v3869, 0.0
  %v3973 = vsel %vm3939, %v3870, 0.0
  %v3974 = vsel %vm3923, %v3871, 0.0
  %v3975 = vsel %vm3924, %v3872, 0.0
  %v3976 = vsel %vm3925, %v3873, 0.0
  %v3977 = vsel %vm3926, %v3874, 0.0
  %v3978 = vsel %vm3927, %v3875, 0.0
  %v3979 = vsel %vm3928, %v3876, 0.0
  %v3980 = vsel %vm3929, %v3877, 0.0
  %v3981 = vsel %vm3930, %v3878, 0.0
  %v3982 = vsel %vm3931, %v3879, 0.0
  %v3983 = vsel %vm3932, %v3880, 0.0
  %v3984 = vsel %vm3933, %v3881, 0.0
  %v3985 = vsel %vm3934, %v3882, 0.0
  %v3986 = vsel %vm3935, %v3883, 0.0
  %v3987 = vsel %vm3936, %v3884, 0.0
  %v3988 = vsel %vm3937, %v3885, 0.0
  %v3989 = vsel %vm3938, %v3886, 0.0
  %v3990 = vsel %vm3939, %v3887, 0.0
  %v3991 = vsel %vm3923, %v3888, 0.0
  %v3992 = vsel %vm3924, %v3889, 0.0
  %v3993 = vsel %vm3925, %v3890, 0.0
  %v3994 = vsel %vm3926, %v3891, 0.0
  %v3995 = vsel %vm3927, %v3892, 0.0
  %v3996 = vsel %vm3928, %v3893, 0.0
  %v3997 = vsel %vm3929, %v3894, 0.0
  %v3998 = vsel %vm3930, %v3895, 0.0
  %v3999 = vsel %vm3931, %v3896, 0.0
  %v4000 = vsel %vm3932, %v3897, 0.0
  %v4001 = vsel %vm3933, %v3898, 0.0
  %v4002 = vsel %vm3934, %v3899, 0.0
  %v4003 = vsel %vm3935, %v3900, 0.0
  %v4004 = vsel %vm3936, %v3901, 0.0
  %v4005 = vsel %vm3937, %v3902, 0.0
  %v4006 = vsel %vm3938, %v3903, 0.0
  %v4007 = vsel %vm3939, %v3904, 0.0
  %4008 = vst [vmem:[%s21] sm:$0xff] %v3940
  %4009 = vst [vmem:[%s21 + $0x8] sm:$0xff] %v3941
  %4010 = vst [vmem:[%s21 + $0x10] sm:$0xff] %v3942
  %4011 = vst [vmem:[%s21 + $0x18] sm:$0xff] %v3943
  %4012 = vst [vmem:[%s21 + $0x20] sm:$0xff] %v3944
  %4013 = vst [vmem:[%s21 + $0x28] sm:$0xff] %v3945
  %4014 = vst [vmem:[%s21 + $0x30] sm:$0xff] %v3946
  %4015 = vst [vmem:[%s21 + $0x38] sm:$0xff] %v3947
  %4016 = vst [vmem:[%s21 + $0x40] sm:$0xff] %v3948
  %4017 = vst [vmem:[%s21 + $0x48] sm:$0xff] %v3949
  %4018 = vst [vmem:[%s21 + $0x50] sm:$0xff] %v3950
  %4019 = vst [vmem:[%s21 + $0x58] sm:$0xff] %v3951
  %4020 = vst [vmem:[%s21 + $0x60] sm:$0xff] %v3952
  %4021 = vst [vmem:[%s21 + $0x68] sm:$0xff] %v3953
  %4022 = vst [vmem:[%s21 + $0x70] sm:$0xff] %v3954
  %4023 = vst [vmem:[%s21 + $0x78] sm:$0xff] %v3955
  %4024 = vst.msk [vmem:[%s21 + $0x80] sm:$0xff] %vm285, %v3956
  %4025 = vst [vmem:[%s21 + $0x88] sm:$0xff] %v3957
  %4026 = vst [vmem:[%s21 + $0x90] sm:$0xff] %v3958
  %4027 = vst [vmem:[%s21 + $0x98] sm:$0xff] %v3959
  %4028 = vst [vmem:[%s21 + $0xa0] sm:$0xff] %v3960
  %4029 = vst [vmem:[%s21 + $0xa8] sm:$0xff] %v3961
  %4030 = vst [vmem:[%s21 + $0xb0] sm:$0xff] %v3962
  %4031 = vst [vmem:[%s21 + $0xb8] sm:$0xff] %v3963
  %4032 = vst [vmem:[%s21 + $0xc0] sm:$0xff] %v3964
  %4033 = vst [vmem:[%s21 + $0xc8] sm:$0xff] %v3965
  %4034 = vst [vmem:[%s21 + $0xd0] sm:$0xff] %v3966
  %4035 = vst [vmem:[%s21 + $0xd8] sm:$0xff] %v3967
  %4036 = vst [vmem:[%s21 + $0xe0] sm:$0xff] %v3968
  %4037 = vst [vmem:[%s21 + $0xe8] sm:$0xff] %v3969
  %4038 = vst [vmem:[%s21 + $0xf0] sm:$0xff] %v3970
  %4039 = vst [vmem:[%s21 + $0xf8] sm:$0xff] %v3971
  %4040 = vst [vmem:[%s21 + $0x100] sm:$0xff] %v3972
  %4041 = vst.msk [vmem:[%s21 + $0x108] sm:$0xff] %vm285, %v3973
  %4042 = vst [vmem:[%s21 + $0x110] sm:$0xff] %v3974
  %4043 = vst [vmem:[%s21 + $0x118] sm:$0xff] %v3975
  %4044 = vst [vmem:[%s21 + $0x120] sm:$0xff] %v3976
  %4045 = vst [vmem:[%s21 + $0x128] sm:$0xff] %v3977
  %4046 = vst [vmem:[%s21 + $0x130] sm:$0xff] %v3978
  %4047 = vst [vmem:[%s21 + $0x138] sm:$0xff] %v3979
  %4048 = vst [vmem:[%s21 + $0x140] sm:$0xff] %v3980
  %4049 = vst [vmem:[%s21 + $0x148] sm:$0xff] %v3981
  %4050 = vst [vmem:[%s21 + $0x150] sm:$0xff] %v3982
  %4051 = vst [vmem:[%s21 + $0x158] sm:$0xff] %v3983
  %4052 = vst [vmem:[%s21 + $0x160] sm:$0xff] %v3984
  %4053 = vst [vmem:[%s21 + $0x168] sm:$0xff] %v3985
  %4054 = vst [vmem:[%s21 + $0x170] sm:$0xff] %v3986
  %4055 = vst [vmem:[%s21 + $0x178] sm:$0xff] %v3987
  %4056 = vst [vmem:[%s21 + $0x180] sm:$0xff] %v3988
  %4057 = vst [vmem:[%s21 + $0x188] sm:$0xff] %v3989
  %4058 = vst.msk [vmem:[%s21 + $0x190] sm:$0xff] %vm285, %v3990
  %4059 = vst [vmem:[%s21 + $0x198] sm:$0xff] %v3991
  %4060 = vst [vmem:[%s21 + $0x1a0] sm:$0xff] %v3992
  %4061 = vst [vmem:[%s21 + $0x1a8] sm:$0xff] %v3993
  %4062 = vst [vmem:[%s21 + $0x1b0] sm:$0xff] %v3994
  %4063 = vst [vmem:[%s21 + $0x1b8] sm:$0xff] %v3995
  %4064 = vst [vmem:[%s21 + $0x1c0] sm:$0xff] %v3996
  %4065 = vst [vmem:[%s21 + $0x1c8] sm:$0xff] %v3997
  %4066 = vst [vmem:[%s21 + $0x1d0] sm:$0xff] %v3998
  %4067 = vst [vmem:[%s21 + $0x1d8] sm:$0xff] %v3999
  %4068 = vst [vmem:[%s21 + $0x1e0] sm:$0xff] %v4000
  %4069 = vst [vmem:[%s21 + $0x1e8] sm:$0xff] %v4001
  %4070 = vst [vmem:[%s21 + $0x1f0] sm:$0xff] %v4002
  %4071 = vst [vmem:[%s21 + $0x1f8] sm:$0xff] %v4003
  %4072 = vst [vmem:[%s21 + $0x200] sm:$0xff] %v4004
  %4073 = vst [vmem:[%s21 + $0x208] sm:$0xff] %v4005
  %4074 = vst [vmem:[%s21 + $0x210] sm:$0xff] %v4006
  %4075 = vst.msk [vmem:[%s21 + $0x218] sm:$0xff] %vm285, %v4007
  // Predicated region
  $region82: #{apply_fn.3} parent=0 // pred_check
    _
  $region83: #{apply_fn.3} parent=0 // pred_check_branch
    %4077 = sbr.rel (0) target = $region85
  $region84: #{apply_fn.3} parent=0 // pred_region
    _
  $region85: #{apply_fn.3} parent=0 // pred_fallthru
    _
  // Predicated region
  $region86: #{apply_fn.3} parent=0 // pred_check
    _
  $region87: #{apply_fn.3} parent=0 // pred_check_branch
    %4079 = sbr.rel (0) target = $region89
  $region88: #{apply_fn.3} parent=0 // pred_region
    _
  $region89: #{apply_fn.3} parent=0 // pred_fallthru
    _
  // Predicated region
  $region90: #{apply_fn.3} parent=0 // pred_check
    _
  $region91: #{apply_fn.3} parent=0 // pred_check_branch
    %4081 = sbr.rel (0) target = $region93
  $region92: #{apply_fn.3} parent=0 // pred_region
    _
  $region93: #{apply_fn.3} parent=0 // pred_fallthru
    _
  // Predicated region
  $region94: #{apply_fn.3} parent=0 // pred_check
    _
  $region95: #{apply_fn.3} parent=0 // pred_check_branch
    %4083 = sbr.rel (0) target = $region97
  $region96: #{apply_fn.3} parent=0 // pred_region
    _
  $region97: #{apply_fn.3} parent=0 // pred_fallthru
    _

</llo_original>
